<compile_context>
chip_gen: v6e
topology: v6e:2x2x1
jax: 0.10.0
libtpu: 0.0.40
codegen_flags: <defaults>
</compile_context>

<pallas_src>
import jax
import jax.numpy as jnp
from jax.experimental import pallas as pl
from jax.experimental.pallas import tpu as pltpu


def _mul_unpool2d_kernel(x_ref, o_ref):
    """x_ref: (4, tR, w) quadrant rows; o_ref: (tR, 4w) row-pair view.

    o_ref[r, 0:2w]  = interleave(x_ref[0, r], x_ref[1, r])   (output row 2i)
    o_ref[r, 2w:4w] = interleave(x_ref[2, r], x_ref[3, r])   (output row 2i+1)
    """
    a00 = x_ref[0]
    a01 = x_ref[1]
    a10 = x_ref[2]
    a11 = x_ref[3]
    t_r, w = a00.shape

    # Lane (W) interleave: (tR, w, 2) -> (tR, 2w).  This is the only data
    # shuffle the op fundamentally requires.  (For bf16/int8 inputs a
    # pack+bitcast could turn this into a pure VPU pack; kept on the generic
    # path so every dtype lowers identically and correctly.)
    even_rows = jnp.stack([a00, a01], axis=-1).reshape(t_r, 2 * w)
    odd_rows = jnp.stack([a10, a11], axis=-1).reshape(t_r, 2 * w)

    # The two output image rows of a pair are adjacent in HBM, so in the
    # (tR, 4w) output view they are simply the low / high halves of each row:
    # static-sliced stores, no sublane interleave, no strided stores.
    o_ref[:, 0:2 * w] = even_rows
    o_ref[:, 2 * w:4 * w] = odd_rows


def _vmem_capacity_bytes():
    try:
        return int(pltpu.get_tpu_info().vmem_capacity_bytes)
    except Exception:
        return 64 << 20  # conservative fallback (v7x per-TensorCore VMEM)


def _choose_row_tile(n_rows, w, itemsize, step_budget_bytes):
    """Rows (of the merged c*h axis) per grid step.

    One step touches 4 input slabs (tR, w) plus one output slab (tR, 4w)
    = 8 * tR * w elements.
    """
    # Sub-32-bit dtypes pack rows along sublanes: align row tiles accordingly.
    pack = 8 * max(1, 4 // max(1, itemsize))   # 8 (f32), 16 (bf16), 32 (int8)
    max_rows = max(1, step_budget_bytes // (8 * w * itemsize))
    if max_rows >= n_rows:
        return n_rows, pack
    return max(pack, (max_rows // pack) * pack), pack


def mul_unpool2d(x, stride=2):
    """Pallas TPU implementation of MulUnPool2d.forward (stride must be 2)."""
    assert stride == 2, "MulUnPool2d only supports stride == 2"
    b, c, h, w = x.shape
    assert b % (stride * stride) == 0
    B = b // (stride * stride)
    H = c * h                                   # merged channel*row axis
    itemsize = jnp.dtype(x.dtype).itemsize

    vmem_cap = _vmem_capacity_bytes()
    step_budget = min(8 << 20, vmem_cap // 8)   # per-step working set
    t_r, pack = _choose_row_tile(H, w, itemsize, step_budget)

    # v7x has two TensorCores; make sure a "parallel" axis has >= 2 steps.
    if B == 1 and pl.cdiv(H, t_r) == 1 and H > pack:
        t_r = max(pack, ((H // 2) // pack) * pack)
    n_row_blocks = pl.cdiv(H, t_r)

    step_bytes = 8 * t_r * w * itemsize
    vmem_limit = int(min(vmem_cap * 3 // 4, max(32 << 20, 4 * step_bytes)))

    # Free reshapes (pure row-major splits/merges, no HBM data movement):
    #   input  (4B, c, h, w) -> (4, B, c*h, w)
    #   output (B, c*h, 4w)  -> (B, c, 2h, 2w)
    x4 = x.reshape(4, B, H, w)

    out = pl.pallas_call(
        _mul_unpool2d_kernel,
        out_shape=jax.ShapeDtypeStruct((B, H, 4 * w), x.dtype),
        grid=(B, n_row_blocks),
        in_specs=[pl.BlockSpec((4, None, t_r, w),
                               lambda n, r: (0, n, r, 0))],
        out_specs=pl.BlockSpec((None, t_r, 4 * w),
                               lambda n, r: (n, r, 0)),
        compiler_params=pltpu.CompilerParams(
            dimension_semantics=("parallel", "parallel"),
            vmem_limit_bytes=vmem_limit),
        cost_estimate=pl.CostEstimate(
            flops=0, transcendentals=0,
            bytes_accessed=int(2 * x.size * itemsize)),
    )(x4)
    return out.reshape(B, c, 2 * h, 2 * w)


def mul_unpool2d_ref(x, stride=2):
    """Pure-jnp reference mirroring the PyTorch view/transpose/reshape chain."""
    b, c, h, w = x.shape
    B = b // (stride * stride)
    y = x.reshape(stride, stride, B, c, h, w)      # (s0, s1, n, c, h, w)
    y = jnp.transpose(y, (2, 3, 4, 0, 5, 1))       # (n, c, h, s0, w, s1)
    return y.reshape(B, c, stride * h, stride * w)


if __name__ == "__main__":
    key = jax.random.PRNGKey(0)
    k0, k1 = jax.random.split(key)

    # stride=2 unpool needs batch % 4 == 0: (8, 4, 16, 16) -> (2, 4, 32, 32)
    x = jax.random.normal(k0, (8, 4, 16, 16), jnp.float32)
    out = jax.block_until_ready(mul_unpool2d(x, stride=2))
    assert out.shape == (2, 4, 32, 32), out.shape
    assert jnp.array_equal(out, mul_unpool2d_ref(x, stride=2)), \
        "Pallas MulUnPool2d mismatch vs reference"

    # Partial-block / forced-split path: B == 1, row count not a multiple of 8.
    x2 = jax.random.normal(k1, (4, 3, 10, 16), jnp.float32)
    out2 = jax.block_until_ready(mul_unpool2d(x2, stride=2))
    assert out2.shape == (1, 3, 20, 32), out2.shape
    assert jnp.array_equal(out2, mul_unpool2d_ref(x2, stride=2)), \
        "Pallas MulUnPool2d mismatch vs reference (partial blocks)"

    print("KERNEL_OK")
</pallas_src>

<mosaic_0001>
module attributes {stable_mosaic.version = 11 : i64} {
  func.func @_mul_unpool2d_kernel(%arg0: i32, %arg1: i32, %arg2: memref<4x1x64x16xf32, #tpu.memory_space<vmem>>, %arg3: memref<1x64x64xf32, #tpu.memory_space<vmem>>) attributes {dimension_semantics = [#tpu.dimension_semantics<parallel>, #tpu.dimension_semantics<parallel>], iteration_bounds = array<i64: 2, 1>, scalar_prefetch = 0 : i64, scratch_operands = 0 : i64, tpu.core_type = #tpu.core_type<tc>, window_params = [{transform_indices = @transform_0, window_bounds = array<i64: 4, 1, 64, 16>}, {transform_indices = @transform_1, window_bounds = array<i64: 1, 64, 64>}]} {
    %c0 = arith.constant 0 : index
    %c0_0 = arith.constant 0 : index
    %c0_1 = arith.constant 0 : index
    %c0_2 = arith.constant 0 : index
    %0 = vector.load %arg2[%c0, %c0_0, %c0_1, %c0_2] : memref<4x1x64x16xf32, #tpu.memory_space<vmem>>, vector<1x1x64x16xf32>
    %1 = vector.shape_cast %0 : vector<1x1x64x16xf32> to vector<64x16xf32>
    %c1 = arith.constant 1 : index
    %c0_3 = arith.constant 0 : index
    %c0_4 = arith.constant 0 : index
    %c0_5 = arith.constant 0 : index
    %2 = vector.load %arg2[%c1, %c0_3, %c0_4, %c0_5] : memref<4x1x64x16xf32, #tpu.memory_space<vmem>>, vector<1x1x64x16xf32>
    %3 = vector.shape_cast %2 : vector<1x1x64x16xf32> to vector<64x16xf32>
    %c2 = arith.constant 2 : index
    %c0_6 = arith.constant 0 : index
    %c0_7 = arith.constant 0 : index
    %c0_8 = arith.constant 0 : index
    %4 = vector.load %arg2[%c2, %c0_6, %c0_7, %c0_8] : memref<4x1x64x16xf32, #tpu.memory_space<vmem>>, vector<1x1x64x16xf32>
    %5 = vector.shape_cast %4 : vector<1x1x64x16xf32> to vector<64x16xf32>
    %c3 = arith.constant 3 : index
    %c0_9 = arith.constant 0 : index
    %c0_10 = arith.constant 0 : index
    %c0_11 = arith.constant 0 : index
    %6 = vector.load %arg2[%c3, %c0_9, %c0_10, %c0_11] : memref<4x1x64x16xf32, #tpu.memory_space<vmem>>, vector<1x1x64x16xf32>
    %7 = vector.shape_cast %6 : vector<1x1x64x16xf32> to vector<64x16xf32>
    %8 = vector.shape_cast %1 : vector<64x16xf32> to vector<64x16x1xf32>
    %9 = vector.shape_cast %3 : vector<64x16xf32> to vector<64x16x1xf32>
    %10 = tpu.concatenate %8, %9 in 2 : vector<64x16x1xf32>, vector<64x16x1xf32> -> vector<64x16x2xf32>
    %11 = vector.shape_cast %10 : vector<64x16x2xf32> to vector<64x32xf32>
    %12 = vector.shape_cast %5 : vector<64x16xf32> to vector<64x16x1xf32>
    %13 = vector.shape_cast %7 : vector<64x16xf32> to vector<64x16x1xf32>
    %14 = tpu.concatenate %12, %13 in 2 : vector<64x16x1xf32>, vector<64x16x1xf32> -> vector<64x16x2xf32>
    %15 = vector.shape_cast %14 : vector<64x16x2xf32> to vector<64x32xf32>
    %c0_12 = arith.constant 0 : index
    %c0_13 = arith.constant 0 : index
    %c0_14 = arith.constant 0 : index
    %16 = vector.load %arg3[%c0_12, %c0_13, %c0_14] : memref<1x64x64xf32, #tpu.memory_space<vmem>>, vector<1x64x32xf32>
    %17 = vector.shape_cast %16 : vector<1x64x32xf32> to vector<64x32xf32>
    %18 = vector.shape_cast %11 : vector<64x32xf32> to vector<1x64x32xf32>
    tpu.vector_store %arg3[%c0_12, %c0_13, %c0_14], %18 {strides = array<i32>} : memref<1x64x64xf32, #tpu.memory_space<vmem>>, vector<1x64x32xf32>,
    %c0_15 = arith.constant 0 : index
    %c0_16 = arith.constant 0 : index
    %c32 = arith.constant 32 : index
    %19 = vector.load %arg3[%c0_15, %c0_16, %c32] : memref<1x64x64xf32, #tpu.memory_space<vmem>>, vector<1x64x32xf32>
    %20 = vector.shape_cast %19 : vector<1x64x32xf32> to vector<64x32xf32>
    %21 = vector.shape_cast %15 : vector<64x32xf32> to vector<1x64x32xf32>
    tpu.vector_store %arg3[%c0_15, %c0_16, %c32], %21 {strides = array<i32>} : memref<1x64x64xf32, #tpu.memory_space<vmem>>, vector<1x64x32xf32>,
    return
  }
  func.func @transform_0(%arg0: i32, %arg1: i32) -> (i32, i32, i32, i32) {
    %c0_i32 = arith.constant 0 : i32
    %c0_i32_0 = arith.constant 0 : i32
    %c0_i32_1 = arith.constant 0 : i32
    return %c0_i32, %arg0, %arg1, %c0_i32_0 : i32, i32, i32, i32
  }
  func.func @transform_1(%arg0: i32, %arg1: i32) -> (i32, i32, i32) {
    %c0_i32 = arith.constant 0 : i32
    %c0_i32_0 = arith.constant 0 : i32
    return %arg0, %arg1, %c0_i32 : i32, i32, i32
  }
}

</mosaic_0001>

<llo_original>
// kernel: tpu_custom_call.1
$region0: #{tpu_custom_call.1}
  #allocation0 [shape = 'u32[]', space=smem, size = 0x4, offset = 0x4, fixed_abs, tag = 'smem constant byte address 0x4 - core index']
  #allocation1 [shape = 'u32[144,128]{1,0:T(1,128)}', space=vmem, size = 0x12000, scoped, tag = 'internal scratch']
  %s0 = inlined_call_operand.vmem [shape: f32[4,2,64,16], index: 0, kind: input, shape index: {}]
  %s1 = inlined_call_operand.hbm [shape: f32[2,64,64], index: 1, kind: output, shape index: {}]
  %s2 = sld [smem:[#allocation0]]
  $region75: #{tpu_custom_call.1} parent=0
    _
  %s4 = ssub.s32 1, %s2
  %s5 = scalar_select 0, %s4, %s2
  $region1: #{tpu_custom_call.1} parent=0
    #allocation2 [shape = 'u8[262144]{0}', space=vmem, size = 0x40000, scoped, tag = 'input window, operand 0']
    #allocation3 [shape = 'u8[65536]{0}', space=vmem, size = 0x10000, scoped, tag = 'output window, operand 0']
    #allocation4 [shape = 's32[2]{0}', space=sflag, size = 0x8, scoped, tag = 'scoped memory for tpu_custom_call.1']
    %6 = vsyncpa [#allocation4], 0
    %s7 = scalar_lea.sflag [#allocation4], 1
    %8 = vsyncpa %s7, 0
    loop: start=0, step=1, limit=4
    $region2: #{tpu_custom_call.1} parent=1 // loop_pre_header
      _
    $region3: #{tpu_custom_call.1} parent=1 // loop_header
      %s10 = sphi 0, %s14
      %p11 = scmp.ge.s32.totalorder %s10, 4
      %s17 = sphi 0, %s29
      %s18 = sphi 0, %s25
      %s19 = sphi 0, %s17
      %s20 = sphi 0, %s18
      %s21 = sphi 0, %s19
      %s22 = sphi 0, %s20
      %s34 = sphi 0, %s36
      %s37 = sphi 0, %s34
      %s38 = sphi 0, %s37
      %s54 = sphi 0, %s38
      %s62 = sphi 0, %s64
      %s65 = sphi 0, %s62
      %s66 = sphi 0, %s65
      %s82 = sphi 0, %s66
    $region4: #{tpu_custom_call.1} parent=1 // loop_header_branch
      %13 = sbr.rel (%p11) target = $region8
    $region5: #{tpu_custom_call.1} parent=1 // loop_body
      %s15 = ssub.s32 %s10, 1
      %s16 = ssub.s32 %s10, 2
      %s23 = sadd.s32 1, %s18
      %p24 = scmp.ge.s32.totalorder %s23, 1
      %s25 = scalar_select %p24, 0, %s23
      %s26 = sadd.s32 1, %s17
      %s27 = scalar_select %p24, %s26, %s17
      %p28 = scmp.ge.s32.totalorder %s27, 2
      %s29 = scalar_select %p28, 0, %s27
      %s30 = ssub.s32 %s17, %s29
      %s31 = ssub.s32 %s18, %s25
      %s32 = sor.u32 %s30, %s31
      %p33 = scmp.eq.s32.totalorder %s32, 0
      %s35 = sadd.s32 %s34, 1
      %s36 = scalar_select %p33, %s34, %s35
      %p39 = pneg %p33
      %p40 = scmp.eq.s32.totalorder %s10, 1
      %p41 = por %p39, %p40
      %p42 = scmp.ne.s32.totalorder %s34, %s37
      %p43 = scmp.eq.s32.totalorder %s10, 0
      %p44 = por %p42, %p43
      %p45 = scmp.ne.s32.totalorder %s34, %s37
      %p46 = scmp.eq.s32.totalorder %s15, 1
      %p47 = por %p45, %p46
      %p48 = scmp.ne.s32.totalorder %s37, %s38
      %p49 = scmp.eq.s32.totalorder %s15, 0
      %p50 = por %p48, %p49
      %p51 = scmp.ne.s32.totalorder %s37, %s38
      %p52 = scmp.eq.s32.totalorder %s16, 1
      %p53 = por %p51, %p52
      %p55 = scmp.ne.s32.totalorder %s38, %s54
      %p56 = scmp.eq.s32.totalorder %s16, 0
      %p57 = por %p55, %p56
      %s58 = ssub.s32 %s17, %s29
      %s59 = ssub.s32 %s18, %s25
      %s60 = sor.u32 %s58, %s59
      %p61 = scmp.eq.s32.totalorder %s60, 0
      %s63 = sadd.s32 %s62, 1
      %s64 = scalar_select %p61, %s62, %s63
      %p67 = pneg %p61
      %p68 = scmp.eq.s32.totalorder %s10, 1
      %p69 = por %p67, %p68
      %p70 = scmp.ne.s32.totalorder %s62, %s65
      %p71 = scmp.eq.s32.totalorder %s10, 0
      %p72 = por %p70, %p71
      %p73 = scmp.ne.s32.totalorder %s62, %s65
      %p74 = scmp.eq.s32.totalorder %s15, 1
      %p75 = por %p73, %p74
      %p76 = scmp.ne.s32.totalorder %s65, %s66
      %p77 = scmp.eq.s32.totalorder %s15, 0
      %p78 = por %p76, %p77
      %p79 = scmp.ne.s32.totalorder %s65, %s66
      %p80 = scmp.eq.s32.totalorder %s16, 1
      %p81 = por %p79, %p80
      %p83 = scmp.ne.s32.totalorder %s66, %s82
      %p84 = scmp.eq.s32.totalorder %s16, 0
      %p85 = por %p83, %p84
      %p86 = scmp.le.s32.totalorder 1, %s10
      %p87 = scmp.lt.s32.totalorder %s10, 3
      %p88 = pnand %p86, %p87
      %p89 = pneg %p88
      // Predicated region
      $region9: #{tpu_custom_call.1} parent=5 // pred_check
        _
      $region10: #{tpu_custom_call.1} parent=5 // pred_check_branch
        %91 = sbr.rel (%p88) target = $region12
      $region11: #{tpu_custom_call.1} parent=5 // pred_region
        %s92 = ssub.s32 %s10, 1
      $region12: #{tpu_custom_call.1} parent=5 // pred_fallthru
        _
      %p93 = scmp.lt.s32.totalorder %s10, 2
      // Predicated region
      $region13: #{tpu_custom_call.1} parent=5 // pred_check
        %p94 = pneg %p93
      $region14: #{tpu_custom_call.1} parent=5 // pred_check_branch
        %96 = sbr.rel (%p94) target = $region16
      $region15: #{tpu_custom_call.1} parent=5 // pred_region
        // Predicated region
        $region17: #{tpu_custom_call.1} parent=15 // pred_check
          %p97 = pneg %p44
        $region18: #{tpu_custom_call.1} parent=15 // pred_check_branch
          %99 = sbr.rel (%p97) target = $region20
        $region19: #{tpu_custom_call.1} parent=15 // pred_region
          %s100 = sand.u32 %s34, 1
          %s101 = sand.u32 %s34, 1
          %s102 = smul.addr %s101, 256
          %s103 = scalar_lea.vmem [#allocation2], %s102
          %s104 = smul.u32 8, %s18
          %s105 = smul.addr %s17, 8
          %s106 = sadd.s32 %s104, %s105
          %s107 = smul.addr %s106, 8
          %s108 = scalar_lea.vmem %s0, %s107
          // Predicated region
          $region21: #{tpu_custom_call.1} parent=19 // pred_check
            _
          $region22: #{tpu_custom_call.1} parent=19 // pred_check_branch
            %110 = sbr.rel (0) target = $region24
          $region23: #{tpu_custom_call.1} parent=19 // pred_region
            // Predicated region
            $region25: #{tpu_custom_call.1} parent=23 // pred_check
              _
            $region26: #{tpu_custom_call.1} parent=23 // pred_check_branch
              %112 = sbr.rel (0) target = $region28
            $region27: #{tpu_custom_call.1} parent=23 // pred_region
              // Predicated region
              $region40: #{tpu_custom_call.1} parent=27 // pred_check
                _
              $region41: #{tpu_custom_call.1} parent=27 // pred_check_branch
                %190 = sbr.rel (0) target = $region43
              $region42: #{tpu_custom_call.1} parent=27 // pred_region
                loop: start=0, step=1, limit=1
                $region44: #{tpu_custom_call.1} parent=42 // loop_pre_header
                  _
                $region45: #{tpu_custom_call.1} parent=42 // loop_header
                  %s192 = sphi 0, %s196
                  %p193 = scmp.ge.s32.totalorder %s192, 1
                  %s197 = sphi %s108, %s108
                  %s198 = sphi %s103, %s103
                $region46: #{tpu_custom_call.1} parent=42 // loop_header_branch
                  %195 = sbr.rel (%p193) target = $region50
                $region47: #{tpu_custom_call.1} parent=42 // loop_body
                  %v199 = vld [vmem:[%s197] sm:$0xff]
                  %200 = vst [vmem:[%s198] sm:$0xff] %v199
                  %v201 = vld [vmem:[%s197 + $0x8] sm:$0xff]
                  %202 = vst [vmem:[%s198 + $0x8] sm:$0xff] %v201
                  %v203 = vld [vmem:[%s197 + $0x10] sm:$0xff]
                  %204 = vst [vmem:[%s198 + $0x10] sm:$0xff] %v203
                  %v205 = vld [vmem:[%s197 + $0x18] sm:$0xff]
                  %206 = vst [vmem:[%s198 + $0x18] sm:$0xff] %v205
                  %v207 = vld [vmem:[%s197 + $0x20] sm:$0xff]
                  %208 = vst [vmem:[%s198 + $0x20] sm:$0xff] %v207
                  %v209 = vld [vmem:[%s197 + $0x28] sm:$0xff]
                  %210 = vst [vmem:[%s198 + $0x28] sm:$0xff] %v209
                  %v211 = vld [vmem:[%s197 + $0x30] sm:$0xff]
                  %212 = vst [vmem:[%s198 + $0x30] sm:$0xff] %v211
                  %v213 = vld [vmem:[%s197 + $0x38] sm:$0xff]
                  %214 = vst [vmem:[%s198 + $0x38] sm:$0xff] %v213
                  %v215 = vld [vmem:[%s197 + $0x80] sm:$0xff]
                  %216 = vst [vmem:[%s198 + $0x40] sm:$0xff] %v215
                  %v217 = vld [vmem:[%s197 + $0x88] sm:$0xff]
                  %218 = vst [vmem:[%s198 + $0x48] sm:$0xff] %v217
                  %v219 = vld [vmem:[%s197 + $0x90] sm:$0xff]
                  %220 = vst [vmem:[%s198 + $0x50] sm:$0xff] %v219
                  %v221 = vld [vmem:[%s197 + $0x98] sm:$0xff]
                  %222 = vst [vmem:[%s198 + $0x58] sm:$0xff] %v221
                  %v223 = vld [vmem:[%s197 + $0xa0] sm:$0xff]
                  %224 = vst [vmem:[%s198 + $0x60] sm:$0xff] %v223
                  %v225 = vld [vmem:[%s197 + $0xa8] sm:$0xff]
                  %226 = vst [vmem:[%s198 + $0x68] sm:$0xff] %v225
                  %v227 = vld [vmem:[%s197 + $0xb0] sm:$0xff]
                  %228 = vst [vmem:[%s198 + $0x70] sm:$0xff] %v227
                  %v229 = vld [vmem:[%s197 + $0xb8] sm:$0xff]
                  %230 = vst [vmem:[%s198 + $0x78] sm:$0xff] %v229
                  %v231 = vld [vmem:[%s197 + $0x100] sm:$0xff]
                  %232 = vst [vmem:[%s198 + $0x80] sm:$0xff] %v231
                  %v233 = vld [vmem:[%s197 + $0x108] sm:$0xff]
                  %234 = vst [vmem:[%s198 + $0x88] sm:$0xff] %v233
                  %v235 = vld [vmem:[%s197 + $0x110] sm:$0xff]
                  %236 = vst [vmem:[%s198 + $0x90] sm:$0xff] %v235
                  %v237 = vld [vmem:[%s197 + $0x118] sm:$0xff]
                  %238 = vst [vmem:[%s198 + $0x98] sm:$0xff] %v237
                  %v239 = vld [vmem:[%s197 + $0x120] sm:$0xff]
                  %240 = vst [vmem:[%s198 + $0xa0] sm:$0xff] %v239
                  %v241 = vld [vmem:[%s197 + $0x128] sm:$0xff]
                  %242 = vst [vmem:[%s198 + $0xa8] sm:$0xff] %v241
                  %v243 = vld [vmem:[%s197 + $0x130] sm:$0xff]
                  %244 = vst [vmem:[%s198 + $0xb0] sm:$0xff] %v243
                  %v245 = vld [vmem:[%s197 + $0x138] sm:$0xff]
                  %246 = vst [vmem:[%s198 + $0xb8] sm:$0xff] %v245
                  %v247 = vld [vmem:[%s197 + $0x180] sm:$0xff]
                  %248 = vst [vmem:[%s198 + $0xc0] sm:$0xff] %v247
                  %v249 = vld [vmem:[%s197 + $0x188] sm:$0xff]
                  %250 = vst [vmem:[%s198 + $0xc8] sm:$0xff] %v249
                  %v251 = vld [vmem:[%s197 + $0x190] sm:$0xff]
                  %252 = vst [vmem:[%s198 + $0xd0] sm:$0xff] %v251
                  %v253 = vld [vmem:[%s197 + $0x198] sm:$0xff]
                  %254 = vst [vmem:[%s198 + $0xd8] sm:$0xff] %v253
                  %v255 = vld [vmem:[%s197 + $0x1a0] sm:$0xff]
                  %256 = vst [vmem:[%s198 + $0xe0] sm:$0xff] %v255
                  %v257 = vld [vmem:[%s197 + $0x1a8] sm:$0xff]
                  %258 = vst [vmem:[%s198 + $0xe8] sm:$0xff] %v257
                  %v259 = vld [vmem:[%s197 + $0x1b0] sm:$0xff]
                  %260 = vst [vmem:[%s198 + $0xf0] sm:$0xff] %v259
                  %v261 = vld [vmem:[%s197 + $0x1b8] sm:$0xff]
                  %262 = vst [vmem:[%s198 + $0xf8] sm:$0xff] %v261
                $region48: #{tpu_custom_call.1} parent=42 // loop_footer
                  %s196 = sadd.s32 1, %s192
                $region49: #{tpu_custom_call.1} parent=42 // loop_footer_branch
                  %191 = sbr.rel target = $region45
                $region50: #{tpu_custom_call.1} parent=42 // loop_exit
                  _
              $region43: #{tpu_custom_call.1} parent=27 // pred_fallthru
                _
              // Predicated region
              $region51: #{tpu_custom_call.1} parent=27 // pred_check
                _
              $region52: #{tpu_custom_call.1} parent=27 // pred_check_branch
                %264 = sbr.rel target = $region54
              $region53: #{tpu_custom_call.1} parent=27 // pred_region
                _
              $region54: #{tpu_custom_call.1} parent=27 // pred_fallthru
                _
            $region28: #{tpu_custom_call.1} parent=23 // pred_fallthru
              _
            // Predicated region
            $region29: #{tpu_custom_call.1} parent=23 // pred_check
              _
            $region30: #{tpu_custom_call.1} parent=23 // pred_check_branch
              %114 = sbr.rel target = $region32
            $region31: #{tpu_custom_call.1} parent=23 // pred_region
              %s116 = ssub.s32 256, 1
              loop: start=0, step=1, limit=1
              $region33: #{tpu_custom_call.1} parent=31 // loop_pre_header
                _
              $region34: #{tpu_custom_call.1} parent=31 // loop_header
                %s118 = sphi 0, %s122
                %p119 = scmp.ge.s32.totalorder %s118, 1
                %s123 = sphi %s108, %s108
                %s124 = sphi %s103, %s103
              $region35: #{tpu_custom_call.1} parent=31 // loop_header_branch
                %121 = sbr.rel (%p119) target = $region39
              $region36: #{tpu_custom_call.1} parent=31 // loop_body
                %v125 = vld [vmem:[%s123] sm:%s116]
                %126 = vst [vmem:[%s124] sm:%s116] %v125
                %v127 = vld [vmem:[%s123 + $0x8] sm:%s116]
                %128 = vst [vmem:[%s124 + $0x8] sm:%s116] %v127
                %v129 = vld [vmem:[%s123 + $0x10] sm:%s116]
                %130 = vst [vmem:[%s124 + $0x10] sm:%s116] %v129
                %v131 = vld [vmem:[%s123 + $0x18] sm:%s116]
                %132 = vst [vmem:[%s124 + $0x18] sm:%s116] %v131
                %v133 = vld [vmem:[%s123 + $0x20] sm:%s116]
                %134 = vst [vmem:[%s124 + $0x20] sm:%s116] %v133
                %v135 = vld [vmem:[%s123 + $0x28] sm:%s116]
                %136 = vst [vmem:[%s124 + $0x28] sm:%s116] %v135
                %v137 = vld [vmem:[%s123 + $0x30] sm:%s116]
                %138 = vst [vmem:[%s124 + $0x30] sm:%s116] %v137
                %v139 = vld [vmem:[%s123 + $0x38] sm:%s116]
                %140 = vst [vmem:[%s124 + $0x38] sm:%s116] %v139
                %v141 = vld [vmem:[%s123 + $0x80] sm:%s116]
                %142 = vst [vmem:[%s124 + $0x40] sm:%s116] %v141
                %v143 = vld [vmem:[%s123 + $0x88] sm:%s116]
                %144 = vst [vmem:[%s124 + $0x48] sm:%s116] %v143
                %v145 = vld [vmem:[%s123 + $0x90] sm:%s116]
                %146 = vst [vmem:[%s124 + $0x50] sm:%s116] %v145
                %v147 = vld [vmem:[%s123 + $0x98] sm:%s116]
                %148 = vst [vmem:[%s124 + $0x58] sm:%s116] %v147
                %v149 = vld [vmem:[%s123 + $0xa0] sm:%s116]
                %150 = vst [vmem:[%s124 + $0x60] sm:%s116] %v149
                %v151 = vld [vmem:[%s123 + $0xa8] sm:%s116]
                %152 = vst [vmem:[%s124 + $0x68] sm:%s116] %v151
                %v153 = vld [vmem:[%s123 + $0xb0] sm:%s116]
                %154 = vst [vmem:[%s124 + $0x70] sm:%s116] %v153
                %v155 = vld [vmem:[%s123 + $0xb8] sm:%s116]
                %156 = vst [vmem:[%s124 + $0x78] sm:%s116] %v155
                %v157 = vld [vmem:[%s123 + $0x100] sm:%s116]
                %158 = vst [vmem:[%s124 + $0x80] sm:%s116] %v157
                %v159 = vld [vmem:[%s123 + $0x108] sm:%s116]
                %160 = vst [vmem:[%s124 + $0x88] sm:%s116] %v159
                %v161 = vld [vmem:[%s123 + $0x110] sm:%s116]
                %162 = vst [vmem:[%s124 + $0x90] sm:%s116] %v161
                %v163 = vld [vmem:[%s123 + $0x118] sm:%s116]
                %164 = vst [vmem:[%s124 + $0x98] sm:%s116] %v163
                %v165 = vld [vmem:[%s123 + $0x120] sm:%s116]
                %166 = vst [vmem:[%s124 + $0xa0] sm:%s116] %v165
                %v167 = vld [vmem:[%s123 + $0x128] sm:%s116]
                %168 = vst [vmem:[%s124 + $0xa8] sm:%s116] %v167
                %v169 = vld [vmem:[%s123 + $0x130] sm:%s116]
                %170 = vst [vmem:[%s124 + $0xb0] sm:%s116] %v169
                %v171 = vld [vmem:[%s123 + $0x138] sm:%s116]
                %172 = vst [vmem:[%s124 + $0xb8] sm:%s116] %v171
                %v173 = vld [vmem:[%s123 + $0x180] sm:%s116]
                %174 = vst [vmem:[%s124 + $0xc0] sm:%s116] %v173
                %v175 = vld [vmem:[%s123 + $0x188] sm:%s116]
                %176 = vst [vmem:[%s124 + $0xc8] sm:%s116] %v175
                %v177 = vld [vmem:[%s123 + $0x190] sm:%s116]
                %178 = vst [vmem:[%s124 + $0xd0] sm:%s116] %v177
                %v179 = vld [vmem:[%s123 + $0x198] sm:%s116]
                %180 = vst [vmem:[%s124 + $0xd8] sm:%s116] %v179
                %v181 = vld [vmem:[%s123 + $0x1a0] sm:%s116]
                %182 = vst [vmem:[%s124 + $0xe0] sm:%s116] %v181
                %v183 = vld [vmem:[%s123 + $0x1a8] sm:%s116]
                %184 = vst [vmem:[%s124 + $0xe8] sm:%s116] %v183
                %v185 = vld [vmem:[%s123 + $0x1b0] sm:%s116]
                %186 = vst [vmem:[%s124 + $0xf0] sm:%s116] %v185
                %v187 = vld [vmem:[%s123 + $0x1b8] sm:%s116]
                %188 = vst [vmem:[%s124 + $0xf8] sm:%s116] %v187
              $region37: #{tpu_custom_call.1} parent=31 // loop_footer
                %s122 = sadd.s32 1, %s118
              $region38: #{tpu_custom_call.1} parent=31 // loop_footer_branch
                %117 = sbr.rel target = $region34
              $region39: #{tpu_custom_call.1} parent=31 // loop_exit
                _
            $region32: #{tpu_custom_call.1} parent=23 // pred_fallthru
              _
          $region24: #{tpu_custom_call.1} parent=19 // pred_fallthru
            _
          %265 = vnop
        $region20: #{tpu_custom_call.1} parent=15 // pred_fallthru
          _
      $region16: #{tpu_custom_call.1} parent=5 // pred_fallthru
        _
      %p266 = scmp.le.s32.totalorder 1, %s10
      %p267 = scmp.lt.s32.totalorder %s10, 3
      %p268 = pnand %p266, %p267
      %p269 = pneg %p268
      // Predicated region
      $region55: #{tpu_custom_call.1} parent=5 // pred_check
        _
      $region56: #{tpu_custom_call.1} parent=5 // pred_check_branch
        %271 = sbr.rel (%p268) target = $region58
      $region57: #{tpu_custom_call.1} parent=5 // pred_region
        %s272 = ssub.s32 %s10, 1
        %s273 = sand.u32 %s37, 1
        %s274 = sand.u32 %s37, 1
        %s275 = smul.addr %s274, 256
        %s276 = scalar_lea.vmem [#allocation2], %s275
        // Predicated region
        $region59: #{tpu_custom_call.1} parent=57 // pred_check
          %p277 = pneg %p50
        $region60: #{tpu_custom_call.1} parent=57 // pred_check_branch
          %279 = sbr.rel (%p277) target = $region62
        $region61: #{tpu_custom_call.1} parent=57 // pred_region
          _
        $region62: #{tpu_custom_call.1} parent=57 // pred_fallthru
          _
        %s280 = sand.u32 %s37, 1
        %s281 = sand.u32 %s37, 1
        %s282 = smul.addr %s281, 256
        %s283 = scalar_lea.vmem [#allocation2], %s282
        %p284 = pneg %p50
        %p285 = pneg %p47
        %p286 = pneg %p78
        %p287 = pneg %p75
        %s288 = sand.u32 %s65, 1
        %s289 = scalar_lea.sflag [#allocation4], %s288
        %s290 = sand.u32 %s65, 1
        %s291 = smul.addr %s290, 64
        %s292 = scalar_lea.vmem [#allocation3], %s291
        %s293 = smul.u32 8, %s20
        %s294 = smul.u32 8, %s20
        %v295 = vld [vmem:[%s276] sm:$0xff]
        %v296 = vld [vmem:[%s276 + $0x8] sm:$0xff]
        %v297 = vld [vmem:[%s276 + $0x10] sm:$0xff]
        %v298 = vld [vmem:[%s276 + $0x18] sm:$0xff]
        %v299 = vld [vmem:[%s276 + $0x20] sm:$0xff]
        %v300 = vld [vmem:[%s276 + $0x28] sm:$0xff]
        %v301 = vld [vmem:[%s276 + $0x30] sm:$0xff]
        %v302 = vld [vmem:[%s276 + $0x38] sm:$0xff]
        %s303 = scalar_lea.vmem %s276, 64 [#allocation2]
        %v304 = vld [vmem:[%s303] sm:$0xff]
        %v305 = vld [vmem:[%s303 + $0x8] sm:$0xff]
        %v306 = vld [vmem:[%s303 + $0x10] sm:$0xff]
        %v307 = vld [vmem:[%s303 + $0x18] sm:$0xff]
        %v308 = vld [vmem:[%s303 + $0x20] sm:$0xff]
        %v309 = vld [vmem:[%s303 + $0x28] sm:$0xff]
        %v310 = vld [vmem:[%s303 + $0x30] sm:$0xff]
        %v311 = vld [vmem:[%s303 + $0x38] sm:$0xff]
        %s312 = scalar_lea.vmem %s276, 128 [#allocation2]
        %v313 = vld [vmem:[%s312] sm:$0xff]
        %v314 = vld [vmem:[%s312 + $0x8] sm:$0xff]
        %v315 = vld [vmem:[%s312 + $0x10] sm:$0xff]
        %v316 = vld [vmem:[%s312 + $0x18] sm:$0xff]
        %v317 = vld [vmem:[%s312 + $0x20] sm:$0xff]
        %v318 = vld [vmem:[%s312 + $0x28] sm:$0xff]
        %v319 = vld [vmem:[%s312 + $0x30] sm:$0xff]
        %v320 = vld [vmem:[%s312 + $0x38] sm:$0xff]
        %s321 = scalar_lea.vmem %s276, 192 [#allocation2]
        %v322 = vld [vmem:[%s321] sm:$0xff]
        %v323 = vld [vmem:[%s321 + $0x8] sm:$0xff]
        %v324 = vld [vmem:[%s321 + $0x10] sm:$0xff]
        %v325 = vld [vmem:[%s321 + $0x18] sm:$0xff]
        %v326 = vld [vmem:[%s321 + $0x20] sm:$0xff]
        %v327 = vld [vmem:[%s321 + $0x28] sm:$0xff]
        %v328 = vld [vmem:[%s321 + $0x30] sm:$0xff]
        %v329 = vld [vmem:[%s321 + $0x38] sm:$0xff]
        %v330 = vlaneseq
        %v331 = vshrl.u32 %v330, 7
        %v332 = vsub.s32 0, %v331
        %v333 = vrot.slane %v295, %v332
        %335 = vbcast.lane.b32.xlu0 %v333, 256
        %v336 = vpop.permute.xlu0 %335
        %s338 = sor.u32 256, 8
        %339 = vbcast.lane.b32.xlu0 %v333, %s338
        %v340 = vpop.permute.xlu0 %339
        %v341 = vlaneseq
        %v342 = vshrl.u32 %v341, 7
        %v343 = vsub.s32 1, %v342
        %v344 = vrot.slane %v295, %v343
        %346 = vbcast.lane.b32.xlu0 %v344, 256
        %v347 = vpop.permute.xlu0 %346
        %s349 = sor.u32 256, 8
        %350 = vbcast.lane.b32.xlu0 %v344, %s349
        %v351 = vpop.permute.xlu0 %350
        %v352 = vlaneseq
        %v353 = vshrl.u32 %v352, 7
        %v354 = vsub.s32 2, %v353
        %v355 = vrot.slane %v295, %v354
        %357 = vbcast.lane.b32.xlu0 %v355, 256
        %v358 = vpop.permute.xlu0 %357
        %s360 = sor.u32 256, 8
        %361 = vbcast.lane.b32.xlu0 %v355, %s360
        %v362 = vpop.permute.xlu0 %361
        %v363 = vlaneseq
        %v364 = vshrl.u32 %v363, 7
        %v365 = vsub.s32 3, %v364
        %v366 = vrot.slane %v295, %v365
        %368 = vbcast.lane.b32.xlu0 %v366, 256
        %v369 = vpop.permute.xlu0 %368
        %s371 = sor.u32 256, 8
        %372 = vbcast.lane.b32.xlu0 %v366, %s371
        %v373 = vpop.permute.xlu0 %372
        %v374 = vlaneseq
        %v375 = vshrl.u32 %v374, 7
        %v376 = vsub.s32 4, %v375
        %v377 = vrot.slane %v295, %v376
        %379 = vbcast.lane.b32.xlu0 %v377, 256
        %v380 = vpop.permute.xlu0 %379
        %s382 = sor.u32 256, 8
        %383 = vbcast.lane.b32.xlu0 %v377, %s382
        %v384 = vpop.permute.xlu0 %383
        %v385 = vlaneseq
        %v386 = vshrl.u32 %v385, 7
        %v387 = vsub.s32 5, %v386
        %v388 = vrot.slane %v295, %v387
        %390 = vbcast.lane.b32.xlu0 %v388, 256
        %v391 = vpop.permute.xlu0 %390
        %s393 = sor.u32 256, 8
        %394 = vbcast.lane.b32.xlu0 %v388, %s393
        %v395 = vpop.permute.xlu0 %394
        %v396 = vlaneseq
        %v397 = vshrl.u32 %v396, 7
        %v398 = vsub.s32 6, %v397
        %v399 = vrot.slane %v295, %v398
        %401 = vbcast.lane.b32.xlu0 %v399, 256
        %v402 = vpop.permute.xlu0 %401
        %s404 = sor.u32 256, 8
        %405 = vbcast.lane.b32.xlu0 %v399, %s404
        %v406 = vpop.permute.xlu0 %405
        %v407 = vlaneseq
        %v408 = vshrl.u32 %v407, 7
        %v409 = vsub.s32 7, %v408
        %v410 = vrot.slane %v295, %v409
        %412 = vbcast.lane.b32.xlu0 %v410, 256
        %v413 = vpop.permute.xlu0 %412
        %s415 = sor.u32 256, 8
        %416 = vbcast.lane.b32.xlu0 %v410, %s415
        %v417 = vpop.permute.xlu0 %416
        %v418 = vlaneseq
        %v419 = vshrl.u32 %v418, 7
        %v420 = vsub.s32 0, %v419
        %v421 = vrot.slane %v296, %v420
        %423 = vbcast.lane.b32.xlu0 %v421, 256
        %v424 = vpop.permute.xlu0 %423
        %s426 = sor.u32 256, 8
        %427 = vbcast.lane.b32.xlu0 %v421, %s426
        %v428 = vpop.permute.xlu0 %427
        %v429 = vlaneseq
        %v430 = vshrl.u32 %v429, 7
        %v431 = vsub.s32 1, %v430
        %v432 = vrot.slane %v296, %v431
        %434 = vbcast.lane.b32.xlu0 %v432, 256
        %v435 = vpop.permute.xlu0 %434
        %s437 = sor.u32 256, 8
        %438 = vbcast.lane.b32.xlu0 %v432, %s437
        %v439 = vpop.permute.xlu0 %438
        %v440 = vlaneseq
        %v441 = vshrl.u32 %v440, 7
        %v442 = vsub.s32 2, %v441
        %v443 = vrot.slane %v296, %v442
        %445 = vbcast.lane.b32.xlu0 %v443, 256
        %v446 = vpop.permute.xlu0 %445
        %s448 = sor.u32 256, 8
        %449 = vbcast.lane.b32.xlu0 %v443, %s448
        %v450 = vpop.permute.xlu0 %449
        %v451 = vlaneseq
        %v452 = vshrl.u32 %v451, 7
        %v453 = vsub.s32 3, %v452
        %v454 = vrot.slane %v296, %v453
        %456 = vbcast.lane.b32.xlu0 %v454, 256
        %v457 = vpop.permute.xlu0 %456
        %s459 = sor.u32 256, 8
        %460 = vbcast.lane.b32.xlu0 %v454, %s459
        %v461 = vpop.permute.xlu0 %460
        %v462 = vlaneseq
        %v463 = vshrl.u32 %v462, 7
        %v464 = vsub.s32 4, %v463
        %v465 = vrot.slane %v296, %v464
        %467 = vbcast.lane.b32.xlu0 %v465, 256
        %v468 = vpop.permute.xlu0 %467
        %s470 = sor.u32 256, 8
        %471 = vbcast.lane.b32.xlu0 %v465, %s470
        %v472 = vpop.permute.xlu0 %471
        %v473 = vlaneseq
        %v474 = vshrl.u32 %v473, 7
        %v475 = vsub.s32 5, %v474
        %v476 = vrot.slane %v296, %v475
        %478 = vbcast.lane.b32.xlu0 %v476, 256
        %v479 = vpop.permute.xlu0 %478
        %s481 = sor.u32 256, 8
        %482 = vbcast.lane.b32.xlu0 %v476, %s481
        %v483 = vpop.permute.xlu0 %482
        %v484 = vlaneseq
        %v485 = vshrl.u32 %v484, 7
        %v486 = vsub.s32 6, %v485
        %v487 = vrot.slane %v296, %v486
        %489 = vbcast.lane.b32.xlu0 %v487, 256
        %v490 = vpop.permute.xlu0 %489
        %s492 = sor.u32 256, 8
        %493 = vbcast.lane.b32.xlu0 %v487, %s492
        %v494 = vpop.permute.xlu0 %493
        %v495 = vlaneseq
        %v496 = vshrl.u32 %v495, 7
        %v497 = vsub.s32 7, %v496
        %v498 = vrot.slane %v296, %v497
        %500 = vbcast.lane.b32.xlu0 %v498, 256
        %v501 = vpop.permute.xlu0 %500
        %s503 = sor.u32 256, 8
        %504 = vbcast.lane.b32.xlu0 %v498, %s503
        %v505 = vpop.permute.xlu0 %504
        %v506 = vlaneseq
        %v507 = vshrl.u32 %v506, 7
        %v508 = vsub.s32 0, %v507
        %v509 = vrot.slane %v297, %v508
        %511 = vbcast.lane.b32.xlu0 %v509, 256
        %v512 = vpop.permute.xlu0 %511
        %s514 = sor.u32 256, 8
        %515 = vbcast.lane.b32.xlu0 %v509, %s514
        %v516 = vpop.permute.xlu0 %515
        %v517 = vlaneseq
        %v518 = vshrl.u32 %v517, 7
        %v519 = vsub.s32 1, %v518
        %v520 = vrot.slane %v297, %v519
        %522 = vbcast.lane.b32.xlu0 %v520, 256
        %v523 = vpop.permute.xlu0 %522
        %s525 = sor.u32 256, 8
        %526 = vbcast.lane.b32.xlu0 %v520, %s525
        %v527 = vpop.permute.xlu0 %526
        %v528 = vlaneseq
        %v529 = vshrl.u32 %v528, 7
        %v530 = vsub.s32 2, %v529
        %v531 = vrot.slane %v297, %v530
        %533 = vbcast.lane.b32.xlu0 %v531, 256
        %v534 = vpop.permute.xlu0 %533
        %s536 = sor.u32 256, 8
        %537 = vbcast.lane.b32.xlu0 %v531, %s536
        %v538 = vpop.permute.xlu0 %537
        %v539 = vlaneseq
        %v540 = vshrl.u32 %v539, 7
        %v541 = vsub.s32 3, %v540
        %v542 = vrot.slane %v297, %v541
        %544 = vbcast.lane.b32.xlu0 %v542, 256
        %v545 = vpop.permute.xlu0 %544
        %s547 = sor.u32 256, 8
        %548 = vbcast.lane.b32.xlu0 %v542, %s547
        %v549 = vpop.permute.xlu0 %548
        %v550 = vlaneseq
        %v551 = vshrl.u32 %v550, 7
        %v552 = vsub.s32 4, %v551
        %v553 = vrot.slane %v297, %v552
        %555 = vbcast.lane.b32.xlu0 %v553, 256
        %v556 = vpop.permute.xlu0 %555
        %s558 = sor.u32 256, 8
        %559 = vbcast.lane.b32.xlu0 %v553, %s558
        %v560 = vpop.permute.xlu0 %559
        %v561 = vlaneseq
        %v562 = vshrl.u32 %v561, 7
        %v563 = vsub.s32 5, %v562
        %v564 = vrot.slane %v297, %v563
        %566 = vbcast.lane.b32.xlu0 %v564, 256
        %v567 = vpop.permute.xlu0 %566
        %s569 = sor.u32 256, 8
        %570 = vbcast.lane.b32.xlu0 %v564, %s569
        %v571 = vpop.permute.xlu0 %570
        %v572 = vlaneseq
        %v573 = vshrl.u32 %v572, 7
        %v574 = vsub.s32 6, %v573
        %v575 = vrot.slane %v297, %v574
        %577 = vbcast.lane.b32.xlu0 %v575, 256
        %v578 = vpop.permute.xlu0 %577
        %s580 = sor.u32 256, 8
        %581 = vbcast.lane.b32.xlu0 %v575, %s580
        %v582 = vpop.permute.xlu0 %581
        %v583 = vlaneseq
        %v584 = vshrl.u32 %v583, 7
        %v585 = vsub.s32 7, %v584
        %v586 = vrot.slane %v297, %v585
        %588 = vbcast.lane.b32.xlu0 %v586, 256
        %v589 = vpop.permute.xlu0 %588
        %s591 = sor.u32 256, 8
        %592 = vbcast.lane.b32.xlu0 %v586, %s591
        %v593 = vpop.permute.xlu0 %592
        %v594 = vlaneseq
        %v595 = vshrl.u32 %v594, 7
        %v596 = vsub.s32 0, %v595
        %v597 = vrot.slane %v298, %v596
        %599 = vbcast.lane.b32.xlu0 %v597, 256
        %v600 = vpop.permute.xlu0 %599
        %s602 = sor.u32 256, 8
        %603 = vbcast.lane.b32.xlu0 %v597, %s602
        %v604 = vpop.permute.xlu0 %603
        %v605 = vlaneseq
        %v606 = vshrl.u32 %v605, 7
        %v607 = vsub.s32 1, %v606
        %v608 = vrot.slane %v298, %v607
        %610 = vbcast.lane.b32.xlu0 %v608, 256
        %v611 = vpop.permute.xlu0 %610
        %s613 = sor.u32 256, 8
        %614 = vbcast.lane.b32.xlu0 %v608, %s613
        %v615 = vpop.permute.xlu0 %614
        %v616 = vlaneseq
        %v617 = vshrl.u32 %v616, 7
        %v618 = vsub.s32 2, %v617
        %v619 = vrot.slane %v298, %v618
        %621 = vbcast.lane.b32.xlu0 %v619, 256
        %v622 = vpop.permute.xlu0 %621
        %s624 = sor.u32 256, 8
        %625 = vbcast.lane.b32.xlu0 %v619, %s624
        %v626 = vpop.permute.xlu0 %625
        %v627 = vlaneseq
        %v628 = vshrl.u32 %v627, 7
        %v629 = vsub.s32 3, %v628
        %v630 = vrot.slane %v298, %v629
        %632 = vbcast.lane.b32.xlu0 %v630, 256
        %v633 = vpop.permute.xlu0 %632
        %s635 = sor.u32 256, 8
        %636 = vbcast.lane.b32.xlu0 %v630, %s635
        %v637 = vpop.permute.xlu0 %636
        %v638 = vlaneseq
        %v639 = vshrl.u32 %v638, 7
        %v640 = vsub.s32 4, %v639
        %v641 = vrot.slane %v298, %v640
        %643 = vbcast.lane.b32.xlu0 %v641, 256
        %v644 = vpop.permute.xlu0 %643
        %s646 = sor.u32 256, 8
        %647 = vbcast.lane.b32.xlu0 %v641, %s646
        %v648 = vpop.permute.xlu0 %647
        %v649 = vlaneseq
        %v650 = vshrl.u32 %v649, 7
        %v651 = vsub.s32 5, %v650
        %v652 = vrot.slane %v298, %v651
        %654 = vbcast.lane.b32.xlu0 %v652, 256
        %v655 = vpop.permute.xlu0 %654
        %s657 = sor.u32 256, 8
        %658 = vbcast.lane.b32.xlu0 %v652, %s657
        %v659 = vpop.permute.xlu0 %658
        %v660 = vlaneseq
        %v661 = vshrl.u32 %v660, 7
        %v662 = vsub.s32 6, %v661
        %v663 = vrot.slane %v298, %v662
        %665 = vbcast.lane.b32.xlu0 %v663, 256
        %v666 = vpop.permute.xlu0 %665
        %s668 = sor.u32 256, 8
        %669 = vbcast.lane.b32.xlu0 %v663, %s668
        %v670 = vpop.permute.xlu0 %669
        %v671 = vlaneseq
        %v672 = vshrl.u32 %v671, 7
        %v673 = vsub.s32 7, %v672
        %v674 = vrot.slane %v298, %v673
        %676 = vbcast.lane.b32.xlu0 %v674, 256
        %v677 = vpop.permute.xlu0 %676
        %s679 = sor.u32 256, 8
        %680 = vbcast.lane.b32.xlu0 %v674, %s679
        %v681 = vpop.permute.xlu0 %680
        %v682 = vlaneseq
        %v683 = vshrl.u32 %v682, 7
        %v684 = vsub.s32 0, %v683
        %v685 = vrot.slane %v299, %v684
        %687 = vbcast.lane.b32.xlu0 %v685, 256
        %v688 = vpop.permute.xlu0 %687
        %s690 = sor.u32 256, 8
        %691 = vbcast.lane.b32.xlu0 %v685, %s690
        %v692 = vpop.permute.xlu0 %691
        %v693 = vlaneseq
        %v694 = vshrl.u32 %v693, 7
        %v695 = vsub.s32 1, %v694
        %v696 = vrot.slane %v299, %v695
        %698 = vbcast.lane.b32.xlu0 %v696, 256
        %v699 = vpop.permute.xlu0 %698
        %s701 = sor.u32 256, 8
        %702 = vbcast.lane.b32.xlu0 %v696, %s701
        %v703 = vpop.permute.xlu0 %702
        %v704 = vlaneseq
        %v705 = vshrl.u32 %v704, 7
        %v706 = vsub.s32 2, %v705
        %v707 = vrot.slane %v299, %v706
        %709 = vbcast.lane.b32.xlu0 %v707, 256
        %v710 = vpop.permute.xlu0 %709
        %s712 = sor.u32 256, 8
        %713 = vbcast.lane.b32.xlu0 %v707, %s712
        %v714 = vpop.permute.xlu0 %713
        %v715 = vlaneseq
        %v716 = vshrl.u32 %v715, 7
        %v717 = vsub.s32 3, %v716
        %v718 = vrot.slane %v299, %v717
        %720 = vbcast.lane.b32.xlu0 %v718, 256
        %v721 = vpop.permute.xlu0 %720
        %s723 = sor.u32 256, 8
        %724 = vbcast.lane.b32.xlu0 %v718, %s723
        %v725 = vpop.permute.xlu0 %724
        %v726 = vlaneseq
        %v727 = vshrl.u32 %v726, 7
        %v728 = vsub.s32 4, %v727
        %v729 = vrot.slane %v299, %v728
        %731 = vbcast.lane.b32.xlu0 %v729, 256
        %v732 = vpop.permute.xlu0 %731
        %s734 = sor.u32 256, 8
        %735 = vbcast.lane.b32.xlu0 %v729, %s734
        %v736 = vpop.permute.xlu0 %735
        %v737 = vlaneseq
        %v738 = vshrl.u32 %v737, 7
        %v739 = vsub.s32 5, %v738
        %v740 = vrot.slane %v299, %v739
        %742 = vbcast.lane.b32.xlu0 %v740, 256
        %v743 = vpop.permute.xlu0 %742
        %s745 = sor.u32 256, 8
        %746 = vbcast.lane.b32.xlu0 %v740, %s745
        %v747 = vpop.permute.xlu0 %746
        %v748 = vlaneseq
        %v749 = vshrl.u32 %v748, 7
        %v750 = vsub.s32 6, %v749
        %v751 = vrot.slane %v299, %v750
        %753 = vbcast.lane.b32.xlu0 %v751, 256
        %v754 = vpop.permute.xlu0 %753
        %s756 = sor.u32 256, 8
        %757 = vbcast.lane.b32.xlu0 %v751, %s756
        %v758 = vpop.permute.xlu0 %757
        %v759 = vlaneseq
        %v760 = vshrl.u32 %v759, 7
        %v761 = vsub.s32 7, %v760
        %v762 = vrot.slane %v299, %v761
        %764 = vbcast.lane.b32.xlu0 %v762, 256
        %v765 = vpop.permute.xlu0 %764
        %s767 = sor.u32 256, 8
        %768 = vbcast.lane.b32.xlu0 %v762, %s767
        %v769 = vpop.permute.xlu0 %768
        %v770 = vlaneseq
        %v771 = vshrl.u32 %v770, 7
        %v772 = vsub.s32 0, %v771
        %v773 = vrot.slane %v300, %v772
        %775 = vbcast.lane.b32.xlu0 %v773, 256
        %v776 = vpop.permute.xlu0 %775
        %s778 = sor.u32 256, 8
        %779 = vbcast.lane.b32.xlu0 %v773, %s778
        %v780 = vpop.permute.xlu0 %779
        %v781 = vlaneseq
        %v782 = vshrl.u32 %v781, 7
        %v783 = vsub.s32 1, %v782
        %v784 = vrot.slane %v300, %v783
        %786 = vbcast.lane.b32.xlu0 %v784, 256
        %v787 = vpop.permute.xlu0 %786
        %s789 = sor.u32 256, 8
        %790 = vbcast.lane.b32.xlu0 %v784, %s789
        %v791 = vpop.permute.xlu0 %790
        %v792 = vlaneseq
        %v793 = vshrl.u32 %v792, 7
        %v794 = vsub.s32 2, %v793
        %v795 = vrot.slane %v300, %v794
        %797 = vbcast.lane.b32.xlu0 %v795, 256
        %v798 = vpop.permute.xlu0 %797
        %s800 = sor.u32 256, 8
        %801 = vbcast.lane.b32.xlu0 %v795, %s800
        %v802 = vpop.permute.xlu0 %801
        %v803 = vlaneseq
        %v804 = vshrl.u32 %v803, 7
        %v805 = vsub.s32 3, %v804
        %v806 = vrot.slane %v300, %v805
        %808 = vbcast.lane.b32.xlu0 %v806, 256
        %v809 = vpop.permute.xlu0 %808
        %s811 = sor.u32 256, 8
        %812 = vbcast.lane.b32.xlu0 %v806, %s811
        %v813 = vpop.permute.xlu0 %812
        %v814 = vlaneseq
        %v815 = vshrl.u32 %v814, 7
        %v816 = vsub.s32 4, %v815
        %v817 = vrot.slane %v300, %v816
        %819 = vbcast.lane.b32.xlu0 %v817, 256
        %v820 = vpop.permute.xlu0 %819
        %s822 = sor.u32 256, 8
        %823 = vbcast.lane.b32.xlu0 %v817, %s822
        %v824 = vpop.permute.xlu0 %823
        %v825 = vlaneseq
        %v826 = vshrl.u32 %v825, 7
        %v827 = vsub.s32 5, %v826
        %v828 = vrot.slane %v300, %v827
        %830 = vbcast.lane.b32.xlu0 %v828, 256
        %v831 = vpop.permute.xlu0 %830
        %s833 = sor.u32 256, 8
        %834 = vbcast.lane.b32.xlu0 %v828, %s833
        %v835 = vpop.permute.xlu0 %834
        %v836 = vlaneseq
        %v837 = vshrl.u32 %v836, 7
        %v838 = vsub.s32 6, %v837
        %v839 = vrot.slane %v300, %v838
        %841 = vbcast.lane.b32.xlu0 %v839, 256
        %v842 = vpop.permute.xlu0 %841
        %s844 = sor.u32 256, 8
        %845 = vbcast.lane.b32.xlu0 %v839, %s844
        %v846 = vpop.permute.xlu0 %845
        %v847 = vlaneseq
        %v848 = vshrl.u32 %v847, 7
        %v849 = vsub.s32 7, %v848
        %v850 = vrot.slane %v300, %v849
        %852 = vbcast.lane.b32.xlu0 %v850, 256
        %v853 = vpop.permute.xlu0 %852
        %s855 = sor.u32 256, 8
        %856 = vbcast.lane.b32.xlu0 %v850, %s855
        %v857 = vpop.permute.xlu0 %856
        %v858 = vlaneseq
        %v859 = vshrl.u32 %v858, 7
        %v860 = vsub.s32 0, %v859
        %v861 = vrot.slane %v301, %v860
        %863 = vbcast.lane.b32.xlu0 %v861, 256
        %v864 = vpop.permute.xlu0 %863
        %s866 = sor.u32 256, 8
        %867 = vbcast.lane.b32.xlu0 %v861, %s866
        %v868 = vpop.permute.xlu0 %867
        %v869 = vlaneseq
        %v870 = vshrl.u32 %v869, 7
        %v871 = vsub.s32 1, %v870
        %v872 = vrot.slane %v301, %v871
        %874 = vbcast.lane.b32.xlu0 %v872, 256
        %v875 = vpop.permute.xlu0 %874
        %s877 = sor.u32 256, 8
        %878 = vbcast.lane.b32.xlu0 %v872, %s877
        %v879 = vpop.permute.xlu0 %878
        %v880 = vlaneseq
        %v881 = vshrl.u32 %v880, 7
        %v882 = vsub.s32 2, %v881
        %v883 = vrot.slane %v301, %v882
        %885 = vbcast.lane.b32.xlu0 %v883, 256
        %v886 = vpop.permute.xlu0 %885
        %s888 = sor.u32 256, 8
        %889 = vbcast.lane.b32.xlu0 %v883, %s888
        %v890 = vpop.permute.xlu0 %889
        %v891 = vlaneseq
        %v892 = vshrl.u32 %v891, 7
        %v893 = vsub.s32 3, %v892
        %v894 = vrot.slane %v301, %v893
        %896 = vbcast.lane.b32.xlu0 %v894, 256
        %v897 = vpop.permute.xlu0 %896
        %s899 = sor.u32 256, 8
        %900 = vbcast.lane.b32.xlu0 %v894, %s899
        %v901 = vpop.permute.xlu0 %900
        %v902 = vlaneseq
        %v903 = vshrl.u32 %v902, 7
        %v904 = vsub.s32 4, %v903
        %v905 = vrot.slane %v301, %v904
        %907 = vbcast.lane.b32.xlu0 %v905, 256
        %v908 = vpop.permute.xlu0 %907
        %s910 = sor.u32 256, 8
        %911 = vbcast.lane.b32.xlu0 %v905, %s910
        %v912 = vpop.permute.xlu0 %911
        %v913 = vlaneseq
        %v914 = vshrl.u32 %v913, 7
        %v915 = vsub.s32 5, %v914
        %v916 = vrot.slane %v301, %v915
        %918 = vbcast.lane.b32.xlu0 %v916, 256
        %v919 = vpop.permute.xlu0 %918
        %s921 = sor.u32 256, 8
        %922 = vbcast.lane.b32.xlu0 %v916, %s921
        %v923 = vpop.permute.xlu0 %922
        %v924 = vlaneseq
        %v925 = vshrl.u32 %v924, 7
        %v926 = vsub.s32 6, %v925
        %v927 = vrot.slane %v301, %v926
        %929 = vbcast.lane.b32.xlu0 %v927, 256
        %v930 = vpop.permute.xlu0 %929
        %s932 = sor.u32 256, 8
        %933 = vbcast.lane.b32.xlu0 %v927, %s932
        %v934 = vpop.permute.xlu0 %933
        %v935 = vlaneseq
        %v936 = vshrl.u32 %v935, 7
        %v937 = vsub.s32 7, %v936
        %v938 = vrot.slane %v301, %v937
        %940 = vbcast.lane.b32.xlu0 %v938, 256
        %v941 = vpop.permute.xlu0 %940
        %s943 = sor.u32 256, 8
        %944 = vbcast.lane.b32.xlu0 %v938, %s943
        %v945 = vpop.permute.xlu0 %944
        %v946 = vlaneseq
        %v947 = vshrl.u32 %v946, 7
        %v948 = vsub.s32 0, %v947
        %v949 = vrot.slane %v302, %v948
        %951 = vbcast.lane.b32.xlu0 %v949, 256
        %v952 = vpop.permute.xlu0 %951
        %s954 = sor.u32 256, 8
        %955 = vbcast.lane.b32.xlu0 %v949, %s954
        %v956 = vpop.permute.xlu0 %955
        %v957 = vlaneseq
        %v958 = vshrl.u32 %v957, 7
        %v959 = vsub.s32 1, %v958
        %v960 = vrot.slane %v302, %v959
        %962 = vbcast.lane.b32.xlu0 %v960, 256
        %v963 = vpop.permute.xlu0 %962
        %s965 = sor.u32 256, 8
        %966 = vbcast.lane.b32.xlu0 %v960, %s965
        %v967 = vpop.permute.xlu0 %966
        %v968 = vlaneseq
        %v969 = vshrl.u32 %v968, 7
        %v970 = vsub.s32 2, %v969
        %v971 = vrot.slane %v302, %v970
        %973 = vbcast.lane.b32.xlu0 %v971, 256
        %v974 = vpop.permute.xlu0 %973
        %s976 = sor.u32 256, 8
        %977 = vbcast.lane.b32.xlu0 %v971, %s976
        %v978 = vpop.permute.xlu0 %977
        %v979 = vlaneseq
        %v980 = vshrl.u32 %v979, 7
        %v981 = vsub.s32 3, %v980
        %v982 = vrot.slane %v302, %v981
        %984 = vbcast.lane.b32.xlu0 %v982, 256
        %v985 = vpop.permute.xlu0 %984
        %s987 = sor.u32 256, 8
        %988 = vbcast.lane.b32.xlu0 %v982, %s987
        %v989 = vpop.permute.xlu0 %988
        %v990 = vlaneseq
        %v991 = vshrl.u32 %v990, 7
        %v992 = vsub.s32 4, %v991
        %v993 = vrot.slane %v302, %v992
        %995 = vbcast.lane.b32.xlu0 %v993, 256
        %v996 = vpop.permute.xlu0 %995
        %s998 = sor.u32 256, 8
        %999 = vbcast.lane.b32.xlu0 %v993, %s998
        %v1000 = vpop.permute.xlu0 %999
        %v1001 = vlaneseq
        %v1002 = vshrl.u32 %v1001, 7
        %v1003 = vsub.s32 5, %v1002
        %v1004 = vrot.slane %v302, %v1003
        %1006 = vbcast.lane.b32.xlu0 %v1004, 256
        %v1007 = vpop.permute.xlu0 %1006
        %s1009 = sor.u32 256, 8
        %1010 = vbcast.lane.b32.xlu0 %v1004, %s1009
        %v1011 = vpop.permute.xlu0 %1010
        %v1012 = vlaneseq
        %v1013 = vshrl.u32 %v1012, 7
        %v1014 = vsub.s32 6, %v1013
        %v1015 = vrot.slane %v302, %v1014
        %1017 = vbcast.lane.b32.xlu0 %v1015, 256
        %v1018 = vpop.permute.xlu0 %1017
        %s1020 = sor.u32 256, 8
        %1021 = vbcast.lane.b32.xlu0 %v1015, %s1020
        %v1022 = vpop.permute.xlu0 %1021
        %v1023 = vlaneseq
        %v1024 = vshrl.u32 %v1023, 7
        %v1025 = vsub.s32 7, %v1024
        %v1026 = vrot.slane %v302, %v1025
        %1028 = vbcast.lane.b32.xlu0 %v1026, 256
        %v1029 = vpop.permute.xlu0 %1028
        %s1031 = sor.u32 256, 8
        %1032 = vbcast.lane.b32.xlu0 %v1026, %s1031
        %v1033 = vpop.permute.xlu0 %1032
        %v1034 = vlaneseq
        %v1035 = vshrl.u32 %v1034, 7
        %v1036 = vsub.s32 0, %v1035
        %v1037 = vrot.slane %v304, %v1036
        %1039 = vbcast.lane.b32.xlu0 %v1037, 256
        %v1040 = vpop.permute.xlu0 %1039
        %s1042 = sor.u32 256, 8
        %1043 = vbcast.lane.b32.xlu0 %v1037, %s1042
        %v1044 = vpop.permute.xlu0 %1043
        %v1045 = vlaneseq
        %v1046 = vshrl.u32 %v1045, 7
        %v1047 = vsub.s32 1, %v1046
        %v1048 = vrot.slane %v304, %v1047
        %1050 = vbcast.lane.b32.xlu0 %v1048, 256
        %v1051 = vpop.permute.xlu0 %1050
        %s1053 = sor.u32 256, 8
        %1054 = vbcast.lane.b32.xlu0 %v1048, %s1053
        %v1055 = vpop.permute.xlu0 %1054
        %v1056 = vlaneseq
        %v1057 = vshrl.u32 %v1056, 7
        %v1058 = vsub.s32 2, %v1057
        %v1059 = vrot.slane %v304, %v1058
        %1061 = vbcast.lane.b32.xlu0 %v1059, 256
        %v1062 = vpop.permute.xlu0 %1061
        %s1064 = sor.u32 256, 8
        %1065 = vbcast.lane.b32.xlu0 %v1059, %s1064
        %v1066 = vpop.permute.xlu0 %1065
        %v1067 = vlaneseq
        %v1068 = vshrl.u32 %v1067, 7
        %v1069 = vsub.s32 3, %v1068
        %v1070 = vrot.slane %v304, %v1069
        %1072 = vbcast.lane.b32.xlu0 %v1070, 256
        %v1073 = vpop.permute.xlu0 %1072
        %s1075 = sor.u32 256, 8
        %1076 = vbcast.lane.b32.xlu0 %v1070, %s1075
        %v1077 = vpop.permute.xlu0 %1076
        %v1078 = vlaneseq
        %v1079 = vshrl.u32 %v1078, 7
        %v1080 = vsub.s32 4, %v1079
        %v1081 = vrot.slane %v304, %v1080
        %1083 = vbcast.lane.b32.xlu0 %v1081, 256
        %v1084 = vpop.permute.xlu0 %1083
        %s1086 = sor.u32 256, 8
        %1087 = vbcast.lane.b32.xlu0 %v1081, %s1086
        %v1088 = vpop.permute.xlu0 %1087
        %v1089 = vlaneseq
        %v1090 = vshrl.u32 %v1089, 7
        %v1091 = vsub.s32 5, %v1090
        %v1092 = vrot.slane %v304, %v1091
        %1094 = vbcast.lane.b32.xlu0 %v1092, 256
        %v1095 = vpop.permute.xlu0 %1094
        %s1097 = sor.u32 256, 8
        %1098 = vbcast.lane.b32.xlu0 %v1092, %s1097
        %v1099 = vpop.permute.xlu0 %1098
        %v1100 = vlaneseq
        %v1101 = vshrl.u32 %v1100, 7
        %v1102 = vsub.s32 6, %v1101
        %v1103 = vrot.slane %v304, %v1102
        %1105 = vbcast.lane.b32.xlu0 %v1103, 256
        %v1106 = vpop.permute.xlu0 %1105
        %s1108 = sor.u32 256, 8
        %1109 = vbcast.lane.b32.xlu0 %v1103, %s1108
        %v1110 = vpop.permute.xlu0 %1109
        %v1111 = vlaneseq
        %v1112 = vshrl.u32 %v1111, 7
        %v1113 = vsub.s32 7, %v1112
        %v1114 = vrot.slane %v304, %v1113
        %1116 = vbcast.lane.b32.xlu0 %v1114, 256
        %v1117 = vpop.permute.xlu0 %1116
        %s1119 = sor.u32 256, 8
        %1120 = vbcast.lane.b32.xlu0 %v1114, %s1119
        %v1121 = vpop.permute.xlu0 %1120
        %v1122 = vlaneseq
        %v1123 = vshrl.u32 %v1122, 7
        %v1124 = vsub.s32 0, %v1123
        %v1125 = vrot.slane %v305, %v1124
        %1127 = vbcast.lane.b32.xlu0 %v1125, 256
        %v1128 = vpop.permute.xlu0 %1127
        %s1130 = sor.u32 256, 8
        %1131 = vbcast.lane.b32.xlu0 %v1125, %s1130
        %v1132 = vpop.permute.xlu0 %1131
        %v1133 = vlaneseq
        %v1134 = vshrl.u32 %v1133, 7
        %v1135 = vsub.s32 1, %v1134
        %v1136 = vrot.slane %v305, %v1135
        %1138 = vbcast.lane.b32.xlu0 %v1136, 256
        %v1139 = vpop.permute.xlu0 %1138
        %s1141 = sor.u32 256, 8
        %1142 = vbcast.lane.b32.xlu0 %v1136, %s1141
        %v1143 = vpop.permute.xlu0 %1142
        %v1144 = vlaneseq
        %v1145 = vshrl.u32 %v1144, 7
        %v1146 = vsub.s32 2, %v1145
        %v1147 = vrot.slane %v305, %v1146
        %1149 = vbcast.lane.b32.xlu0 %v1147, 256
        %v1150 = vpop.permute.xlu0 %1149
        %s1152 = sor.u32 256, 8
        %1153 = vbcast.lane.b32.xlu0 %v1147, %s1152
        %v1154 = vpop.permute.xlu0 %1153
        %v1155 = vlaneseq
        %v1156 = vshrl.u32 %v1155, 7
        %v1157 = vsub.s32 3, %v1156
        %v1158 = vrot.slane %v305, %v1157
        %1160 = vbcast.lane.b32.xlu0 %v1158, 256
        %v1161 = vpop.permute.xlu0 %1160
        %s1163 = sor.u32 256, 8
        %1164 = vbcast.lane.b32.xlu0 %v1158, %s1163
        %v1165 = vpop.permute.xlu0 %1164
        %v1166 = vlaneseq
        %v1167 = vshrl.u32 %v1166, 7
        %v1168 = vsub.s32 4, %v1167
        %v1169 = vrot.slane %v305, %v1168
        %1171 = vbcast.lane.b32.xlu0 %v1169, 256
        %v1172 = vpop.permute.xlu0 %1171
        %s1174 = sor.u32 256, 8
        %1175 = vbcast.lane.b32.xlu0 %v1169, %s1174
        %v1176 = vpop.permute.xlu0 %1175
        %v1177 = vlaneseq
        %v1178 = vshrl.u32 %v1177, 7
        %v1179 = vsub.s32 5, %v1178
        %v1180 = vrot.slane %v305, %v1179
        %1182 = vbcast.lane.b32.xlu0 %v1180, 256
        %v1183 = vpop.permute.xlu0 %1182
        %s1185 = sor.u32 256, 8
        %1186 = vbcast.lane.b32.xlu0 %v1180, %s1185
        %v1187 = vpop.permute.xlu0 %1186
        %v1188 = vlaneseq
        %v1189 = vshrl.u32 %v1188, 7
        %v1190 = vsub.s32 6, %v1189
        %v1191 = vrot.slane %v305, %v1190
        %1193 = vbcast.lane.b32.xlu0 %v1191, 256
        %v1194 = vpop.permute.xlu0 %1193
        %s1196 = sor.u32 256, 8
        %1197 = vbcast.lane.b32.xlu0 %v1191, %s1196
        %v1198 = vpop.permute.xlu0 %1197
        %v1199 = vlaneseq
        %v1200 = vshrl.u32 %v1199, 7
        %v1201 = vsub.s32 7, %v1200
        %v1202 = vrot.slane %v305, %v1201
        %1204 = vbcast.lane.b32.xlu0 %v1202, 256
        %v1205 = vpop.permute.xlu0 %1204
        %s1207 = sor.u32 256, 8
        %1208 = vbcast.lane.b32.xlu0 %v1202, %s1207
        %v1209 = vpop.permute.xlu0 %1208
        %v1210 = vlaneseq
        %v1211 = vshrl.u32 %v1210, 7
        %v1212 = vsub.s32 0, %v1211
        %v1213 = vrot.slane %v306, %v1212
        %1215 = vbcast.lane.b32.xlu0 %v1213, 256
        %v1216 = vpop.permute.xlu0 %1215
        %s1218 = sor.u32 256, 8
        %1219 = vbcast.lane.b32.xlu0 %v1213, %s1218
        %v1220 = vpop.permute.xlu0 %1219
        %v1221 = vlaneseq
        %v1222 = vshrl.u32 %v1221, 7
        %v1223 = vsub.s32 1, %v1222
        %v1224 = vrot.slane %v306, %v1223
        %1226 = vbcast.lane.b32.xlu0 %v1224, 256
        %v1227 = vpop.permute.xlu0 %1226
        %s1229 = sor.u32 256, 8
        %1230 = vbcast.lane.b32.xlu0 %v1224, %s1229
        %v1231 = vpop.permute.xlu0 %1230
        %v1232 = vlaneseq
        %v1233 = vshrl.u32 %v1232, 7
        %v1234 = vsub.s32 2, %v1233
        %v1235 = vrot.slane %v306, %v1234
        %1237 = vbcast.lane.b32.xlu0 %v1235, 256
        %v1238 = vpop.permute.xlu0 %1237
        %s1240 = sor.u32 256, 8
        %1241 = vbcast.lane.b32.xlu0 %v1235, %s1240
        %v1242 = vpop.permute.xlu0 %1241
        %v1243 = vlaneseq
        %v1244 = vshrl.u32 %v1243, 7
        %v1245 = vsub.s32 3, %v1244
        %v1246 = vrot.slane %v306, %v1245
        %1248 = vbcast.lane.b32.xlu0 %v1246, 256
        %v1249 = vpop.permute.xlu0 %1248
        %s1251 = sor.u32 256, 8
        %1252 = vbcast.lane.b32.xlu0 %v1246, %s1251
        %v1253 = vpop.permute.xlu0 %1252
        %v1254 = vlaneseq
        %v1255 = vshrl.u32 %v1254, 7
        %v1256 = vsub.s32 4, %v1255
        %v1257 = vrot.slane %v306, %v1256
        %1259 = vbcast.lane.b32.xlu0 %v1257, 256
        %v1260 = vpop.permute.xlu0 %1259
        %s1262 = sor.u32 256, 8
        %1263 = vbcast.lane.b32.xlu0 %v1257, %s1262
        %v1264 = vpop.permute.xlu0 %1263
        %v1265 = vlaneseq
        %v1266 = vshrl.u32 %v1265, 7
        %v1267 = vsub.s32 5, %v1266
        %v1268 = vrot.slane %v306, %v1267
        %1270 = vbcast.lane.b32.xlu0 %v1268, 256
        %v1271 = vpop.permute.xlu0 %1270
        %s1273 = sor.u32 256, 8
        %1274 = vbcast.lane.b32.xlu0 %v1268, %s1273
        %v1275 = vpop.permute.xlu0 %1274
        %v1276 = vlaneseq
        %v1277 = vshrl.u32 %v1276, 7
        %v1278 = vsub.s32 6, %v1277
        %v1279 = vrot.slane %v306, %v1278
        %1281 = vbcast.lane.b32.xlu0 %v1279, 256
        %v1282 = vpop.permute.xlu0 %1281
        %s1284 = sor.u32 256, 8
        %1285 = vbcast.lane.b32.xlu0 %v1279, %s1284
        %v1286 = vpop.permute.xlu0 %1285
        %v1287 = vlaneseq
        %v1288 = vshrl.u32 %v1287, 7
        %v1289 = vsub.s32 7, %v1288
        %v1290 = vrot.slane %v306, %v1289
        %1292 = vbcast.lane.b32.xlu0 %v1290, 256
        %v1293 = vpop.permute.xlu0 %1292
        %s1295 = sor.u32 256, 8
        %1296 = vbcast.lane.b32.xlu0 %v1290, %s1295
        %v1297 = vpop.permute.xlu0 %1296
        %v1298 = vlaneseq
        %v1299 = vshrl.u32 %v1298, 7
        %v1300 = vsub.s32 0, %v1299
        %v1301 = vrot.slane %v307, %v1300
        %1303 = vbcast.lane.b32.xlu0 %v1301, 256
        %v1304 = vpop.permute.xlu0 %1303
        %s1306 = sor.u32 256, 8
        %1307 = vbcast.lane.b32.xlu0 %v1301, %s1306
        %v1308 = vpop.permute.xlu0 %1307
        %v1309 = vlaneseq
        %v1310 = vshrl.u32 %v1309, 7
        %v1311 = vsub.s32 1, %v1310
        %v1312 = vrot.slane %v307, %v1311
        %1314 = vbcast.lane.b32.xlu0 %v1312, 256
        %v1315 = vpop.permute.xlu0 %1314
        %s1317 = sor.u32 256, 8
        %1318 = vbcast.lane.b32.xlu0 %v1312, %s1317
        %v1319 = vpop.permute.xlu0 %1318
        %v1320 = vlaneseq
        %v1321 = vshrl.u32 %v1320, 7
        %v1322 = vsub.s32 2, %v1321
        %v1323 = vrot.slane %v307, %v1322
        %1325 = vbcast.lane.b32.xlu0 %v1323, 256
        %v1326 = vpop.permute.xlu0 %1325
        %s1328 = sor.u32 256, 8
        %1329 = vbcast.lane.b32.xlu0 %v1323, %s1328
        %v1330 = vpop.permute.xlu0 %1329
        %v1331 = vlaneseq
        %v1332 = vshrl.u32 %v1331, 7
        %v1333 = vsub.s32 3, %v1332
        %v1334 = vrot.slane %v307, %v1333
        %1336 = vbcast.lane.b32.xlu0 %v1334, 256
        %v1337 = vpop.permute.xlu0 %1336
        %s1339 = sor.u32 256, 8
        %1340 = vbcast.lane.b32.xlu0 %v1334, %s1339
        %v1341 = vpop.permute.xlu0 %1340
        %v1342 = vlaneseq
        %v1343 = vshrl.u32 %v1342, 7
        %v1344 = vsub.s32 4, %v1343
        %v1345 = vrot.slane %v307, %v1344
        %1347 = vbcast.lane.b32.xlu0 %v1345, 256
        %v1348 = vpop.permute.xlu0 %1347
        %s1350 = sor.u32 256, 8
        %1351 = vbcast.lane.b32.xlu0 %v1345, %s1350
        %v1352 = vpop.permute.xlu0 %1351
        %v1353 = vlaneseq
        %v1354 = vshrl.u32 %v1353, 7
        %v1355 = vsub.s32 5, %v1354
        %v1356 = vrot.slane %v307, %v1355
        %1358 = vbcast.lane.b32.xlu0 %v1356, 256
        %v1359 = vpop.permute.xlu0 %1358
        %s1361 = sor.u32 256, 8
        %1362 = vbcast.lane.b32.xlu0 %v1356, %s1361
        %v1363 = vpop.permute.xlu0 %1362
        %v1364 = vlaneseq
        %v1365 = vshrl.u32 %v1364, 7
        %v1366 = vsub.s32 6, %v1365
        %v1367 = vrot.slane %v307, %v1366
        %1369 = vbcast.lane.b32.xlu0 %v1367, 256
        %v1370 = vpop.permute.xlu0 %1369
        %s1372 = sor.u32 256, 8
        %1373 = vbcast.lane.b32.xlu0 %v1367, %s1372
        %v1374 = vpop.permute.xlu0 %1373
        %v1375 = vlaneseq
        %v1376 = vshrl.u32 %v1375, 7
        %v1377 = vsub.s32 7, %v1376
        %v1378 = vrot.slane %v307, %v1377
        %1380 = vbcast.lane.b32.xlu0 %v1378, 256
        %v1381 = vpop.permute.xlu0 %1380
        %s1383 = sor.u32 256, 8
        %1384 = vbcast.lane.b32.xlu0 %v1378, %s1383
        %v1385 = vpop.permute.xlu0 %1384
        %v1386 = vlaneseq
        %v1387 = vshrl.u32 %v1386, 7
        %v1388 = vsub.s32 0, %v1387
        %v1389 = vrot.slane %v308, %v1388
        %1391 = vbcast.lane.b32.xlu0 %v1389, 256
        %v1392 = vpop.permute.xlu0 %1391
        %s1394 = sor.u32 256, 8
        %1395 = vbcast.lane.b32.xlu0 %v1389, %s1394
        %v1396 = vpop.permute.xlu0 %1395
        %v1397 = vlaneseq
        %v1398 = vshrl.u32 %v1397, 7
        %v1399 = vsub.s32 1, %v1398
        %v1400 = vrot.slane %v308, %v1399
        %1402 = vbcast.lane.b32.xlu0 %v1400, 256
        %v1403 = vpop.permute.xlu0 %1402
        %s1405 = sor.u32 256, 8
        %1406 = vbcast.lane.b32.xlu0 %v1400, %s1405
        %v1407 = vpop.permute.xlu0 %1406
        %v1408 = vlaneseq
        %v1409 = vshrl.u32 %v1408, 7
        %v1410 = vsub.s32 2, %v1409
        %v1411 = vrot.slane %v308, %v1410
        %1413 = vbcast.lane.b32.xlu0 %v1411, 256
        %v1414 = vpop.permute.xlu0 %1413
        %s1416 = sor.u32 256, 8
        %1417 = vbcast.lane.b32.xlu0 %v1411, %s1416
        %v1418 = vpop.permute.xlu0 %1417
        %v1419 = vlaneseq
        %v1420 = vshrl.u32 %v1419, 7
        %v1421 = vsub.s32 3, %v1420
        %v1422 = vrot.slane %v308, %v1421
        %1424 = vbcast.lane.b32.xlu0 %v1422, 256
        %v1425 = vpop.permute.xlu0 %1424
        %s1427 = sor.u32 256, 8
        %1428 = vbcast.lane.b32.xlu0 %v1422, %s1427
        %v1429 = vpop.permute.xlu0 %1428
        %v1430 = vlaneseq
        %v1431 = vshrl.u32 %v1430, 7
        %v1432 = vsub.s32 4, %v1431
        %v1433 = vrot.slane %v308, %v1432
        %1435 = vbcast.lane.b32.xlu0 %v1433, 256
        %v1436 = vpop.permute.xlu0 %1435
        %s1438 = sor.u32 256, 8
        %1439 = vbcast.lane.b32.xlu0 %v1433, %s1438
        %v1440 = vpop.permute.xlu0 %1439
        %v1441 = vlaneseq
        %v1442 = vshrl.u32 %v1441, 7
        %v1443 = vsub.s32 5, %v1442
        %v1444 = vrot.slane %v308, %v1443
        %1446 = vbcast.lane.b32.xlu0 %v1444, 256
        %v1447 = vpop.permute.xlu0 %1446
        %s1449 = sor.u32 256, 8
        %1450 = vbcast.lane.b32.xlu0 %v1444, %s1449
        %v1451 = vpop.permute.xlu0 %1450
        %v1452 = vlaneseq
        %v1453 = vshrl.u32 %v1452, 7
        %v1454 = vsub.s32 6, %v1453
        %v1455 = vrot.slane %v308, %v1454
        %1457 = vbcast.lane.b32.xlu0 %v1455, 256
        %v1458 = vpop.permute.xlu0 %1457
        %s1460 = sor.u32 256, 8
        %1461 = vbcast.lane.b32.xlu0 %v1455, %s1460
        %v1462 = vpop.permute.xlu0 %1461
        %v1463 = vlaneseq
        %v1464 = vshrl.u32 %v1463, 7
        %v1465 = vsub.s32 7, %v1464
        %v1466 = vrot.slane %v308, %v1465
        %1468 = vbcast.lane.b32.xlu0 %v1466, 256
        %v1469 = vpop.permute.xlu0 %1468
        %s1471 = sor.u32 256, 8
        %1472 = vbcast.lane.b32.xlu0 %v1466, %s1471
        %v1473 = vpop.permute.xlu0 %1472
        %v1474 = vlaneseq
        %v1475 = vshrl.u32 %v1474, 7
        %v1476 = vsub.s32 0, %v1475
        %v1477 = vrot.slane %v309, %v1476
        %1479 = vbcast.lane.b32.xlu0 %v1477, 256
        %v1480 = vpop.permute.xlu0 %1479
        %s1482 = sor.u32 256, 8
        %1483 = vbcast.lane.b32.xlu0 %v1477, %s1482
        %v1484 = vpop.permute.xlu0 %1483
        %v1485 = vlaneseq
        %v1486 = vshrl.u32 %v1485, 7
        %v1487 = vsub.s32 1, %v1486
        %v1488 = vrot.slane %v309, %v1487
        %1490 = vbcast.lane.b32.xlu0 %v1488, 256
        %v1491 = vpop.permute.xlu0 %1490
        %s1493 = sor.u32 256, 8
        %1494 = vbcast.lane.b32.xlu0 %v1488, %s1493
        %v1495 = vpop.permute.xlu0 %1494
        %v1496 = vlaneseq
        %v1497 = vshrl.u32 %v1496, 7
        %v1498 = vsub.s32 2, %v1497
        %v1499 = vrot.slane %v309, %v1498
        %1501 = vbcast.lane.b32.xlu0 %v1499, 256
        %v1502 = vpop.permute.xlu0 %1501
        %s1504 = sor.u32 256, 8
        %1505 = vbcast.lane.b32.xlu0 %v1499, %s1504
        %v1506 = vpop.permute.xlu0 %1505
        %v1507 = vlaneseq
        %v1508 = vshrl.u32 %v1507, 7
        %v1509 = vsub.s32 3, %v1508
        %v1510 = vrot.slane %v309, %v1509
        %1512 = vbcast.lane.b32.xlu0 %v1510, 256
        %v1513 = vpop.permute.xlu0 %1512
        %s1515 = sor.u32 256, 8
        %1516 = vbcast.lane.b32.xlu0 %v1510, %s1515
        %v1517 = vpop.permute.xlu0 %1516
        %v1518 = vlaneseq
        %v1519 = vshrl.u32 %v1518, 7
        %v1520 = vsub.s32 4, %v1519
        %v1521 = vrot.slane %v309, %v1520
        %1523 = vbcast.lane.b32.xlu0 %v1521, 256
        %v1524 = vpop.permute.xlu0 %1523
        %s1526 = sor.u32 256, 8
        %1527 = vbcast.lane.b32.xlu0 %v1521, %s1526
        %v1528 = vpop.permute.xlu0 %1527
        %v1529 = vlaneseq
        %v1530 = vshrl.u32 %v1529, 7
        %v1531 = vsub.s32 5, %v1530
        %v1532 = vrot.slane %v309, %v1531
        %1534 = vbcast.lane.b32.xlu0 %v1532, 256
        %v1535 = vpop.permute.xlu0 %1534
        %s1537 = sor.u32 256, 8
        %1538 = vbcast.lane.b32.xlu0 %v1532, %s1537
        %v1539 = vpop.permute.xlu0 %1538
        %v1540 = vlaneseq
        %v1541 = vshrl.u32 %v1540, 7
        %v1542 = vsub.s32 6, %v1541
        %v1543 = vrot.slane %v309, %v1542
        %1545 = vbcast.lane.b32.xlu0 %v1543, 256
        %v1546 = vpop.permute.xlu0 %1545
        %s1548 = sor.u32 256, 8
        %1549 = vbcast.lane.b32.xlu0 %v1543, %s1548
        %v1550 = vpop.permute.xlu0 %1549
        %v1551 = vlaneseq
        %v1552 = vshrl.u32 %v1551, 7
        %v1553 = vsub.s32 7, %v1552
        %v1554 = vrot.slane %v309, %v1553
        %1556 = vbcast.lane.b32.xlu0 %v1554, 256
        %v1557 = vpop.permute.xlu0 %1556
        %s1559 = sor.u32 256, 8
        %1560 = vbcast.lane.b32.xlu0 %v1554, %s1559
        %v1561 = vpop.permute.xlu0 %1560
        %v1562 = vlaneseq
        %v1563 = vshrl.u32 %v1562, 7
        %v1564 = vsub.s32 0, %v1563
        %v1565 = vrot.slane %v310, %v1564
        %1567 = vbcast.lane.b32.xlu0 %v1565, 256
        %v1568 = vpop.permute.xlu0 %1567
        %s1570 = sor.u32 256, 8
        %1571 = vbcast.lane.b32.xlu0 %v1565, %s1570
        %v1572 = vpop.permute.xlu0 %1571
        %v1573 = vlaneseq
        %v1574 = vshrl.u32 %v1573, 7
        %v1575 = vsub.s32 1, %v1574
        %v1576 = vrot.slane %v310, %v1575
        %1578 = vbcast.lane.b32.xlu0 %v1576, 256
        %v1579 = vpop.permute.xlu0 %1578
        %s1581 = sor.u32 256, 8
        %1582 = vbcast.lane.b32.xlu0 %v1576, %s1581
        %v1583 = vpop.permute.xlu0 %1582
        %v1584 = vlaneseq
        %v1585 = vshrl.u32 %v1584, 7
        %v1586 = vsub.s32 2, %v1585
        %v1587 = vrot.slane %v310, %v1586
        %1589 = vbcast.lane.b32.xlu0 %v1587, 256
        %v1590 = vpop.permute.xlu0 %1589
        %s1592 = sor.u32 256, 8
        %1593 = vbcast.lane.b32.xlu0 %v1587, %s1592
        %v1594 = vpop.permute.xlu0 %1593
        %v1595 = vlaneseq
        %v1596 = vshrl.u32 %v1595, 7
        %v1597 = vsub.s32 3, %v1596
        %v1598 = vrot.slane %v310, %v1597
        %1600 = vbcast.lane.b32.xlu0 %v1598, 256
        %v1601 = vpop.permute.xlu0 %1600
        %s1603 = sor.u32 256, 8
        %1604 = vbcast.lane.b32.xlu0 %v1598, %s1603
        %v1605 = vpop.permute.xlu0 %1604
        %v1606 = vlaneseq
        %v1607 = vshrl.u32 %v1606, 7
        %v1608 = vsub.s32 4, %v1607
        %v1609 = vrot.slane %v310, %v1608
        %1611 = vbcast.lane.b32.xlu0 %v1609, 256
        %v1612 = vpop.permute.xlu0 %1611
        %s1614 = sor.u32 256, 8
        %1615 = vbcast.lane.b32.xlu0 %v1609, %s1614
        %v1616 = vpop.permute.xlu0 %1615
        %v1617 = vlaneseq
        %v1618 = vshrl.u32 %v1617, 7
        %v1619 = vsub.s32 5, %v1618
        %v1620 = vrot.slane %v310, %v1619
        %1622 = vbcast.lane.b32.xlu0 %v1620, 256
        %v1623 = vpop.permute.xlu0 %1622
        %s1625 = sor.u32 256, 8
        %1626 = vbcast.lane.b32.xlu0 %v1620, %s1625
        %v1627 = vpop.permute.xlu0 %1626
        %v1628 = vlaneseq
        %v1629 = vshrl.u32 %v1628, 7
        %v1630 = vsub.s32 6, %v1629
        %v1631 = vrot.slane %v310, %v1630
        %1633 = vbcast.lane.b32.xlu0 %v1631, 256
        %v1634 = vpop.permute.xlu0 %1633
        %s1636 = sor.u32 256, 8
        %1637 = vbcast.lane.b32.xlu0 %v1631, %s1636
        %v1638 = vpop.permute.xlu0 %1637
        %v1639 = vlaneseq
        %v1640 = vshrl.u32 %v1639, 7
        %v1641 = vsub.s32 7, %v1640
        %v1642 = vrot.slane %v310, %v1641
        %1644 = vbcast.lane.b32.xlu0 %v1642, 256
        %v1645 = vpop.permute.xlu0 %1644
        %s1647 = sor.u32 256, 8
        %1648 = vbcast.lane.b32.xlu0 %v1642, %s1647
        %v1649 = vpop.permute.xlu0 %1648
        %v1650 = vlaneseq
        %v1651 = vshrl.u32 %v1650, 7
        %v1652 = vsub.s32 0, %v1651
        %v1653 = vrot.slane %v311, %v1652
        %1655 = vbcast.lane.b32.xlu0 %v1653, 256
        %v1656 = vpop.permute.xlu0 %1655
        %s1658 = sor.u32 256, 8
        %1659 = vbcast.lane.b32.xlu0 %v1653, %s1658
        %v1660 = vpop.permute.xlu0 %1659
        %v1661 = vlaneseq
        %v1662 = vshrl.u32 %v1661, 7
        %v1663 = vsub.s32 1, %v1662
        %v1664 = vrot.slane %v311, %v1663
        %1666 = vbcast.lane.b32.xlu0 %v1664, 256
        %v1667 = vpop.permute.xlu0 %1666
        %s1669 = sor.u32 256, 8
        %1670 = vbcast.lane.b32.xlu0 %v1664, %s1669
        %v1671 = vpop.permute.xlu0 %1670
        %v1672 = vlaneseq
        %v1673 = vshrl.u32 %v1672, 7
        %v1674 = vsub.s32 2, %v1673
        %v1675 = vrot.slane %v311, %v1674
        %1677 = vbcast.lane.b32.xlu0 %v1675, 256
        %v1678 = vpop.permute.xlu0 %1677
        %s1680 = sor.u32 256, 8
        %1681 = vbcast.lane.b32.xlu0 %v1675, %s1680
        %v1682 = vpop.permute.xlu0 %1681
        %v1683 = vlaneseq
        %v1684 = vshrl.u32 %v1683, 7
        %v1685 = vsub.s32 3, %v1684
        %v1686 = vrot.slane %v311, %v1685
        %1688 = vbcast.lane.b32.xlu0 %v1686, 256
        %v1689 = vpop.permute.xlu0 %1688
        %s1691 = sor.u32 256, 8
        %1692 = vbcast.lane.b32.xlu0 %v1686, %s1691
        %v1693 = vpop.permute.xlu0 %1692
        %v1694 = vlaneseq
        %v1695 = vshrl.u32 %v1694, 7
        %v1696 = vsub.s32 4, %v1695
        %v1697 = vrot.slane %v311, %v1696
        %1699 = vbcast.lane.b32.xlu0 %v1697, 256
        %v1700 = vpop.permute.xlu0 %1699
        %s1702 = sor.u32 256, 8
        %1703 = vbcast.lane.b32.xlu0 %v1697, %s1702
        %v1704 = vpop.permute.xlu0 %1703
        %v1705 = vlaneseq
        %v1706 = vshrl.u32 %v1705, 7
        %v1707 = vsub.s32 5, %v1706
        %v1708 = vrot.slane %v311, %v1707
        %1710 = vbcast.lane.b32.xlu0 %v1708, 256
        %v1711 = vpop.permute.xlu0 %1710
        %s1713 = sor.u32 256, 8
        %1714 = vbcast.lane.b32.xlu0 %v1708, %s1713
        %v1715 = vpop.permute.xlu0 %1714
        %v1716 = vlaneseq
        %v1717 = vshrl.u32 %v1716, 7
        %v1718 = vsub.s32 6, %v1717
        %v1719 = vrot.slane %v311, %v1718
        %1721 = vbcast.lane.b32.xlu0 %v1719, 256
        %v1722 = vpop.permute.xlu0 %1721
        %s1724 = sor.u32 256, 8
        %1725 = vbcast.lane.b32.xlu0 %v1719, %s1724
        %v1726 = vpop.permute.xlu0 %1725
        %v1727 = vlaneseq
        %v1728 = vshrl.u32 %v1727, 7
        %v1729 = vsub.s32 7, %v1728
        %v1730 = vrot.slane %v311, %v1729
        %1732 = vbcast.lane.b32.xlu0 %v1730, 256
        %v1733 = vpop.permute.xlu0 %1732
        %s1735 = sor.u32 256, 8
        %1736 = vbcast.lane.b32.xlu0 %v1730, %s1735
        %v1737 = vpop.permute.xlu0 %1736
        %vm1738 = vcmask 7168
        %v1739 = vsel %vm1738, %v336, %v1040
        %v1740 = vsel %vm1738, %v340, %v1044
        %v1741 = vsel %vm1738, %v347, %v1051
        %v1742 = vsel %vm1738, %v351, %v1055
        %v1743 = vsel %vm1738, %v358, %v1062
        %v1744 = vsel %vm1738, %v362, %v1066
        %v1745 = vsel %vm1738, %v369, %v1073
        %v1746 = vsel %vm1738, %v373, %v1077
        %v1747 = vsel %vm1738, %v380, %v1084
        %v1748 = vsel %vm1738, %v384, %v1088
        %v1749 = vsel %vm1738, %v391, %v1095
        %v1750 = vsel %vm1738, %v395, %v1099
        %v1751 = vsel %vm1738, %v402, %v1106
        %v1752 = vsel %vm1738, %v406, %v1110
        %v1753 = vsel %vm1738, %v413, %v1117
        %v1754 = vsel %vm1738, %v417, %v1121
        %v1755 = vsel %vm1738, %v424, %v1128
        %v1756 = vsel %vm1738, %v428, %v1132
        %v1757 = vsel %vm1738, %v435, %v1139
        %v1758 = vsel %vm1738, %v439, %v1143
        %v1759 = vsel %vm1738, %v446, %v1150
        %v1760 = vsel %vm1738, %v450, %v1154
        %v1761 = vsel %vm1738, %v457, %v1161
        %v1762 = vsel %vm1738, %v461, %v1165
        %v1763 = vsel %vm1738, %v468, %v1172
        %v1764 = vsel %vm1738, %v472, %v1176
        %v1765 = vsel %vm1738, %v479, %v1183
        %v1766 = vsel %vm1738, %v483, %v1187
        %v1767 = vsel %vm1738, %v490, %v1194
        %v1768 = vsel %vm1738, %v494, %v1198
        %v1769 = vsel %vm1738, %v501, %v1205
        %v1770 = vsel %vm1738, %v505, %v1209
        %v1771 = vsel %vm1738, %v512, %v1216
        %v1772 = vsel %vm1738, %v516, %v1220
        %v1773 = vsel %vm1738, %v523, %v1227
        %v1774 = vsel %vm1738, %v527, %v1231
        %v1775 = vsel %vm1738, %v534, %v1238
        %v1776 = vsel %vm1738, %v538, %v1242
        %v1777 = vsel %vm1738, %v545, %v1249
        %v1778 = vsel %vm1738, %v549, %v1253
        %v1779 = vsel %vm1738, %v556, %v1260
        %v1780 = vsel %vm1738, %v560, %v1264
        %v1781 = vsel %vm1738, %v567, %v1271
        %v1782 = vsel %vm1738, %v571, %v1275
        %v1783 = vsel %vm1738, %v578, %v1282
        %v1784 = vsel %vm1738, %v582, %v1286
        %v1785 = vsel %vm1738, %v589, %v1293
        %v1786 = vsel %vm1738, %v593, %v1297
        %v1787 = vsel %vm1738, %v600, %v1304
        %v1788 = vsel %vm1738, %v604, %v1308
        %v1789 = vsel %vm1738, %v611, %v1315
        %v1790 = vsel %vm1738, %v615, %v1319
        %v1791 = vsel %vm1738, %v622, %v1326
        %v1792 = vsel %vm1738, %v626, %v1330
        %v1793 = vsel %vm1738, %v633, %v1337
        %v1794 = vsel %vm1738, %v637, %v1341
        %v1795 = vsel %vm1738, %v644, %v1348
        %v1796 = vsel %vm1738, %v648, %v1352
        %v1797 = vsel %vm1738, %v655, %v1359
        %v1798 = vsel %vm1738, %v659, %v1363
        %v1799 = vsel %vm1738, %v666, %v1370
        %v1800 = vsel %vm1738, %v670, %v1374
        %v1801 = vsel %vm1738, %v677, %v1381
        %v1802 = vsel %vm1738, %v681, %v1385
        %v1803 = vsel %vm1738, %v688, %v1392
        %v1804 = vsel %vm1738, %v692, %v1396
        %v1805 = vsel %vm1738, %v699, %v1403
        %v1806 = vsel %vm1738, %v703, %v1407
        %v1807 = vsel %vm1738, %v710, %v1414
        %v1808 = vsel %vm1738, %v714, %v1418
        %v1809 = vsel %vm1738, %v721, %v1425
        %v1810 = vsel %vm1738, %v725, %v1429
        %v1811 = vsel %vm1738, %v732, %v1436
        %v1812 = vsel %vm1738, %v736, %v1440
        %v1813 = vsel %vm1738, %v743, %v1447
        %v1814 = vsel %vm1738, %v747, %v1451
        %v1815 = vsel %vm1738, %v754, %v1458
        %v1816 = vsel %vm1738, %v758, %v1462
        %v1817 = vsel %vm1738, %v765, %v1469
        %v1818 = vsel %vm1738, %v769, %v1473
        %v1819 = vsel %vm1738, %v776, %v1480
        %v1820 = vsel %vm1738, %v780, %v1484
        %v1821 = vsel %vm1738, %v787, %v1491
        %v1822 = vsel %vm1738, %v791, %v1495
        %v1823 = vsel %vm1738, %v798, %v1502
        %v1824 = vsel %vm1738, %v802, %v1506
        %v1825 = vsel %vm1738, %v809, %v1513
        %v1826 = vsel %vm1738, %v813, %v1517
        %v1827 = vsel %vm1738, %v820, %v1524
        %v1828 = vsel %vm1738, %v824, %v1528
        %v1829 = vsel %vm1738, %v831, %v1535
        %v1830 = vsel %vm1738, %v835, %v1539
        %v1831 = vsel %vm1738, %v842, %v1546
        %v1832 = vsel %vm1738, %v846, %v1550
        %v1833 = vsel %vm1738, %v853, %v1557
        %v1834 = vsel %vm1738, %v857, %v1561
        %v1835 = vsel %vm1738, %v864, %v1568
        %v1836 = vsel %vm1738, %v868, %v1572
        %v1837 = vsel %vm1738, %v875, %v1579
        %v1838 = vsel %vm1738, %v879, %v1583
        %v1839 = vsel %vm1738, %v886, %v1590
        %v1840 = vsel %vm1738, %v890, %v1594
        %v1841 = vsel %vm1738, %v897, %v1601
        %v1842 = vsel %vm1738, %v901, %v1605
        %v1843 = vsel %vm1738, %v908, %v1612
        %v1844 = vsel %vm1738, %v912, %v1616
        %v1845 = vsel %vm1738, %v919, %v1623
        %v1846 = vsel %vm1738, %v923, %v1627
        %v1847 = vsel %vm1738, %v930, %v1634
        %v1848 = vsel %vm1738, %v934, %v1638
        %v1849 = vsel %vm1738, %v941, %v1645
        %v1850 = vsel %vm1738, %v945, %v1649
        %v1851 = vsel %vm1738, %v952, %v1656
        %v1852 = vsel %vm1738, %v956, %v1660
        %v1853 = vsel %vm1738, %v963, %v1667
        %v1854 = vsel %vm1738, %v967, %v1671
        %v1855 = vsel %vm1738, %v974, %v1678
        %v1856 = vsel %vm1738, %v978, %v1682
        %v1857 = vsel %vm1738, %v985, %v1689
        %v1858 = vsel %vm1738, %v989, %v1693
        %v1859 = vsel %vm1738, %v996, %v1700
        %v1860 = vsel %vm1738, %v1000, %v1704
        %v1861 = vsel %vm1738, %v1007, %v1711
        %v1862 = vsel %vm1738, %v1011, %v1715
        %v1863 = vsel %vm1738, %v1018, %v1722
        %v1864 = vsel %vm1738, %v1022, %v1726
        %v1865 = vsel %vm1738, %v1029, %v1733
        %v1866 = vsel %vm1738, %v1033, %v1737
        %v1867 = vlaneseq
        %v1868 = vshrl.u32 %v1867, 7
        %v1869 = vsub.s32 0, %v1868
        %v1870 = vrot.slane %v313, %v1869
        %1872 = vbcast.lane.b32.xlu0 %v1870, 256
        %v1873 = vpop.permute.xlu0 %1872
        %s1875 = sor.u32 256, 8
        %1876 = vbcast.lane.b32.xlu0 %v1870, %s1875
        %v1877 = vpop.permute.xlu0 %1876
        %v1878 = vlaneseq
        %v1879 = vshrl.u32 %v1878, 7
        %v1880 = vsub.s32 1, %v1879
        %v1881 = vrot.slane %v313, %v1880
        %1883 = vbcast.lane.b32.xlu0 %v1881, 256
        %v1884 = vpop.permute.xlu0 %1883
        %s1886 = sor.u32 256, 8
        %1887 = vbcast.lane.b32.xlu0 %v1881, %s1886
        %v1888 = vpop.permute.xlu0 %1887
        %v1889 = vlaneseq
        %v1890 = vshrl.u32 %v1889, 7
        %v1891 = vsub.s32 2, %v1890
        %v1892 = vrot.slane %v313, %v1891
        %1894 = vbcast.lane.b32.xlu0 %v1892, 256
        %v1895 = vpop.permute.xlu0 %1894
        %s1897 = sor.u32 256, 8
        %1898 = vbcast.lane.b32.xlu0 %v1892, %s1897
        %v1899 = vpop.permute.xlu0 %1898
        %v1900 = vlaneseq
        %v1901 = vshrl.u32 %v1900, 7
        %v1902 = vsub.s32 3, %v1901
        %v1903 = vrot.slane %v313, %v1902
        %1905 = vbcast.lane.b32.xlu0 %v1903, 256
        %v1906 = vpop.permute.xlu0 %1905
        %s1908 = sor.u32 256, 8
        %1909 = vbcast.lane.b32.xlu0 %v1903, %s1908
        %v1910 = vpop.permute.xlu0 %1909
        %v1911 = vlaneseq
        %v1912 = vshrl.u32 %v1911, 7
        %v1913 = vsub.s32 4, %v1912
        %v1914 = vrot.slane %v313, %v1913
        %1916 = vbcast.lane.b32.xlu0 %v1914, 256
        %v1917 = vpop.permute.xlu0 %1916
        %s1919 = sor.u32 256, 8
        %1920 = vbcast.lane.b32.xlu0 %v1914, %s1919
        %v1921 = vpop.permute.xlu0 %1920
        %v1922 = vlaneseq
        %v1923 = vshrl.u32 %v1922, 7
        %v1924 = vsub.s32 5, %v1923
        %v1925 = vrot.slane %v313, %v1924
        %1927 = vbcast.lane.b32.xlu0 %v1925, 256
        %v1928 = vpop.permute.xlu0 %1927
        %s1930 = sor.u32 256, 8
        %1931 = vbcast.lane.b32.xlu0 %v1925, %s1930
        %v1932 = vpop.permute.xlu0 %1931
        %v1933 = vlaneseq
        %v1934 = vshrl.u32 %v1933, 7
        %v1935 = vsub.s32 6, %v1934
        %v1936 = vrot.slane %v313, %v1935
        %1938 = vbcast.lane.b32.xlu0 %v1936, 256
        %v1939 = vpop.permute.xlu0 %1938
        %s1941 = sor.u32 256, 8
        %1942 = vbcast.lane.b32.xlu0 %v1936, %s1941
        %v1943 = vpop.permute.xlu0 %1942
        %v1944 = vlaneseq
        %v1945 = vshrl.u32 %v1944, 7
        %v1946 = vsub.s32 7, %v1945
        %v1947 = vrot.slane %v313, %v1946
        %1949 = vbcast.lane.b32.xlu0 %v1947, 256
        %v1950 = vpop.permute.xlu0 %1949
        %s1952 = sor.u32 256, 8
        %1953 = vbcast.lane.b32.xlu0 %v1947, %s1952
        %v1954 = vpop.permute.xlu0 %1953
        %v1955 = vlaneseq
        %v1956 = vshrl.u32 %v1955, 7
        %v1957 = vsub.s32 0, %v1956
        %v1958 = vrot.slane %v314, %v1957
        %1960 = vbcast.lane.b32.xlu0 %v1958, 256
        %v1961 = vpop.permute.xlu0 %1960
        %s1963 = sor.u32 256, 8
        %1964 = vbcast.lane.b32.xlu0 %v1958, %s1963
        %v1965 = vpop.permute.xlu0 %1964
        %v1966 = vlaneseq
        %v1967 = vshrl.u32 %v1966, 7
        %v1968 = vsub.s32 1, %v1967
        %v1969 = vrot.slane %v314, %v1968
        %1971 = vbcast.lane.b32.xlu0 %v1969, 256
        %v1972 = vpop.permute.xlu0 %1971
        %s1974 = sor.u32 256, 8
        %1975 = vbcast.lane.b32.xlu0 %v1969, %s1974
        %v1976 = vpop.permute.xlu0 %1975
        %v1977 = vlaneseq
        %v1978 = vshrl.u32 %v1977, 7
        %v1979 = vsub.s32 2, %v1978
        %v1980 = vrot.slane %v314, %v1979
        %1982 = vbcast.lane.b32.xlu0 %v1980, 256
        %v1983 = vpop.permute.xlu0 %1982
        %s1985 = sor.u32 256, 8
        %1986 = vbcast.lane.b32.xlu0 %v1980, %s1985
        %v1987 = vpop.permute.xlu0 %1986
        %v1988 = vlaneseq
        %v1989 = vshrl.u32 %v1988, 7
        %v1990 = vsub.s32 3, %v1989
        %v1991 = vrot.slane %v314, %v1990
        %1993 = vbcast.lane.b32.xlu0 %v1991, 256
        %v1994 = vpop.permute.xlu0 %1993
        %s1996 = sor.u32 256, 8
        %1997 = vbcast.lane.b32.xlu0 %v1991, %s1996
        %v1998 = vpop.permute.xlu0 %1997
        %v1999 = vlaneseq
        %v2000 = vshrl.u32 %v1999, 7
        %v2001 = vsub.s32 4, %v2000
        %v2002 = vrot.slane %v314, %v2001
        %2004 = vbcast.lane.b32.xlu0 %v2002, 256
        %v2005 = vpop.permute.xlu0 %2004
        %s2007 = sor.u32 256, 8
        %2008 = vbcast.lane.b32.xlu0 %v2002, %s2007
        %v2009 = vpop.permute.xlu0 %2008
        %v2010 = vlaneseq
        %v2011 = vshrl.u32 %v2010, 7
        %v2012 = vsub.s32 5, %v2011
        %v2013 = vrot.slane %v314, %v2012
        %2015 = vbcast.lane.b32.xlu0 %v2013, 256
        %v2016 = vpop.permute.xlu0 %2015
        %s2018 = sor.u32 256, 8
        %2019 = vbcast.lane.b32.xlu0 %v2013, %s2018
        %v2020 = vpop.permute.xlu0 %2019
        %v2021 = vlaneseq
        %v2022 = vshrl.u32 %v2021, 7
        %v2023 = vsub.s32 6, %v2022
        %v2024 = vrot.slane %v314, %v2023
        %2026 = vbcast.lane.b32.xlu0 %v2024, 256
        %v2027 = vpop.permute.xlu0 %2026
        %s2029 = sor.u32 256, 8
        %2030 = vbcast.lane.b32.xlu0 %v2024, %s2029
        %v2031 = vpop.permute.xlu0 %2030
        %v2032 = vlaneseq
        %v2033 = vshrl.u32 %v2032, 7
        %v2034 = vsub.s32 7, %v2033
        %v2035 = vrot.slane %v314, %v2034
        %2037 = vbcast.lane.b32.xlu0 %v2035, 256
        %v2038 = vpop.permute.xlu0 %2037
        %s2040 = sor.u32 256, 8
        %2041 = vbcast.lane.b32.xlu0 %v2035, %s2040
        %v2042 = vpop.permute.xlu0 %2041
        %v2043 = vlaneseq
        %v2044 = vshrl.u32 %v2043, 7
        %v2045 = vsub.s32 0, %v2044
        %v2046 = vrot.slane %v315, %v2045
        %2048 = vbcast.lane.b32.xlu0 %v2046, 256
        %v2049 = vpop.permute.xlu0 %2048
        %s2051 = sor.u32 256, 8
        %2052 = vbcast.lane.b32.xlu0 %v2046, %s2051
        %v2053 = vpop.permute.xlu0 %2052
        %v2054 = vlaneseq
        %v2055 = vshrl.u32 %v2054, 7
        %v2056 = vsub.s32 1, %v2055
        %v2057 = vrot.slane %v315, %v2056
        %2059 = vbcast.lane.b32.xlu0 %v2057, 256
        %v2060 = vpop.permute.xlu0 %2059
        %s2062 = sor.u32 256, 8
        %2063 = vbcast.lane.b32.xlu0 %v2057, %s2062
        %v2064 = vpop.permute.xlu0 %2063
        %v2065 = vlaneseq
        %v2066 = vshrl.u32 %v2065, 7
        %v2067 = vsub.s32 2, %v2066
        %v2068 = vrot.slane %v315, %v2067
        %2070 = vbcast.lane.b32.xlu0 %v2068, 256
        %v2071 = vpop.permute.xlu0 %2070
        %s2073 = sor.u32 256, 8
        %2074 = vbcast.lane.b32.xlu0 %v2068, %s2073
        %v2075 = vpop.permute.xlu0 %2074
        %v2076 = vlaneseq
        %v2077 = vshrl.u32 %v2076, 7
        %v2078 = vsub.s32 3, %v2077
        %v2079 = vrot.slane %v315, %v2078
        %2081 = vbcast.lane.b32.xlu0 %v2079, 256
        %v2082 = vpop.permute.xlu0 %2081
        %s2084 = sor.u32 256, 8
        %2085 = vbcast.lane.b32.xlu0 %v2079, %s2084
        %v2086 = vpop.permute.xlu0 %2085
        %v2087 = vlaneseq
        %v2088 = vshrl.u32 %v2087, 7
        %v2089 = vsub.s32 4, %v2088
        %v2090 = vrot.slane %v315, %v2089
        %2092 = vbcast.lane.b32.xlu0 %v2090, 256
        %v2093 = vpop.permute.xlu0 %2092
        %s2095 = sor.u32 256, 8
        %2096 = vbcast.lane.b32.xlu0 %v2090, %s2095
        %v2097 = vpop.permute.xlu0 %2096
        %v2098 = vlaneseq
        %v2099 = vshrl.u32 %v2098, 7
        %v2100 = vsub.s32 5, %v2099
        %v2101 = vrot.slane %v315, %v2100
        %2103 = vbcast.lane.b32.xlu0 %v2101, 256
        %v2104 = vpop.permute.xlu0 %2103
        %s2106 = sor.u32 256, 8
        %2107 = vbcast.lane.b32.xlu0 %v2101, %s2106
        %v2108 = vpop.permute.xlu0 %2107
        %v2109 = vlaneseq
        %v2110 = vshrl.u32 %v2109, 7
        %v2111 = vsub.s32 6, %v2110
        %v2112 = vrot.slane %v315, %v2111
        %2114 = vbcast.lane.b32.xlu0 %v2112, 256
        %v2115 = vpop.permute.xlu0 %2114
        %s2117 = sor.u32 256, 8
        %2118 = vbcast.lane.b32.xlu0 %v2112, %s2117
        %v2119 = vpop.permute.xlu0 %2118
        %v2120 = vlaneseq
        %v2121 = vshrl.u32 %v2120, 7
        %v2122 = vsub.s32 7, %v2121
        %v2123 = vrot.slane %v315, %v2122
        %2125 = vbcast.lane.b32.xlu0 %v2123, 256
        %v2126 = vpop.permute.xlu0 %2125
        %s2128 = sor.u32 256, 8
        %2129 = vbcast.lane.b32.xlu0 %v2123, %s2128
        %v2130 = vpop.permute.xlu0 %2129
        %v2131 = vlaneseq
        %v2132 = vshrl.u32 %v2131, 7
        %v2133 = vsub.s32 0, %v2132
        %v2134 = vrot.slane %v316, %v2133
        %2136 = vbcast.lane.b32.xlu0 %v2134, 256
        %v2137 = vpop.permute.xlu0 %2136
        %s2139 = sor.u32 256, 8
        %2140 = vbcast.lane.b32.xlu0 %v2134, %s2139
        %v2141 = vpop.permute.xlu0 %2140
        %v2142 = vlaneseq
        %v2143 = vshrl.u32 %v2142, 7
        %v2144 = vsub.s32 1, %v2143
        %v2145 = vrot.slane %v316, %v2144
        %2147 = vbcast.lane.b32.xlu0 %v2145, 256
        %v2148 = vpop.permute.xlu0 %2147
        %s2150 = sor.u32 256, 8
        %2151 = vbcast.lane.b32.xlu0 %v2145, %s2150
        %v2152 = vpop.permute.xlu0 %2151
        %v2153 = vlaneseq
        %v2154 = vshrl.u32 %v2153, 7
        %v2155 = vsub.s32 2, %v2154
        %v2156 = vrot.slane %v316, %v2155
        %2158 = vbcast.lane.b32.xlu0 %v2156, 256
        %v2159 = vpop.permute.xlu0 %2158
        %s2161 = sor.u32 256, 8
        %2162 = vbcast.lane.b32.xlu0 %v2156, %s2161
        %v2163 = vpop.permute.xlu0 %2162
        %v2164 = vlaneseq
        %v2165 = vshrl.u32 %v2164, 7
        %v2166 = vsub.s32 3, %v2165
        %v2167 = vrot.slane %v316, %v2166
        %2169 = vbcast.lane.b32.xlu0 %v2167, 256
        %v2170 = vpop.permute.xlu0 %2169
        %s2172 = sor.u32 256, 8
        %2173 = vbcast.lane.b32.xlu0 %v2167, %s2172
        %v2174 = vpop.permute.xlu0 %2173
        %v2175 = vlaneseq
        %v2176 = vshrl.u32 %v2175, 7
        %v2177 = vsub.s32 4, %v2176
        %v2178 = vrot.slane %v316, %v2177
        %2180 = vbcast.lane.b32.xlu0 %v2178, 256
        %v2181 = vpop.permute.xlu0 %2180
        %s2183 = sor.u32 256, 8
        %2184 = vbcast.lane.b32.xlu0 %v2178, %s2183
        %v2185 = vpop.permute.xlu0 %2184
        %v2186 = vlaneseq
        %v2187 = vshrl.u32 %v2186, 7
        %v2188 = vsub.s32 5, %v2187
        %v2189 = vrot.slane %v316, %v2188
        %2191 = vbcast.lane.b32.xlu0 %v2189, 256
        %v2192 = vpop.permute.xlu0 %2191
        %s2194 = sor.u32 256, 8
        %2195 = vbcast.lane.b32.xlu0 %v2189, %s2194
        %v2196 = vpop.permute.xlu0 %2195
        %v2197 = vlaneseq
        %v2198 = vshrl.u32 %v2197, 7
        %v2199 = vsub.s32 6, %v2198
        %v2200 = vrot.slane %v316, %v2199
        %2202 = vbcast.lane.b32.xlu0 %v2200, 256
        %v2203 = vpop.permute.xlu0 %2202
        %s2205 = sor.u32 256, 8
        %2206 = vbcast.lane.b32.xlu0 %v2200, %s2205
        %v2207 = vpop.permute.xlu0 %2206
        %v2208 = vlaneseq
        %v2209 = vshrl.u32 %v2208, 7
        %v2210 = vsub.s32 7, %v2209
        %v2211 = vrot.slane %v316, %v2210
        %2213 = vbcast.lane.b32.xlu0 %v2211, 256
        %v2214 = vpop.permute.xlu0 %2213
        %s2216 = sor.u32 256, 8
        %2217 = vbcast.lane.b32.xlu0 %v2211, %s2216
        %v2218 = vpop.permute.xlu0 %2217
        %v2219 = vlaneseq
        %v2220 = vshrl.u32 %v2219, 7
        %v2221 = vsub.s32 0, %v2220
        %v2222 = vrot.slane %v317, %v2221
        %2224 = vbcast.lane.b32.xlu0 %v2222, 256
        %v2225 = vpop.permute.xlu0 %2224
        %s2227 = sor.u32 256, 8
        %2228 = vbcast.lane.b32.xlu0 %v2222, %s2227
        %v2229 = vpop.permute.xlu0 %2228
        %v2230 = vlaneseq
        %v2231 = vshrl.u32 %v2230, 7
        %v2232 = vsub.s32 1, %v2231
        %v2233 = vrot.slane %v317, %v2232
        %2235 = vbcast.lane.b32.xlu0 %v2233, 256
        %v2236 = vpop.permute.xlu0 %2235
        %s2238 = sor.u32 256, 8
        %2239 = vbcast.lane.b32.xlu0 %v2233, %s2238
        %v2240 = vpop.permute.xlu0 %2239
        %v2241 = vlaneseq
        %v2242 = vshrl.u32 %v2241, 7
        %v2243 = vsub.s32 2, %v2242
        %v2244 = vrot.slane %v317, %v2243
        %2246 = vbcast.lane.b32.xlu0 %v2244, 256
        %v2247 = vpop.permute.xlu0 %2246
        %s2249 = sor.u32 256, 8
        %2250 = vbcast.lane.b32.xlu0 %v2244, %s2249
        %v2251 = vpop.permute.xlu0 %2250
        %v2252 = vlaneseq
        %v2253 = vshrl.u32 %v2252, 7
        %v2254 = vsub.s32 3, %v2253
        %v2255 = vrot.slane %v317, %v2254
        %2257 = vbcast.lane.b32.xlu0 %v2255, 256
        %v2258 = vpop.permute.xlu0 %2257
        %s2260 = sor.u32 256, 8
        %2261 = vbcast.lane.b32.xlu0 %v2255, %s2260
        %v2262 = vpop.permute.xlu0 %2261
        %v2263 = vlaneseq
        %v2264 = vshrl.u32 %v2263, 7
        %v2265 = vsub.s32 4, %v2264
        %v2266 = vrot.slane %v317, %v2265
        %2268 = vbcast.lane.b32.xlu0 %v2266, 256
        %v2269 = vpop.permute.xlu0 %2268
        %s2271 = sor.u32 256, 8
        %2272 = vbcast.lane.b32.xlu0 %v2266, %s2271
        %v2273 = vpop.permute.xlu0 %2272
        %v2274 = vlaneseq
        %v2275 = vshrl.u32 %v2274, 7
        %v2276 = vsub.s32 5, %v2275
        %v2277 = vrot.slane %v317, %v2276
        %2279 = vbcast.lane.b32.xlu0 %v2277, 256
        %v2280 = vpop.permute.xlu0 %2279
        %s2282 = sor.u32 256, 8
        %2283 = vbcast.lane.b32.xlu0 %v2277, %s2282
        %v2284 = vpop.permute.xlu0 %2283
        %v2285 = vlaneseq
        %v2286 = vshrl.u32 %v2285, 7
        %v2287 = vsub.s32 6, %v2286
        %v2288 = vrot.slane %v317, %v2287
        %2290 = vbcast.lane.b32.xlu0 %v2288, 256
        %v2291 = vpop.permute.xlu0 %2290
        %s2293 = sor.u32 256, 8
        %2294 = vbcast.lane.b32.xlu0 %v2288, %s2293
        %v2295 = vpop.permute.xlu0 %2294
        %v2296 = vlaneseq
        %v2297 = vshrl.u32 %v2296, 7
        %v2298 = vsub.s32 7, %v2297
        %v2299 = vrot.slane %v317, %v2298
        %2301 = vbcast.lane.b32.xlu0 %v2299, 256
        %v2302 = vpop.permute.xlu0 %2301
        %s2304 = sor.u32 256, 8
        %2305 = vbcast.lane.b32.xlu0 %v2299, %s2304
        %v2306 = vpop.permute.xlu0 %2305
        %v2307 = vlaneseq
        %v2308 = vshrl.u32 %v2307, 7
        %v2309 = vsub.s32 0, %v2308
        %v2310 = vrot.slane %v318, %v2309
        %2312 = vbcast.lane.b32.xlu0 %v2310, 256
        %v2313 = vpop.permute.xlu0 %2312
        %s2315 = sor.u32 256, 8
        %2316 = vbcast.lane.b32.xlu0 %v2310, %s2315
        %v2317 = vpop.permute.xlu0 %2316
        %v2318 = vlaneseq
        %v2319 = vshrl.u32 %v2318, 7
        %v2320 = vsub.s32 1, %v2319
        %v2321 = vrot.slane %v318, %v2320
        %2323 = vbcast.lane.b32.xlu0 %v2321, 256
        %v2324 = vpop.permute.xlu0 %2323
        %s2326 = sor.u32 256, 8
        %2327 = vbcast.lane.b32.xlu0 %v2321, %s2326
        %v2328 = vpop.permute.xlu0 %2327
        %v2329 = vlaneseq
        %v2330 = vshrl.u32 %v2329, 7
        %v2331 = vsub.s32 2, %v2330
        %v2332 = vrot.slane %v318, %v2331
        %2334 = vbcast.lane.b32.xlu0 %v2332, 256
        %v2335 = vpop.permute.xlu0 %2334
        %s2337 = sor.u32 256, 8
        %2338 = vbcast.lane.b32.xlu0 %v2332, %s2337
        %v2339 = vpop.permute.xlu0 %2338
        %v2340 = vlaneseq
        %v2341 = vshrl.u32 %v2340, 7
        %v2342 = vsub.s32 3, %v2341
        %v2343 = vrot.slane %v318, %v2342
        %2345 = vbcast.lane.b32.xlu0 %v2343, 256
        %v2346 = vpop.permute.xlu0 %2345
        %s2348 = sor.u32 256, 8
        %2349 = vbcast.lane.b32.xlu0 %v2343, %s2348
        %v2350 = vpop.permute.xlu0 %2349
        %v2351 = vlaneseq
        %v2352 = vshrl.u32 %v2351, 7
        %v2353 = vsub.s32 4, %v2352
        %v2354 = vrot.slane %v318, %v2353
        %2356 = vbcast.lane.b32.xlu0 %v2354, 256
        %v2357 = vpop.permute.xlu0 %2356
        %s2359 = sor.u32 256, 8
        %2360 = vbcast.lane.b32.xlu0 %v2354, %s2359
        %v2361 = vpop.permute.xlu0 %2360
        %v2362 = vlaneseq
        %v2363 = vshrl.u32 %v2362, 7
        %v2364 = vsub.s32 5, %v2363
        %v2365 = vrot.slane %v318, %v2364
        %2367 = vbcast.lane.b32.xlu0 %v2365, 256
        %v2368 = vpop.permute.xlu0 %2367
        %s2370 = sor.u32 256, 8
        %2371 = vbcast.lane.b32.xlu0 %v2365, %s2370
        %v2372 = vpop.permute.xlu0 %2371
        %v2373 = vlaneseq
        %v2374 = vshrl.u32 %v2373, 7
        %v2375 = vsub.s32 6, %v2374
        %v2376 = vrot.slane %v318, %v2375
        %2378 = vbcast.lane.b32.xlu0 %v2376, 256
        %v2379 = vpop.permute.xlu0 %2378
        %s2381 = sor.u32 256, 8
        %2382 = vbcast.lane.b32.xlu0 %v2376, %s2381
        %v2383 = vpop.permute.xlu0 %2382
        %v2384 = vlaneseq
        %v2385 = vshrl.u32 %v2384, 7
        %v2386 = vsub.s32 7, %v2385
        %v2387 = vrot.slane %v318, %v2386
        %2389 = vbcast.lane.b32.xlu0 %v2387, 256
        %v2390 = vpop.permute.xlu0 %2389
        %s2392 = sor.u32 256, 8
        %2393 = vbcast.lane.b32.xlu0 %v2387, %s2392
        %v2394 = vpop.permute.xlu0 %2393
        %v2395 = vlaneseq
        %v2396 = vshrl.u32 %v2395, 7
        %v2397 = vsub.s32 0, %v2396
        %v2398 = vrot.slane %v319, %v2397
        %2400 = vbcast.lane.b32.xlu0 %v2398, 256
        %v2401 = vpop.permute.xlu0 %2400
        %s2403 = sor.u32 256, 8
        %2404 = vbcast.lane.b32.xlu0 %v2398, %s2403
        %v2405 = vpop.permute.xlu0 %2404
        %v2406 = vlaneseq
        %v2407 = vshrl.u32 %v2406, 7
        %v2408 = vsub.s32 1, %v2407
        %v2409 = vrot.slane %v319, %v2408
        %2411 = vbcast.lane.b32.xlu0 %v2409, 256
        %v2412 = vpop.permute.xlu0 %2411
        %s2414 = sor.u32 256, 8
        %2415 = vbcast.lane.b32.xlu0 %v2409, %s2414
        %v2416 = vpop.permute.xlu0 %2415
        %v2417 = vlaneseq
        %v2418 = vshrl.u32 %v2417, 7
        %v2419 = vsub.s32 2, %v2418
        %v2420 = vrot.slane %v319, %v2419
        %2422 = vbcast.lane.b32.xlu0 %v2420, 256
        %v2423 = vpop.permute.xlu0 %2422
        %s2425 = sor.u32 256, 8
        %2426 = vbcast.lane.b32.xlu0 %v2420, %s2425
        %v2427 = vpop.permute.xlu0 %2426
        %v2428 = vlaneseq
        %v2429 = vshrl.u32 %v2428, 7
        %v2430 = vsub.s32 3, %v2429
        %v2431 = vrot.slane %v319, %v2430
        %2433 = vbcast.lane.b32.xlu0 %v2431, 256
        %v2434 = vpop.permute.xlu0 %2433
        %s2436 = sor.u32 256, 8
        %2437 = vbcast.lane.b32.xlu0 %v2431, %s2436
        %v2438 = vpop.permute.xlu0 %2437
        %v2439 = vlaneseq
        %v2440 = vshrl.u32 %v2439, 7
        %v2441 = vsub.s32 4, %v2440
        %v2442 = vrot.slane %v319, %v2441
        %2444 = vbcast.lane.b32.xlu0 %v2442, 256
        %v2445 = vpop.permute.xlu0 %2444
        %s2447 = sor.u32 256, 8
        %2448 = vbcast.lane.b32.xlu0 %v2442, %s2447
        %v2449 = vpop.permute.xlu0 %2448
        %v2450 = vlaneseq
        %v2451 = vshrl.u32 %v2450, 7
        %v2452 = vsub.s32 5, %v2451
        %v2453 = vrot.slane %v319, %v2452
        %2455 = vbcast.lane.b32.xlu0 %v2453, 256
        %v2456 = vpop.permute.xlu0 %2455
        %s2458 = sor.u32 256, 8
        %2459 = vbcast.lane.b32.xlu0 %v2453, %s2458
        %v2460 = vpop.permute.xlu0 %2459
        %v2461 = vlaneseq
        %v2462 = vshrl.u32 %v2461, 7
        %v2463 = vsub.s32 6, %v2462
        %v2464 = vrot.slane %v319, %v2463
        %2466 = vbcast.lane.b32.xlu0 %v2464, 256
        %v2467 = vpop.permute.xlu0 %2466
        %s2469 = sor.u32 256, 8
        %2470 = vbcast.lane.b32.xlu0 %v2464, %s2469
        %v2471 = vpop.permute.xlu0 %2470
        %v2472 = vlaneseq
        %v2473 = vshrl.u32 %v2472, 7
        %v2474 = vsub.s32 7, %v2473
        %v2475 = vrot.slane %v319, %v2474
        %2477 = vbcast.lane.b32.xlu0 %v2475, 256
        %v2478 = vpop.permute.xlu0 %2477
        %s2480 = sor.u32 256, 8
        %2481 = vbcast.lane.b32.xlu0 %v2475, %s2480
        %v2482 = vpop.permute.xlu0 %2481
        %v2483 = vlaneseq
        %v2484 = vshrl.u32 %v2483, 7
        %v2485 = vsub.s32 0, %v2484
        %v2486 = vrot.slane %v320, %v2485
        %2488 = vbcast.lane.b32.xlu0 %v2486, 256
        %v2489 = vpop.permute.xlu0 %2488
        %s2491 = sor.u32 256, 8
        %2492 = vbcast.lane.b32.xlu0 %v2486, %s2491
        %v2493 = vpop.permute.xlu0 %2492
        %v2494 = vlaneseq
        %v2495 = vshrl.u32 %v2494, 7
        %v2496 = vsub.s32 1, %v2495
        %v2497 = vrot.slane %v320, %v2496
        %2499 = vbcast.lane.b32.xlu0 %v2497, 256
        %v2500 = vpop.permute.xlu0 %2499
        %s2502 = sor.u32 256, 8
        %2503 = vbcast.lane.b32.xlu0 %v2497, %s2502
        %v2504 = vpop.permute.xlu0 %2503
        %v2505 = vlaneseq
        %v2506 = vshrl.u32 %v2505, 7
        %v2507 = vsub.s32 2, %v2506
        %v2508 = vrot.slane %v320, %v2507
        %2510 = vbcast.lane.b32.xlu0 %v2508, 256
        %v2511 = vpop.permute.xlu0 %2510
        %s2513 = sor.u32 256, 8
        %2514 = vbcast.lane.b32.xlu0 %v2508, %s2513
        %v2515 = vpop.permute.xlu0 %2514
        %v2516 = vlaneseq
        %v2517 = vshrl.u32 %v2516, 7
        %v2518 = vsub.s32 3, %v2517
        %v2519 = vrot.slane %v320, %v2518
        %2521 = vbcast.lane.b32.xlu0 %v2519, 256
        %v2522 = vpop.permute.xlu0 %2521
        %s2524 = sor.u32 256, 8
        %2525 = vbcast.lane.b32.xlu0 %v2519, %s2524
        %v2526 = vpop.permute.xlu0 %2525
        %v2527 = vlaneseq
        %v2528 = vshrl.u32 %v2527, 7
        %v2529 = vsub.s32 4, %v2528
        %v2530 = vrot.slane %v320, %v2529
        %2532 = vbcast.lane.b32.xlu0 %v2530, 256
        %v2533 = vpop.permute.xlu0 %2532
        %s2535 = sor.u32 256, 8
        %2536 = vbcast.lane.b32.xlu0 %v2530, %s2535
        %v2537 = vpop.permute.xlu0 %2536
        %v2538 = vlaneseq
        %v2539 = vshrl.u32 %v2538, 7
        %v2540 = vsub.s32 5, %v2539
        %v2541 = vrot.slane %v320, %v2540
        %2543 = vbcast.lane.b32.xlu0 %v2541, 256
        %v2544 = vpop.permute.xlu0 %2543
        %s2546 = sor.u32 256, 8
        %2547 = vbcast.lane.b32.xlu0 %v2541, %s2546
        %v2548 = vpop.permute.xlu0 %2547
        %v2549 = vlaneseq
        %v2550 = vshrl.u32 %v2549, 7
        %v2551 = vsub.s32 6, %v2550
        %v2552 = vrot.slane %v320, %v2551
        %2554 = vbcast.lane.b32.xlu0 %v2552, 256
        %v2555 = vpop.permute.xlu0 %2554
        %s2557 = sor.u32 256, 8
        %2558 = vbcast.lane.b32.xlu0 %v2552, %s2557
        %v2559 = vpop.permute.xlu0 %2558
        %v2560 = vlaneseq
        %v2561 = vshrl.u32 %v2560, 7
        %v2562 = vsub.s32 7, %v2561
        %v2563 = vrot.slane %v320, %v2562
        %2565 = vbcast.lane.b32.xlu0 %v2563, 256
        %v2566 = vpop.permute.xlu0 %2565
        %s2568 = sor.u32 256, 8
        %2569 = vbcast.lane.b32.xlu0 %v2563, %s2568
        %v2570 = vpop.permute.xlu0 %2569
        %v2571 = vlaneseq
        %v2572 = vshrl.u32 %v2571, 7
        %v2573 = vsub.s32 0, %v2572
        %v2574 = vrot.slane %v322, %v2573
        %2576 = vbcast.lane.b32.xlu0 %v2574, 256
        %v2577 = vpop.permute.xlu0 %2576
        %s2579 = sor.u32 256, 8
        %2580 = vbcast.lane.b32.xlu0 %v2574, %s2579
        %v2581 = vpop.permute.xlu0 %2580
        %v2582 = vlaneseq
        %v2583 = vshrl.u32 %v2582, 7
        %v2584 = vsub.s32 1, %v2583
        %v2585 = vrot.slane %v322, %v2584
        %2587 = vbcast.lane.b32.xlu0 %v2585, 256
        %v2588 = vpop.permute.xlu0 %2587
        %s2590 = sor.u32 256, 8
        %2591 = vbcast.lane.b32.xlu0 %v2585, %s2590
        %v2592 = vpop.permute.xlu0 %2591
        %v2593 = vlaneseq
        %v2594 = vshrl.u32 %v2593, 7
        %v2595 = vsub.s32 2, %v2594
        %v2596 = vrot.slane %v322, %v2595
        %2598 = vbcast.lane.b32.xlu0 %v2596, 256
        %v2599 = vpop.permute.xlu0 %2598
        %s2601 = sor.u32 256, 8
        %2602 = vbcast.lane.b32.xlu0 %v2596, %s2601
        %v2603 = vpop.permute.xlu0 %2602
        %v2604 = vlaneseq
        %v2605 = vshrl.u32 %v2604, 7
        %v2606 = vsub.s32 3, %v2605
        %v2607 = vrot.slane %v322, %v2606
        %2609 = vbcast.lane.b32.xlu0 %v2607, 256
        %v2610 = vpop.permute.xlu0 %2609
        %s2612 = sor.u32 256, 8
        %2613 = vbcast.lane.b32.xlu0 %v2607, %s2612
        %v2614 = vpop.permute.xlu0 %2613
        %v2615 = vlaneseq
        %v2616 = vshrl.u32 %v2615, 7
        %v2617 = vsub.s32 4, %v2616
        %v2618 = vrot.slane %v322, %v2617
        %2620 = vbcast.lane.b32.xlu0 %v2618, 256
        %v2621 = vpop.permute.xlu0 %2620
        %s2623 = sor.u32 256, 8
        %2624 = vbcast.lane.b32.xlu0 %v2618, %s2623
        %v2625 = vpop.permute.xlu0 %2624
        %v2626 = vlaneseq
        %v2627 = vshrl.u32 %v2626, 7
        %v2628 = vsub.s32 5, %v2627
        %v2629 = vrot.slane %v322, %v2628
        %2631 = vbcast.lane.b32.xlu0 %v2629, 256
        %v2632 = vpop.permute.xlu0 %2631
        %s2634 = sor.u32 256, 8
        %2635 = vbcast.lane.b32.xlu0 %v2629, %s2634
        %v2636 = vpop.permute.xlu0 %2635
        %v2637 = vlaneseq
        %v2638 = vshrl.u32 %v2637, 7
        %v2639 = vsub.s32 6, %v2638
        %v2640 = vrot.slane %v322, %v2639
        %2642 = vbcast.lane.b32.xlu0 %v2640, 256
        %v2643 = vpop.permute.xlu0 %2642
        %s2645 = sor.u32 256, 8
        %2646 = vbcast.lane.b32.xlu0 %v2640, %s2645
        %v2647 = vpop.permute.xlu0 %2646
        %v2648 = vlaneseq
        %v2649 = vshrl.u32 %v2648, 7
        %v2650 = vsub.s32 7, %v2649
        %v2651 = vrot.slane %v322, %v2650
        %2653 = vbcast.lane.b32.xlu0 %v2651, 256
        %v2654 = vpop.permute.xlu0 %2653
        %s2656 = sor.u32 256, 8
        %2657 = vbcast.lane.b32.xlu0 %v2651, %s2656
        %v2658 = vpop.permute.xlu0 %2657
        %v2659 = vlaneseq
        %v2660 = vshrl.u32 %v2659, 7
        %v2661 = vsub.s32 0, %v2660
        %v2662 = vrot.slane %v323, %v2661
        %2664 = vbcast.lane.b32.xlu0 %v2662, 256
        %v2665 = vpop.permute.xlu0 %2664
        %s2667 = sor.u32 256, 8
        %2668 = vbcast.lane.b32.xlu0 %v2662, %s2667
        %v2669 = vpop.permute.xlu0 %2668
        %v2670 = vlaneseq
        %v2671 = vshrl.u32 %v2670, 7
        %v2672 = vsub.s32 1, %v2671
        %v2673 = vrot.slane %v323, %v2672
        %2675 = vbcast.lane.b32.xlu0 %v2673, 256
        %v2676 = vpop.permute.xlu0 %2675
        %s2678 = sor.u32 256, 8
        %2679 = vbcast.lane.b32.xlu0 %v2673, %s2678
        %v2680 = vpop.permute.xlu0 %2679
        %v2681 = vlaneseq
        %v2682 = vshrl.u32 %v2681, 7
        %v2683 = vsub.s32 2, %v2682
        %v2684 = vrot.slane %v323, %v2683
        %2686 = vbcast.lane.b32.xlu0 %v2684, 256
        %v2687 = vpop.permute.xlu0 %2686
        %s2689 = sor.u32 256, 8
        %2690 = vbcast.lane.b32.xlu0 %v2684, %s2689
        %v2691 = vpop.permute.xlu0 %2690
        %v2692 = vlaneseq
        %v2693 = vshrl.u32 %v2692, 7
        %v2694 = vsub.s32 3, %v2693
        %v2695 = vrot.slane %v323, %v2694
        %2697 = vbcast.lane.b32.xlu0 %v2695, 256
        %v2698 = vpop.permute.xlu0 %2697
        %s2700 = sor.u32 256, 8
        %2701 = vbcast.lane.b32.xlu0 %v2695, %s2700
        %v2702 = vpop.permute.xlu0 %2701
        %v2703 = vlaneseq
        %v2704 = vshrl.u32 %v2703, 7
        %v2705 = vsub.s32 4, %v2704
        %v2706 = vrot.slane %v323, %v2705
        %2708 = vbcast.lane.b32.xlu0 %v2706, 256
        %v2709 = vpop.permute.xlu0 %2708
        %s2711 = sor.u32 256, 8
        %2712 = vbcast.lane.b32.xlu0 %v2706, %s2711
        %v2713 = vpop.permute.xlu0 %2712
        %v2714 = vlaneseq
        %v2715 = vshrl.u32 %v2714, 7
        %v2716 = vsub.s32 5, %v2715
        %v2717 = vrot.slane %v323, %v2716
        %2719 = vbcast.lane.b32.xlu0 %v2717, 256
        %v2720 = vpop.permute.xlu0 %2719
        %s2722 = sor.u32 256, 8
        %2723 = vbcast.lane.b32.xlu0 %v2717, %s2722
        %v2724 = vpop.permute.xlu0 %2723
        %v2725 = vlaneseq
        %v2726 = vshrl.u32 %v2725, 7
        %v2727 = vsub.s32 6, %v2726
        %v2728 = vrot.slane %v323, %v2727
        %2730 = vbcast.lane.b32.xlu0 %v2728, 256
        %v2731 = vpop.permute.xlu0 %2730
        %s2733 = sor.u32 256, 8
        %2734 = vbcast.lane.b32.xlu0 %v2728, %s2733
        %v2735 = vpop.permute.xlu0 %2734
        %v2736 = vlaneseq
        %v2737 = vshrl.u32 %v2736, 7
        %v2738 = vsub.s32 7, %v2737
        %v2739 = vrot.slane %v323, %v2738
        %2741 = vbcast.lane.b32.xlu0 %v2739, 256
        %v2742 = vpop.permute.xlu0 %2741
        %s2744 = sor.u32 256, 8
        %2745 = vbcast.lane.b32.xlu0 %v2739, %s2744
        %v2746 = vpop.permute.xlu0 %2745
        %v2747 = vlaneseq
        %v2748 = vshrl.u32 %v2747, 7
        %v2749 = vsub.s32 0, %v2748
        %v2750 = vrot.slane %v324, %v2749
        %2752 = vbcast.lane.b32.xlu0 %v2750, 256
        %v2753 = vpop.permute.xlu0 %2752
        %s2755 = sor.u32 256, 8
        %2756 = vbcast.lane.b32.xlu0 %v2750, %s2755
        %v2757 = vpop.permute.xlu0 %2756
        %v2758 = vlaneseq
        %v2759 = vshrl.u32 %v2758, 7
        %v2760 = vsub.s32 1, %v2759
        %v2761 = vrot.slane %v324, %v2760
        %2763 = vbcast.lane.b32.xlu0 %v2761, 256
        %v2764 = vpop.permute.xlu0 %2763
        %s2766 = sor.u32 256, 8
        %2767 = vbcast.lane.b32.xlu0 %v2761, %s2766
        %v2768 = vpop.permute.xlu0 %2767
        %v2769 = vlaneseq
        %v2770 = vshrl.u32 %v2769, 7
        %v2771 = vsub.s32 2, %v2770
        %v2772 = vrot.slane %v324, %v2771
        %2774 = vbcast.lane.b32.xlu0 %v2772, 256
        %v2775 = vpop.permute.xlu0 %2774
        %s2777 = sor.u32 256, 8
        %2778 = vbcast.lane.b32.xlu0 %v2772, %s2777
        %v2779 = vpop.permute.xlu0 %2778
        %v2780 = vlaneseq
        %v2781 = vshrl.u32 %v2780, 7
        %v2782 = vsub.s32 3, %v2781
        %v2783 = vrot.slane %v324, %v2782
        %2785 = vbcast.lane.b32.xlu0 %v2783, 256
        %v2786 = vpop.permute.xlu0 %2785
        %s2788 = sor.u32 256, 8
        %2789 = vbcast.lane.b32.xlu0 %v2783, %s2788
        %v2790 = vpop.permute.xlu0 %2789
        %v2791 = vlaneseq
        %v2792 = vshrl.u32 %v2791, 7
        %v2793 = vsub.s32 4, %v2792
        %v2794 = vrot.slane %v324, %v2793
        %2796 = vbcast.lane.b32.xlu0 %v2794, 256
        %v2797 = vpop.permute.xlu0 %2796
        %s2799 = sor.u32 256, 8
        %2800 = vbcast.lane.b32.xlu0 %v2794, %s2799
        %v2801 = vpop.permute.xlu0 %2800
        %v2802 = vlaneseq
        %v2803 = vshrl.u32 %v2802, 7
        %v2804 = vsub.s32 5, %v2803
        %v2805 = vrot.slane %v324, %v2804
        %2807 = vbcast.lane.b32.xlu0 %v2805, 256
        %v2808 = vpop.permute.xlu0 %2807
        %s2810 = sor.u32 256, 8
        %2811 = vbcast.lane.b32.xlu0 %v2805, %s2810
        %v2812 = vpop.permute.xlu0 %2811
        %v2813 = vlaneseq
        %v2814 = vshrl.u32 %v2813, 7
        %v2815 = vsub.s32 6, %v2814
        %v2816 = vrot.slane %v324, %v2815
        %2818 = vbcast.lane.b32.xlu0 %v2816, 256
        %v2819 = vpop.permute.xlu0 %2818
        %s2821 = sor.u32 256, 8
        %2822 = vbcast.lane.b32.xlu0 %v2816, %s2821
        %v2823 = vpop.permute.xlu0 %2822
        %v2824 = vlaneseq
        %v2825 = vshrl.u32 %v2824, 7
        %v2826 = vsub.s32 7, %v2825
        %v2827 = vrot.slane %v324, %v2826
        %2829 = vbcast.lane.b32.xlu0 %v2827, 256
        %v2830 = vpop.permute.xlu0 %2829
        %s2832 = sor.u32 256, 8
        %2833 = vbcast.lane.b32.xlu0 %v2827, %s2832
        %v2834 = vpop.permute.xlu0 %2833
        %v2835 = vlaneseq
        %v2836 = vshrl.u32 %v2835, 7
        %v2837 = vsub.s32 0, %v2836
        %v2838 = vrot.slane %v325, %v2837
        %2840 = vbcast.lane.b32.xlu0 %v2838, 256
        %v2841 = vpop.permute.xlu0 %2840
        %s2843 = sor.u32 256, 8
        %2844 = vbcast.lane.b32.xlu0 %v2838, %s2843
        %v2845 = vpop.permute.xlu0 %2844
        %v2846 = vlaneseq
        %v2847 = vshrl.u32 %v2846, 7
        %v2848 = vsub.s32 1, %v2847
        %v2849 = vrot.slane %v325, %v2848
        %2851 = vbcast.lane.b32.xlu0 %v2849, 256
        %v2852 = vpop.permute.xlu0 %2851
        %s2854 = sor.u32 256, 8
        %2855 = vbcast.lane.b32.xlu0 %v2849, %s2854
        %v2856 = vpop.permute.xlu0 %2855
        %v2857 = vlaneseq
        %v2858 = vshrl.u32 %v2857, 7
        %v2859 = vsub.s32 2, %v2858
        %v2860 = vrot.slane %v325, %v2859
        %2862 = vbcast.lane.b32.xlu0 %v2860, 256
        %v2863 = vpop.permute.xlu0 %2862
        %s2865 = sor.u32 256, 8
        %2866 = vbcast.lane.b32.xlu0 %v2860, %s2865
        %v2867 = vpop.permute.xlu0 %2866
        %v2868 = vlaneseq
        %v2869 = vshrl.u32 %v2868, 7
        %v2870 = vsub.s32 3, %v2869
        %v2871 = vrot.slane %v325, %v2870
        %2873 = vbcast.lane.b32.xlu0 %v2871, 256
        %v2874 = vpop.permute.xlu0 %2873
        %s2876 = sor.u32 256, 8
        %2877 = vbcast.lane.b32.xlu0 %v2871, %s2876
        %v2878 = vpop.permute.xlu0 %2877
        %v2879 = vlaneseq
        %v2880 = vshrl.u32 %v2879, 7
        %v2881 = vsub.s32 4, %v2880
        %v2882 = vrot.slane %v325, %v2881
        %2884 = vbcast.lane.b32.xlu0 %v2882, 256
        %v2885 = vpop.permute.xlu0 %2884
        %s2887 = sor.u32 256, 8
        %2888 = vbcast.lane.b32.xlu0 %v2882, %s2887
        %v2889 = vpop.permute.xlu0 %2888
        %v2890 = vlaneseq
        %v2891 = vshrl.u32 %v2890, 7
        %v2892 = vsub.s32 5, %v2891
        %v2893 = vrot.slane %v325, %v2892
        %2895 = vbcast.lane.b32.xlu0 %v2893, 256
        %v2896 = vpop.permute.xlu0 %2895
        %s2898 = sor.u32 256, 8
        %2899 = vbcast.lane.b32.xlu0 %v2893, %s2898
        %v2900 = vpop.permute.xlu0 %2899
        %v2901 = vlaneseq
        %v2902 = vshrl.u32 %v2901, 7
        %v2903 = vsub.s32 6, %v2902
        %v2904 = vrot.slane %v325, %v2903
        %2906 = vbcast.lane.b32.xlu0 %v2904, 256
        %v2907 = vpop.permute.xlu0 %2906
        %s2909 = sor.u32 256, 8
        %2910 = vbcast.lane.b32.xlu0 %v2904, %s2909
        %v2911 = vpop.permute.xlu0 %2910
        %v2912 = vlaneseq
        %v2913 = vshrl.u32 %v2912, 7
        %v2914 = vsub.s32 7, %v2913
        %v2915 = vrot.slane %v325, %v2914
        %2917 = vbcast.lane.b32.xlu0 %v2915, 256
        %v2918 = vpop.permute.xlu0 %2917
        %s2920 = sor.u32 256, 8
        %2921 = vbcast.lane.b32.xlu0 %v2915, %s2920
        %v2922 = vpop.permute.xlu0 %2921
        %v2923 = vlaneseq
        %v2924 = vshrl.u32 %v2923, 7
        %v2925 = vsub.s32 0, %v2924
        %v2926 = vrot.slane %v326, %v2925
        %2928 = vbcast.lane.b32.xlu0 %v2926, 256
        %v2929 = vpop.permute.xlu0 %2928
        %s2931 = sor.u32 256, 8
        %2932 = vbcast.lane.b32.xlu0 %v2926, %s2931
        %v2933 = vpop.permute.xlu0 %2932
        %v2934 = vlaneseq
        %v2935 = vshrl.u32 %v2934, 7
        %v2936 = vsub.s32 1, %v2935
        %v2937 = vrot.slane %v326, %v2936
        %2939 = vbcast.lane.b32.xlu0 %v2937, 256
        %v2940 = vpop.permute.xlu0 %2939
        %s2942 = sor.u32 256, 8
        %2943 = vbcast.lane.b32.xlu0 %v2937, %s2942
        %v2944 = vpop.permute.xlu0 %2943
        %v2945 = vlaneseq
        %v2946 = vshrl.u32 %v2945, 7
        %v2947 = vsub.s32 2, %v2946
        %v2948 = vrot.slane %v326, %v2947
        %2950 = vbcast.lane.b32.xlu0 %v2948, 256
        %v2951 = vpop.permute.xlu0 %2950
        %s2953 = sor.u32 256, 8
        %2954 = vbcast.lane.b32.xlu0 %v2948, %s2953
        %v2955 = vpop.permute.xlu0 %2954
        %v2956 = vlaneseq
        %v2957 = vshrl.u32 %v2956, 7
        %v2958 = vsub.s32 3, %v2957
        %v2959 = vrot.slane %v326, %v2958
        %2961 = vbcast.lane.b32.xlu0 %v2959, 256
        %v2962 = vpop.permute.xlu0 %2961
        %s2964 = sor.u32 256, 8
        %2965 = vbcast.lane.b32.xlu0 %v2959, %s2964
        %v2966 = vpop.permute.xlu0 %2965
        %v2967 = vlaneseq
        %v2968 = vshrl.u32 %v2967, 7
        %v2969 = vsub.s32 4, %v2968
        %v2970 = vrot.slane %v326, %v2969
        %2972 = vbcast.lane.b32.xlu0 %v2970, 256
        %v2973 = vpop.permute.xlu0 %2972
        %s2975 = sor.u32 256, 8
        %2976 = vbcast.lane.b32.xlu0 %v2970, %s2975
        %v2977 = vpop.permute.xlu0 %2976
        %v2978 = vlaneseq
        %v2979 = vshrl.u32 %v2978, 7
        %v2980 = vsub.s32 5, %v2979
        %v2981 = vrot.slane %v326, %v2980
        %2983 = vbcast.lane.b32.xlu0 %v2981, 256
        %v2984 = vpop.permute.xlu0 %2983
        %s2986 = sor.u32 256, 8
        %2987 = vbcast.lane.b32.xlu0 %v2981, %s2986
        %v2988 = vpop.permute.xlu0 %2987
        %v2989 = vlaneseq
        %v2990 = vshrl.u32 %v2989, 7
        %v2991 = vsub.s32 6, %v2990
        %v2992 = vrot.slane %v326, %v2991
        %2994 = vbcast.lane.b32.xlu0 %v2992, 256
        %v2995 = vpop.permute.xlu0 %2994
        %s2997 = sor.u32 256, 8
        %2998 = vbcast.lane.b32.xlu0 %v2992, %s2997
        %v2999 = vpop.permute.xlu0 %2998
        %v3000 = vlaneseq
        %v3001 = vshrl.u32 %v3000, 7
        %v3002 = vsub.s32 7, %v3001
        %v3003 = vrot.slane %v326, %v3002
        %3005 = vbcast.lane.b32.xlu0 %v3003, 256
        %v3006 = vpop.permute.xlu0 %3005
        %s3008 = sor.u32 256, 8
        %3009 = vbcast.lane.b32.xlu0 %v3003, %s3008
        %v3010 = vpop.permute.xlu0 %3009
        %v3011 = vlaneseq
        %v3012 = vshrl.u32 %v3011, 7
        %v3013 = vsub.s32 0, %v3012
        %v3014 = vrot.slane %v327, %v3013
        %3016 = vbcast.lane.b32.xlu0 %v3014, 256
        %v3017 = vpop.permute.xlu0 %3016
        %s3019 = sor.u32 256, 8
        %3020 = vbcast.lane.b32.xlu0 %v3014, %s3019
        %v3021 = vpop.permute.xlu0 %3020
        %v3022 = vlaneseq
        %v3023 = vshrl.u32 %v3022, 7
        %v3024 = vsub.s32 1, %v3023
        %v3025 = vrot.slane %v327, %v3024
        %3027 = vbcast.lane.b32.xlu0 %v3025, 256
        %v3028 = vpop.permute.xlu0 %3027
        %s3030 = sor.u32 256, 8
        %3031 = vbcast.lane.b32.xlu0 %v3025, %s3030
        %v3032 = vpop.permute.xlu0 %3031
        %v3033 = vlaneseq
        %v3034 = vshrl.u32 %v3033, 7
        %v3035 = vsub.s32 2, %v3034
        %v3036 = vrot.slane %v327, %v3035
        %3038 = vbcast.lane.b32.xlu0 %v3036, 256
        %v3039 = vpop.permute.xlu0 %3038
        %s3041 = sor.u32 256, 8
        %3042 = vbcast.lane.b32.xlu0 %v3036, %s3041
        %v3043 = vpop.permute.xlu0 %3042
        %v3044 = vlaneseq
        %v3045 = vshrl.u32 %v3044, 7
        %v3046 = vsub.s32 3, %v3045
        %v3047 = vrot.slane %v327, %v3046
        %3049 = vbcast.lane.b32.xlu0 %v3047, 256
        %v3050 = vpop.permute.xlu0 %3049
        %s3052 = sor.u32 256, 8
        %3053 = vbcast.lane.b32.xlu0 %v3047, %s3052
        %v3054 = vpop.permute.xlu0 %3053
        %v3055 = vlaneseq
        %v3056 = vshrl.u32 %v3055, 7
        %v3057 = vsub.s32 4, %v3056
        %v3058 = vrot.slane %v327, %v3057
        %3060 = vbcast.lane.b32.xlu0 %v3058, 256
        %v3061 = vpop.permute.xlu0 %3060
        %s3063 = sor.u32 256, 8
        %3064 = vbcast.lane.b32.xlu0 %v3058, %s3063
        %v3065 = vpop.permute.xlu0 %3064
        %v3066 = vlaneseq
        %v3067 = vshrl.u32 %v3066, 7
        %v3068 = vsub.s32 5, %v3067
        %v3069 = vrot.slane %v327, %v3068
        %3071 = vbcast.lane.b32.xlu0 %v3069, 256
        %v3072 = vpop.permute.xlu0 %3071
        %s3074 = sor.u32 256, 8
        %3075 = vbcast.lane.b32.xlu0 %v3069, %s3074
        %v3076 = vpop.permute.xlu0 %3075
        %v3077 = vlaneseq
        %v3078 = vshrl.u32 %v3077, 7
        %v3079 = vsub.s32 6, %v3078
        %v3080 = vrot.slane %v327, %v3079
        %3082 = vbcast.lane.b32.xlu0 %v3080, 256
        %v3083 = vpop.permute.xlu0 %3082
        %s3085 = sor.u32 256, 8
        %3086 = vbcast.lane.b32.xlu0 %v3080, %s3085
        %v3087 = vpop.permute.xlu0 %3086
        %v3088 = vlaneseq
        %v3089 = vshrl.u32 %v3088, 7
        %v3090 = vsub.s32 7, %v3089
        %v3091 = vrot.slane %v327, %v3090
        %3093 = vbcast.lane.b32.xlu0 %v3091, 256
        %v3094 = vpop.permute.xlu0 %3093
        %s3096 = sor.u32 256, 8
        %3097 = vbcast.lane.b32.xlu0 %v3091, %s3096
        %v3098 = vpop.permute.xlu0 %3097
        %v3099 = vlaneseq
        %v3100 = vshrl.u32 %v3099, 7
        %v3101 = vsub.s32 0, %v3100
        %v3102 = vrot.slane %v328, %v3101
        %3104 = vbcast.lane.b32.xlu0 %v3102, 256
        %v3105 = vpop.permute.xlu0 %3104
        %s3107 = sor.u32 256, 8
        %3108 = vbcast.lane.b32.xlu0 %v3102, %s3107
        %v3109 = vpop.permute.xlu0 %3108
        %v3110 = vlaneseq
        %v3111 = vshrl.u32 %v3110, 7
        %v3112 = vsub.s32 1, %v3111
        %v3113 = vrot.slane %v328, %v3112
        %3115 = vbcast.lane.b32.xlu0 %v3113, 256
        %v3116 = vpop.permute.xlu0 %3115
        %s3118 = sor.u32 256, 8
        %3119 = vbcast.lane.b32.xlu0 %v3113, %s3118
        %v3120 = vpop.permute.xlu0 %3119
        %v3121 = vlaneseq
        %v3122 = vshrl.u32 %v3121, 7
        %v3123 = vsub.s32 2, %v3122
        %v3124 = vrot.slane %v328, %v3123
        %3126 = vbcast.lane.b32.xlu0 %v3124, 256
        %v3127 = vpop.permute.xlu0 %3126
        %s3129 = sor.u32 256, 8
        %3130 = vbcast.lane.b32.xlu0 %v3124, %s3129
        %v3131 = vpop.permute.xlu0 %3130
        %v3132 = vlaneseq
        %v3133 = vshrl.u32 %v3132, 7
        %v3134 = vsub.s32 3, %v3133
        %v3135 = vrot.slane %v328, %v3134
        %3137 = vbcast.lane.b32.xlu0 %v3135, 256
        %v3138 = vpop.permute.xlu0 %3137
        %s3140 = sor.u32 256, 8
        %3141 = vbcast.lane.b32.xlu0 %v3135, %s3140
        %v3142 = vpop.permute.xlu0 %3141
        %v3143 = vlaneseq
        %v3144 = vshrl.u32 %v3143, 7
        %v3145 = vsub.s32 4, %v3144
        %v3146 = vrot.slane %v328, %v3145
        %3148 = vbcast.lane.b32.xlu0 %v3146, 256
        %v3149 = vpop.permute.xlu0 %3148
        %s3151 = sor.u32 256, 8
        %3152 = vbcast.lane.b32.xlu0 %v3146, %s3151
        %v3153 = vpop.permute.xlu0 %3152
        %v3154 = vlaneseq
        %v3155 = vshrl.u32 %v3154, 7
        %v3156 = vsub.s32 5, %v3155
        %v3157 = vrot.slane %v328, %v3156
        %3159 = vbcast.lane.b32.xlu0 %v3157, 256
        %v3160 = vpop.permute.xlu0 %3159
        %s3162 = sor.u32 256, 8
        %3163 = vbcast.lane.b32.xlu0 %v3157, %s3162
        %v3164 = vpop.permute.xlu0 %3163
        %v3165 = vlaneseq
        %v3166 = vshrl.u32 %v3165, 7
        %v3167 = vsub.s32 6, %v3166
        %v3168 = vrot.slane %v328, %v3167
        %3170 = vbcast.lane.b32.xlu0 %v3168, 256
        %v3171 = vpop.permute.xlu0 %3170
        %s3173 = sor.u32 256, 8
        %3174 = vbcast.lane.b32.xlu0 %v3168, %s3173
        %v3175 = vpop.permute.xlu0 %3174
        %v3176 = vlaneseq
        %v3177 = vshrl.u32 %v3176, 7
        %v3178 = vsub.s32 7, %v3177
        %v3179 = vrot.slane %v328, %v3178
        %3181 = vbcast.lane.b32.xlu0 %v3179, 256
        %v3182 = vpop.permute.xlu0 %3181
        %s3184 = sor.u32 256, 8
        %3185 = vbcast.lane.b32.xlu0 %v3179, %s3184
        %v3186 = vpop.permute.xlu0 %3185
        %v3187 = vlaneseq
        %v3188 = vshrl.u32 %v3187, 7
        %v3189 = vsub.s32 0, %v3188
        %v3190 = vrot.slane %v329, %v3189
        %3192 = vbcast.lane.b32.xlu0 %v3190, 256
        %v3193 = vpop.permute.xlu0 %3192
        %s3195 = sor.u32 256, 8
        %3196 = vbcast.lane.b32.xlu0 %v3190, %s3195
        %v3197 = vpop.permute.xlu0 %3196
        %v3198 = vlaneseq
        %v3199 = vshrl.u32 %v3198, 7
        %v3200 = vsub.s32 1, %v3199
        %v3201 = vrot.slane %v329, %v3200
        %3203 = vbcast.lane.b32.xlu0 %v3201, 256
        %v3204 = vpop.permute.xlu0 %3203
        %s3206 = sor.u32 256, 8
        %3207 = vbcast.lane.b32.xlu0 %v3201, %s3206
        %v3208 = vpop.permute.xlu0 %3207
        %v3209 = vlaneseq
        %v3210 = vshrl.u32 %v3209, 7
        %v3211 = vsub.s32 2, %v3210
        %v3212 = vrot.slane %v329, %v3211
        %3214 = vbcast.lane.b32.xlu0 %v3212, 256
        %v3215 = vpop.permute.xlu0 %3214
        %s3217 = sor.u32 256, 8
        %3218 = vbcast.lane.b32.xlu0 %v3212, %s3217
        %v3219 = vpop.permute.xlu0 %3218
        %v3220 = vlaneseq
        %v3221 = vshrl.u32 %v3220, 7
        %v3222 = vsub.s32 3, %v3221
        %v3223 = vrot.slane %v329, %v3222
        %3225 = vbcast.lane.b32.xlu0 %v3223, 256
        %v3226 = vpop.permute.xlu0 %3225
        %s3228 = sor.u32 256, 8
        %3229 = vbcast.lane.b32.xlu0 %v3223, %s3228
        %v3230 = vpop.permute.xlu0 %3229
        %v3231 = vlaneseq
        %v3232 = vshrl.u32 %v3231, 7
        %v3233 = vsub.s32 4, %v3232
        %v3234 = vrot.slane %v329, %v3233
        %3236 = vbcast.lane.b32.xlu0 %v3234, 256
        %v3237 = vpop.permute.xlu0 %3236
        %s3239 = sor.u32 256, 8
        %3240 = vbcast.lane.b32.xlu0 %v3234, %s3239
        %v3241 = vpop.permute.xlu0 %3240
        %v3242 = vlaneseq
        %v3243 = vshrl.u32 %v3242, 7
        %v3244 = vsub.s32 5, %v3243
        %v3245 = vrot.slane %v329, %v3244
        %3247 = vbcast.lane.b32.xlu0 %v3245, 256
        %v3248 = vpop.permute.xlu0 %3247
        %s3250 = sor.u32 256, 8
        %3251 = vbcast.lane.b32.xlu0 %v3245, %s3250
        %v3252 = vpop.permute.xlu0 %3251
        %v3253 = vlaneseq
        %v3254 = vshrl.u32 %v3253, 7
        %v3255 = vsub.s32 6, %v3254
        %v3256 = vrot.slane %v329, %v3255
        %3258 = vbcast.lane.b32.xlu0 %v3256, 256
        %v3259 = vpop.permute.xlu0 %3258
        %s3261 = sor.u32 256, 8
        %3262 = vbcast.lane.b32.xlu0 %v3256, %s3261
        %v3263 = vpop.permute.xlu0 %3262
        %v3264 = vlaneseq
        %v3265 = vshrl.u32 %v3264, 7
        %v3266 = vsub.s32 7, %v3265
        %v3267 = vrot.slane %v329, %v3266
        %3269 = vbcast.lane.b32.xlu0 %v3267, 256
        %v3270 = vpop.permute.xlu0 %3269
        %s3272 = sor.u32 256, 8
        %3273 = vbcast.lane.b32.xlu0 %v3267, %s3272
        %v3274 = vpop.permute.xlu0 %3273
        %v3275 = vsel %vm1738, %v1873, %v2577
        %v3276 = vsel %vm1738, %v1877, %v2581
        %v3277 = vsel %vm1738, %v1884, %v2588
        %v3278 = vsel %vm1738, %v1888, %v2592
        %v3279 = vsel %vm1738, %v1895, %v2599
        %v3280 = vsel %vm1738, %v1899, %v2603
        %v3281 = vsel %vm1738, %v1906, %v2610
        %v3282 = vsel %vm1738, %v1910, %v2614
        %v3283 = vsel %vm1738, %v1917, %v2621
        %v3284 = vsel %vm1738, %v1921, %v2625
        %v3285 = vsel %vm1738, %v1928, %v2632
        %v3286 = vsel %vm1738, %v1932, %v2636
        %v3287 = vsel %vm1738, %v1939, %v2643
        %v3288 = vsel %vm1738, %v1943, %v2647
        %v3289 = vsel %vm1738, %v1950, %v2654
        %v3290 = vsel %vm1738, %v1954, %v2658
        %v3291 = vsel %vm1738, %v1961, %v2665
        %v3292 = vsel %vm1738, %v1965, %v2669
        %v3293 = vsel %vm1738, %v1972, %v2676
        %v3294 = vsel %vm1738, %v1976, %v2680
        %v3295 = vsel %vm1738, %v1983, %v2687
        %v3296 = vsel %vm1738, %v1987, %v2691
        %v3297 = vsel %vm1738, %v1994, %v2698
        %v3298 = vsel %vm1738, %v1998, %v2702
        %v3299 = vsel %vm1738, %v2005, %v2709
        %v3300 = vsel %vm1738, %v2009, %v2713
        %v3301 = vsel %vm1738, %v2016, %v2720
        %v3302 = vsel %vm1738, %v2020, %v2724
        %v3303 = vsel %vm1738, %v2027, %v2731
        %v3304 = vsel %vm1738, %v2031, %v2735
        %v3305 = vsel %vm1738, %v2038, %v2742
        %v3306 = vsel %vm1738, %v2042, %v2746
        %v3307 = vsel %vm1738, %v2049, %v2753
        %v3308 = vsel %vm1738, %v2053, %v2757
        %v3309 = vsel %vm1738, %v2060, %v2764
        %v3310 = vsel %vm1738, %v2064, %v2768
        %v3311 = vsel %vm1738, %v2071, %v2775
        %v3312 = vsel %vm1738, %v2075, %v2779
        %v3313 = vsel %vm1738, %v2082, %v2786
        %v3314 = vsel %vm1738, %v2086, %v2790
        %v3315 = vsel %vm1738, %v2093, %v2797
        %v3316 = vsel %vm1738, %v2097, %v2801
        %v3317 = vsel %vm1738, %v2104, %v2808
        %v3318 = vsel %vm1738, %v2108, %v2812
        %v3319 = vsel %vm1738, %v2115, %v2819
        %v3320 = vsel %vm1738, %v2119, %v2823
        %v3321 = vsel %vm1738, %v2126, %v2830
        %v3322 = vsel %vm1738, %v2130, %v2834
        %v3323 = vsel %vm1738, %v2137, %v2841
        %v3324 = vsel %vm1738, %v2141, %v2845
        %v3325 = vsel %vm1738, %v2148, %v2852
        %v3326 = vsel %vm1738, %v2152, %v2856
        %v3327 = vsel %vm1738, %v2159, %v2863
        %v3328 = vsel %vm1738, %v2163, %v2867
        %v3329 = vsel %vm1738, %v2170, %v2874
        %v3330 = vsel %vm1738, %v2174, %v2878
        %v3331 = vsel %vm1738, %v2181, %v2885
        %v3332 = vsel %vm1738, %v2185, %v2889
        %v3333 = vsel %vm1738, %v2192, %v2896
        %v3334 = vsel %vm1738, %v2196, %v2900
        %v3335 = vsel %vm1738, %v2203, %v2907
        %v3336 = vsel %vm1738, %v2207, %v2911
        %v3337 = vsel %vm1738, %v2214, %v2918
        %v3338 = vsel %vm1738, %v2218, %v2922
        %v3339 = vsel %vm1738, %v2225, %v2929
        %v3340 = vsel %vm1738, %v2229, %v2933
        %v3341 = vsel %vm1738, %v2236, %v2940
        %v3342 = vsel %vm1738, %v2240, %v2944
        %v3343 = vsel %vm1738, %v2247, %v2951
        %v3344 = vsel %vm1738, %v2251, %v2955
        %v3345 = vsel %vm1738, %v2258, %v2962
        %v3346 = vsel %vm1738, %v2262, %v2966
        %v3347 = vsel %vm1738, %v2269, %v2973
        %v3348 = vsel %vm1738, %v2273, %v2977
        %v3349 = vsel %vm1738, %v2280, %v2984
        %v3350 = vsel %vm1738, %v2284, %v2988
        %v3351 = vsel %vm1738, %v2291, %v2995
        %v3352 = vsel %vm1738, %v2295, %v2999
        %v3353 = vsel %vm1738, %v2302, %v3006
        %v3354 = vsel %vm1738, %v2306, %v3010
        %v3355 = vsel %vm1738, %v2313, %v3017
        %v3356 = vsel %vm1738, %v2317, %v3021
        %v3357 = vsel %vm1738, %v2324, %v3028
        %v3358 = vsel %vm1738, %v2328, %v3032
        %v3359 = vsel %vm1738, %v2335, %v3039
        %v3360 = vsel %vm1738, %v2339, %v3043
        %v3361 = vsel %vm1738, %v2346, %v3050
        %v3362 = vsel %vm1738, %v2350, %v3054
        %v3363 = vsel %vm1738, %v2357, %v3061
        %v3364 = vsel %vm1738, %v2361, %v3065
        %v3365 = vsel %vm1738, %v2368, %v3072
        %v3366 = vsel %vm1738, %v2372, %v3076
        %v3367 = vsel %vm1738, %v2379, %v3083
        %v3368 = vsel %vm1738, %v2383, %v3087
        %v3369 = vsel %vm1738, %v2390, %v3094
        %v3370 = vsel %vm1738, %v2394, %v3098
        %v3371 = vsel %vm1738, %v2401, %v3105
        %v3372 = vsel %vm1738, %v2405, %v3109
        %v3373 = vsel %vm1738, %v2412, %v3116
        %v3374 = vsel %vm1738, %v2416, %v3120
        %v3375 = vsel %vm1738, %v2423, %v3127
        %v3376 = vsel %vm1738, %v2427, %v3131
        %v3377 = vsel %vm1738, %v2434, %v3138
        %v3378 = vsel %vm1738, %v2438, %v3142
        %v3379 = vsel %vm1738, %v2445, %v3149
        %v3380 = vsel %vm1738, %v2449, %v3153
        %v3381 = vsel %vm1738, %v2456, %v3160
        %v3382 = vsel %vm1738, %v2460, %v3164
        %v3383 = vsel %vm1738, %v2467, %v3171
        %v3384 = vsel %vm1738, %v2471, %v3175
        %v3385 = vsel %vm1738, %v2478, %v3182
        %v3386 = vsel %vm1738, %v2482, %v3186
        %v3387 = vsel %vm1738, %v2489, %v3193
        %v3388 = vsel %vm1738, %v2493, %v3197
        %v3389 = vsel %vm1738, %v2500, %v3204
        %v3390 = vsel %vm1738, %v2504, %v3208
        %v3391 = vsel %vm1738, %v2511, %v3215
        %v3392 = vsel %vm1738, %v2515, %v3219
        %v3393 = vsel %vm1738, %v2522, %v3226
        %v3394 = vsel %vm1738, %v2526, %v3230
        %v3395 = vsel %vm1738, %v2533, %v3237
        %v3396 = vsel %vm1738, %v2537, %v3241
        %v3397 = vsel %vm1738, %v2544, %v3248
        %v3398 = vsel %vm1738, %v2548, %v3252
        %v3399 = vsel %vm1738, %v2555, %v3259
        %v3400 = vsel %vm1738, %v2559, %v3263
        %v3401 = vsel %vm1738, %v2566, %v3270
        %v3402 = vsel %vm1738, %v2570, %v3274
        %v3403 = vcombine.low %v1739, %v1743
        %v3404 = vcombine.high %v1739, %v1743
        %v3406 = vunpack.c.l.s4 1983009808
        %v3407 = vunpack.c.0.s8 %v3406
        %v3408 = vlaneseq
        %v3409 = vshrl.u32 %v3408, 7
        %v3410 = vsub.s32 %v3407, %v3409
        %v3411 = vrot.slane %v3403, %v3410
        %v3413 = vunpack.c.l.s4 1983009808
        %v3414 = vunpack.c.0.s8 %v3413
        %v3415 = vlaneseq
        %v3416 = vshrl.u32 %v3415, 7
        %v3417 = vsub.s32 %v3414, %v3416
        %v3418 = vrot.slane %v3404, %v3417
        %v3419 = vcombine.low %v1741, %v1745
        %v3420 = vcombine.high %v1741, %v1745
        %v3422 = vunpack.c.l.s4 1983009808
        %v3423 = vunpack.c.0.s8 %v3422
        %v3424 = vlaneseq
        %v3425 = vshrl.u32 %v3424, 7
        %v3426 = vsub.s32 %v3423, %v3425
        %v3427 = vrot.slane %v3419, %v3426
        %v3429 = vunpack.c.l.s4 1983009808
        %v3430 = vunpack.c.0.s8 %v3429
        %v3431 = vlaneseq
        %v3432 = vshrl.u32 %v3431, 7
        %v3433 = vsub.s32 %v3430, %v3432
        %v3434 = vrot.slane %v3420, %v3433
        %v3435 = vcombine.low %v1747, %v1751
        %v3436 = vcombine.high %v1747, %v1751
        %v3438 = vunpack.c.l.s4 1983009808
        %v3439 = vunpack.c.0.s8 %v3438
        %v3440 = vlaneseq
        %v3441 = vshrl.u32 %v3440, 7
        %v3442 = vsub.s32 %v3439, %v3441
        %v3443 = vrot.slane %v3435, %v3442
        %v3445 = vunpack.c.l.s4 1983009808
        %v3446 = vunpack.c.0.s8 %v3445
        %v3447 = vlaneseq
        %v3448 = vshrl.u32 %v3447, 7
        %v3449 = vsub.s32 %v3446, %v3448
        %v3450 = vrot.slane %v3436, %v3449
        %v3451 = vcombine.low %v1749, %v1753
        %v3452 = vcombine.high %v1749, %v1753
        %v3454 = vunpack.c.l.s4 1983009808
        %v3455 = vunpack.c.0.s8 %v3454
        %v3456 = vlaneseq
        %v3457 = vshrl.u32 %v3456, 7
        %v3458 = vsub.s32 %v3455, %v3457
        %v3459 = vrot.slane %v3451, %v3458
        %v3461 = vunpack.c.l.s4 1983009808
        %v3462 = vunpack.c.0.s8 %v3461
        %v3463 = vlaneseq
        %v3464 = vshrl.u32 %v3463, 7
        %v3465 = vsub.s32 %v3462, %v3464
        %v3466 = vrot.slane %v3452, %v3465
        %v3467 = vcombine.low %v3411, %v3427
        %v3468 = vcombine.high %v3411, %v3427
        %v3470 = vunpack.c.l.s4 1934713408
        %v3471 = vunpack.c.0.s8 %v3470
        %v3472 = vlaneseq
        %v3473 = vshrl.u32 %v3472, 7
        %v3474 = vsub.s32 %v3471, %v3473
        %v3475 = vrot.slane %v3467, %v3474
        %v3477 = vunpack.c.l.s4 1934713408
        %v3478 = vunpack.c.0.s8 %v3477
        %v3479 = vlaneseq
        %v3480 = vshrl.u32 %v3479, 7
        %v3481 = vsub.s32 %v3478, %v3480
        %v3482 = vrot.slane %v3468, %v3481
        %v3483 = vcombine.low %v3418, %v3434
        %v3484 = vcombine.high %v3418, %v3434
        %v3486 = vunpack.c.l.s4 1934713408
        %v3487 = vunpack.c.0.s8 %v3486
        %v3488 = vlaneseq
        %v3489 = vshrl.u32 %v3488, 7
        %v3490 = vsub.s32 %v3487, %v3489
        %v3491 = vrot.slane %v3483, %v3490
        %v3493 = vunpack.c.l.s4 1934713408
        %v3494 = vunpack.c.0.s8 %v3493
        %v3495 = vlaneseq
        %v3496 = vshrl.u32 %v3495, 7
        %v3497 = vsub.s32 %v3494, %v3496
        %v3498 = vrot.slane %v3484, %v3497
        %v3499 = vcombine.low %v3443, %v3459
        %v3500 = vcombine.high %v3443, %v3459
        %v3502 = vunpack.c.l.s4 1934713408
        %v3503 = vunpack.c.0.s8 %v3502
        %v3504 = vlaneseq
        %v3505 = vshrl.u32 %v3504, 7
        %v3506 = vsub.s32 %v3503, %v3505
        %v3507 = vrot.slane %v3499, %v3506
        %v3509 = vunpack.c.l.s4 1934713408
        %v3510 = vunpack.c.0.s8 %v3509
        %v3511 = vlaneseq
        %v3512 = vshrl.u32 %v3511, 7
        %v3513 = vsub.s32 %v3510, %v3512
        %v3514 = vrot.slane %v3500, %v3513
        %v3515 = vcombine.low %v3450, %v3466
        %v3516 = vcombine.high %v3450, %v3466
        %v3518 = vunpack.c.l.s4 1934713408
        %v3519 = vunpack.c.0.s8 %v3518
        %v3520 = vlaneseq
        %v3521 = vshrl.u32 %v3520, 7
        %v3522 = vsub.s32 %v3519, %v3521
        %v3523 = vrot.slane %v3515, %v3522
        %v3525 = vunpack.c.l.s4 1934713408
        %v3526 = vunpack.c.0.s8 %v3525
        %v3527 = vlaneseq
        %v3528 = vshrl.u32 %v3527, 7
        %v3529 = vsub.s32 %v3526, %v3528
        %v3530 = vrot.slane %v3516, %v3529
        %v3531 = vcombine.low %v3475, %v3507
        %v3532 = vcombine.high %v3475, %v3507
        %v3533 = vcombine.low %v3482, %v3514
        %v3534 = vcombine.high %v3482, %v3514
        %v3535 = vcombine.low %v3491, %v3523
        %v3536 = vcombine.high %v3491, %v3523
        %v3537 = vcombine.low %v3498, %v3530
        %v3538 = vcombine.high %v3498, %v3530
        %v3539 = vcombine.low %v1755, %v1759
        %v3540 = vcombine.high %v1755, %v1759
        %v3542 = vunpack.c.l.s4 1983009808
        %v3543 = vunpack.c.0.s8 %v3542
        %v3544 = vlaneseq
        %v3545 = vshrl.u32 %v3544, 7
        %v3546 = vsub.s32 %v3543, %v3545
        %v3547 = vrot.slane %v3539, %v3546
        %v3549 = vunpack.c.l.s4 1983009808
        %v3550 = vunpack.c.0.s8 %v3549
        %v3551 = vlaneseq
        %v3552 = vshrl.u32 %v3551, 7
        %v3553 = vsub.s32 %v3550, %v3552
        %v3554 = vrot.slane %v3540, %v3553
        %v3555 = vcombine.low %v1757, %v1761
        %v3556 = vcombine.high %v1757, %v1761
        %v3558 = vunpack.c.l.s4 1983009808
        %v3559 = vunpack.c.0.s8 %v3558
        %v3560 = vlaneseq
        %v3561 = vshrl.u32 %v3560, 7
        %v3562 = vsub.s32 %v3559, %v3561
        %v3563 = vrot.slane %v3555, %v3562
        %v3565 = vunpack.c.l.s4 1983009808
        %v3566 = vunpack.c.0.s8 %v3565
        %v3567 = vlaneseq
        %v3568 = vshrl.u32 %v3567, 7
        %v3569 = vsub.s32 %v3566, %v3568
        %v3570 = vrot.slane %v3556, %v3569
        %v3571 = vcombine.low %v1763, %v1767
        %v3572 = vcombine.high %v1763, %v1767
        %v3574 = vunpack.c.l.s4 1983009808
        %v3575 = vunpack.c.0.s8 %v3574
        %v3576 = vlaneseq
        %v3577 = vshrl.u32 %v3576, 7
        %v3578 = vsub.s32 %v3575, %v3577
        %v3579 = vrot.slane %v3571, %v3578
        %v3581 = vunpack.c.l.s4 1983009808
        %v3582 = vunpack.c.0.s8 %v3581
        %v3583 = vlaneseq
        %v3584 = vshrl.u32 %v3583, 7
        %v3585 = vsub.s32 %v3582, %v3584
        %v3586 = vrot.slane %v3572, %v3585
        %v3587 = vcombine.low %v1765, %v1769
        %v3588 = vcombine.high %v1765, %v1769
        %v3590 = vunpack.c.l.s4 1983009808
        %v3591 = vunpack.c.0.s8 %v3590
        %v3592 = vlaneseq
        %v3593 = vshrl.u32 %v3592, 7
        %v3594 = vsub.s32 %v3591, %v3593
        %v3595 = vrot.slane %v3587, %v3594
        %v3597 = vunpack.c.l.s4 1983009808
        %v3598 = vunpack.c.0.s8 %v3597
        %v3599 = vlaneseq
        %v3600 = vshrl.u32 %v3599, 7
        %v3601 = vsub.s32 %v3598, %v3600
        %v3602 = vrot.slane %v3588, %v3601
        %v3603 = vcombine.low %v3547, %v3563
        %v3604 = vcombine.high %v3547, %v3563
        %v3606 = vunpack.c.l.s4 1934713408
        %v3607 = vunpack.c.0.s8 %v3606
        %v3608 = vlaneseq
        %v3609 = vshrl.u32 %v3608, 7
        %v3610 = vsub.s32 %v3607, %v3609
        %v3611 = vrot.slane %v3603, %v3610
        %v3613 = vunpack.c.l.s4 1934713408
        %v3614 = vunpack.c.0.s8 %v3613
        %v3615 = vlaneseq
        %v3616 = vshrl.u32 %v3615, 7
        %v3617 = vsub.s32 %v3614, %v3616
        %v3618 = vrot.slane %v3604, %v3617
        %v3619 = vcombine.low %v3554, %v3570
        %v3620 = vcombine.high %v3554, %v3570
        %v3622 = vunpack.c.l.s4 1934713408
        %v3623 = vunpack.c.0.s8 %v3622
        %v3624 = vlaneseq
        %v3625 = vshrl.u32 %v3624, 7
        %v3626 = vsub.s32 %v3623, %v3625
        %v3627 = vrot.slane %v3619, %v3626
        %v3629 = vunpack.c.l.s4 1934713408
        %v3630 = vunpack.c.0.s8 %v3629
        %v3631 = vlaneseq
        %v3632 = vshrl.u32 %v3631, 7
        %v3633 = vsub.s32 %v3630, %v3632
        %v3634 = vrot.slane %v3620, %v3633
        %v3635 = vcombine.low %v3579, %v3595
        %v3636 = vcombine.high %v3579, %v3595
        %v3638 = vunpack.c.l.s4 1934713408
        %v3639 = vunpack.c.0.s8 %v3638
        %v3640 = vlaneseq
        %v3641 = vshrl.u32 %v3640, 7
        %v3642 = vsub.s32 %v3639, %v3641
        %v3643 = vrot.slane %v3635, %v3642
        %v3645 = vunpack.c.l.s4 1934713408
        %v3646 = vunpack.c.0.s8 %v3645
        %v3647 = vlaneseq
        %v3648 = vshrl.u32 %v3647, 7
        %v3649 = vsub.s32 %v3646, %v3648
        %v3650 = vrot.slane %v3636, %v3649
        %v3651 = vcombine.low %v3586, %v3602
        %v3652 = vcombine.high %v3586, %v3602
        %v3654 = vunpack.c.l.s4 1934713408
        %v3655 = vunpack.c.0.s8 %v3654
        %v3656 = vlaneseq
        %v3657 = vshrl.u32 %v3656, 7
        %v3658 = vsub.s32 %v3655, %v3657
        %v3659 = vrot.slane %v3651, %v3658
        %v3661 = vunpack.c.l.s4 1934713408
        %v3662 = vunpack.c.0.s8 %v3661
        %v3663 = vlaneseq
        %v3664 = vshrl.u32 %v3663, 7
        %v3665 = vsub.s32 %v3662, %v3664
        %v3666 = vrot.slane %v3652, %v3665
        %v3667 = vcombine.low %v3611, %v3643
        %v3668 = vcombine.high %v3611, %v3643
        %v3669 = vcombine.low %v3618, %v3650
        %v3670 = vcombine.high %v3618, %v3650
        %v3671 = vcombine.low %v3627, %v3659
        %v3672 = vcombine.high %v3627, %v3659
        %v3673 = vcombine.low %v3634, %v3666
        %v3674 = vcombine.high %v3634, %v3666
        %v3675 = vcombine.low %v1771, %v1775
        %v3676 = vcombine.high %v1771, %v1775
        %v3678 = vunpack.c.l.s4 1983009808
        %v3679 = vunpack.c.0.s8 %v3678
        %v3680 = vlaneseq
        %v3681 = vshrl.u32 %v3680, 7
        %v3682 = vsub.s32 %v3679, %v3681
        %v3683 = vrot.slane %v3675, %v3682
        %v3685 = vunpack.c.l.s4 1983009808
        %v3686 = vunpack.c.0.s8 %v3685
        %v3687 = vlaneseq
        %v3688 = vshrl.u32 %v3687, 7
        %v3689 = vsub.s32 %v3686, %v3688
        %v3690 = vrot.slane %v3676, %v3689
        %v3691 = vcombine.low %v1773, %v1777
        %v3692 = vcombine.high %v1773, %v1777
        %v3694 = vunpack.c.l.s4 1983009808
        %v3695 = vunpack.c.0.s8 %v3694
        %v3696 = vlaneseq
        %v3697 = vshrl.u32 %v3696, 7
        %v3698 = vsub.s32 %v3695, %v3697
        %v3699 = vrot.slane %v3691, %v3698
        %v3701 = vunpack.c.l.s4 1983009808
        %v3702 = vunpack.c.0.s8 %v3701
        %v3703 = vlaneseq
        %v3704 = vshrl.u32 %v3703, 7
        %v3705 = vsub.s32 %v3702, %v3704
        %v3706 = vrot.slane %v3692, %v3705
        %v3707 = vcombine.low %v1779, %v1783
        %v3708 = vcombine.high %v1779, %v1783
        %v3710 = vunpack.c.l.s4 1983009808
        %v3711 = vunpack.c.0.s8 %v3710
        %v3712 = vlaneseq
        %v3713 = vshrl.u32 %v3712, 7
        %v3714 = vsub.s32 %v3711, %v3713
        %v3715 = vrot.slane %v3707, %v3714
        %v3717 = vunpack.c.l.s4 1983009808
        %v3718 = vunpack.c.0.s8 %v3717
        %v3719 = vlaneseq
        %v3720 = vshrl.u32 %v3719, 7
        %v3721 = vsub.s32 %v3718, %v3720
        %v3722 = vrot.slane %v3708, %v3721
        %v3723 = vcombine.low %v1781, %v1785
        %v3724 = vcombine.high %v1781, %v1785
        %v3726 = vunpack.c.l.s4 1983009808
        %v3727 = vunpack.c.0.s8 %v3726
        %v3728 = vlaneseq
        %v3729 = vshrl.u32 %v3728, 7
        %v3730 = vsub.s32 %v3727, %v3729
        %v3731 = vrot.slane %v3723, %v3730
        %v3733 = vunpack.c.l.s4 1983009808
        %v3734 = vunpack.c.0.s8 %v3733
        %v3735 = vlaneseq
        %v3736 = vshrl.u32 %v3735, 7
        %v3737 = vsub.s32 %v3734, %v3736
        %v3738 = vrot.slane %v3724, %v3737
        %v3739 = vcombine.low %v3683, %v3699
        %v3740 = vcombine.high %v3683, %v3699
        %v3742 = vunpack.c.l.s4 1934713408
        %v3743 = vunpack.c.0.s8 %v3742
        %v3744 = vlaneseq
        %v3745 = vshrl.u32 %v3744, 7
        %v3746 = vsub.s32 %v3743, %v3745
        %v3747 = vrot.slane %v3739, %v3746
        %v3749 = vunpack.c.l.s4 1934713408
        %v3750 = vunpack.c.0.s8 %v3749
        %v3751 = vlaneseq
        %v3752 = vshrl.u32 %v3751, 7
        %v3753 = vsub.s32 %v3750, %v3752
        %v3754 = vrot.slane %v3740, %v3753
        %v3755 = vcombine.low %v3690, %v3706
        %v3756 = vcombine.high %v3690, %v3706
        %v3758 = vunpack.c.l.s4 1934713408
        %v3759 = vunpack.c.0.s8 %v3758
        %v3760 = vlaneseq
        %v3761 = vshrl.u32 %v3760, 7
        %v3762 = vsub.s32 %v3759, %v3761
        %v3763 = vrot.slane %v3755, %v3762
        %v3765 = vunpack.c.l.s4 1934713408
        %v3766 = vunpack.c.0.s8 %v3765
        %v3767 = vlaneseq
        %v3768 = vshrl.u32 %v3767, 7
        %v3769 = vsub.s32 %v3766, %v3768
        %v3770 = vrot.slane %v3756, %v3769
        %v3771 = vcombine.low %v3715, %v3731
        %v3772 = vcombine.high %v3715, %v3731
        %v3774 = vunpack.c.l.s4 1934713408
        %v3775 = vunpack.c.0.s8 %v3774
        %v3776 = vlaneseq
        %v3777 = vshrl.u32 %v3776, 7
        %v3778 = vsub.s32 %v3775, %v3777
        %v3779 = vrot.slane %v3771, %v3778
        %v3781 = vunpack.c.l.s4 1934713408
        %v3782 = vunpack.c.0.s8 %v3781
        %v3783 = vlaneseq
        %v3784 = vshrl.u32 %v3783, 7
        %v3785 = vsub.s32 %v3782, %v3784
        %v3786 = vrot.slane %v3772, %v3785
        %v3787 = vcombine.low %v3722, %v3738
        %v3788 = vcombine.high %v3722, %v3738
        %v3790 = vunpack.c.l.s4 1934713408
        %v3791 = vunpack.c.0.s8 %v3790
        %v3792 = vlaneseq
        %v3793 = vshrl.u32 %v3792, 7
        %v3794 = vsub.s32 %v3791, %v3793
        %v3795 = vrot.slane %v3787, %v3794
        %v3797 = vunpack.c.l.s4 1934713408
        %v3798 = vunpack.c.0.s8 %v3797
        %v3799 = vlaneseq
        %v3800 = vshrl.u32 %v3799, 7
        %v3801 = vsub.s32 %v3798, %v3800
        %v3802 = vrot.slane %v3788, %v3801
        %v3803 = vcombine.low %v3747, %v3779
        %v3804 = vcombine.high %v3747, %v3779
        %v3805 = vcombine.low %v3754, %v3786
        %v3806 = vcombine.high %v3754, %v3786
        %v3807 = vcombine.low %v3763, %v3795
        %v3808 = vcombine.high %v3763, %v3795
        %v3809 = vcombine.low %v3770, %v3802
        %v3810 = vcombine.high %v3770, %v3802
        %v3811 = vcombine.low %v1787, %v1791
        %v3812 = vcombine.high %v1787, %v1791
        %v3814 = vunpack.c.l.s4 1983009808
        %v3815 = vunpack.c.0.s8 %v3814
        %v3816 = vlaneseq
        %v3817 = vshrl.u32 %v3816, 7
        %v3818 = vsub.s32 %v3815, %v3817
        %v3819 = vrot.slane %v3811, %v3818
        %v3821 = vunpack.c.l.s4 1983009808
        %v3822 = vunpack.c.0.s8 %v3821
        %v3823 = vlaneseq
        %v3824 = vshrl.u32 %v3823, 7
        %v3825 = vsub.s32 %v3822, %v3824
        %v3826 = vrot.slane %v3812, %v3825
        %v3827 = vcombine.low %v1789, %v1793
        %v3828 = vcombine.high %v1789, %v1793
        %v3830 = vunpack.c.l.s4 1983009808
        %v3831 = vunpack.c.0.s8 %v3830
        %v3832 = vlaneseq
        %v3833 = vshrl.u32 %v3832, 7
        %v3834 = vsub.s32 %v3831, %v3833
        %v3835 = vrot.slane %v3827, %v3834
        %v3837 = vunpack.c.l.s4 1983009808
        %v3838 = vunpack.c.0.s8 %v3837
        %v3839 = vlaneseq
        %v3840 = vshrl.u32 %v3839, 7
        %v3841 = vsub.s32 %v3838, %v3840
        %v3842 = vrot.slane %v3828, %v3841
        %v3843 = vcombine.low %v1795, %v1799
        %v3844 = vcombine.high %v1795, %v1799
        %v3846 = vunpack.c.l.s4 1983009808
        %v3847 = vunpack.c.0.s8 %v3846
        %v3848 = vlaneseq
        %v3849 = vshrl.u32 %v3848, 7
        %v3850 = vsub.s32 %v3847, %v3849
        %v3851 = vrot.slane %v3843, %v3850
        %v3853 = vunpack.c.l.s4 1983009808
        %v3854 = vunpack.c.0.s8 %v3853
        %v3855 = vlaneseq
        %v3856 = vshrl.u32 %v3855, 7
        %v3857 = vsub.s32 %v3854, %v3856
        %v3858 = vrot.slane %v3844, %v3857
        %v3859 = vcombine.low %v1797, %v1801
        %v3860 = vcombine.high %v1797, %v1801
        %v3862 = vunpack.c.l.s4 1983009808
        %v3863 = vunpack.c.0.s8 %v3862
        %v3864 = vlaneseq
        %v3865 = vshrl.u32 %v3864, 7
        %v3866 = vsub.s32 %v3863, %v3865
        %v3867 = vrot.slane %v3859, %v3866
        %v3869 = vunpack.c.l.s4 1983009808
        %v3870 = vunpack.c.0.s8 %v3869
        %v3871 = vlaneseq
        %v3872 = vshrl.u32 %v3871, 7
        %v3873 = vsub.s32 %v3870, %v3872
        %v3874 = vrot.slane %v3860, %v3873
        %v3875 = vcombine.low %v3819, %v3835
        %v3876 = vcombine.high %v3819, %v3835
        %v3878 = vunpack.c.l.s4 1934713408
        %v3879 = vunpack.c.0.s8 %v3878
        %v3880 = vlaneseq
        %v3881 = vshrl.u32 %v3880, 7
        %v3882 = vsub.s32 %v3879, %v3881
        %v3883 = vrot.slane %v3875, %v3882
        %v3885 = vunpack.c.l.s4 1934713408
        %v3886 = vunpack.c.0.s8 %v3885
        %v3887 = vlaneseq
        %v3888 = vshrl.u32 %v3887, 7
        %v3889 = vsub.s32 %v3886, %v3888
        %v3890 = vrot.slane %v3876, %v3889
        %v3891 = vcombine.low %v3826, %v3842
        %v3892 = vcombine.high %v3826, %v3842
        %v3894 = vunpack.c.l.s4 1934713408
        %v3895 = vunpack.c.0.s8 %v3894
        %v3896 = vlaneseq
        %v3897 = vshrl.u32 %v3896, 7
        %v3898 = vsub.s32 %v3895, %v3897
        %v3899 = vrot.slane %v3891, %v3898
        %v3901 = vunpack.c.l.s4 1934713408
        %v3902 = vunpack.c.0.s8 %v3901
        %v3903 = vlaneseq
        %v3904 = vshrl.u32 %v3903, 7
        %v3905 = vsub.s32 %v3902, %v3904
        %v3906 = vrot.slane %v3892, %v3905
        %v3907 = vcombine.low %v3851, %v3867
        %v3908 = vcombine.high %v3851, %v3867
        %v3910 = vunpack.c.l.s4 1934713408
        %v3911 = vunpack.c.0.s8 %v3910
        %v3912 = vlaneseq
        %v3913 = vshrl.u32 %v3912, 7
        %v3914 = vsub.s32 %v3911, %v3913
        %v3915 = vrot.slane %v3907, %v3914
        %v3917 = vunpack.c.l.s4 1934713408
        %v3918 = vunpack.c.0.s8 %v3917
        %v3919 = vlaneseq
        %v3920 = vshrl.u32 %v3919, 7
        %v3921 = vsub.s32 %v3918, %v3920
        %v3922 = vrot.slane %v3908, %v3921
        %v3923 = vcombine.low %v3858, %v3874
        %v3924 = vcombine.high %v3858, %v3874
        %v3926 = vunpack.c.l.s4 1934713408
        %v3927 = vunpack.c.0.s8 %v3926
        %v3928 = vlaneseq
        %v3929 = vshrl.u32 %v3928, 7
        %v3930 = vsub.s32 %v3927, %v3929
        %v3931 = vrot.slane %v3923, %v3930
        %v3933 = vunpack.c.l.s4 1934713408
        %v3934 = vunpack.c.0.s8 %v3933
        %v3935 = vlaneseq
        %v3936 = vshrl.u32 %v3935, 7
        %v3937 = vsub.s32 %v3934, %v3936
        %v3938 = vrot.slane %v3924, %v3937
        %v3939 = vcombine.low %v3883, %v3915
        %v3940 = vcombine.high %v3883, %v3915
        %v3941 = vcombine.low %v3890, %v3922
        %v3942 = vcombine.high %v3890, %v3922
        %v3943 = vcombine.low %v3899, %v3931
        %v3944 = vcombine.high %v3899, %v3931
        %v3945 = vcombine.low %v3906, %v3938
        %v3946 = vcombine.high %v3906, %v3938
        %v3947 = vcombine.low %v1803, %v1807
        %v3948 = vcombine.high %v1803, %v1807
        %v3950 = vunpack.c.l.s4 1983009808
        %v3951 = vunpack.c.0.s8 %v3950
        %v3952 = vlaneseq
        %v3953 = vshrl.u32 %v3952, 7
        %v3954 = vsub.s32 %v3951, %v3953
        %v3955 = vrot.slane %v3947, %v3954
        %v3957 = vunpack.c.l.s4 1983009808
        %v3958 = vunpack.c.0.s8 %v3957
        %v3959 = vlaneseq
        %v3960 = vshrl.u32 %v3959, 7
        %v3961 = vsub.s32 %v3958, %v3960
        %v3962 = vrot.slane %v3948, %v3961
        %v3963 = vcombine.low %v1805, %v1809
        %v3964 = vcombine.high %v1805, %v1809
        %v3966 = vunpack.c.l.s4 1983009808
        %v3967 = vunpack.c.0.s8 %v3966
        %v3968 = vlaneseq
        %v3969 = vshrl.u32 %v3968, 7
        %v3970 = vsub.s32 %v3967, %v3969
        %v3971 = vrot.slane %v3963, %v3970
        %v3973 = vunpack.c.l.s4 1983009808
        %v3974 = vunpack.c.0.s8 %v3973
        %v3975 = vlaneseq
        %v3976 = vshrl.u32 %v3975, 7
        %v3977 = vsub.s32 %v3974, %v3976
        %v3978 = vrot.slane %v3964, %v3977
        %v3979 = vcombine.low %v1811, %v1815
        %v3980 = vcombine.high %v1811, %v1815
        %v3982 = vunpack.c.l.s4 1983009808
        %v3983 = vunpack.c.0.s8 %v3982
        %v3984 = vlaneseq
        %v3985 = vshrl.u32 %v3984, 7
        %v3986 = vsub.s32 %v3983, %v3985
        %v3987 = vrot.slane %v3979, %v3986
        %v3989 = vunpack.c.l.s4 1983009808
        %v3990 = vunpack.c.0.s8 %v3989
        %v3991 = vlaneseq
        %v3992 = vshrl.u32 %v3991, 7
        %v3993 = vsub.s32 %v3990, %v3992
        %v3994 = vrot.slane %v3980, %v3993
        %v3995 = vcombine.low %v1813, %v1817
        %v3996 = vcombine.high %v1813, %v1817
        %v3998 = vunpack.c.l.s4 1983009808
        %v3999 = vunpack.c.0.s8 %v3998
        %v4000 = vlaneseq
        %v4001 = vshrl.u32 %v4000, 7
        %v4002 = vsub.s32 %v3999, %v4001
        %v4003 = vrot.slane %v3995, %v4002
        %v4005 = vunpack.c.l.s4 1983009808
        %v4006 = vunpack.c.0.s8 %v4005
        %v4007 = vlaneseq
        %v4008 = vshrl.u32 %v4007, 7
        %v4009 = vsub.s32 %v4006, %v4008
        %v4010 = vrot.slane %v3996, %v4009
        %v4011 = vcombine.low %v3955, %v3971
        %v4012 = vcombine.high %v3955, %v3971
        %v4014 = vunpack.c.l.s4 1934713408
        %v4015 = vunpack.c.0.s8 %v4014
        %v4016 = vlaneseq
        %v4017 = vshrl.u32 %v4016, 7
        %v4018 = vsub.s32 %v4015, %v4017
        %v4019 = vrot.slane %v4011, %v4018
        %v4021 = vunpack.c.l.s4 1934713408
        %v4022 = vunpack.c.0.s8 %v4021
        %v4023 = vlaneseq
        %v4024 = vshrl.u32 %v4023, 7
        %v4025 = vsub.s32 %v4022, %v4024
        %v4026 = vrot.slane %v4012, %v4025
        %v4027 = vcombine.low %v3962, %v3978
        %v4028 = vcombine.high %v3962, %v3978
        %v4030 = vunpack.c.l.s4 1934713408
        %v4031 = vunpack.c.0.s8 %v4030
        %v4032 = vlaneseq
        %v4033 = vshrl.u32 %v4032, 7
        %v4034 = vsub.s32 %v4031, %v4033
        %v4035 = vrot.slane %v4027, %v4034
        %v4037 = vunpack.c.l.s4 1934713408
        %v4038 = vunpack.c.0.s8 %v4037
        %v4039 = vlaneseq
        %v4040 = vshrl.u32 %v4039, 7
        %v4041 = vsub.s32 %v4038, %v4040
        %v4042 = vrot.slane %v4028, %v4041
        %v4043 = vcombine.low %v3987, %v4003
        %v4044 = vcombine.high %v3987, %v4003
        %v4046 = vunpack.c.l.s4 1934713408
        %v4047 = vunpack.c.0.s8 %v4046
        %v4048 = vlaneseq
        %v4049 = vshrl.u32 %v4048, 7
        %v4050 = vsub.s32 %v4047, %v4049
        %v4051 = vrot.slane %v4043, %v4050
        %v4053 = vunpack.c.l.s4 1934713408
        %v4054 = vunpack.c.0.s8 %v4053
        %v4055 = vlaneseq
        %v4056 = vshrl.u32 %v4055, 7
        %v4057 = vsub.s32 %v4054, %v4056
        %v4058 = vrot.slane %v4044, %v4057
        %v4059 = vcombine.low %v3994, %v4010
        %v4060 = vcombine.high %v3994, %v4010
        %v4062 = vunpack.c.l.s4 1934713408
        %v4063 = vunpack.c.0.s8 %v4062
        %v4064 = vlaneseq
        %v4065 = vshrl.u32 %v4064, 7
        %v4066 = vsub.s32 %v4063, %v4065
        %v4067 = vrot.slane %v4059, %v4066
        %v4069 = vunpack.c.l.s4 1934713408
        %v4070 = vunpack.c.0.s8 %v4069
        %v4071 = vlaneseq
        %v4072 = vshrl.u32 %v4071, 7
        %v4073 = vsub.s32 %v4070, %v4072
        %v4074 = vrot.slane %v4060, %v4073
        %v4075 = vcombine.low %v4019, %v4051
        %v4076 = vcombine.high %v4019, %v4051
        %v4077 = vcombine.low %v4026, %v4058
        %v4078 = vcombine.high %v4026, %v4058
        %v4079 = vcombine.low %v4035, %v4067
        %v4080 = vcombine.high %v4035, %v4067
        %v4081 = vcombine.low %v4042, %v4074
        %v4082 = vcombine.high %v4042, %v4074
        %v4083 = vcombine.low %v1819, %v1823
        %v4084 = vcombine.high %v1819, %v1823
        %v4086 = vunpack.c.l.s4 1983009808
        %v4087 = vunpack.c.0.s8 %v4086
        %v4088 = vlaneseq
        %v4089 = vshrl.u32 %v4088, 7
        %v4090 = vsub.s32 %v4087, %v4089
        %v4091 = vrot.slane %v4083, %v4090
        %v4093 = vunpack.c.l.s4 1983009808
        %v4094 = vunpack.c.0.s8 %v4093
        %v4095 = vlaneseq
        %v4096 = vshrl.u32 %v4095, 7
        %v4097 = vsub.s32 %v4094, %v4096
        %v4098 = vrot.slane %v4084, %v4097
        %v4099 = vcombine.low %v1821, %v1825
        %v4100 = vcombine.high %v1821, %v1825
        %v4102 = vunpack.c.l.s4 1983009808
        %v4103 = vunpack.c.0.s8 %v4102
        %v4104 = vlaneseq
        %v4105 = vshrl.u32 %v4104, 7
        %v4106 = vsub.s32 %v4103, %v4105
        %v4107 = vrot.slane %v4099, %v4106
        %v4109 = vunpack.c.l.s4 1983009808
        %v4110 = vunpack.c.0.s8 %v4109
        %v4111 = vlaneseq
        %v4112 = vshrl.u32 %v4111, 7
        %v4113 = vsub.s32 %v4110, %v4112
        %v4114 = vrot.slane %v4100, %v4113
        %v4115 = vcombine.low %v1827, %v1831
        %v4116 = vcombine.high %v1827, %v1831
        %v4118 = vunpack.c.l.s4 1983009808
        %v4119 = vunpack.c.0.s8 %v4118
        %v4120 = vlaneseq
        %v4121 = vshrl.u32 %v4120, 7
        %v4122 = vsub.s32 %v4119, %v4121
        %v4123 = vrot.slane %v4115, %v4122
        %v4125 = vunpack.c.l.s4 1983009808
        %v4126 = vunpack.c.0.s8 %v4125
        %v4127 = vlaneseq
        %v4128 = vshrl.u32 %v4127, 7
        %v4129 = vsub.s32 %v4126, %v4128
        %v4130 = vrot.slane %v4116, %v4129
        %v4131 = vcombine.low %v1829, %v1833
        %v4132 = vcombine.high %v1829, %v1833
        %v4134 = vunpack.c.l.s4 1983009808
        %v4135 = vunpack.c.0.s8 %v4134
        %v4136 = vlaneseq
        %v4137 = vshrl.u32 %v4136, 7
        %v4138 = vsub.s32 %v4135, %v4137
        %v4139 = vrot.slane %v4131, %v4138
        %v4141 = vunpack.c.l.s4 1983009808
        %v4142 = vunpack.c.0.s8 %v4141
        %v4143 = vlaneseq
        %v4144 = vshrl.u32 %v4143, 7
        %v4145 = vsub.s32 %v4142, %v4144
        %v4146 = vrot.slane %v4132, %v4145
        %v4147 = vcombine.low %v4091, %v4107
        %v4148 = vcombine.high %v4091, %v4107
        %v4150 = vunpack.c.l.s4 1934713408
        %v4151 = vunpack.c.0.s8 %v4150
        %v4152 = vlaneseq
        %v4153 = vshrl.u32 %v4152, 7
        %v4154 = vsub.s32 %v4151, %v4153
        %v4155 = vrot.slane %v4147, %v4154
        %v4157 = vunpack.c.l.s4 1934713408
        %v4158 = vunpack.c.0.s8 %v4157
        %v4159 = vlaneseq
        %v4160 = vshrl.u32 %v4159, 7
        %v4161 = vsub.s32 %v4158, %v4160
        %v4162 = vrot.slane %v4148, %v4161
        %v4163 = vcombine.low %v4098, %v4114
        %v4164 = vcombine.high %v4098, %v4114
        %v4166 = vunpack.c.l.s4 1934713408
        %v4167 = vunpack.c.0.s8 %v4166
        %v4168 = vlaneseq
        %v4169 = vshrl.u32 %v4168, 7
        %v4170 = vsub.s32 %v4167, %v4169
        %v4171 = vrot.slane %v4163, %v4170
        %v4173 = vunpack.c.l.s4 1934713408
        %v4174 = vunpack.c.0.s8 %v4173
        %v4175 = vlaneseq
        %v4176 = vshrl.u32 %v4175, 7
        %v4177 = vsub.s32 %v4174, %v4176
        %v4178 = vrot.slane %v4164, %v4177
        %v4179 = vcombine.low %v4123, %v4139
        %v4180 = vcombine.high %v4123, %v4139
        %v4182 = vunpack.c.l.s4 1934713408
        %v4183 = vunpack.c.0.s8 %v4182
        %v4184 = vlaneseq
        %v4185 = vshrl.u32 %v4184, 7
        %v4186 = vsub.s32 %v4183, %v4185
        %v4187 = vrot.slane %v4179, %v4186
        %v4189 = vunpack.c.l.s4 1934713408
        %v4190 = vunpack.c.0.s8 %v4189
        %v4191 = vlaneseq
        %v4192 = vshrl.u32 %v4191, 7
        %v4193 = vsub.s32 %v4190, %v4192
        %v4194 = vrot.slane %v4180, %v4193
        %v4195 = vcombine.low %v4130, %v4146
        %v4196 = vcombine.high %v4130, %v4146
        %v4198 = vunpack.c.l.s4 1934713408
        %v4199 = vunpack.c.0.s8 %v4198
        %v4200 = vlaneseq
        %v4201 = vshrl.u32 %v4200, 7
        %v4202 = vsub.s32 %v4199, %v4201
        %v4203 = vrot.slane %v4195, %v4202
        %v4205 = vunpack.c.l.s4 1934713408
        %v4206 = vunpack.c.0.s8 %v4205
        %v4207 = vlaneseq
        %v4208 = vshrl.u32 %v4207, 7
        %v4209 = vsub.s32 %v4206, %v4208
        %v4210 = vrot.slane %v4196, %v4209
        %v4211 = vcombine.low %v4155, %v4187
        %v4212 = vcombine.high %v4155, %v4187
        %v4213 = vcombine.low %v4162, %v4194
        %v4214 = vcombine.high %v4162, %v4194
        %v4215 = vcombine.low %v4171, %v4203
        %v4216 = vcombine.high %v4171, %v4203
        %v4217 = vcombine.low %v4178, %v4210
        %v4218 = vcombine.high %v4178, %v4210
        %v4219 = vcombine.low %v1835, %v1839
        %v4220 = vcombine.high %v1835, %v1839
        %v4222 = vunpack.c.l.s4 1983009808
        %v4223 = vunpack.c.0.s8 %v4222
        %v4224 = vlaneseq
        %v4225 = vshrl.u32 %v4224, 7
        %v4226 = vsub.s32 %v4223, %v4225
        %v4227 = vrot.slane %v4219, %v4226
        %v4229 = vunpack.c.l.s4 1983009808
        %v4230 = vunpack.c.0.s8 %v4229
        %v4231 = vlaneseq
        %v4232 = vshrl.u32 %v4231, 7
        %v4233 = vsub.s32 %v4230, %v4232
        %v4234 = vrot.slane %v4220, %v4233
        %v4235 = vcombine.low %v1837, %v1841
        %v4236 = vcombine.high %v1837, %v1841
        %v4238 = vunpack.c.l.s4 1983009808
        %v4239 = vunpack.c.0.s8 %v4238
        %v4240 = vlaneseq
        %v4241 = vshrl.u32 %v4240, 7
        %v4242 = vsub.s32 %v4239, %v4241
        %v4243 = vrot.slane %v4235, %v4242
        %v4245 = vunpack.c.l.s4 1983009808
        %v4246 = vunpack.c.0.s8 %v4245
        %v4247 = vlaneseq
        %v4248 = vshrl.u32 %v4247, 7
        %v4249 = vsub.s32 %v4246, %v4248
        %v4250 = vrot.slane %v4236, %v4249
        %v4251 = vcombine.low %v1843, %v1847
        %v4252 = vcombine.high %v1843, %v1847
        %v4254 = vunpack.c.l.s4 1983009808
        %v4255 = vunpack.c.0.s8 %v4254
        %v4256 = vlaneseq
        %v4257 = vshrl.u32 %v4256, 7
        %v4258 = vsub.s32 %v4255, %v4257
        %v4259 = vrot.slane %v4251, %v4258
        %v4261 = vunpack.c.l.s4 1983009808
        %v4262 = vunpack.c.0.s8 %v4261
        %v4263 = vlaneseq
        %v4264 = vshrl.u32 %v4263, 7
        %v4265 = vsub.s32 %v4262, %v4264
        %v4266 = vrot.slane %v4252, %v4265
        %v4267 = vcombine.low %v1845, %v1849
        %v4268 = vcombine.high %v1845, %v1849
        %v4270 = vunpack.c.l.s4 1983009808
        %v4271 = vunpack.c.0.s8 %v4270
        %v4272 = vlaneseq
        %v4273 = vshrl.u32 %v4272, 7
        %v4274 = vsub.s32 %v4271, %v4273
        %v4275 = vrot.slane %v4267, %v4274
        %v4277 = vunpack.c.l.s4 1983009808
        %v4278 = vunpack.c.0.s8 %v4277
        %v4279 = vlaneseq
        %v4280 = vshrl.u32 %v4279, 7
        %v4281 = vsub.s32 %v4278, %v4280
        %v4282 = vrot.slane %v4268, %v4281
        %v4283 = vcombine.low %v4227, %v4243
        %v4284 = vcombine.high %v4227, %v4243
        %v4286 = vunpack.c.l.s4 1934713408
        %v4287 = vunpack.c.0.s8 %v4286
        %v4288 = vlaneseq
        %v4289 = vshrl.u32 %v4288, 7
        %v4290 = vsub.s32 %v4287, %v4289
        %v4291 = vrot.slane %v4283, %v4290
        %v4293 = vunpack.c.l.s4 1934713408
        %v4294 = vunpack.c.0.s8 %v4293
        %v4295 = vlaneseq
        %v4296 = vshrl.u32 %v4295, 7
        %v4297 = vsub.s32 %v4294, %v4296
        %v4298 = vrot.slane %v4284, %v4297
        %v4299 = vcombine.low %v4234, %v4250
        %v4300 = vcombine.high %v4234, %v4250
        %v4302 = vunpack.c.l.s4 1934713408
        %v4303 = vunpack.c.0.s8 %v4302
        %v4304 = vlaneseq
        %v4305 = vshrl.u32 %v4304, 7
        %v4306 = vsub.s32 %v4303, %v4305
        %v4307 = vrot.slane %v4299, %v4306
        %v4309 = vunpack.c.l.s4 1934713408
        %v4310 = vunpack.c.0.s8 %v4309
        %v4311 = vlaneseq
        %v4312 = vshrl.u32 %v4311, 7
        %v4313 = vsub.s32 %v4310, %v4312
        %v4314 = vrot.slane %v4300, %v4313
        %v4315 = vcombine.low %v4259, %v4275
        %v4316 = vcombine.high %v4259, %v4275
        %v4318 = vunpack.c.l.s4 1934713408
        %v4319 = vunpack.c.0.s8 %v4318
        %v4320 = vlaneseq
        %v4321 = vshrl.u32 %v4320, 7
        %v4322 = vsub.s32 %v4319, %v4321
        %v4323 = vrot.slane %v4315, %v4322
        %v4325 = vunpack.c.l.s4 1934713408
        %v4326 = vunpack.c.0.s8 %v4325
        %v4327 = vlaneseq
        %v4328 = vshrl.u32 %v4327, 7
        %v4329 = vsub.s32 %v4326, %v4328
        %v4330 = vrot.slane %v4316, %v4329
        %v4331 = vcombine.low %v4266, %v4282
        %v4332 = vcombine.high %v4266, %v4282
        %v4334 = vunpack.c.l.s4 1934713408
        %v4335 = vunpack.c.0.s8 %v4334
        %v4336 = vlaneseq
        %v4337 = vshrl.u32 %v4336, 7
        %v4338 = vsub.s32 %v4335, %v4337
        %v4339 = vrot.slane %v4331, %v4338
        %v4341 = vunpack.c.l.s4 1934713408
        %v4342 = vunpack.c.0.s8 %v4341
        %v4343 = vlaneseq
        %v4344 = vshrl.u32 %v4343, 7
        %v4345 = vsub.s32 %v4342, %v4344
        %v4346 = vrot.slane %v4332, %v4345
        %v4347 = vcombine.low %v4291, %v4323
        %v4348 = vcombine.high %v4291, %v4323
        %v4349 = vcombine.low %v4298, %v4330
        %v4350 = vcombine.high %v4298, %v4330
        %v4351 = vcombine.low %v4307, %v4339
        %v4352 = vcombine.high %v4307, %v4339
        %v4353 = vcombine.low %v4314, %v4346
        %v4354 = vcombine.high %v4314, %v4346
        %v4355 = vcombine.low %v1851, %v1855
        %v4356 = vcombine.high %v1851, %v1855
        %v4358 = vunpack.c.l.s4 1983009808
        %v4359 = vunpack.c.0.s8 %v4358
        %v4360 = vlaneseq
        %v4361 = vshrl.u32 %v4360, 7
        %v4362 = vsub.s32 %v4359, %v4361
        %v4363 = vrot.slane %v4355, %v4362
        %v4365 = vunpack.c.l.s4 1983009808
        %v4366 = vunpack.c.0.s8 %v4365
        %v4367 = vlaneseq
        %v4368 = vshrl.u32 %v4367, 7
        %v4369 = vsub.s32 %v4366, %v4368
        %v4370 = vrot.slane %v4356, %v4369
        %v4371 = vcombine.low %v1853, %v1857
        %v4372 = vcombine.high %v1853, %v1857
        %v4374 = vunpack.c.l.s4 1983009808
        %v4375 = vunpack.c.0.s8 %v4374
        %v4376 = vlaneseq
        %v4377 = vshrl.u32 %v4376, 7
        %v4378 = vsub.s32 %v4375, %v4377
        %v4379 = vrot.slane %v4371, %v4378
        %v4381 = vunpack.c.l.s4 1983009808
        %v4382 = vunpack.c.0.s8 %v4381
        %v4383 = vlaneseq
        %v4384 = vshrl.u32 %v4383, 7
        %v4385 = vsub.s32 %v4382, %v4384
        %v4386 = vrot.slane %v4372, %v4385
        %v4387 = vcombine.low %v1859, %v1863
        %v4388 = vcombine.high %v1859, %v1863
        %v4390 = vunpack.c.l.s4 1983009808
        %v4391 = vunpack.c.0.s8 %v4390
        %v4392 = vlaneseq
        %v4393 = vshrl.u32 %v4392, 7
        %v4394 = vsub.s32 %v4391, %v4393
        %v4395 = vrot.slane %v4387, %v4394
        %v4397 = vunpack.c.l.s4 1983009808
        %v4398 = vunpack.c.0.s8 %v4397
        %v4399 = vlaneseq
        %v4400 = vshrl.u32 %v4399, 7
        %v4401 = vsub.s32 %v4398, %v4400
        %v4402 = vrot.slane %v4388, %v4401
        %v4403 = vcombine.low %v1861, %v1865
        %v4404 = vcombine.high %v1861, %v1865
        %v4406 = vunpack.c.l.s4 1983009808
        %v4407 = vunpack.c.0.s8 %v4406
        %v4408 = vlaneseq
        %v4409 = vshrl.u32 %v4408, 7
        %v4410 = vsub.s32 %v4407, %v4409
        %v4411 = vrot.slane %v4403, %v4410
        %v4413 = vunpack.c.l.s4 1983009808
        %v4414 = vunpack.c.0.s8 %v4413
        %v4415 = vlaneseq
        %v4416 = vshrl.u32 %v4415, 7
        %v4417 = vsub.s32 %v4414, %v4416
        %v4418 = vrot.slane %v4404, %v4417
        %v4419 = vcombine.low %v4363, %v4379
        %v4420 = vcombine.high %v4363, %v4379
        %v4422 = vunpack.c.l.s4 1934713408
        %v4423 = vunpack.c.0.s8 %v4422
        %v4424 = vlaneseq
        %v4425 = vshrl.u32 %v4424, 7
        %v4426 = vsub.s32 %v4423, %v4425
        %v4427 = vrot.slane %v4419, %v4426
        %v4429 = vunpack.c.l.s4 1934713408
        %v4430 = vunpack.c.0.s8 %v4429
        %v4431 = vlaneseq
        %v4432 = vshrl.u32 %v4431, 7
        %v4433 = vsub.s32 %v4430, %v4432
        %v4434 = vrot.slane %v4420, %v4433
        %v4435 = vcombine.low %v4370, %v4386
        %v4436 = vcombine.high %v4370, %v4386
        %v4438 = vunpack.c.l.s4 1934713408
        %v4439 = vunpack.c.0.s8 %v4438
        %v4440 = vlaneseq
        %v4441 = vshrl.u32 %v4440, 7
        %v4442 = vsub.s32 %v4439, %v4441
        %v4443 = vrot.slane %v4435, %v4442
        %v4445 = vunpack.c.l.s4 1934713408
        %v4446 = vunpack.c.0.s8 %v4445
        %v4447 = vlaneseq
        %v4448 = vshrl.u32 %v4447, 7
        %v4449 = vsub.s32 %v4446, %v4448
        %v4450 = vrot.slane %v4436, %v4449
        %v4451 = vcombine.low %v4395, %v4411
        %v4452 = vcombine.high %v4395, %v4411
        %v4454 = vunpack.c.l.s4 1934713408
        %v4455 = vunpack.c.0.s8 %v4454
        %v4456 = vlaneseq
        %v4457 = vshrl.u32 %v4456, 7
        %v4458 = vsub.s32 %v4455, %v4457
        %v4459 = vrot.slane %v4451, %v4458
        %v4461 = vunpack.c.l.s4 1934713408
        %v4462 = vunpack.c.0.s8 %v4461
        %v4463 = vlaneseq
        %v4464 = vshrl.u32 %v4463, 7
        %v4465 = vsub.s32 %v4462, %v4464
        %v4466 = vrot.slane %v4452, %v4465
        %v4467 = vcombine.low %v4402, %v4418
        %v4468 = vcombine.high %v4402, %v4418
        %v4470 = vunpack.c.l.s4 1934713408
        %v4471 = vunpack.c.0.s8 %v4470
        %v4472 = vlaneseq
        %v4473 = vshrl.u32 %v4472, 7
        %v4474 = vsub.s32 %v4471, %v4473
        %v4475 = vrot.slane %v4467, %v4474
        %v4477 = vunpack.c.l.s4 1934713408
        %v4478 = vunpack.c.0.s8 %v4477
        %v4479 = vlaneseq
        %v4480 = vshrl.u32 %v4479, 7
        %v4481 = vsub.s32 %v4478, %v4480
        %v4482 = vrot.slane %v4468, %v4481
        %v4483 = vcombine.low %v4427, %v4459
        %v4484 = vcombine.high %v4427, %v4459
        %v4485 = vcombine.low %v4434, %v4466
        %v4486 = vcombine.high %v4434, %v4466
        %v4487 = vcombine.low %v4443, %v4475
        %v4488 = vcombine.high %v4443, %v4475
        %v4489 = vcombine.low %v4450, %v4482
        %v4490 = vcombine.high %v4450, %v4482
        %v4491 = vcombine.low %v1740, %v1744
        %v4492 = vcombine.high %v1740, %v1744
        %v4494 = vunpack.c.l.s4 1983009808
        %v4495 = vunpack.c.0.s8 %v4494
        %v4496 = vlaneseq
        %v4497 = vshrl.u32 %v4496, 7
        %v4498 = vsub.s32 %v4495, %v4497
        %v4499 = vrot.slane %v4491, %v4498
        %v4501 = vunpack.c.l.s4 1983009808
        %v4502 = vunpack.c.0.s8 %v4501
        %v4503 = vlaneseq
        %v4504 = vshrl.u32 %v4503, 7
        %v4505 = vsub.s32 %v4502, %v4504
        %v4506 = vrot.slane %v4492, %v4505
        %v4507 = vcombine.low %v1742, %v1746
        %v4508 = vcombine.high %v1742, %v1746
        %v4510 = vunpack.c.l.s4 1983009808
        %v4511 = vunpack.c.0.s8 %v4510
        %v4512 = vlaneseq
        %v4513 = vshrl.u32 %v4512, 7
        %v4514 = vsub.s32 %v4511, %v4513
        %v4515 = vrot.slane %v4507, %v4514
        %v4517 = vunpack.c.l.s4 1983009808
        %v4518 = vunpack.c.0.s8 %v4517
        %v4519 = vlaneseq
        %v4520 = vshrl.u32 %v4519, 7
        %v4521 = vsub.s32 %v4518, %v4520
        %v4522 = vrot.slane %v4508, %v4521
        %v4523 = vcombine.low %v1748, %v1752
        %v4524 = vcombine.high %v1748, %v1752
        %v4526 = vunpack.c.l.s4 1983009808
        %v4527 = vunpack.c.0.s8 %v4526
        %v4528 = vlaneseq
        %v4529 = vshrl.u32 %v4528, 7
        %v4530 = vsub.s32 %v4527, %v4529
        %v4531 = vrot.slane %v4523, %v4530
        %v4533 = vunpack.c.l.s4 1983009808
        %v4534 = vunpack.c.0.s8 %v4533
        %v4535 = vlaneseq
        %v4536 = vshrl.u32 %v4535, 7
        %v4537 = vsub.s32 %v4534, %v4536
        %v4538 = vrot.slane %v4524, %v4537
        %v4539 = vcombine.low %v1750, %v1754
        %v4540 = vcombine.high %v1750, %v1754
        %v4542 = vunpack.c.l.s4 1983009808
        %v4543 = vunpack.c.0.s8 %v4542
        %v4544 = vlaneseq
        %v4545 = vshrl.u32 %v4544, 7
        %v4546 = vsub.s32 %v4543, %v4545
        %v4547 = vrot.slane %v4539, %v4546
        %v4549 = vunpack.c.l.s4 1983009808
        %v4550 = vunpack.c.0.s8 %v4549
        %v4551 = vlaneseq
        %v4552 = vshrl.u32 %v4551, 7
        %v4553 = vsub.s32 %v4550, %v4552
        %v4554 = vrot.slane %v4540, %v4553
        %v4555 = vcombine.low %v4499, %v4515
        %v4556 = vcombine.high %v4499, %v4515
        %v4558 = vunpack.c.l.s4 1934713408
        %v4559 = vunpack.c.0.s8 %v4558
        %v4560 = vlaneseq
        %v4561 = vshrl.u32 %v4560, 7
        %v4562 = vsub.s32 %v4559, %v4561
        %v4563 = vrot.slane %v4555, %v4562
        %v4565 = vunpack.c.l.s4 1934713408
        %v4566 = vunpack.c.0.s8 %v4565
        %v4567 = vlaneseq
        %v4568 = vshrl.u32 %v4567, 7
        %v4569 = vsub.s32 %v4566, %v4568
        %v4570 = vrot.slane %v4556, %v4569
        %v4571 = vcombine.low %v4506, %v4522
        %v4572 = vcombine.high %v4506, %v4522
        %v4574 = vunpack.c.l.s4 1934713408
        %v4575 = vunpack.c.0.s8 %v4574
        %v4576 = vlaneseq
        %v4577 = vshrl.u32 %v4576, 7
        %v4578 = vsub.s32 %v4575, %v4577
        %v4579 = vrot.slane %v4571, %v4578
        %v4581 = vunpack.c.l.s4 1934713408
        %v4582 = vunpack.c.0.s8 %v4581
        %v4583 = vlaneseq
        %v4584 = vshrl.u32 %v4583, 7
        %v4585 = vsub.s32 %v4582, %v4584
        %v4586 = vrot.slane %v4572, %v4585
        %v4587 = vcombine.low %v4531, %v4547
        %v4588 = vcombine.high %v4531, %v4547
        %v4590 = vunpack.c.l.s4 1934713408
        %v4591 = vunpack.c.0.s8 %v4590
        %v4592 = vlaneseq
        %v4593 = vshrl.u32 %v4592, 7
        %v4594 = vsub.s32 %v4591, %v4593
        %v4595 = vrot.slane %v4587, %v4594
        %v4597 = vunpack.c.l.s4 1934713408
        %v4598 = vunpack.c.0.s8 %v4597
        %v4599 = vlaneseq
        %v4600 = vshrl.u32 %v4599, 7
        %v4601 = vsub.s32 %v4598, %v4600
        %v4602 = vrot.slane %v4588, %v4601
        %v4603 = vcombine.low %v4538, %v4554
        %v4604 = vcombine.high %v4538, %v4554
        %v4606 = vunpack.c.l.s4 1934713408
        %v4607 = vunpack.c.0.s8 %v4606
        %v4608 = vlaneseq
        %v4609 = vshrl.u32 %v4608, 7
        %v4610 = vsub.s32 %v4607, %v4609
        %v4611 = vrot.slane %v4603, %v4610
        %v4613 = vunpack.c.l.s4 1934713408
        %v4614 = vunpack.c.0.s8 %v4613
        %v4615 = vlaneseq
        %v4616 = vshrl.u32 %v4615, 7
        %v4617 = vsub.s32 %v4614, %v4616
        %v4618 = vrot.slane %v4604, %v4617
        %v4619 = vcombine.low %v4563, %v4595
        %v4620 = vcombine.high %v4563, %v4595
        %v4621 = vcombine.low %v4570, %v4602
        %v4622 = vcombine.high %v4570, %v4602
        %v4623 = vcombine.low %v4579, %v4611
        %v4624 = vcombine.high %v4579, %v4611
        %v4625 = vcombine.low %v4586, %v4618
        %v4626 = vcombine.high %v4586, %v4618
        %v4627 = vcombine.low %v1756, %v1760
        %v4628 = vcombine.high %v1756, %v1760
        %v4630 = vunpack.c.l.s4 1983009808
        %v4631 = vunpack.c.0.s8 %v4630
        %v4632 = vlaneseq
        %v4633 = vshrl.u32 %v4632, 7
        %v4634 = vsub.s32 %v4631, %v4633
        %v4635 = vrot.slane %v4627, %v4634
        %v4637 = vunpack.c.l.s4 1983009808
        %v4638 = vunpack.c.0.s8 %v4637
        %v4639 = vlaneseq
        %v4640 = vshrl.u32 %v4639, 7
        %v4641 = vsub.s32 %v4638, %v4640
        %v4642 = vrot.slane %v4628, %v4641
        %v4643 = vcombine.low %v1758, %v1762
        %v4644 = vcombine.high %v1758, %v1762
        %v4646 = vunpack.c.l.s4 1983009808
        %v4647 = vunpack.c.0.s8 %v4646
        %v4648 = vlaneseq
        %v4649 = vshrl.u32 %v4648, 7
        %v4650 = vsub.s32 %v4647, %v4649
        %v4651 = vrot.slane %v4643, %v4650
        %v4653 = vunpack.c.l.s4 1983009808
        %v4654 = vunpack.c.0.s8 %v4653
        %v4655 = vlaneseq
        %v4656 = vshrl.u32 %v4655, 7
        %v4657 = vsub.s32 %v4654, %v4656
        %v4658 = vrot.slane %v4644, %v4657
        %v4659 = vcombine.low %v1764, %v1768
        %v4660 = vcombine.high %v1764, %v1768
        %v4662 = vunpack.c.l.s4 1983009808
        %v4663 = vunpack.c.0.s8 %v4662
        %v4664 = vlaneseq
        %v4665 = vshrl.u32 %v4664, 7
        %v4666 = vsub.s32 %v4663, %v4665
        %v4667 = vrot.slane %v4659, %v4666
        %v4669 = vunpack.c.l.s4 1983009808
        %v4670 = vunpack.c.0.s8 %v4669
        %v4671 = vlaneseq
        %v4672 = vshrl.u32 %v4671, 7
        %v4673 = vsub.s32 %v4670, %v4672
        %v4674 = vrot.slane %v4660, %v4673
        %v4675 = vcombine.low %v1766, %v1770
        %v4676 = vcombine.high %v1766, %v1770
        %v4678 = vunpack.c.l.s4 1983009808
        %v4679 = vunpack.c.0.s8 %v4678
        %v4680 = vlaneseq
        %v4681 = vshrl.u32 %v4680, 7
        %v4682 = vsub.s32 %v4679, %v4681
        %v4683 = vrot.slane %v4675, %v4682
        %v4685 = vunpack.c.l.s4 1983009808
        %v4686 = vunpack.c.0.s8 %v4685
        %v4687 = vlaneseq
        %v4688 = vshrl.u32 %v4687, 7
        %v4689 = vsub.s32 %v4686, %v4688
        %v4690 = vrot.slane %v4676, %v4689
        %v4691 = vcombine.low %v4635, %v4651
        %v4692 = vcombine.high %v4635, %v4651
        %v4694 = vunpack.c.l.s4 1934713408
        %v4695 = vunpack.c.0.s8 %v4694
        %v4696 = vlaneseq
        %v4697 = vshrl.u32 %v4696, 7
        %v4698 = vsub.s32 %v4695, %v4697
        %v4699 = vrot.slane %v4691, %v4698
        %v4701 = vunpack.c.l.s4 1934713408
        %v4702 = vunpack.c.0.s8 %v4701
        %v4703 = vlaneseq
        %v4704 = vshrl.u32 %v4703, 7
        %v4705 = vsub.s32 %v4702, %v4704
        %v4706 = vrot.slane %v4692, %v4705
        %v4707 = vcombine.low %v4642, %v4658
        %v4708 = vcombine.high %v4642, %v4658
        %v4710 = vunpack.c.l.s4 1934713408
        %v4711 = vunpack.c.0.s8 %v4710
        %v4712 = vlaneseq
        %v4713 = vshrl.u32 %v4712, 7
        %v4714 = vsub.s32 %v4711, %v4713
        %v4715 = vrot.slane %v4707, %v4714
        %v4717 = vunpack.c.l.s4 1934713408
        %v4718 = vunpack.c.0.s8 %v4717
        %v4719 = vlaneseq
        %v4720 = vshrl.u32 %v4719, 7
        %v4721 = vsub.s32 %v4718, %v4720
        %v4722 = vrot.slane %v4708, %v4721
        %v4723 = vcombine.low %v4667, %v4683
        %v4724 = vcombine.high %v4667, %v4683
        %v4726 = vunpack.c.l.s4 1934713408
        %v4727 = vunpack.c.0.s8 %v4726
        %v4728 = vlaneseq
        %v4729 = vshrl.u32 %v4728, 7
        %v4730 = vsub.s32 %v4727, %v4729
        %v4731 = vrot.slane %v4723, %v4730
        %v4733 = vunpack.c.l.s4 1934713408
        %v4734 = vunpack.c.0.s8 %v4733
        %v4735 = vlaneseq
        %v4736 = vshrl.u32 %v4735, 7
        %v4737 = vsub.s32 %v4734, %v4736
        %v4738 = vrot.slane %v4724, %v4737
        %v4739 = vcombine.low %v4674, %v4690
        %v4740 = vcombine.high %v4674, %v4690
        %v4742 = vunpack.c.l.s4 1934713408
        %v4743 = vunpack.c.0.s8 %v4742
        %v4744 = vlaneseq
        %v4745 = vshrl.u32 %v4744, 7
        %v4746 = vsub.s32 %v4743, %v4745
        %v4747 = vrot.slane %v4739, %v4746
        %v4749 = vunpack.c.l.s4 1934713408
        %v4750 = vunpack.c.0.s8 %v4749
        %v4751 = vlaneseq
        %v4752 = vshrl.u32 %v4751, 7
        %v4753 = vsub.s32 %v4750, %v4752
        %v4754 = vrot.slane %v4740, %v4753
        %v4755 = vcombine.low %v4699, %v4731
        %v4756 = vcombine.high %v4699, %v4731
        %v4757 = vcombine.low %v4706, %v4738
        %v4758 = vcombine.high %v4706, %v4738
        %v4759 = vcombine.low %v4715, %v4747
        %v4760 = vcombine.high %v4715, %v4747
        %v4761 = vcombine.low %v4722, %v4754
        %v4762 = vcombine.high %v4722, %v4754
        %v4763 = vcombine.low %v1772, %v1776
        %v4764 = vcombine.high %v1772, %v1776
        %v4766 = vunpack.c.l.s4 1983009808
        %v4767 = vunpack.c.0.s8 %v4766
        %v4768 = vlaneseq
        %v4769 = vshrl.u32 %v4768, 7
        %v4770 = vsub.s32 %v4767, %v4769
        %v4771 = vrot.slane %v4763, %v4770
        %v4773 = vunpack.c.l.s4 1983009808
        %v4774 = vunpack.c.0.s8 %v4773
        %v4775 = vlaneseq
        %v4776 = vshrl.u32 %v4775, 7
        %v4777 = vsub.s32 %v4774, %v4776
        %v4778 = vrot.slane %v4764, %v4777
        %v4779 = vcombine.low %v1774, %v1778
        %v4780 = vcombine.high %v1774, %v1778
        %v4782 = vunpack.c.l.s4 1983009808
        %v4783 = vunpack.c.0.s8 %v4782
        %v4784 = vlaneseq
        %v4785 = vshrl.u32 %v4784, 7
        %v4786 = vsub.s32 %v4783, %v4785
        %v4787 = vrot.slane %v4779, %v4786
        %v4789 = vunpack.c.l.s4 1983009808
        %v4790 = vunpack.c.0.s8 %v4789
        %v4791 = vlaneseq
        %v4792 = vshrl.u32 %v4791, 7
        %v4793 = vsub.s32 %v4790, %v4792
        %v4794 = vrot.slane %v4780, %v4793
        %v4795 = vcombine.low %v1780, %v1784
        %v4796 = vcombine.high %v1780, %v1784
        %v4798 = vunpack.c.l.s4 1983009808
        %v4799 = vunpack.c.0.s8 %v4798
        %v4800 = vlaneseq
        %v4801 = vshrl.u32 %v4800, 7
        %v4802 = vsub.s32 %v4799, %v4801
        %v4803 = vrot.slane %v4795, %v4802
        %v4805 = vunpack.c.l.s4 1983009808
        %v4806 = vunpack.c.0.s8 %v4805
        %v4807 = vlaneseq
        %v4808 = vshrl.u32 %v4807, 7
        %v4809 = vsub.s32 %v4806, %v4808
        %v4810 = vrot.slane %v4796, %v4809
        %v4811 = vcombine.low %v1782, %v1786
        %v4812 = vcombine.high %v1782, %v1786
        %v4814 = vunpack.c.l.s4 1983009808
        %v4815 = vunpack.c.0.s8 %v4814
        %v4816 = vlaneseq
        %v4817 = vshrl.u32 %v4816, 7
        %v4818 = vsub.s32 %v4815, %v4817
        %v4819 = vrot.slane %v4811, %v4818
        %v4821 = vunpack.c.l.s4 1983009808
        %v4822 = vunpack.c.0.s8 %v4821
        %v4823 = vlaneseq
        %v4824 = vshrl.u32 %v4823, 7
        %v4825 = vsub.s32 %v4822, %v4824
        %v4826 = vrot.slane %v4812, %v4825
        %v4827 = vcombine.low %v4771, %v4787
        %v4828 = vcombine.high %v4771, %v4787
        %v4830 = vunpack.c.l.s4 1934713408
        %v4831 = vunpack.c.0.s8 %v4830
        %v4832 = vlaneseq
        %v4833 = vshrl.u32 %v4832, 7
        %v4834 = vsub.s32 %v4831, %v4833
        %v4835 = vrot.slane %v4827, %v4834
        %v4837 = vunpack.c.l.s4 1934713408
        %v4838 = vunpack.c.0.s8 %v4837
        %v4839 = vlaneseq
        %v4840 = vshrl.u32 %v4839, 7
        %v4841 = vsub.s32 %v4838, %v4840
        %v4842 = vrot.slane %v4828, %v4841
        %v4843 = vcombine.low %v4778, %v4794
        %v4844 = vcombine.high %v4778, %v4794
        %v4846 = vunpack.c.l.s4 1934713408
        %v4847 = vunpack.c.0.s8 %v4846
        %v4848 = vlaneseq
        %v4849 = vshrl.u32 %v4848, 7
        %v4850 = vsub.s32 %v4847, %v4849
        %v4851 = vrot.slane %v4843, %v4850
        %v4853 = vunpack.c.l.s4 1934713408
        %v4854 = vunpack.c.0.s8 %v4853
        %v4855 = vlaneseq
        %v4856 = vshrl.u32 %v4855, 7
        %v4857 = vsub.s32 %v4854, %v4856
        %v4858 = vrot.slane %v4844, %v4857
        %v4859 = vcombine.low %v4803, %v4819
        %v4860 = vcombine.high %v4803, %v4819
        %v4862 = vunpack.c.l.s4 1934713408
        %v4863 = vunpack.c.0.s8 %v4862
        %v4864 = vlaneseq
        %v4865 = vshrl.u32 %v4864, 7
        %v4866 = vsub.s32 %v4863, %v4865
        %v4867 = vrot.slane %v4859, %v4866
        %v4869 = vunpack.c.l.s4 1934713408
        %v4870 = vunpack.c.0.s8 %v4869
        %v4871 = vlaneseq
        %v4872 = vshrl.u32 %v4871, 7
        %v4873 = vsub.s32 %v4870, %v4872
        %v4874 = vrot.slane %v4860, %v4873
        %v4875 = vcombine.low %v4810, %v4826
        %v4876 = vcombine.high %v4810, %v4826
        %v4878 = vunpack.c.l.s4 1934713408
        %v4879 = vunpack.c.0.s8 %v4878
        %v4880 = vlaneseq
        %v4881 = vshrl.u32 %v4880, 7
        %v4882 = vsub.s32 %v4879, %v4881
        %v4883 = vrot.slane %v4875, %v4882
        %v4885 = vunpack.c.l.s4 1934713408
        %v4886 = vunpack.c.0.s8 %v4885
        %v4887 = vlaneseq
        %v4888 = vshrl.u32 %v4887, 7
        %v4889 = vsub.s32 %v4886, %v4888
        %v4890 = vrot.slane %v4876, %v4889
        %v4891 = vcombine.low %v4835, %v4867
        %v4892 = vcombine.high %v4835, %v4867
        %v4893 = vcombine.low %v4842, %v4874
        %v4894 = vcombine.high %v4842, %v4874
        %v4895 = vcombine.low %v4851, %v4883
        %v4896 = vcombine.high %v4851, %v4883
        %v4897 = vcombine.low %v4858, %v4890
        %v4898 = vcombine.high %v4858, %v4890
        %v4899 = vcombine.low %v1788, %v1792
        %v4900 = vcombine.high %v1788, %v1792
        %v4902 = vunpack.c.l.s4 1983009808
        %v4903 = vunpack.c.0.s8 %v4902
        %v4904 = vlaneseq
        %v4905 = vshrl.u32 %v4904, 7
        %v4906 = vsub.s32 %v4903, %v4905
        %v4907 = vrot.slane %v4899, %v4906
        %v4909 = vunpack.c.l.s4 1983009808
        %v4910 = vunpack.c.0.s8 %v4909
        %v4911 = vlaneseq
        %v4912 = vshrl.u32 %v4911, 7
        %v4913 = vsub.s32 %v4910, %v4912
        %v4914 = vrot.slane %v4900, %v4913
        %v4915 = vcombine.low %v1790, %v1794
        %v4916 = vcombine.high %v1790, %v1794
        %v4918 = vunpack.c.l.s4 1983009808
        %v4919 = vunpack.c.0.s8 %v4918
        %v4920 = vlaneseq
        %v4921 = vshrl.u32 %v4920, 7
        %v4922 = vsub.s32 %v4919, %v4921
        %v4923 = vrot.slane %v4915, %v4922
        %v4925 = vunpack.c.l.s4 1983009808
        %v4926 = vunpack.c.0.s8 %v4925
        %v4927 = vlaneseq
        %v4928 = vshrl.u32 %v4927, 7
        %v4929 = vsub.s32 %v4926, %v4928
        %v4930 = vrot.slane %v4916, %v4929
        %v4931 = vcombine.low %v1796, %v1800
        %v4932 = vcombine.high %v1796, %v1800
        %v4934 = vunpack.c.l.s4 1983009808
        %v4935 = vunpack.c.0.s8 %v4934
        %v4936 = vlaneseq
        %v4937 = vshrl.u32 %v4936, 7
        %v4938 = vsub.s32 %v4935, %v4937
        %v4939 = vrot.slane %v4931, %v4938
        %v4941 = vunpack.c.l.s4 1983009808
        %v4942 = vunpack.c.0.s8 %v4941
        %v4943 = vlaneseq
        %v4944 = vshrl.u32 %v4943, 7
        %v4945 = vsub.s32 %v4942, %v4944
        %v4946 = vrot.slane %v4932, %v4945
        %v4947 = vcombine.low %v1798, %v1802
        %v4948 = vcombine.high %v1798, %v1802
        %v4950 = vunpack.c.l.s4 1983009808
        %v4951 = vunpack.c.0.s8 %v4950
        %v4952 = vlaneseq
        %v4953 = vshrl.u32 %v4952, 7
        %v4954 = vsub.s32 %v4951, %v4953
        %v4955 = vrot.slane %v4947, %v4954
        %v4957 = vunpack.c.l.s4 1983009808
        %v4958 = vunpack.c.0.s8 %v4957
        %v4959 = vlaneseq
        %v4960 = vshrl.u32 %v4959, 7
        %v4961 = vsub.s32 %v4958, %v4960
        %v4962 = vrot.slane %v4948, %v4961
        %v4963 = vcombine.low %v4907, %v4923
        %v4964 = vcombine.high %v4907, %v4923
        %v4966 = vunpack.c.l.s4 1934713408
        %v4967 = vunpack.c.0.s8 %v4966
        %v4968 = vlaneseq
        %v4969 = vshrl.u32 %v4968, 7
        %v4970 = vsub.s32 %v4967, %v4969
        %v4971 = vrot.slane %v4963, %v4970
        %v4973 = vunpack.c.l.s4 1934713408
        %v4974 = vunpack.c.0.s8 %v4973
        %v4975 = vlaneseq
        %v4976 = vshrl.u32 %v4975, 7
        %v4977 = vsub.s32 %v4974, %v4976
        %v4978 = vrot.slane %v4964, %v4977
        %v4979 = vcombine.low %v4914, %v4930
        %v4980 = vcombine.high %v4914, %v4930
        %v4982 = vunpack.c.l.s4 1934713408
        %v4983 = vunpack.c.0.s8 %v4982
        %v4984 = vlaneseq
        %v4985 = vshrl.u32 %v4984, 7
        %v4986 = vsub.s32 %v4983, %v4985
        %v4987 = vrot.slane %v4979, %v4986
        %v4989 = vunpack.c.l.s4 1934713408
        %v4990 = vunpack.c.0.s8 %v4989
        %v4991 = vlaneseq
        %v4992 = vshrl.u32 %v4991, 7
        %v4993 = vsub.s32 %v4990, %v4992
        %v4994 = vrot.slane %v4980, %v4993
        %v4995 = vcombine.low %v4939, %v4955
        %v4996 = vcombine.high %v4939, %v4955
        %v4998 = vunpack.c.l.s4 1934713408
        %v4999 = vunpack.c.0.s8 %v4998
        %v5000 = vlaneseq
        %v5001 = vshrl.u32 %v5000, 7
        %v5002 = vsub.s32 %v4999, %v5001
        %v5003 = vrot.slane %v4995, %v5002
        %v5005 = vunpack.c.l.s4 1934713408
        %v5006 = vunpack.c.0.s8 %v5005
        %v5007 = vlaneseq
        %v5008 = vshrl.u32 %v5007, 7
        %v5009 = vsub.s32 %v5006, %v5008
        %v5010 = vrot.slane %v4996, %v5009
        %v5011 = vcombine.low %v4946, %v4962
        %v5012 = vcombine.high %v4946, %v4962
        %v5014 = vunpack.c.l.s4 1934713408
        %v5015 = vunpack.c.0.s8 %v5014
        %v5016 = vlaneseq
        %v5017 = vshrl.u32 %v5016, 7
        %v5018 = vsub.s32 %v5015, %v5017
        %v5019 = vrot.slane %v5011, %v5018
        %v5021 = vunpack.c.l.s4 1934713408
        %v5022 = vunpack.c.0.s8 %v5021
        %v5023 = vlaneseq
        %v5024 = vshrl.u32 %v5023, 7
        %v5025 = vsub.s32 %v5022, %v5024
        %v5026 = vrot.slane %v5012, %v5025
        %v5027 = vcombine.low %v4971, %v5003
        %v5028 = vcombine.high %v4971, %v5003
        %v5029 = vcombine.low %v4978, %v5010
        %v5030 = vcombine.high %v4978, %v5010
        %v5031 = vcombine.low %v4987, %v5019
        %v5032 = vcombine.high %v4987, %v5019
        %v5033 = vcombine.low %v4994, %v5026
        %v5034 = vcombine.high %v4994, %v5026
        %v5035 = vcombine.low %v1804, %v1808
        %v5036 = vcombine.high %v1804, %v1808
        %v5038 = vunpack.c.l.s4 1983009808
        %v5039 = vunpack.c.0.s8 %v5038
        %v5040 = vlaneseq
        %v5041 = vshrl.u32 %v5040, 7
        %v5042 = vsub.s32 %v5039, %v5041
        %v5043 = vrot.slane %v5035, %v5042
        %v5045 = vunpack.c.l.s4 1983009808
        %v5046 = vunpack.c.0.s8 %v5045
        %v5047 = vlaneseq
        %v5048 = vshrl.u32 %v5047, 7
        %v5049 = vsub.s32 %v5046, %v5048
        %v5050 = vrot.slane %v5036, %v5049
        %v5051 = vcombine.low %v1806, %v1810
        %v5052 = vcombine.high %v1806, %v1810
        %v5054 = vunpack.c.l.s4 1983009808
        %v5055 = vunpack.c.0.s8 %v5054
        %v5056 = vlaneseq
        %v5057 = vshrl.u32 %v5056, 7
        %v5058 = vsub.s32 %v5055, %v5057
        %v5059 = vrot.slane %v5051, %v5058
        %v5061 = vunpack.c.l.s4 1983009808
        %v5062 = vunpack.c.0.s8 %v5061
        %v5063 = vlaneseq
        %v5064 = vshrl.u32 %v5063, 7
        %v5065 = vsub.s32 %v5062, %v5064
        %v5066 = vrot.slane %v5052, %v5065
        %v5067 = vcombine.low %v1812, %v1816
        %v5068 = vcombine.high %v1812, %v1816
        %v5070 = vunpack.c.l.s4 1983009808
        %v5071 = vunpack.c.0.s8 %v5070
        %v5072 = vlaneseq
        %v5073 = vshrl.u32 %v5072, 7
        %v5074 = vsub.s32 %v5071, %v5073
        %v5075 = vrot.slane %v5067, %v5074
        %v5077 = vunpack.c.l.s4 1983009808
        %v5078 = vunpack.c.0.s8 %v5077
        %v5079 = vlaneseq
        %v5080 = vshrl.u32 %v5079, 7
        %v5081 = vsub.s32 %v5078, %v5080
        %v5082 = vrot.slane %v5068, %v5081
        %v5083 = vcombine.low %v1814, %v1818
        %v5084 = vcombine.high %v1814, %v1818
        %v5086 = vunpack.c.l.s4 1983009808
        %v5087 = vunpack.c.0.s8 %v5086
        %v5088 = vlaneseq
        %v5089 = vshrl.u32 %v5088, 7
        %v5090 = vsub.s32 %v5087, %v5089
        %v5091 = vrot.slane %v5083, %v5090
        %v5093 = vunpack.c.l.s4 1983009808
        %v5094 = vunpack.c.0.s8 %v5093
        %v5095 = vlaneseq
        %v5096 = vshrl.u32 %v5095, 7
        %v5097 = vsub.s32 %v5094, %v5096
        %v5098 = vrot.slane %v5084, %v5097
        %v5099 = vcombine.low %v5043, %v5059
        %v5100 = vcombine.high %v5043, %v5059
        %v5102 = vunpack.c.l.s4 1934713408
        %v5103 = vunpack.c.0.s8 %v5102
        %v5104 = vlaneseq
        %v5105 = vshrl.u32 %v5104, 7
        %v5106 = vsub.s32 %v5103, %v5105
        %v5107 = vrot.slane %v5099, %v5106
        %v5109 = vunpack.c.l.s4 1934713408
        %v5110 = vunpack.c.0.s8 %v5109
        %v5111 = vlaneseq
        %v5112 = vshrl.u32 %v5111, 7
        %v5113 = vsub.s32 %v5110, %v5112
        %v5114 = vrot.slane %v5100, %v5113
        %v5115 = vcombine.low %v5050, %v5066
        %v5116 = vcombine.high %v5050, %v5066
        %v5118 = vunpack.c.l.s4 1934713408
        %v5119 = vunpack.c.0.s8 %v5118
        %v5120 = vlaneseq
        %v5121 = vshrl.u32 %v5120, 7
        %v5122 = vsub.s32 %v5119, %v5121
        %v5123 = vrot.slane %v5115, %v5122
        %v5125 = vunpack.c.l.s4 1934713408
        %v5126 = vunpack.c.0.s8 %v5125
        %v5127 = vlaneseq
        %v5128 = vshrl.u32 %v5127, 7
        %v5129 = vsub.s32 %v5126, %v5128
        %v5130 = vrot.slane %v5116, %v5129
        %v5131 = vcombine.low %v5075, %v5091
        %v5132 = vcombine.high %v5075, %v5091
        %v5134 = vunpack.c.l.s4 1934713408
        %v5135 = vunpack.c.0.s8 %v5134
        %v5136 = vlaneseq
        %v5137 = vshrl.u32 %v5136, 7
        %v5138 = vsub.s32 %v5135, %v5137
        %v5139 = vrot.slane %v5131, %v5138
        %v5141 = vunpack.c.l.s4 1934713408
        %v5142 = vunpack.c.0.s8 %v5141
        %v5143 = vlaneseq
        %v5144 = vshrl.u32 %v5143, 7
        %v5145 = vsub.s32 %v5142, %v5144
        %v5146 = vrot.slane %v5132, %v5145
        %v5147 = vcombine.low %v5082, %v5098
        %v5148 = vcombine.high %v5082, %v5098
        %v5150 = vunpack.c.l.s4 1934713408
        %v5151 = vunpack.c.0.s8 %v5150
        %v5152 = vlaneseq
        %v5153 = vshrl.u32 %v5152, 7
        %v5154 = vsub.s32 %v5151, %v5153
        %v5155 = vrot.slane %v5147, %v5154
        %v5157 = vunpack.c.l.s4 1934713408
        %v5158 = vunpack.c.0.s8 %v5157
        %v5159 = vlaneseq
        %v5160 = vshrl.u32 %v5159, 7
        %v5161 = vsub.s32 %v5158, %v5160
        %v5162 = vrot.slane %v5148, %v5161
        %v5163 = vcombine.low %v5107, %v5139
        %v5164 = vcombine.high %v5107, %v5139
        %v5165 = vcombine.low %v5114, %v5146
        %v5166 = vcombine.high %v5114, %v5146
        %v5167 = vcombine.low %v5123, %v5155
        %v5168 = vcombine.high %v5123, %v5155
        %v5169 = vcombine.low %v5130, %v5162
        %v5170 = vcombine.high %v5130, %v5162
        %v5171 = vcombine.low %v1820, %v1824
        %v5172 = vcombine.high %v1820, %v1824
        %v5174 = vunpack.c.l.s4 1983009808
        %v5175 = vunpack.c.0.s8 %v5174
        %v5176 = vlaneseq
        %v5177 = vshrl.u32 %v5176, 7
        %v5178 = vsub.s32 %v5175, %v5177
        %v5179 = vrot.slane %v5171, %v5178
        %v5181 = vunpack.c.l.s4 1983009808
        %v5182 = vunpack.c.0.s8 %v5181
        %v5183 = vlaneseq
        %v5184 = vshrl.u32 %v5183, 7
        %v5185 = vsub.s32 %v5182, %v5184
        %v5186 = vrot.slane %v5172, %v5185
        %v5187 = vcombine.low %v1822, %v1826
        %v5188 = vcombine.high %v1822, %v1826
        %v5190 = vunpack.c.l.s4 1983009808
        %v5191 = vunpack.c.0.s8 %v5190
        %v5192 = vlaneseq
        %v5193 = vshrl.u32 %v5192, 7
        %v5194 = vsub.s32 %v5191, %v5193
        %v5195 = vrot.slane %v5187, %v5194
        %v5197 = vunpack.c.l.s4 1983009808
        %v5198 = vunpack.c.0.s8 %v5197
        %v5199 = vlaneseq
        %v5200 = vshrl.u32 %v5199, 7
        %v5201 = vsub.s32 %v5198, %v5200
        %v5202 = vrot.slane %v5188, %v5201
        %v5203 = vcombine.low %v1828, %v1832
        %v5204 = vcombine.high %v1828, %v1832
        %v5206 = vunpack.c.l.s4 1983009808
        %v5207 = vunpack.c.0.s8 %v5206
        %v5208 = vlaneseq
        %v5209 = vshrl.u32 %v5208, 7
        %v5210 = vsub.s32 %v5207, %v5209
        %v5211 = vrot.slane %v5203, %v5210
        %v5213 = vunpack.c.l.s4 1983009808
        %v5214 = vunpack.c.0.s8 %v5213
        %v5215 = vlaneseq
        %v5216 = vshrl.u32 %v5215, 7
        %v5217 = vsub.s32 %v5214, %v5216
        %v5218 = vrot.slane %v5204, %v5217
        %v5219 = vcombine.low %v1830, %v1834
        %v5220 = vcombine.high %v1830, %v1834
        %v5222 = vunpack.c.l.s4 1983009808
        %v5223 = vunpack.c.0.s8 %v5222
        %v5224 = vlaneseq
        %v5225 = vshrl.u32 %v5224, 7
        %v5226 = vsub.s32 %v5223, %v5225
        %v5227 = vrot.slane %v5219, %v5226
        %v5229 = vunpack.c.l.s4 1983009808
        %v5230 = vunpack.c.0.s8 %v5229
        %v5231 = vlaneseq
        %v5232 = vshrl.u32 %v5231, 7
        %v5233 = vsub.s32 %v5230, %v5232
        %v5234 = vrot.slane %v5220, %v5233
        %v5235 = vcombine.low %v5179, %v5195
        %v5236 = vcombine.high %v5179, %v5195
        %v5238 = vunpack.c.l.s4 1934713408
        %v5239 = vunpack.c.0.s8 %v5238
        %v5240 = vlaneseq
        %v5241 = vshrl.u32 %v5240, 7
        %v5242 = vsub.s32 %v5239, %v5241
        %v5243 = vrot.slane %v5235, %v5242
        %v5245 = vunpack.c.l.s4 1934713408
        %v5246 = vunpack.c.0.s8 %v5245
        %v5247 = vlaneseq
        %v5248 = vshrl.u32 %v5247, 7
        %v5249 = vsub.s32 %v5246, %v5248
        %v5250 = vrot.slane %v5236, %v5249
        %v5251 = vcombine.low %v5186, %v5202
        %v5252 = vcombine.high %v5186, %v5202
        %v5254 = vunpack.c.l.s4 1934713408
        %v5255 = vunpack.c.0.s8 %v5254
        %v5256 = vlaneseq
        %v5257 = vshrl.u32 %v5256, 7
        %v5258 = vsub.s32 %v5255, %v5257
        %v5259 = vrot.slane %v5251, %v5258
        %v5261 = vunpack.c.l.s4 1934713408
        %v5262 = vunpack.c.0.s8 %v5261
        %v5263 = vlaneseq
        %v5264 = vshrl.u32 %v5263, 7
        %v5265 = vsub.s32 %v5262, %v5264
        %v5266 = vrot.slane %v5252, %v5265
        %v5267 = vcombine.low %v5211, %v5227
        %v5268 = vcombine.high %v5211, %v5227
        %v5270 = vunpack.c.l.s4 1934713408
        %v5271 = vunpack.c.0.s8 %v5270
        %v5272 = vlaneseq
        %v5273 = vshrl.u32 %v5272, 7
        %v5274 = vsub.s32 %v5271, %v5273
        %v5275 = vrot.slane %v5267, %v5274
        %v5277 = vunpack.c.l.s4 1934713408
        %v5278 = vunpack.c.0.s8 %v5277
        %v5279 = vlaneseq
        %v5280 = vshrl.u32 %v5279, 7
        %v5281 = vsub.s32 %v5278, %v5280
        %v5282 = vrot.slane %v5268, %v5281
        %v5283 = vcombine.low %v5218, %v5234
        %v5284 = vcombine.high %v5218, %v5234
        %v5286 = vunpack.c.l.s4 1934713408
        %v5287 = vunpack.c.0.s8 %v5286
        %v5288 = vlaneseq
        %v5289 = vshrl.u32 %v5288, 7
        %v5290 = vsub.s32 %v5287, %v5289
        %v5291 = vrot.slane %v5283, %v5290
        %v5293 = vunpack.c.l.s4 1934713408
        %v5294 = vunpack.c.0.s8 %v5293
        %v5295 = vlaneseq
        %v5296 = vshrl.u32 %v5295, 7
        %v5297 = vsub.s32 %v5294, %v5296
        %v5298 = vrot.slane %v5284, %v5297
        %v5299 = vcombine.low %v5243, %v5275
        %v5300 = vcombine.high %v5243, %v5275
        %v5301 = vcombine.low %v5250, %v5282
        %v5302 = vcombine.high %v5250, %v5282
        %v5303 = vcombine.low %v5259, %v5291
        %v5304 = vcombine.high %v5259, %v5291
        %v5305 = vcombine.low %v5266, %v5298
        %v5306 = vcombine.high %v5266, %v5298
        %v5307 = vcombine.low %v1836, %v1840
        %v5308 = vcombine.high %v1836, %v1840
        %v5310 = vunpack.c.l.s4 1983009808
        %v5311 = vunpack.c.0.s8 %v5310
        %v5312 = vlaneseq
        %v5313 = vshrl.u32 %v5312, 7
        %v5314 = vsub.s32 %v5311, %v5313
        %v5315 = vrot.slane %v5307, %v5314
        %v5317 = vunpack.c.l.s4 1983009808
        %v5318 = vunpack.c.0.s8 %v5317
        %v5319 = vlaneseq
        %v5320 = vshrl.u32 %v5319, 7
        %v5321 = vsub.s32 %v5318, %v5320
        %v5322 = vrot.slane %v5308, %v5321
        %v5323 = vcombine.low %v1838, %v1842
        %v5324 = vcombine.high %v1838, %v1842
        %v5326 = vunpack.c.l.s4 1983009808
        %v5327 = vunpack.c.0.s8 %v5326
        %v5328 = vlaneseq
        %v5329 = vshrl.u32 %v5328, 7
        %v5330 = vsub.s32 %v5327, %v5329
        %v5331 = vrot.slane %v5323, %v5330
        %v5333 = vunpack.c.l.s4 1983009808
        %v5334 = vunpack.c.0.s8 %v5333
        %v5335 = vlaneseq
        %v5336 = vshrl.u32 %v5335, 7
        %v5337 = vsub.s32 %v5334, %v5336
        %v5338 = vrot.slane %v5324, %v5337
        %v5339 = vcombine.low %v1844, %v1848
        %v5340 = vcombine.high %v1844, %v1848
        %v5342 = vunpack.c.l.s4 1983009808
        %v5343 = vunpack.c.0.s8 %v5342
        %v5344 = vlaneseq
        %v5345 = vshrl.u32 %v5344, 7
        %v5346 = vsub.s32 %v5343, %v5345
        %v5347 = vrot.slane %v5339, %v5346
        %v5349 = vunpack.c.l.s4 1983009808
        %v5350 = vunpack.c.0.s8 %v5349
        %v5351 = vlaneseq
        %v5352 = vshrl.u32 %v5351, 7
        %v5353 = vsub.s32 %v5350, %v5352
        %v5354 = vrot.slane %v5340, %v5353
        %v5355 = vcombine.low %v1846, %v1850
        %v5356 = vcombine.high %v1846, %v1850
        %v5358 = vunpack.c.l.s4 1983009808
        %v5359 = vunpack.c.0.s8 %v5358
        %v5360 = vlaneseq
        %v5361 = vshrl.u32 %v5360, 7
        %v5362 = vsub.s32 %v5359, %v5361
        %v5363 = vrot.slane %v5355, %v5362
        %v5365 = vunpack.c.l.s4 1983009808
        %v5366 = vunpack.c.0.s8 %v5365
        %v5367 = vlaneseq
        %v5368 = vshrl.u32 %v5367, 7
        %v5369 = vsub.s32 %v5366, %v5368
        %v5370 = vrot.slane %v5356, %v5369
        %v5371 = vcombine.low %v5315, %v5331
        %v5372 = vcombine.high %v5315, %v5331
        %v5374 = vunpack.c.l.s4 1934713408
        %v5375 = vunpack.c.0.s8 %v5374
        %v5376 = vlaneseq
        %v5377 = vshrl.u32 %v5376, 7
        %v5378 = vsub.s32 %v5375, %v5377
        %v5379 = vrot.slane %v5371, %v5378
        %v5381 = vunpack.c.l.s4 1934713408
        %v5382 = vunpack.c.0.s8 %v5381
        %v5383 = vlaneseq
        %v5384 = vshrl.u32 %v5383, 7
        %v5385 = vsub.s32 %v5382, %v5384
        %v5386 = vrot.slane %v5372, %v5385
        %v5387 = vcombine.low %v5322, %v5338
        %v5388 = vcombine.high %v5322, %v5338
        %v5390 = vunpack.c.l.s4 1934713408
        %v5391 = vunpack.c.0.s8 %v5390
        %v5392 = vlaneseq
        %v5393 = vshrl.u32 %v5392, 7
        %v5394 = vsub.s32 %v5391, %v5393
        %v5395 = vrot.slane %v5387, %v5394
        %v5397 = vunpack.c.l.s4 1934713408
        %v5398 = vunpack.c.0.s8 %v5397
        %v5399 = vlaneseq
        %v5400 = vshrl.u32 %v5399, 7
        %v5401 = vsub.s32 %v5398, %v5400
        %v5402 = vrot.slane %v5388, %v5401
        %v5403 = vcombine.low %v5347, %v5363
        %v5404 = vcombine.high %v5347, %v5363
        %v5406 = vunpack.c.l.s4 1934713408
        %v5407 = vunpack.c.0.s8 %v5406
        %v5408 = vlaneseq
        %v5409 = vshrl.u32 %v5408, 7
        %v5410 = vsub.s32 %v5407, %v5409
        %v5411 = vrot.slane %v5403, %v5410
        %v5413 = vunpack.c.l.s4 1934713408
        %v5414 = vunpack.c.0.s8 %v5413
        %v5415 = vlaneseq
        %v5416 = vshrl.u32 %v5415, 7
        %v5417 = vsub.s32 %v5414, %v5416
        %v5418 = vrot.slane %v5404, %v5417
        %v5419 = vcombine.low %v5354, %v5370
        %v5420 = vcombine.high %v5354, %v5370
        %v5422 = vunpack.c.l.s4 1934713408
        %v5423 = vunpack.c.0.s8 %v5422
        %v5424 = vlaneseq
        %v5425 = vshrl.u32 %v5424, 7
        %v5426 = vsub.s32 %v5423, %v5425
        %v5427 = vrot.slane %v5419, %v5426
        %v5429 = vunpack.c.l.s4 1934713408
        %v5430 = vunpack.c.0.s8 %v5429
        %v5431 = vlaneseq
        %v5432 = vshrl.u32 %v5431, 7
        %v5433 = vsub.s32 %v5430, %v5432
        %v5434 = vrot.slane %v5420, %v5433
        %v5435 = vcombine.low %v5379, %v5411
        %v5436 = vcombine.high %v5379, %v5411
        %v5437 = vcombine.low %v5386, %v5418
        %v5438 = vcombine.high %v5386, %v5418
        %v5439 = vcombine.low %v5395, %v5427
        %v5440 = vcombine.high %v5395, %v5427
        %v5441 = vcombine.low %v5402, %v5434
        %v5442 = vcombine.high %v5402, %v5434
        %v5443 = vcombine.low %v1852, %v1856
        %v5444 = vcombine.high %v1852, %v1856
        %v5446 = vunpack.c.l.s4 1983009808
        %v5447 = vunpack.c.0.s8 %v5446
        %v5448 = vlaneseq
        %v5449 = vshrl.u32 %v5448, 7
        %v5450 = vsub.s32 %v5447, %v5449
        %v5451 = vrot.slane %v5443, %v5450
        %v5453 = vunpack.c.l.s4 1983009808
        %v5454 = vunpack.c.0.s8 %v5453
        %v5455 = vlaneseq
        %v5456 = vshrl.u32 %v5455, 7
        %v5457 = vsub.s32 %v5454, %v5456
        %v5458 = vrot.slane %v5444, %v5457
        %v5459 = vcombine.low %v1854, %v1858
        %v5460 = vcombine.high %v1854, %v1858
        %v5462 = vunpack.c.l.s4 1983009808
        %v5463 = vunpack.c.0.s8 %v5462
        %v5464 = vlaneseq
        %v5465 = vshrl.u32 %v5464, 7
        %v5466 = vsub.s32 %v5463, %v5465
        %v5467 = vrot.slane %v5459, %v5466
        %v5469 = vunpack.c.l.s4 1983009808
        %v5470 = vunpack.c.0.s8 %v5469
        %v5471 = vlaneseq
        %v5472 = vshrl.u32 %v5471, 7
        %v5473 = vsub.s32 %v5470, %v5472
        %v5474 = vrot.slane %v5460, %v5473
        %v5475 = vcombine.low %v1860, %v1864
        %v5476 = vcombine.high %v1860, %v1864
        %v5478 = vunpack.c.l.s4 1983009808
        %v5479 = vunpack.c.0.s8 %v5478
        %v5480 = vlaneseq
        %v5481 = vshrl.u32 %v5480, 7
        %v5482 = vsub.s32 %v5479, %v5481
        %v5483 = vrot.slane %v5475, %v5482
        %v5485 = vunpack.c.l.s4 1983009808
        %v5486 = vunpack.c.0.s8 %v5485
        %v5487 = vlaneseq
        %v5488 = vshrl.u32 %v5487, 7
        %v5489 = vsub.s32 %v5486, %v5488
        %v5490 = vrot.slane %v5476, %v5489
        %v5491 = vcombine.low %v1862, %v1866
        %v5492 = vcombine.high %v1862, %v1866
        %v5494 = vunpack.c.l.s4 1983009808
        %v5495 = vunpack.c.0.s8 %v5494
        %v5496 = vlaneseq
        %v5497 = vshrl.u32 %v5496, 7
        %v5498 = vsub.s32 %v5495, %v5497
        %v5499 = vrot.slane %v5491, %v5498
        %v5501 = vunpack.c.l.s4 1983009808
        %v5502 = vunpack.c.0.s8 %v5501
        %v5503 = vlaneseq
        %v5504 = vshrl.u32 %v5503, 7
        %v5505 = vsub.s32 %v5502, %v5504
        %v5506 = vrot.slane %v5492, %v5505
        %v5507 = vcombine.low %v5451, %v5467
        %v5508 = vcombine.high %v5451, %v5467
        %v5510 = vunpack.c.l.s4 1934713408
        %v5511 = vunpack.c.0.s8 %v5510
        %v5512 = vlaneseq
        %v5513 = vshrl.u32 %v5512, 7
        %v5514 = vsub.s32 %v5511, %v5513
        %v5515 = vrot.slane %v5507, %v5514
        %v5517 = vunpack.c.l.s4 1934713408
        %v5518 = vunpack.c.0.s8 %v5517
        %v5519 = vlaneseq
        %v5520 = vshrl.u32 %v5519, 7
        %v5521 = vsub.s32 %v5518, %v5520
        %v5522 = vrot.slane %v5508, %v5521
        %v5523 = vcombine.low %v5458, %v5474
        %v5524 = vcombine.high %v5458, %v5474
        %v5526 = vunpack.c.l.s4 1934713408
        %v5527 = vunpack.c.0.s8 %v5526
        %v5528 = vlaneseq
        %v5529 = vshrl.u32 %v5528, 7
        %v5530 = vsub.s32 %v5527, %v5529
        %v5531 = vrot.slane %v5523, %v5530
        %v5533 = vunpack.c.l.s4 1934713408
        %v5534 = vunpack.c.0.s8 %v5533
        %v5535 = vlaneseq
        %v5536 = vshrl.u32 %v5535, 7
        %v5537 = vsub.s32 %v5534, %v5536
        %v5538 = vrot.slane %v5524, %v5537
        %v5539 = vcombine.low %v5483, %v5499
        %v5540 = vcombine.high %v5483, %v5499
        %v5542 = vunpack.c.l.s4 1934713408
        %v5543 = vunpack.c.0.s8 %v5542
        %v5544 = vlaneseq
        %v5545 = vshrl.u32 %v5544, 7
        %v5546 = vsub.s32 %v5543, %v5545
        %v5547 = vrot.slane %v5539, %v5546
        %v5549 = vunpack.c.l.s4 1934713408
        %v5550 = vunpack.c.0.s8 %v5549
        %v5551 = vlaneseq
        %v5552 = vshrl.u32 %v5551, 7
        %v5553 = vsub.s32 %v5550, %v5552
        %v5554 = vrot.slane %v5540, %v5553
        %v5555 = vcombine.low %v5490, %v5506
        %v5556 = vcombine.high %v5490, %v5506
        %v5558 = vunpack.c.l.s4 1934713408
        %v5559 = vunpack.c.0.s8 %v5558
        %v5560 = vlaneseq
        %v5561 = vshrl.u32 %v5560, 7
        %v5562 = vsub.s32 %v5559, %v5561
        %v5563 = vrot.slane %v5555, %v5562
        %v5565 = vunpack.c.l.s4 1934713408
        %v5566 = vunpack.c.0.s8 %v5565
        %v5567 = vlaneseq
        %v5568 = vshrl.u32 %v5567, 7
        %v5569 = vsub.s32 %v5566, %v5568
        %v5570 = vrot.slane %v5556, %v5569
        %v5571 = vcombine.low %v5515, %v5547
        %v5572 = vcombine.high %v5515, %v5547
        %v5573 = vcombine.low %v5522, %v5554
        %v5574 = vcombine.high %v5522, %v5554
        %v5575 = vcombine.low %v5531, %v5563
        %v5576 = vcombine.high %v5531, %v5563
        %v5577 = vcombine.low %v5538, %v5570
        %v5578 = vcombine.high %v5538, %v5570
        %5587 = vrot.lane.b32.xlu0 %v3532, 2
        %v5588 = vpop.permute.xlu0 %5587
        %5589 = vrot.lane.b32.xlu0 %v3668, 2
        %v5590 = vpop.permute.xlu0 %5589
        %5591 = vrot.lane.b32.xlu0 %v3804, 2
        %v5592 = vpop.permute.xlu0 %5591
        %5593 = vrot.lane.b32.xlu0 %v3940, 2
        %v5594 = vpop.permute.xlu0 %5593
        %5595 = vrot.lane.b32.xlu0 %v4076, 2
        %v5596 = vpop.permute.xlu0 %5595
        %5597 = vrot.lane.b32.xlu0 %v4212, 2
        %v5598 = vpop.permute.xlu0 %5597
        %5599 = vrot.lane.b32.xlu0 %v4348, 2
        %v5600 = vpop.permute.xlu0 %5599
        %5601 = vrot.lane.b32.xlu0 %v4484, 2
        %v5602 = vpop.permute.xlu0 %5601
        %5619 = vrot.lane.b32.xlu0 %v3533, 4
        %v5620 = vpop.permute.xlu0 %5619
        %5621 = vrot.lane.b32.xlu0 %v3669, 4
        %v5622 = vpop.permute.xlu0 %5621
        %5623 = vrot.lane.b32.xlu0 %v3805, 4
        %v5624 = vpop.permute.xlu0 %5623
        %5625 = vrot.lane.b32.xlu0 %v3941, 4
        %v5626 = vpop.permute.xlu0 %5625
        %5627 = vrot.lane.b32.xlu0 %v4077, 4
        %v5628 = vpop.permute.xlu0 %5627
        %5629 = vrot.lane.b32.xlu0 %v4213, 4
        %v5630 = vpop.permute.xlu0 %5629
        %5631 = vrot.lane.b32.xlu0 %v4349, 4
        %v5632 = vpop.permute.xlu0 %5631
        %5633 = vrot.lane.b32.xlu0 %v4485, 4
        %v5634 = vpop.permute.xlu0 %5633
        %5651 = vrot.lane.b32.xlu0 %v3534, 6
        %v5652 = vpop.permute.xlu0 %5651
        %5653 = vrot.lane.b32.xlu0 %v3670, 6
        %v5654 = vpop.permute.xlu0 %5653
        %5655 = vrot.lane.b32.xlu0 %v3806, 6
        %v5656 = vpop.permute.xlu0 %5655
        %5657 = vrot.lane.b32.xlu0 %v3942, 6
        %v5658 = vpop.permute.xlu0 %5657
        %5659 = vrot.lane.b32.xlu0 %v4078, 6
        %v5660 = vpop.permute.xlu0 %5659
        %5661 = vrot.lane.b32.xlu0 %v4214, 6
        %v5662 = vpop.permute.xlu0 %5661
        %5663 = vrot.lane.b32.xlu0 %v4350, 6
        %v5664 = vpop.permute.xlu0 %5663
        %5665 = vrot.lane.b32.xlu0 %v4486, 6
        %v5666 = vpop.permute.xlu0 %5665
        %5683 = vrot.lane.b32.xlu0 %v3535, 8
        %v5684 = vpop.permute.xlu0 %5683
        %5685 = vrot.lane.b32.xlu0 %v3671, 8
        %v5686 = vpop.permute.xlu0 %5685
        %5687 = vrot.lane.b32.xlu0 %v3807, 8
        %v5688 = vpop.permute.xlu0 %5687
        %5689 = vrot.lane.b32.xlu0 %v3943, 8
        %v5690 = vpop.permute.xlu0 %5689
        %5691 = vrot.lane.b32.xlu0 %v4079, 8
        %v5692 = vpop.permute.xlu0 %5691
        %5693 = vrot.lane.b32.xlu0 %v4215, 8
        %v5694 = vpop.permute.xlu0 %5693
        %5695 = vrot.lane.b32.xlu0 %v4351, 8
        %v5696 = vpop.permute.xlu0 %5695
        %5697 = vrot.lane.b32.xlu0 %v4487, 8
        %v5698 = vpop.permute.xlu0 %5697
        %5715 = vrot.lane.b32.xlu0 %v3536, 10
        %v5716 = vpop.permute.xlu0 %5715
        %5717 = vrot.lane.b32.xlu0 %v3672, 10
        %v5718 = vpop.permute.xlu0 %5717
        %5719 = vrot.lane.b32.xlu0 %v3808, 10
        %v5720 = vpop.permute.xlu0 %5719
        %5721 = vrot.lane.b32.xlu0 %v3944, 10
        %v5722 = vpop.permute.xlu0 %5721
        %5723 = vrot.lane.b32.xlu0 %v4080, 10
        %v5724 = vpop.permute.xlu0 %5723
        %5725 = vrot.lane.b32.xlu0 %v4216, 10
        %v5726 = vpop.permute.xlu0 %5725
        %5727 = vrot.lane.b32.xlu0 %v4352, 10
        %v5728 = vpop.permute.xlu0 %5727
        %5729 = vrot.lane.b32.xlu0 %v4488, 10
        %v5730 = vpop.permute.xlu0 %5729
        %5747 = vrot.lane.b32.xlu0 %v3537, 12
        %v5748 = vpop.permute.xlu0 %5747
        %5749 = vrot.lane.b32.xlu0 %v3673, 12
        %v5750 = vpop.permute.xlu0 %5749
        %5751 = vrot.lane.b32.xlu0 %v3809, 12
        %v5752 = vpop.permute.xlu0 %5751
        %5753 = vrot.lane.b32.xlu0 %v3945, 12
        %v5754 = vpop.permute.xlu0 %5753
        %5755 = vrot.lane.b32.xlu0 %v4081, 12
        %v5756 = vpop.permute.xlu0 %5755
        %5757 = vrot.lane.b32.xlu0 %v4217, 12
        %v5758 = vpop.permute.xlu0 %5757
        %5759 = vrot.lane.b32.xlu0 %v4353, 12
        %v5760 = vpop.permute.xlu0 %5759
        %5761 = vrot.lane.b32.xlu0 %v4489, 12
        %v5762 = vpop.permute.xlu0 %5761
        %5779 = vrot.lane.b32.xlu0 %v3538, 14
        %v5780 = vpop.permute.xlu0 %5779
        %5781 = vrot.lane.b32.xlu0 %v3674, 14
        %v5782 = vpop.permute.xlu0 %5781
        %5783 = vrot.lane.b32.xlu0 %v3810, 14
        %v5784 = vpop.permute.xlu0 %5783
        %5785 = vrot.lane.b32.xlu0 %v3946, 14
        %v5786 = vpop.permute.xlu0 %5785
        %5787 = vrot.lane.b32.xlu0 %v4082, 14
        %v5788 = vpop.permute.xlu0 %5787
        %5789 = vrot.lane.b32.xlu0 %v4218, 14
        %v5790 = vpop.permute.xlu0 %5789
        %5791 = vrot.lane.b32.xlu0 %v4354, 14
        %v5792 = vpop.permute.xlu0 %5791
        %5793 = vrot.lane.b32.xlu0 %v4490, 14
        %v5794 = vpop.permute.xlu0 %5793
        %5811 = vrot.lane.b32.xlu0 %v4619, 16
        %v5812 = vpop.permute.xlu0 %5811
        %5813 = vrot.lane.b32.xlu0 %v4755, 16
        %v5814 = vpop.permute.xlu0 %5813
        %5815 = vrot.lane.b32.xlu0 %v4891, 16
        %v5816 = vpop.permute.xlu0 %5815
        %5817 = vrot.lane.b32.xlu0 %v5027, 16
        %v5818 = vpop.permute.xlu0 %5817
        %5819 = vrot.lane.b32.xlu0 %v5163, 16
        %v5820 = vpop.permute.xlu0 %5819
        %5821 = vrot.lane.b32.xlu0 %v5299, 16
        %v5822 = vpop.permute.xlu0 %5821
        %5823 = vrot.lane.b32.xlu0 %v5435, 16
        %v5824 = vpop.permute.xlu0 %5823
        %5825 = vrot.lane.b32.xlu0 %v5571, 16
        %v5826 = vpop.permute.xlu0 %5825
        %5843 = vrot.lane.b32.xlu0 %v4620, 18
        %v5844 = vpop.permute.xlu0 %5843
        %5845 = vrot.lane.b32.xlu0 %v4756, 18
        %v5846 = vpop.permute.xlu0 %5845
        %5847 = vrot.lane.b32.xlu0 %v4892, 18
        %v5848 = vpop.permute.xlu0 %5847
        %5849 = vrot.lane.b32.xlu0 %v5028, 18
        %v5850 = vpop.permute.xlu0 %5849
        %5851 = vrot.lane.b32.xlu0 %v5164, 18
        %v5852 = vpop.permute.xlu0 %5851
        %5853 = vrot.lane.b32.xlu0 %v5300, 18
        %v5854 = vpop.permute.xlu0 %5853
        %5855 = vrot.lane.b32.xlu0 %v5436, 18
        %v5856 = vpop.permute.xlu0 %5855
        %5857 = vrot.lane.b32.xlu0 %v5572, 18
        %v5858 = vpop.permute.xlu0 %5857
        %5875 = vrot.lane.b32.xlu0 %v4621, 20
        %v5876 = vpop.permute.xlu0 %5875
        %5877 = vrot.lane.b32.xlu0 %v4757, 20
        %v5878 = vpop.permute.xlu0 %5877
        %5879 = vrot.lane.b32.xlu0 %v4893, 20
        %v5880 = vpop.permute.xlu0 %5879
        %5881 = vrot.lane.b32.xlu0 %v5029, 20
        %v5882 = vpop.permute.xlu0 %5881
        %5883 = vrot.lane.b32.xlu0 %v5165, 20
        %v5884 = vpop.permute.xlu0 %5883
        %5885 = vrot.lane.b32.xlu0 %v5301, 20
        %v5886 = vpop.permute.xlu0 %5885
        %5887 = vrot.lane.b32.xlu0 %v5437, 20
        %v5888 = vpop.permute.xlu0 %5887
        %5889 = vrot.lane.b32.xlu0 %v5573, 20
        %v5890 = vpop.permute.xlu0 %5889
        %5907 = vrot.lane.b32.xlu0 %v4622, 22
        %v5908 = vpop.permute.xlu0 %5907
        %5909 = vrot.lane.b32.xlu0 %v4758, 22
        %v5910 = vpop.permute.xlu0 %5909
        %5911 = vrot.lane.b32.xlu0 %v4894, 22
        %v5912 = vpop.permute.xlu0 %5911
        %5913 = vrot.lane.b32.xlu0 %v5030, 22
        %v5914 = vpop.permute.xlu0 %5913
        %5915 = vrot.lane.b32.xlu0 %v5166, 22
        %v5916 = vpop.permute.xlu0 %5915
        %5917 = vrot.lane.b32.xlu0 %v5302, 22
        %v5918 = vpop.permute.xlu0 %5917
        %5919 = vrot.lane.b32.xlu0 %v5438, 22
        %v5920 = vpop.permute.xlu0 %5919
        %5921 = vrot.lane.b32.xlu0 %v5574, 22
        %v5922 = vpop.permute.xlu0 %5921
        %5939 = vrot.lane.b32.xlu0 %v4623, 24
        %v5940 = vpop.permute.xlu0 %5939
        %5941 = vrot.lane.b32.xlu0 %v4759, 24
        %v5942 = vpop.permute.xlu0 %5941
        %5943 = vrot.lane.b32.xlu0 %v4895, 24
        %v5944 = vpop.permute.xlu0 %5943
        %5945 = vrot.lane.b32.xlu0 %v5031, 24
        %v5946 = vpop.permute.xlu0 %5945
        %5947 = vrot.lane.b32.xlu0 %v5167, 24
        %v5948 = vpop.permute.xlu0 %5947
        %5949 = vrot.lane.b32.xlu0 %v5303, 24
        %v5950 = vpop.permute.xlu0 %5949
        %5951 = vrot.lane.b32.xlu0 %v5439, 24
        %v5952 = vpop.permute.xlu0 %5951
        %5953 = vrot.lane.b32.xlu0 %v5575, 24
        %v5954 = vpop.permute.xlu0 %5953
        %5971 = vrot.lane.b32.xlu0 %v4624, 26
        %v5972 = vpop.permute.xlu0 %5971
        %5973 = vrot.lane.b32.xlu0 %v4760, 26
        %v5974 = vpop.permute.xlu0 %5973
        %5975 = vrot.lane.b32.xlu0 %v4896, 26
        %v5976 = vpop.permute.xlu0 %5975
        %5977 = vrot.lane.b32.xlu0 %v5032, 26
        %v5978 = vpop.permute.xlu0 %5977
        %5979 = vrot.lane.b32.xlu0 %v5168, 26
        %v5980 = vpop.permute.xlu0 %5979
        %5981 = vrot.lane.b32.xlu0 %v5304, 26
        %v5982 = vpop.permute.xlu0 %5981
        %5983 = vrot.lane.b32.xlu0 %v5440, 26
        %v5984 = vpop.permute.xlu0 %5983
        %5985 = vrot.lane.b32.xlu0 %v5576, 26
        %v5986 = vpop.permute.xlu0 %5985
        %6003 = vrot.lane.b32.xlu0 %v4625, 28
        %v6004 = vpop.permute.xlu0 %6003
        %6005 = vrot.lane.b32.xlu0 %v4761, 28
        %v6006 = vpop.permute.xlu0 %6005
        %6007 = vrot.lane.b32.xlu0 %v4897, 28
        %v6008 = vpop.permute.xlu0 %6007
        %6009 = vrot.lane.b32.xlu0 %v5033, 28
        %v6010 = vpop.permute.xlu0 %6009
        %6011 = vrot.lane.b32.xlu0 %v5169, 28
        %v6012 = vpop.permute.xlu0 %6011
        %6013 = vrot.lane.b32.xlu0 %v5305, 28
        %v6014 = vpop.permute.xlu0 %6013
        %6015 = vrot.lane.b32.xlu0 %v5441, 28
        %v6016 = vpop.permute.xlu0 %6015
        %6017 = vrot.lane.b32.xlu0 %v5577, 28
        %v6018 = vpop.permute.xlu0 %6017
        %6035 = vrot.lane.b32.xlu0 %v4626, 30
        %v6036 = vpop.permute.xlu0 %6035
        %6037 = vrot.lane.b32.xlu0 %v4762, 30
        %v6038 = vpop.permute.xlu0 %6037
        %6039 = vrot.lane.b32.xlu0 %v4898, 30
        %v6040 = vpop.permute.xlu0 %6039
        %6041 = vrot.lane.b32.xlu0 %v5034, 30
        %v6042 = vpop.permute.xlu0 %6041
        %6043 = vrot.lane.b32.xlu0 %v5170, 30
        %v6044 = vpop.permute.xlu0 %6043
        %6045 = vrot.lane.b32.xlu0 %v5306, 30
        %v6046 = vpop.permute.xlu0 %6045
        %6047 = vrot.lane.b32.xlu0 %v5442, 30
        %v6048 = vpop.permute.xlu0 %6047
        %6049 = vrot.lane.b32.xlu0 %v5578, 30
        %v6050 = vpop.permute.xlu0 %6049
        %vm6059 = vcmask 15360
        %v6060 = vsel %vm6059, %v3531, %v5588
        %v6061 = vsel %vm6059, %v3667, %v5590
        %v6062 = vsel %vm6059, %v3803, %v5592
        %v6063 = vsel %vm6059, %v3939, %v5594
        %v6064 = vsel %vm6059, %v4075, %v5596
        %v6065 = vsel %vm6059, %v4211, %v5598
        %v6066 = vsel %vm6059, %v4347, %v5600
        %v6067 = vsel %vm6059, %v4483, %v5602
        %vm6068 = vcmask 31744
        %v6069 = vsel %vm6068, %v6060, %v5620
        %v6070 = vsel %vm6068, %v6061, %v5622
        %v6071 = vsel %vm6068, %v6062, %v5624
        %v6072 = vsel %vm6068, %v6063, %v5626
        %v6073 = vsel %vm6068, %v6064, %v5628
        %v6074 = vsel %vm6068, %v6065, %v5630
        %v6075 = vsel %vm6068, %v6066, %v5632
        %v6076 = vsel %vm6068, %v6067, %v5634
        %vm6077 = vcmask 48128
        %v6078 = vsel %vm6077, %v6069, %v5652
        %v6079 = vsel %vm6077, %v6070, %v5654
        %v6080 = vsel %vm6077, %v6071, %v5656
        %v6081 = vsel %vm6077, %v6072, %v5658
        %v6082 = vsel %vm6077, %v6073, %v5660
        %v6083 = vsel %vm6077, %v6074, %v5662
        %v6084 = vsel %vm6077, %v6075, %v5664
        %v6085 = vsel %vm6077, %v6076, %v5666
        %vm6086 = vcmask 64512
        %v6087 = vsel %vm6086, %v6078, %v5684
        %v6088 = vsel %vm6086, %v6079, %v5686
        %v6089 = vsel %vm6086, %v6080, %v5688
        %v6090 = vsel %vm6086, %v6081, %v5690
        %v6091 = vsel %vm6086, %v6082, %v5692
        %v6092 = vsel %vm6086, %v6083, %v5694
        %v6093 = vsel %vm6086, %v6084, %v5696
        %v6094 = vsel %vm6086, %v6085, %v5698
        %vm6095 = vcmask 80896
        %v6096 = vsel %vm6095, %v6087, %v5716
        %v6097 = vsel %vm6095, %v6088, %v5718
        %v6098 = vsel %vm6095, %v6089, %v5720
        %v6099 = vsel %vm6095, %v6090, %v5722
        %v6100 = vsel %vm6095, %v6091, %v5724
        %v6101 = vsel %vm6095, %v6092, %v5726
        %v6102 = vsel %vm6095, %v6093, %v5728
        %v6103 = vsel %vm6095, %v6094, %v5730
        %vm6104 = vcmask 97280
        %v6105 = vsel %vm6104, %v6096, %v5748
        %v6106 = vsel %vm6104, %v6097, %v5750
        %v6107 = vsel %vm6104, %v6098, %v5752
        %v6108 = vsel %vm6104, %v6099, %v5754
        %v6109 = vsel %vm6104, %v6100, %v5756
        %v6110 = vsel %vm6104, %v6101, %v5758
        %v6111 = vsel %vm6104, %v6102, %v5760
        %v6112 = vsel %vm6104, %v6103, %v5762
        %vm6113 = vcmask 113664
        %v6114 = vsel %vm6113, %v6105, %v5780
        %v6115 = vsel %vm6113, %v6106, %v5782
        %v6116 = vsel %vm6113, %v6107, %v5784
        %v6117 = vsel %vm6113, %v6108, %v5786
        %v6118 = vsel %vm6113, %v6109, %v5788
        %v6119 = vsel %vm6113, %v6110, %v5790
        %v6120 = vsel %vm6113, %v6111, %v5792
        %v6121 = vsel %vm6113, %v6112, %v5794
        %vm6122 = vcmask 130048
        %v6123 = vsel %vm6122, %v6114, %v5812
        %v6124 = vsel %vm6122, %v6115, %v5814
        %v6125 = vsel %vm6122, %v6116, %v5816
        %v6126 = vsel %vm6122, %v6117, %v5818
        %v6127 = vsel %vm6122, %v6118, %v5820
        %v6128 = vsel %vm6122, %v6119, %v5822
        %v6129 = vsel %vm6122, %v6120, %v5824
        %v6130 = vsel %vm6122, %v6121, %v5826
        %vm6131 = vcmask 146432
        %v6132 = vsel %vm6131, %v6123, %v5844
        %v6133 = vsel %vm6131, %v6124, %v5846
        %v6134 = vsel %vm6131, %v6125, %v5848
        %v6135 = vsel %vm6131, %v6126, %v5850
        %v6136 = vsel %vm6131, %v6127, %v5852
        %v6137 = vsel %vm6131, %v6128, %v5854
        %v6138 = vsel %vm6131, %v6129, %v5856
        %v6139 = vsel %vm6131, %v6130, %v5858
        %vm6140 = vcmask 162816
        %v6141 = vsel %vm6140, %v6132, %v5876
        %v6142 = vsel %vm6140, %v6133, %v5878
        %v6143 = vsel %vm6140, %v6134, %v5880
        %v6144 = vsel %vm6140, %v6135, %v5882
        %v6145 = vsel %vm6140, %v6136, %v5884
        %v6146 = vsel %vm6140, %v6137, %v5886
        %v6147 = vsel %vm6140, %v6138, %v5888
        %v6148 = vsel %vm6140, %v6139, %v5890
        %vm6149 = vcmask 179200
        %v6150 = vsel %vm6149, %v6141, %v5908
        %v6151 = vsel %vm6149, %v6142, %v5910
        %v6152 = vsel %vm6149, %v6143, %v5912
        %v6153 = vsel %vm6149, %v6144, %v5914
        %v6154 = vsel %vm6149, %v6145, %v5916
        %v6155 = vsel %vm6149, %v6146, %v5918
        %v6156 = vsel %vm6149, %v6147, %v5920
        %v6157 = vsel %vm6149, %v6148, %v5922
        %vm6158 = vcmask 195584
        %v6159 = vsel %vm6158, %v6150, %v5940
        %v6160 = vsel %vm6158, %v6151, %v5942
        %v6161 = vsel %vm6158, %v6152, %v5944
        %v6162 = vsel %vm6158, %v6153, %v5946
        %v6163 = vsel %vm6158, %v6154, %v5948
        %v6164 = vsel %vm6158, %v6155, %v5950
        %v6165 = vsel %vm6158, %v6156, %v5952
        %v6166 = vsel %vm6158, %v6157, %v5954
        %vm6167 = vcmask 211968
        %v6168 = vsel %vm6167, %v6159, %v5972
        %v6169 = vsel %vm6167, %v6160, %v5974
        %v6170 = vsel %vm6167, %v6161, %v5976
        %v6171 = vsel %vm6167, %v6162, %v5978
        %v6172 = vsel %vm6167, %v6163, %v5980
        %v6173 = vsel %vm6167, %v6164, %v5982
        %v6174 = vsel %vm6167, %v6165, %v5984
        %v6175 = vsel %vm6167, %v6166, %v5986
        %vm6176 = vcmask 228352
        %v6177 = vsel %vm6176, %v6168, %v6004
        %v6178 = vsel %vm6176, %v6169, %v6006
        %v6179 = vsel %vm6176, %v6170, %v6008
        %v6180 = vsel %vm6176, %v6171, %v6010
        %v6181 = vsel %vm6176, %v6172, %v6012
        %v6182 = vsel %vm6176, %v6173, %v6014
        %v6183 = vsel %vm6176, %v6174, %v6016
        %v6184 = vsel %vm6176, %v6175, %v6018
        %vm6185 = vcmask 244736
        %v6186 = vsel %vm6185, %v6177, %v6036
        %v6187 = vsel %vm6185, %v6178, %v6038
        %v6188 = vsel %vm6185, %v6179, %v6040
        %v6189 = vsel %vm6185, %v6180, %v6042
        %v6190 = vsel %vm6185, %v6181, %v6044
        %v6191 = vsel %vm6185, %v6182, %v6046
        %v6192 = vsel %vm6185, %v6183, %v6048
        %v6193 = vsel %vm6185, %v6184, %v6050
        %vm6194 = vcmask 261120
        %6195 = vst.msk [vmem:[%s292] sm:$0xff] %vm6194, %v6186
        %6196 = vst.msk [vmem:[%s292 + $0x8] sm:$0xff] %vm6194, %v6187
        %6197 = vst.msk [vmem:[%s292 + $0x10] sm:$0xff] %vm6194, %v6188
        %6198 = vst.msk [vmem:[%s292 + $0x18] sm:$0xff] %vm6194, %v6189
        %6199 = vst.msk [vmem:[%s292 + $0x20] sm:$0xff] %vm6194, %v6190
        %6200 = vst.msk [vmem:[%s292 + $0x28] sm:$0xff] %vm6194, %v6191
        %6201 = vst.msk [vmem:[%s292 + $0x30] sm:$0xff] %vm6194, %v6192
        %6202 = vst.msk [vmem:[%s292 + $0x38] sm:$0xff] %vm6194, %v6193
        %v6203 = vcombine.low %v3275, %v3279
        %v6204 = vcombine.high %v3275, %v3279
        %v6206 = vunpack.c.l.s4 1983009808
        %v6207 = vunpack.c.0.s8 %v6206
        %v6208 = vlaneseq
        %v6209 = vshrl.u32 %v6208, 7
        %v6210 = vsub.s32 %v6207, %v6209
        %v6211 = vrot.slane %v6203, %v6210
        %v6213 = vunpack.c.l.s4 1983009808
        %v6214 = vunpack.c.0.s8 %v6213
        %v6215 = vlaneseq
        %v6216 = vshrl.u32 %v6215, 7
        %v6217 = vsub.s32 %v6214, %v6216
        %v6218 = vrot.slane %v6204, %v6217
        %v6219 = vcombine.low %v3277, %v3281
        %v6220 = vcombine.high %v3277, %v3281
        %v6222 = vunpack.c.l.s4 1983009808
        %v6223 = vunpack.c.0.s8 %v6222
        %v6224 = vlaneseq
        %v6225 = vshrl.u32 %v6224, 7
        %v6226 = vsub.s32 %v6223, %v6225
        %v6227 = vrot.slane %v6219, %v6226
        %v6229 = vunpack.c.l.s4 1983009808
        %v6230 = vunpack.c.0.s8 %v6229
        %v6231 = vlaneseq
        %v6232 = vshrl.u32 %v6231, 7
        %v6233 = vsub.s32 %v6230, %v6232
        %v6234 = vrot.slane %v6220, %v6233
        %v6235 = vcombine.low %v3283, %v3287
        %v6236 = vcombine.high %v3283, %v3287
        %v6238 = vunpack.c.l.s4 1983009808
        %v6239 = vunpack.c.0.s8 %v6238
        %v6240 = vlaneseq
        %v6241 = vshrl.u32 %v6240, 7
        %v6242 = vsub.s32 %v6239, %v6241
        %v6243 = vrot.slane %v6235, %v6242
        %v6245 = vunpack.c.l.s4 1983009808
        %v6246 = vunpack.c.0.s8 %v6245
        %v6247 = vlaneseq
        %v6248 = vshrl.u32 %v6247, 7
        %v6249 = vsub.s32 %v6246, %v6248
        %v6250 = vrot.slane %v6236, %v6249
        %v6251 = vcombine.low %v3285, %v3289
        %v6252 = vcombine.high %v3285, %v3289
        %v6254 = vunpack.c.l.s4 1983009808
        %v6255 = vunpack.c.0.s8 %v6254
        %v6256 = vlaneseq
        %v6257 = vshrl.u32 %v6256, 7
        %v6258 = vsub.s32 %v6255, %v6257
        %v6259 = vrot.slane %v6251, %v6258
        %v6261 = vunpack.c.l.s4 1983009808
        %v6262 = vunpack.c.0.s8 %v6261
        %v6263 = vlaneseq
        %v6264 = vshrl.u32 %v6263, 7
        %v6265 = vsub.s32 %v6262, %v6264
        %v6266 = vrot.slane %v6252, %v6265
        %v6267 = vcombine.low %v6211, %v6227
        %v6268 = vcombine.high %v6211, %v6227
        %v6270 = vunpack.c.l.s4 1934713408
        %v6271 = vunpack.c.0.s8 %v6270
        %v6272 = vlaneseq
        %v6273 = vshrl.u32 %v6272, 7
        %v6274 = vsub.s32 %v6271, %v6273
        %v6275 = vrot.slane %v6267, %v6274
        %v6277 = vunpack.c.l.s4 1934713408
        %v6278 = vunpack.c.0.s8 %v6277
        %v6279 = vlaneseq
        %v6280 = vshrl.u32 %v6279, 7
        %v6281 = vsub.s32 %v6278, %v6280
        %v6282 = vrot.slane %v6268, %v6281
        %v6283 = vcombine.low %v6218, %v6234
        %v6284 = vcombine.high %v6218, %v6234
        %v6286 = vunpack.c.l.s4 1934713408
        %v6287 = vunpack.c.0.s8 %v6286
        %v6288 = vlaneseq
        %v6289 = vshrl.u32 %v6288, 7
        %v6290 = vsub.s32 %v6287, %v6289
        %v6291 = vrot.slane %v6283, %v6290
        %v6293 = vunpack.c.l.s4 1934713408
        %v6294 = vunpack.c.0.s8 %v6293
        %v6295 = vlaneseq
        %v6296 = vshrl.u32 %v6295, 7
        %v6297 = vsub.s32 %v6294, %v6296
        %v6298 = vrot.slane %v6284, %v6297
        %v6299 = vcombine.low %v6243, %v6259
        %v6300 = vcombine.high %v6243, %v6259
        %v6302 = vunpack.c.l.s4 1934713408
        %v6303 = vunpack.c.0.s8 %v6302
        %v6304 = vlaneseq
        %v6305 = vshrl.u32 %v6304, 7
        %v6306 = vsub.s32 %v6303, %v6305
        %v6307 = vrot.slane %v6299, %v6306
        %v6309 = vunpack.c.l.s4 1934713408
        %v6310 = vunpack.c.0.s8 %v6309
        %v6311 = vlaneseq
        %v6312 = vshrl.u32 %v6311, 7
        %v6313 = vsub.s32 %v6310, %v6312
        %v6314 = vrot.slane %v6300, %v6313
        %v6315 = vcombine.low %v6250, %v6266
        %v6316 = vcombine.high %v6250, %v6266
        %v6318 = vunpack.c.l.s4 1934713408
        %v6319 = vunpack.c.0.s8 %v6318
        %v6320 = vlaneseq
        %v6321 = vshrl.u32 %v6320, 7
        %v6322 = vsub.s32 %v6319, %v6321
        %v6323 = vrot.slane %v6315, %v6322
        %v6325 = vunpack.c.l.s4 1934713408
        %v6326 = vunpack.c.0.s8 %v6325
        %v6327 = vlaneseq
        %v6328 = vshrl.u32 %v6327, 7
        %v6329 = vsub.s32 %v6326, %v6328
        %v6330 = vrot.slane %v6316, %v6329
        %v6331 = vcombine.low %v6275, %v6307
        %v6332 = vcombine.high %v6275, %v6307
        %v6333 = vcombine.low %v6282, %v6314
        %v6334 = vcombine.high %v6282, %v6314
        %v6335 = vcombine.low %v6291, %v6323
        %v6336 = vcombine.high %v6291, %v6323
        %v6337 = vcombine.low %v6298, %v6330
        %v6338 = vcombine.high %v6298, %v6330
        %v6339 = vcombine.low %v3291, %v3295
        %v6340 = vcombine.high %v3291, %v3295
        %v6342 = vunpack.c.l.s4 1983009808
        %v6343 = vunpack.c.0.s8 %v6342
        %v6344 = vlaneseq
        %v6345 = vshrl.u32 %v6344, 7
        %v6346 = vsub.s32 %v6343, %v6345
        %v6347 = vrot.slane %v6339, %v6346
        %v6349 = vunpack.c.l.s4 1983009808
        %v6350 = vunpack.c.0.s8 %v6349
        %v6351 = vlaneseq
        %v6352 = vshrl.u32 %v6351, 7
        %v6353 = vsub.s32 %v6350, %v6352
        %v6354 = vrot.slane %v6340, %v6353
        %v6355 = vcombine.low %v3293, %v3297
        %v6356 = vcombine.high %v3293, %v3297
        %v6358 = vunpack.c.l.s4 1983009808
        %v6359 = vunpack.c.0.s8 %v6358
        %v6360 = vlaneseq
        %v6361 = vshrl.u32 %v6360, 7
        %v6362 = vsub.s32 %v6359, %v6361
        %v6363 = vrot.slane %v6355, %v6362
        %v6365 = vunpack.c.l.s4 1983009808
        %v6366 = vunpack.c.0.s8 %v6365
        %v6367 = vlaneseq
        %v6368 = vshrl.u32 %v6367, 7
        %v6369 = vsub.s32 %v6366, %v6368
        %v6370 = vrot.slane %v6356, %v6369
        %v6371 = vcombine.low %v3299, %v3303
        %v6372 = vcombine.high %v3299, %v3303
        %v6374 = vunpack.c.l.s4 1983009808
        %v6375 = vunpack.c.0.s8 %v6374
        %v6376 = vlaneseq
        %v6377 = vshrl.u32 %v6376, 7
        %v6378 = vsub.s32 %v6375, %v6377
        %v6379 = vrot.slane %v6371, %v6378
        %v6381 = vunpack.c.l.s4 1983009808
        %v6382 = vunpack.c.0.s8 %v6381
        %v6383 = vlaneseq
        %v6384 = vshrl.u32 %v6383, 7
        %v6385 = vsub.s32 %v6382, %v6384
        %v6386 = vrot.slane %v6372, %v6385
        %v6387 = vcombine.low %v3301, %v3305
        %v6388 = vcombine.high %v3301, %v3305
        %v6390 = vunpack.c.l.s4 1983009808
        %v6391 = vunpack.c.0.s8 %v6390
        %v6392 = vlaneseq
        %v6393 = vshrl.u32 %v6392, 7
        %v6394 = vsub.s32 %v6391, %v6393
        %v6395 = vrot.slane %v6387, %v6394
        %v6397 = vunpack.c.l.s4 1983009808
        %v6398 = vunpack.c.0.s8 %v6397
        %v6399 = vlaneseq
        %v6400 = vshrl.u32 %v6399, 7
        %v6401 = vsub.s32 %v6398, %v6400
        %v6402 = vrot.slane %v6388, %v6401
        %v6403 = vcombine.low %v6347, %v6363
        %v6404 = vcombine.high %v6347, %v6363
        %v6406 = vunpack.c.l.s4 1934713408
        %v6407 = vunpack.c.0.s8 %v6406
        %v6408 = vlaneseq
        %v6409 = vshrl.u32 %v6408, 7
        %v6410 = vsub.s32 %v6407, %v6409
        %v6411 = vrot.slane %v6403, %v6410
        %v6413 = vunpack.c.l.s4 1934713408
        %v6414 = vunpack.c.0.s8 %v6413
        %v6415 = vlaneseq
        %v6416 = vshrl.u32 %v6415, 7
        %v6417 = vsub.s32 %v6414, %v6416
        %v6418 = vrot.slane %v6404, %v6417
        %v6419 = vcombine.low %v6354, %v6370
        %v6420 = vcombine.high %v6354, %v6370
        %v6422 = vunpack.c.l.s4 1934713408
        %v6423 = vunpack.c.0.s8 %v6422
        %v6424 = vlaneseq
        %v6425 = vshrl.u32 %v6424, 7
        %v6426 = vsub.s32 %v6423, %v6425
        %v6427 = vrot.slane %v6419, %v6426
        %v6429 = vunpack.c.l.s4 1934713408
        %v6430 = vunpack.c.0.s8 %v6429
        %v6431 = vlaneseq
        %v6432 = vshrl.u32 %v6431, 7
        %v6433 = vsub.s32 %v6430, %v6432
        %v6434 = vrot.slane %v6420, %v6433
        %v6435 = vcombine.low %v6379, %v6395
        %v6436 = vcombine.high %v6379, %v6395
        %v6438 = vunpack.c.l.s4 1934713408
        %v6439 = vunpack.c.0.s8 %v6438
        %v6440 = vlaneseq
        %v6441 = vshrl.u32 %v6440, 7
        %v6442 = vsub.s32 %v6439, %v6441
        %v6443 = vrot.slane %v6435, %v6442
        %v6445 = vunpack.c.l.s4 1934713408
        %v6446 = vunpack.c.0.s8 %v6445
        %v6447 = vlaneseq
        %v6448 = vshrl.u32 %v6447, 7
        %v6449 = vsub.s32 %v6446, %v6448
        %v6450 = vrot.slane %v6436, %v6449
        %v6451 = vcombine.low %v6386, %v6402
        %v6452 = vcombine.high %v6386, %v6402
        %v6454 = vunpack.c.l.s4 1934713408
        %v6455 = vunpack.c.0.s8 %v6454
        %v6456 = vlaneseq
        %v6457 = vshrl.u32 %v6456, 7
        %v6458 = vsub.s32 %v6455, %v6457
        %v6459 = vrot.slane %v6451, %v6458
        %v6461 = vunpack.c.l.s4 1934713408
        %v6462 = vunpack.c.0.s8 %v6461
        %v6463 = vlaneseq
        %v6464 = vshrl.u32 %v6463, 7
        %v6465 = vsub.s32 %v6462, %v6464
        %v6466 = vrot.slane %v6452, %v6465
        %v6467 = vcombine.low %v6411, %v6443
        %v6468 = vcombine.high %v6411, %v6443
        %v6469 = vcombine.low %v6418, %v6450
        %v6470 = vcombine.high %v6418, %v6450
        %v6471 = vcombine.low %v6427, %v6459
        %v6472 = vcombine.high %v6427, %v6459
        %v6473 = vcombine.low %v6434, %v6466
        %v6474 = vcombine.high %v6434, %v6466
        %v6475 = vcombine.low %v3307, %v3311
        %v6476 = vcombine.high %v3307, %v3311
        %v6478 = vunpack.c.l.s4 1983009808
        %v6479 = vunpack.c.0.s8 %v6478
        %v6480 = vlaneseq
        %v6481 = vshrl.u32 %v6480, 7
        %v6482 = vsub.s32 %v6479, %v6481
        %v6483 = vrot.slane %v6475, %v6482
        %v6485 = vunpack.c.l.s4 1983009808
        %v6486 = vunpack.c.0.s8 %v6485
        %v6487 = vlaneseq
        %v6488 = vshrl.u32 %v6487, 7
        %v6489 = vsub.s32 %v6486, %v6488
        %v6490 = vrot.slane %v6476, %v6489
        %v6491 = vcombine.low %v3309, %v3313
        %v6492 = vcombine.high %v3309, %v3313
        %v6494 = vunpack.c.l.s4 1983009808
        %v6495 = vunpack.c.0.s8 %v6494
        %v6496 = vlaneseq
        %v6497 = vshrl.u32 %v6496, 7
        %v6498 = vsub.s32 %v6495, %v6497
        %v6499 = vrot.slane %v6491, %v6498
        %v6501 = vunpack.c.l.s4 1983009808
        %v6502 = vunpack.c.0.s8 %v6501
        %v6503 = vlaneseq
        %v6504 = vshrl.u32 %v6503, 7
        %v6505 = vsub.s32 %v6502, %v6504
        %v6506 = vrot.slane %v6492, %v6505
        %v6507 = vcombine.low %v3315, %v3319
        %v6508 = vcombine.high %v3315, %v3319
        %v6510 = vunpack.c.l.s4 1983009808
        %v6511 = vunpack.c.0.s8 %v6510
        %v6512 = vlaneseq
        %v6513 = vshrl.u32 %v6512, 7
        %v6514 = vsub.s32 %v6511, %v6513
        %v6515 = vrot.slane %v6507, %v6514
        %v6517 = vunpack.c.l.s4 1983009808
        %v6518 = vunpack.c.0.s8 %v6517
        %v6519 = vlaneseq
        %v6520 = vshrl.u32 %v6519, 7
        %v6521 = vsub.s32 %v6518, %v6520
        %v6522 = vrot.slane %v6508, %v6521
        %v6523 = vcombine.low %v3317, %v3321
        %v6524 = vcombine.high %v3317, %v3321
        %v6526 = vunpack.c.l.s4 1983009808
        %v6527 = vunpack.c.0.s8 %v6526
        %v6528 = vlaneseq
        %v6529 = vshrl.u32 %v6528, 7
        %v6530 = vsub.s32 %v6527, %v6529
        %v6531 = vrot.slane %v6523, %v6530
        %v6533 = vunpack.c.l.s4 1983009808
        %v6534 = vunpack.c.0.s8 %v6533
        %v6535 = vlaneseq
        %v6536 = vshrl.u32 %v6535, 7
        %v6537 = vsub.s32 %v6534, %v6536
        %v6538 = vrot.slane %v6524, %v6537
        %v6539 = vcombine.low %v6483, %v6499
        %v6540 = vcombine.high %v6483, %v6499
        %v6542 = vunpack.c.l.s4 1934713408
        %v6543 = vunpack.c.0.s8 %v6542
        %v6544 = vlaneseq
        %v6545 = vshrl.u32 %v6544, 7
        %v6546 = vsub.s32 %v6543, %v6545
        %v6547 = vrot.slane %v6539, %v6546
        %v6549 = vunpack.c.l.s4 1934713408
        %v6550 = vunpack.c.0.s8 %v6549
        %v6551 = vlaneseq
        %v6552 = vshrl.u32 %v6551, 7
        %v6553 = vsub.s32 %v6550, %v6552
        %v6554 = vrot.slane %v6540, %v6553
        %v6555 = vcombine.low %v6490, %v6506
        %v6556 = vcombine.high %v6490, %v6506
        %v6558 = vunpack.c.l.s4 1934713408
        %v6559 = vunpack.c.0.s8 %v6558
        %v6560 = vlaneseq
        %v6561 = vshrl.u32 %v6560, 7
        %v6562 = vsub.s32 %v6559, %v6561
        %v6563 = vrot.slane %v6555, %v6562
        %v6565 = vunpack.c.l.s4 1934713408
        %v6566 = vunpack.c.0.s8 %v6565
        %v6567 = vlaneseq
        %v6568 = vshrl.u32 %v6567, 7
        %v6569 = vsub.s32 %v6566, %v6568
        %v6570 = vrot.slane %v6556, %v6569
        %v6571 = vcombine.low %v6515, %v6531
        %v6572 = vcombine.high %v6515, %v6531
        %v6574 = vunpack.c.l.s4 1934713408
        %v6575 = vunpack.c.0.s8 %v6574
        %v6576 = vlaneseq
        %v6577 = vshrl.u32 %v6576, 7
        %v6578 = vsub.s32 %v6575, %v6577
        %v6579 = vrot.slane %v6571, %v6578
        %v6581 = vunpack.c.l.s4 1934713408
        %v6582 = vunpack.c.0.s8 %v6581
        %v6583 = vlaneseq
        %v6584 = vshrl.u32 %v6583, 7
        %v6585 = vsub.s32 %v6582, %v6584
        %v6586 = vrot.slane %v6572, %v6585
        %v6587 = vcombine.low %v6522, %v6538
        %v6588 = vcombine.high %v6522, %v6538
        %v6590 = vunpack.c.l.s4 1934713408
        %v6591 = vunpack.c.0.s8 %v6590
        %v6592 = vlaneseq
        %v6593 = vshrl.u32 %v6592, 7
        %v6594 = vsub.s32 %v6591, %v6593
        %v6595 = vrot.slane %v6587, %v6594
        %v6597 = vunpack.c.l.s4 1934713408
        %v6598 = vunpack.c.0.s8 %v6597
        %v6599 = vlaneseq
        %v6600 = vshrl.u32 %v6599, 7
        %v6601 = vsub.s32 %v6598, %v6600
        %v6602 = vrot.slane %v6588, %v6601
        %v6603 = vcombine.low %v6547, %v6579
        %v6604 = vcombine.high %v6547, %v6579
        %v6605 = vcombine.low %v6554, %v6586
        %v6606 = vcombine.high %v6554, %v6586
        %v6607 = vcombine.low %v6563, %v6595
        %v6608 = vcombine.high %v6563, %v6595
        %v6609 = vcombine.low %v6570, %v6602
        %v6610 = vcombine.high %v6570, %v6602
        %v6611 = vcombine.low %v3323, %v3327
        %v6612 = vcombine.high %v3323, %v3327
        %v6614 = vunpack.c.l.s4 1983009808
        %v6615 = vunpack.c.0.s8 %v6614
        %v6616 = vlaneseq
        %v6617 = vshrl.u32 %v6616, 7
        %v6618 = vsub.s32 %v6615, %v6617
        %v6619 = vrot.slane %v6611, %v6618
        %v6621 = vunpack.c.l.s4 1983009808
        %v6622 = vunpack.c.0.s8 %v6621
        %v6623 = vlaneseq
        %v6624 = vshrl.u32 %v6623, 7
        %v6625 = vsub.s32 %v6622, %v6624
        %v6626 = vrot.slane %v6612, %v6625
        %v6627 = vcombine.low %v3325, %v3329
        %v6628 = vcombine.high %v3325, %v3329
        %v6630 = vunpack.c.l.s4 1983009808
        %v6631 = vunpack.c.0.s8 %v6630
        %v6632 = vlaneseq
        %v6633 = vshrl.u32 %v6632, 7
        %v6634 = vsub.s32 %v6631, %v6633
        %v6635 = vrot.slane %v6627, %v6634
        %v6637 = vunpack.c.l.s4 1983009808
        %v6638 = vunpack.c.0.s8 %v6637
        %v6639 = vlaneseq
        %v6640 = vshrl.u32 %v6639, 7
        %v6641 = vsub.s32 %v6638, %v6640
        %v6642 = vrot.slane %v6628, %v6641
        %v6643 = vcombine.low %v3331, %v3335
        %v6644 = vcombine.high %v3331, %v3335
        %v6646 = vunpack.c.l.s4 1983009808
        %v6647 = vunpack.c.0.s8 %v6646
        %v6648 = vlaneseq
        %v6649 = vshrl.u32 %v6648, 7
        %v6650 = vsub.s32 %v6647, %v6649
        %v6651 = vrot.slane %v6643, %v6650
        %v6653 = vunpack.c.l.s4 1983009808
        %v6654 = vunpack.c.0.s8 %v6653
        %v6655 = vlaneseq
        %v6656 = vshrl.u32 %v6655, 7
        %v6657 = vsub.s32 %v6654, %v6656
        %v6658 = vrot.slane %v6644, %v6657
        %v6659 = vcombine.low %v3333, %v3337
        %v6660 = vcombine.high %v3333, %v3337
        %v6662 = vunpack.c.l.s4 1983009808
        %v6663 = vunpack.c.0.s8 %v6662
        %v6664 = vlaneseq
        %v6665 = vshrl.u32 %v6664, 7
        %v6666 = vsub.s32 %v6663, %v6665
        %v6667 = vrot.slane %v6659, %v6666
        %v6669 = vunpack.c.l.s4 1983009808
        %v6670 = vunpack.c.0.s8 %v6669
        %v6671 = vlaneseq
        %v6672 = vshrl.u32 %v6671, 7
        %v6673 = vsub.s32 %v6670, %v6672
        %v6674 = vrot.slane %v6660, %v6673
        %v6675 = vcombine.low %v6619, %v6635
        %v6676 = vcombine.high %v6619, %v6635
        %v6678 = vunpack.c.l.s4 1934713408
        %v6679 = vunpack.c.0.s8 %v6678
        %v6680 = vlaneseq
        %v6681 = vshrl.u32 %v6680, 7
        %v6682 = vsub.s32 %v6679, %v6681
        %v6683 = vrot.slane %v6675, %v6682
        %v6685 = vunpack.c.l.s4 1934713408
        %v6686 = vunpack.c.0.s8 %v6685
        %v6687 = vlaneseq
        %v6688 = vshrl.u32 %v6687, 7
        %v6689 = vsub.s32 %v6686, %v6688
        %v6690 = vrot.slane %v6676, %v6689
        %v6691 = vcombine.low %v6626, %v6642
        %v6692 = vcombine.high %v6626, %v6642
        %v6694 = vunpack.c.l.s4 1934713408
        %v6695 = vunpack.c.0.s8 %v6694
        %v6696 = vlaneseq
        %v6697 = vshrl.u32 %v6696, 7
        %v6698 = vsub.s32 %v6695, %v6697
        %v6699 = vrot.slane %v6691, %v6698
        %v6701 = vunpack.c.l.s4 1934713408
        %v6702 = vunpack.c.0.s8 %v6701
        %v6703 = vlaneseq
        %v6704 = vshrl.u32 %v6703, 7
        %v6705 = vsub.s32 %v6702, %v6704
        %v6706 = vrot.slane %v6692, %v6705
        %v6707 = vcombine.low %v6651, %v6667
        %v6708 = vcombine.high %v6651, %v6667
        %v6710 = vunpack.c.l.s4 1934713408
        %v6711 = vunpack.c.0.s8 %v6710
        %v6712 = vlaneseq
        %v6713 = vshrl.u32 %v6712, 7
        %v6714 = vsub.s32 %v6711, %v6713
        %v6715 = vrot.slane %v6707, %v6714
        %v6717 = vunpack.c.l.s4 1934713408
        %v6718 = vunpack.c.0.s8 %v6717
        %v6719 = vlaneseq
        %v6720 = vshrl.u32 %v6719, 7
        %v6721 = vsub.s32 %v6718, %v6720
        %v6722 = vrot.slane %v6708, %v6721
        %v6723 = vcombine.low %v6658, %v6674
        %v6724 = vcombine.high %v6658, %v6674
        %v6726 = vunpack.c.l.s4 1934713408
        %v6727 = vunpack.c.0.s8 %v6726
        %v6728 = vlaneseq
        %v6729 = vshrl.u32 %v6728, 7
        %v6730 = vsub.s32 %v6727, %v6729
        %v6731 = vrot.slane %v6723, %v6730
        %v6733 = vunpack.c.l.s4 1934713408
        %v6734 = vunpack.c.0.s8 %v6733
        %v6735 = vlaneseq
        %v6736 = vshrl.u32 %v6735, 7
        %v6737 = vsub.s32 %v6734, %v6736
        %v6738 = vrot.slane %v6724, %v6737
        %v6739 = vcombine.low %v6683, %v6715
        %v6740 = vcombine.high %v6683, %v6715
        %v6741 = vcombine.low %v6690, %v6722
        %v6742 = vcombine.high %v6690, %v6722
        %v6743 = vcombine.low %v6699, %v6731
        %v6744 = vcombine.high %v6699, %v6731
        %v6745 = vcombine.low %v6706, %v6738
        %v6746 = vcombine.high %v6706, %v6738
        %v6747 = vcombine.low %v3339, %v3343
        %v6748 = vcombine.high %v3339, %v3343
        %v6750 = vunpack.c.l.s4 1983009808
        %v6751 = vunpack.c.0.s8 %v6750
        %v6752 = vlaneseq
        %v6753 = vshrl.u32 %v6752, 7
        %v6754 = vsub.s32 %v6751, %v6753
        %v6755 = vrot.slane %v6747, %v6754
        %v6757 = vunpack.c.l.s4 1983009808
        %v6758 = vunpack.c.0.s8 %v6757
        %v6759 = vlaneseq
        %v6760 = vshrl.u32 %v6759, 7
        %v6761 = vsub.s32 %v6758, %v6760
        %v6762 = vrot.slane %v6748, %v6761
        %v6763 = vcombine.low %v3341, %v3345
        %v6764 = vcombine.high %v3341, %v3345
        %v6766 = vunpack.c.l.s4 1983009808
        %v6767 = vunpack.c.0.s8 %v6766
        %v6768 = vlaneseq
        %v6769 = vshrl.u32 %v6768, 7
        %v6770 = vsub.s32 %v6767, %v6769
        %v6771 = vrot.slane %v6763, %v6770
        %v6773 = vunpack.c.l.s4 1983009808
        %v6774 = vunpack.c.0.s8 %v6773
        %v6775 = vlaneseq
        %v6776 = vshrl.u32 %v6775, 7
        %v6777 = vsub.s32 %v6774, %v6776
        %v6778 = vrot.slane %v6764, %v6777
        %v6779 = vcombine.low %v3347, %v3351
        %v6780 = vcombine.high %v3347, %v3351
        %v6782 = vunpack.c.l.s4 1983009808
        %v6783 = vunpack.c.0.s8 %v6782
        %v6784 = vlaneseq
        %v6785 = vshrl.u32 %v6784, 7
        %v6786 = vsub.s32 %v6783, %v6785
        %v6787 = vrot.slane %v6779, %v6786
        %v6789 = vunpack.c.l.s4 1983009808
        %v6790 = vunpack.c.0.s8 %v6789
        %v6791 = vlaneseq
        %v6792 = vshrl.u32 %v6791, 7
        %v6793 = vsub.s32 %v6790, %v6792
        %v6794 = vrot.slane %v6780, %v6793
        %v6795 = vcombine.low %v3349, %v3353
        %v6796 = vcombine.high %v3349, %v3353
        %v6798 = vunpack.c.l.s4 1983009808
        %v6799 = vunpack.c.0.s8 %v6798
        %v6800 = vlaneseq
        %v6801 = vshrl.u32 %v6800, 7
        %v6802 = vsub.s32 %v6799, %v6801
        %v6803 = vrot.slane %v6795, %v6802
        %v6805 = vunpack.c.l.s4 1983009808
        %v6806 = vunpack.c.0.s8 %v6805
        %v6807 = vlaneseq
        %v6808 = vshrl.u32 %v6807, 7
        %v6809 = vsub.s32 %v6806, %v6808
        %v6810 = vrot.slane %v6796, %v6809
        %v6811 = vcombine.low %v6755, %v6771
        %v6812 = vcombine.high %v6755, %v6771
        %v6814 = vunpack.c.l.s4 1934713408
        %v6815 = vunpack.c.0.s8 %v6814
        %v6816 = vlaneseq
        %v6817 = vshrl.u32 %v6816, 7
        %v6818 = vsub.s32 %v6815, %v6817
        %v6819 = vrot.slane %v6811, %v6818
        %v6821 = vunpack.c.l.s4 1934713408
        %v6822 = vunpack.c.0.s8 %v6821
        %v6823 = vlaneseq
        %v6824 = vshrl.u32 %v6823, 7
        %v6825 = vsub.s32 %v6822, %v6824
        %v6826 = vrot.slane %v6812, %v6825
        %v6827 = vcombine.low %v6762, %v6778
        %v6828 = vcombine.high %v6762, %v6778
        %v6830 = vunpack.c.l.s4 1934713408
        %v6831 = vunpack.c.0.s8 %v6830
        %v6832 = vlaneseq
        %v6833 = vshrl.u32 %v6832, 7
        %v6834 = vsub.s32 %v6831, %v6833
        %v6835 = vrot.slane %v6827, %v6834
        %v6837 = vunpack.c.l.s4 1934713408
        %v6838 = vunpack.c.0.s8 %v6837
        %v6839 = vlaneseq
        %v6840 = vshrl.u32 %v6839, 7
        %v6841 = vsub.s32 %v6838, %v6840
        %v6842 = vrot.slane %v6828, %v6841
        %v6843 = vcombine.low %v6787, %v6803
        %v6844 = vcombine.high %v6787, %v6803
        %v6846 = vunpack.c.l.s4 1934713408
        %v6847 = vunpack.c.0.s8 %v6846
        %v6848 = vlaneseq
        %v6849 = vshrl.u32 %v6848, 7
        %v6850 = vsub.s32 %v6847, %v6849
        %v6851 = vrot.slane %v6843, %v6850
        %v6853 = vunpack.c.l.s4 1934713408
        %v6854 = vunpack.c.0.s8 %v6853
        %v6855 = vlaneseq
        %v6856 = vshrl.u32 %v6855, 7
        %v6857 = vsub.s32 %v6854, %v6856
        %v6858 = vrot.slane %v6844, %v6857
        %v6859 = vcombine.low %v6794, %v6810
        %v6860 = vcombine.high %v6794, %v6810
        %v6862 = vunpack.c.l.s4 1934713408
        %v6863 = vunpack.c.0.s8 %v6862
        %v6864 = vlaneseq
        %v6865 = vshrl.u32 %v6864, 7
        %v6866 = vsub.s32 %v6863, %v6865
        %v6867 = vrot.slane %v6859, %v6866
        %v6869 = vunpack.c.l.s4 1934713408
        %v6870 = vunpack.c.0.s8 %v6869
        %v6871 = vlaneseq
        %v6872 = vshrl.u32 %v6871, 7
        %v6873 = vsub.s32 %v6870, %v6872
        %v6874 = vrot.slane %v6860, %v6873
        %v6875 = vcombine.low %v6819, %v6851
        %v6876 = vcombine.high %v6819, %v6851
        %v6877 = vcombine.low %v6826, %v6858
        %v6878 = vcombine.high %v6826, %v6858
        %v6879 = vcombine.low %v6835, %v6867
        %v6880 = vcombine.high %v6835, %v6867
        %v6881 = vcombine.low %v6842, %v6874
        %v6882 = vcombine.high %v6842, %v6874
        %v6883 = vcombine.low %v3355, %v3359
        %v6884 = vcombine.high %v3355, %v3359
        %v6886 = vunpack.c.l.s4 1983009808
        %v6887 = vunpack.c.0.s8 %v6886
        %v6888 = vlaneseq
        %v6889 = vshrl.u32 %v6888, 7
        %v6890 = vsub.s32 %v6887, %v6889
        %v6891 = vrot.slane %v6883, %v6890
        %v6893 = vunpack.c.l.s4 1983009808
        %v6894 = vunpack.c.0.s8 %v6893
        %v6895 = vlaneseq
        %v6896 = vshrl.u32 %v6895, 7
        %v6897 = vsub.s32 %v6894, %v6896
        %v6898 = vrot.slane %v6884, %v6897
        %v6899 = vcombine.low %v3357, %v3361
        %v6900 = vcombine.high %v3357, %v3361
        %v6902 = vunpack.c.l.s4 1983009808
        %v6903 = vunpack.c.0.s8 %v6902
        %v6904 = vlaneseq
        %v6905 = vshrl.u32 %v6904, 7
        %v6906 = vsub.s32 %v6903, %v6905
        %v6907 = vrot.slane %v6899, %v6906
        %v6909 = vunpack.c.l.s4 1983009808
        %v6910 = vunpack.c.0.s8 %v6909
        %v6911 = vlaneseq
        %v6912 = vshrl.u32 %v6911, 7
        %v6913 = vsub.s32 %v6910, %v6912
        %v6914 = vrot.slane %v6900, %v6913
        %v6915 = vcombine.low %v3363, %v3367
        %v6916 = vcombine.high %v3363, %v3367
        %v6918 = vunpack.c.l.s4 1983009808
        %v6919 = vunpack.c.0.s8 %v6918
        %v6920 = vlaneseq
        %v6921 = vshrl.u32 %v6920, 7
        %v6922 = vsub.s32 %v6919, %v6921
        %v6923 = vrot.slane %v6915, %v6922
        %v6925 = vunpack.c.l.s4 1983009808
        %v6926 = vunpack.c.0.s8 %v6925
        %v6927 = vlaneseq
        %v6928 = vshrl.u32 %v6927, 7
        %v6929 = vsub.s32 %v6926, %v6928
        %v6930 = vrot.slane %v6916, %v6929
        %v6931 = vcombine.low %v3365, %v3369
        %v6932 = vcombine.high %v3365, %v3369
        %v6934 = vunpack.c.l.s4 1983009808
        %v6935 = vunpack.c.0.s8 %v6934
        %v6936 = vlaneseq
        %v6937 = vshrl.u32 %v6936, 7
        %v6938 = vsub.s32 %v6935, %v6937
        %v6939 = vrot.slane %v6931, %v6938
        %v6941 = vunpack.c.l.s4 1983009808
        %v6942 = vunpack.c.0.s8 %v6941
        %v6943 = vlaneseq
        %v6944 = vshrl.u32 %v6943, 7
        %v6945 = vsub.s32 %v6942, %v6944
        %v6946 = vrot.slane %v6932, %v6945
        %v6947 = vcombine.low %v6891, %v6907
        %v6948 = vcombine.high %v6891, %v6907
        %v6950 = vunpack.c.l.s4 1934713408
        %v6951 = vunpack.c.0.s8 %v6950
        %v6952 = vlaneseq
        %v6953 = vshrl.u32 %v6952, 7
        %v6954 = vsub.s32 %v6951, %v6953
        %v6955 = vrot.slane %v6947, %v6954
        %v6957 = vunpack.c.l.s4 1934713408
        %v6958 = vunpack.c.0.s8 %v6957
        %v6959 = vlaneseq
        %v6960 = vshrl.u32 %v6959, 7
        %v6961 = vsub.s32 %v6958, %v6960
        %v6962 = vrot.slane %v6948, %v6961
        %v6963 = vcombine.low %v6898, %v6914
        %v6964 = vcombine.high %v6898, %v6914
        %v6966 = vunpack.c.l.s4 1934713408
        %v6967 = vunpack.c.0.s8 %v6966
        %v6968 = vlaneseq
        %v6969 = vshrl.u32 %v6968, 7
        %v6970 = vsub.s32 %v6967, %v6969
        %v6971 = vrot.slane %v6963, %v6970
        %v6973 = vunpack.c.l.s4 1934713408
        %v6974 = vunpack.c.0.s8 %v6973
        %v6975 = vlaneseq
        %v6976 = vshrl.u32 %v6975, 7
        %v6977 = vsub.s32 %v6974, %v6976
        %v6978 = vrot.slane %v6964, %v6977
        %v6979 = vcombine.low %v6923, %v6939
        %v6980 = vcombine.high %v6923, %v6939
        %v6982 = vunpack.c.l.s4 1934713408
        %v6983 = vunpack.c.0.s8 %v6982
        %v6984 = vlaneseq
        %v6985 = vshrl.u32 %v6984, 7
        %v6986 = vsub.s32 %v6983, %v6985
        %v6987 = vrot.slane %v6979, %v6986
        %v6989 = vunpack.c.l.s4 1934713408
        %v6990 = vunpack.c.0.s8 %v6989
        %v6991 = vlaneseq
        %v6992 = vshrl.u32 %v6991, 7
        %v6993 = vsub.s32 %v6990, %v6992
        %v6994 = vrot.slane %v6980, %v6993
        %v6995 = vcombine.low %v6930, %v6946
        %v6996 = vcombine.high %v6930, %v6946
        %v6998 = vunpack.c.l.s4 1934713408
        %v6999 = vunpack.c.0.s8 %v6998
        %v7000 = vlaneseq
        %v7001 = vshrl.u32 %v7000, 7
        %v7002 = vsub.s32 %v6999, %v7001
        %v7003 = vrot.slane %v6995, %v7002
        %v7005 = vunpack.c.l.s4 1934713408
        %v7006 = vunpack.c.0.s8 %v7005
        %v7007 = vlaneseq
        %v7008 = vshrl.u32 %v7007, 7
        %v7009 = vsub.s32 %v7006, %v7008
        %v7010 = vrot.slane %v6996, %v7009
        %v7011 = vcombine.low %v6955, %v6987
        %v7012 = vcombine.high %v6955, %v6987
        %v7013 = vcombine.low %v6962, %v6994
        %v7014 = vcombine.high %v6962, %v6994
        %v7015 = vcombine.low %v6971, %v7003
        %v7016 = vcombine.high %v6971, %v7003
        %v7017 = vcombine.low %v6978, %v7010
        %v7018 = vcombine.high %v6978, %v7010
        %v7019 = vcombine.low %v3371, %v3375
        %v7020 = vcombine.high %v3371, %v3375
        %v7022 = vunpack.c.l.s4 1983009808
        %v7023 = vunpack.c.0.s8 %v7022
        %v7024 = vlaneseq
        %v7025 = vshrl.u32 %v7024, 7
        %v7026 = vsub.s32 %v7023, %v7025
        %v7027 = vrot.slane %v7019, %v7026
        %v7029 = vunpack.c.l.s4 1983009808
        %v7030 = vunpack.c.0.s8 %v7029
        %v7031 = vlaneseq
        %v7032 = vshrl.u32 %v7031, 7
        %v7033 = vsub.s32 %v7030, %v7032
        %v7034 = vrot.slane %v7020, %v7033
        %v7035 = vcombine.low %v3373, %v3377
        %v7036 = vcombine.high %v3373, %v3377
        %v7038 = vunpack.c.l.s4 1983009808
        %v7039 = vunpack.c.0.s8 %v7038
        %v7040 = vlaneseq
        %v7041 = vshrl.u32 %v7040, 7
        %v7042 = vsub.s32 %v7039, %v7041
        %v7043 = vrot.slane %v7035, %v7042
        %v7045 = vunpack.c.l.s4 1983009808
        %v7046 = vunpack.c.0.s8 %v7045
        %v7047 = vlaneseq
        %v7048 = vshrl.u32 %v7047, 7
        %v7049 = vsub.s32 %v7046, %v7048
        %v7050 = vrot.slane %v7036, %v7049
        %v7051 = vcombine.low %v3379, %v3383
        %v7052 = vcombine.high %v3379, %v3383
        %v7054 = vunpack.c.l.s4 1983009808
        %v7055 = vunpack.c.0.s8 %v7054
        %v7056 = vlaneseq
        %v7057 = vshrl.u32 %v7056, 7
        %v7058 = vsub.s32 %v7055, %v7057
        %v7059 = vrot.slane %v7051, %v7058
        %v7061 = vunpack.c.l.s4 1983009808
        %v7062 = vunpack.c.0.s8 %v7061
        %v7063 = vlaneseq
        %v7064 = vshrl.u32 %v7063, 7
        %v7065 = vsub.s32 %v7062, %v7064
        %v7066 = vrot.slane %v7052, %v7065
        %v7067 = vcombine.low %v3381, %v3385
        %v7068 = vcombine.high %v3381, %v3385
        %v7070 = vunpack.c.l.s4 1983009808
        %v7071 = vunpack.c.0.s8 %v7070
        %v7072 = vlaneseq
        %v7073 = vshrl.u32 %v7072, 7
        %v7074 = vsub.s32 %v7071, %v7073
        %v7075 = vrot.slane %v7067, %v7074
        %v7077 = vunpack.c.l.s4 1983009808
        %v7078 = vunpack.c.0.s8 %v7077
        %v7079 = vlaneseq
        %v7080 = vshrl.u32 %v7079, 7
        %v7081 = vsub.s32 %v7078, %v7080
        %v7082 = vrot.slane %v7068, %v7081
        %v7083 = vcombine.low %v7027, %v7043
        %v7084 = vcombine.high %v7027, %v7043
        %v7086 = vunpack.c.l.s4 1934713408
        %v7087 = vunpack.c.0.s8 %v7086
        %v7088 = vlaneseq
        %v7089 = vshrl.u32 %v7088, 7
        %v7090 = vsub.s32 %v7087, %v7089
        %v7091 = vrot.slane %v7083, %v7090
        %v7093 = vunpack.c.l.s4 1934713408
        %v7094 = vunpack.c.0.s8 %v7093
        %v7095 = vlaneseq
        %v7096 = vshrl.u32 %v7095, 7
        %v7097 = vsub.s32 %v7094, %v7096
        %v7098 = vrot.slane %v7084, %v7097
        %v7099 = vcombine.low %v7034, %v7050
        %v7100 = vcombine.high %v7034, %v7050
        %v7102 = vunpack.c.l.s4 1934713408
        %v7103 = vunpack.c.0.s8 %v7102
        %v7104 = vlaneseq
        %v7105 = vshrl.u32 %v7104, 7
        %v7106 = vsub.s32 %v7103, %v7105
        %v7107 = vrot.slane %v7099, %v7106
        %v7109 = vunpack.c.l.s4 1934713408
        %v7110 = vunpack.c.0.s8 %v7109
        %v7111 = vlaneseq
        %v7112 = vshrl.u32 %v7111, 7
        %v7113 = vsub.s32 %v7110, %v7112
        %v7114 = vrot.slane %v7100, %v7113
        %v7115 = vcombine.low %v7059, %v7075
        %v7116 = vcombine.high %v7059, %v7075
        %v7118 = vunpack.c.l.s4 1934713408
        %v7119 = vunpack.c.0.s8 %v7118
        %v7120 = vlaneseq
        %v7121 = vshrl.u32 %v7120, 7
        %v7122 = vsub.s32 %v7119, %v7121
        %v7123 = vrot.slane %v7115, %v7122
        %v7125 = vunpack.c.l.s4 1934713408
        %v7126 = vunpack.c.0.s8 %v7125
        %v7127 = vlaneseq
        %v7128 = vshrl.u32 %v7127, 7
        %v7129 = vsub.s32 %v7126, %v7128
        %v7130 = vrot.slane %v7116, %v7129
        %v7131 = vcombine.low %v7066, %v7082
        %v7132 = vcombine.high %v7066, %v7082
        %v7134 = vunpack.c.l.s4 1934713408
        %v7135 = vunpack.c.0.s8 %v7134
        %v7136 = vlaneseq
        %v7137 = vshrl.u32 %v7136, 7
        %v7138 = vsub.s32 %v7135, %v7137
        %v7139 = vrot.slane %v7131, %v7138
        %v7141 = vunpack.c.l.s4 1934713408
        %v7142 = vunpack.c.0.s8 %v7141
        %v7143 = vlaneseq
        %v7144 = vshrl.u32 %v7143, 7
        %v7145 = vsub.s32 %v7142, %v7144
        %v7146 = vrot.slane %v7132, %v7145
        %v7147 = vcombine.low %v7091, %v7123
        %v7148 = vcombine.high %v7091, %v7123
        %v7149 = vcombine.low %v7098, %v7130
        %v7150 = vcombine.high %v7098, %v7130
        %v7151 = vcombine.low %v7107, %v7139
        %v7152 = vcombine.high %v7107, %v7139
        %v7153 = vcombine.low %v7114, %v7146
        %v7154 = vcombine.high %v7114, %v7146
        %v7155 = vcombine.low %v3387, %v3391
        %v7156 = vcombine.high %v3387, %v3391
        %v7158 = vunpack.c.l.s4 1983009808
        %v7159 = vunpack.c.0.s8 %v7158
        %v7160 = vlaneseq
        %v7161 = vshrl.u32 %v7160, 7
        %v7162 = vsub.s32 %v7159, %v7161
        %v7163 = vrot.slane %v7155, %v7162
        %v7165 = vunpack.c.l.s4 1983009808
        %v7166 = vunpack.c.0.s8 %v7165
        %v7167 = vlaneseq
        %v7168 = vshrl.u32 %v7167, 7
        %v7169 = vsub.s32 %v7166, %v7168
        %v7170 = vrot.slane %v7156, %v7169
        %v7171 = vcombine.low %v3389, %v3393
        %v7172 = vcombine.high %v3389, %v3393
        %v7174 = vunpack.c.l.s4 1983009808
        %v7175 = vunpack.c.0.s8 %v7174
        %v7176 = vlaneseq
        %v7177 = vshrl.u32 %v7176, 7
        %v7178 = vsub.s32 %v7175, %v7177
        %v7179 = vrot.slane %v7171, %v7178
        %v7181 = vunpack.c.l.s4 1983009808
        %v7182 = vunpack.c.0.s8 %v7181
        %v7183 = vlaneseq
        %v7184 = vshrl.u32 %v7183, 7
        %v7185 = vsub.s32 %v7182, %v7184
        %v7186 = vrot.slane %v7172, %v7185
        %v7187 = vcombine.low %v3395, %v3399
        %v7188 = vcombine.high %v3395, %v3399
        %v7190 = vunpack.c.l.s4 1983009808
        %v7191 = vunpack.c.0.s8 %v7190
        %v7192 = vlaneseq
        %v7193 = vshrl.u32 %v7192, 7
        %v7194 = vsub.s32 %v7191, %v7193
        %v7195 = vrot.slane %v7187, %v7194
        %v7197 = vunpack.c.l.s4 1983009808
        %v7198 = vunpack.c.0.s8 %v7197
        %v7199 = vlaneseq
        %v7200 = vshrl.u32 %v7199, 7
        %v7201 = vsub.s32 %v7198, %v7200
        %v7202 = vrot.slane %v7188, %v7201
        %v7203 = vcombine.low %v3397, %v3401
        %v7204 = vcombine.high %v3397, %v3401
        %v7206 = vunpack.c.l.s4 1983009808
        %v7207 = vunpack.c.0.s8 %v7206
        %v7208 = vlaneseq
        %v7209 = vshrl.u32 %v7208, 7
        %v7210 = vsub.s32 %v7207, %v7209
        %v7211 = vrot.slane %v7203, %v7210
        %v7213 = vunpack.c.l.s4 1983009808
        %v7214 = vunpack.c.0.s8 %v7213
        %v7215 = vlaneseq
        %v7216 = vshrl.u32 %v7215, 7
        %v7217 = vsub.s32 %v7214, %v7216
        %v7218 = vrot.slane %v7204, %v7217
        %v7219 = vcombine.low %v7163, %v7179
        %v7220 = vcombine.high %v7163, %v7179
        %v7222 = vunpack.c.l.s4 1934713408
        %v7223 = vunpack.c.0.s8 %v7222
        %v7224 = vlaneseq
        %v7225 = vshrl.u32 %v7224, 7
        %v7226 = vsub.s32 %v7223, %v7225
        %v7227 = vrot.slane %v7219, %v7226
        %v7229 = vunpack.c.l.s4 1934713408
        %v7230 = vunpack.c.0.s8 %v7229
        %v7231 = vlaneseq
        %v7232 = vshrl.u32 %v7231, 7
        %v7233 = vsub.s32 %v7230, %v7232
        %v7234 = vrot.slane %v7220, %v7233
        %v7235 = vcombine.low %v7170, %v7186
        %v7236 = vcombine.high %v7170, %v7186
        %v7238 = vunpack.c.l.s4 1934713408
        %v7239 = vunpack.c.0.s8 %v7238
        %v7240 = vlaneseq
        %v7241 = vshrl.u32 %v7240, 7
        %v7242 = vsub.s32 %v7239, %v7241
        %v7243 = vrot.slane %v7235, %v7242
        %v7245 = vunpack.c.l.s4 1934713408
        %v7246 = vunpack.c.0.s8 %v7245
        %v7247 = vlaneseq
        %v7248 = vshrl.u32 %v7247, 7
        %v7249 = vsub.s32 %v7246, %v7248
        %v7250 = vrot.slane %v7236, %v7249
        %v7251 = vcombine.low %v7195, %v7211
        %v7252 = vcombine.high %v7195, %v7211
        %v7254 = vunpack.c.l.s4 1934713408
        %v7255 = vunpack.c.0.s8 %v7254
        %v7256 = vlaneseq
        %v7257 = vshrl.u32 %v7256, 7
        %v7258 = vsub.s32 %v7255, %v7257
        %v7259 = vrot.slane %v7251, %v7258
        %v7261 = vunpack.c.l.s4 1934713408
        %v7262 = vunpack.c.0.s8 %v7261
        %v7263 = vlaneseq
        %v7264 = vshrl.u32 %v7263, 7
        %v7265 = vsub.s32 %v7262, %v7264
        %v7266 = vrot.slane %v7252, %v7265
        %v7267 = vcombine.low %v7202, %v7218
        %v7268 = vcombine.high %v7202, %v7218
        %v7270 = vunpack.c.l.s4 1934713408
        %v7271 = vunpack.c.0.s8 %v7270
        %v7272 = vlaneseq
        %v7273 = vshrl.u32 %v7272, 7
        %v7274 = vsub.s32 %v7271, %v7273
        %v7275 = vrot.slane %v7267, %v7274
        %v7277 = vunpack.c.l.s4 1934713408
        %v7278 = vunpack.c.0.s8 %v7277
        %v7279 = vlaneseq
        %v7280 = vshrl.u32 %v7279, 7
        %v7281 = vsub.s32 %v7278, %v7280
        %v7282 = vrot.slane %v7268, %v7281
        %v7283 = vcombine.low %v7227, %v7259
        %v7284 = vcombine.high %v7227, %v7259
        %v7285 = vcombine.low %v7234, %v7266
        %v7286 = vcombine.high %v7234, %v7266
        %v7287 = vcombine.low %v7243, %v7275
        %v7288 = vcombine.high %v7243, %v7275
        %v7289 = vcombine.low %v7250, %v7282
        %v7290 = vcombine.high %v7250, %v7282
        %v7291 = vcombine.low %v3276, %v3280
        %v7292 = vcombine.high %v3276, %v3280
        %v7294 = vunpack.c.l.s4 1983009808
        %v7295 = vunpack.c.0.s8 %v7294
        %v7296 = vlaneseq
        %v7297 = vshrl.u32 %v7296, 7
        %v7298 = vsub.s32 %v7295, %v7297
        %v7299 = vrot.slane %v7291, %v7298
        %v7301 = vunpack.c.l.s4 1983009808
        %v7302 = vunpack.c.0.s8 %v7301
        %v7303 = vlaneseq
        %v7304 = vshrl.u32 %v7303, 7
        %v7305 = vsub.s32 %v7302, %v7304
        %v7306 = vrot.slane %v7292, %v7305
        %v7307 = vcombine.low %v3278, %v3282
        %v7308 = vcombine.high %v3278, %v3282
        %v7310 = vunpack.c.l.s4 1983009808
        %v7311 = vunpack.c.0.s8 %v7310
        %v7312 = vlaneseq
        %v7313 = vshrl.u32 %v7312, 7
        %v7314 = vsub.s32 %v7311, %v7313
        %v7315 = vrot.slane %v7307, %v7314
        %v7317 = vunpack.c.l.s4 1983009808
        %v7318 = vunpack.c.0.s8 %v7317
        %v7319 = vlaneseq
        %v7320 = vshrl.u32 %v7319, 7
        %v7321 = vsub.s32 %v7318, %v7320
        %v7322 = vrot.slane %v7308, %v7321
        %v7323 = vcombine.low %v3284, %v3288
        %v7324 = vcombine.high %v3284, %v3288
        %v7326 = vunpack.c.l.s4 1983009808
        %v7327 = vunpack.c.0.s8 %v7326
        %v7328 = vlaneseq
        %v7329 = vshrl.u32 %v7328, 7
        %v7330 = vsub.s32 %v7327, %v7329
        %v7331 = vrot.slane %v7323, %v7330
        %v7333 = vunpack.c.l.s4 1983009808
        %v7334 = vunpack.c.0.s8 %v7333
        %v7335 = vlaneseq
        %v7336 = vshrl.u32 %v7335, 7
        %v7337 = vsub.s32 %v7334, %v7336
        %v7338 = vrot.slane %v7324, %v7337
        %v7339 = vcombine.low %v3286, %v3290
        %v7340 = vcombine.high %v3286, %v3290
        %v7342 = vunpack.c.l.s4 1983009808
        %v7343 = vunpack.c.0.s8 %v7342
        %v7344 = vlaneseq
        %v7345 = vshrl.u32 %v7344, 7
        %v7346 = vsub.s32 %v7343, %v7345
        %v7347 = vrot.slane %v7339, %v7346
        %v7349 = vunpack.c.l.s4 1983009808
        %v7350 = vunpack.c.0.s8 %v7349
        %v7351 = vlaneseq
        %v7352 = vshrl.u32 %v7351, 7
        %v7353 = vsub.s32 %v7350, %v7352
        %v7354 = vrot.slane %v7340, %v7353
        %v7355 = vcombine.low %v7299, %v7315
        %v7356 = vcombine.high %v7299, %v7315
        %v7358 = vunpack.c.l.s4 1934713408
        %v7359 = vunpack.c.0.s8 %v7358
        %v7360 = vlaneseq
        %v7361 = vshrl.u32 %v7360, 7
        %v7362 = vsub.s32 %v7359, %v7361
        %v7363 = vrot.slane %v7355, %v7362
        %v7365 = vunpack.c.l.s4 1934713408
        %v7366 = vunpack.c.0.s8 %v7365
        %v7367 = vlaneseq
        %v7368 = vshrl.u32 %v7367, 7
        %v7369 = vsub.s32 %v7366, %v7368
        %v7370 = vrot.slane %v7356, %v7369
        %v7371 = vcombine.low %v7306, %v7322
        %v7372 = vcombine.high %v7306, %v7322
        %v7374 = vunpack.c.l.s4 1934713408
        %v7375 = vunpack.c.0.s8 %v7374
        %v7376 = vlaneseq
        %v7377 = vshrl.u32 %v7376, 7
        %v7378 = vsub.s32 %v7375, %v7377
        %v7379 = vrot.slane %v7371, %v7378
        %v7381 = vunpack.c.l.s4 1934713408
        %v7382 = vunpack.c.0.s8 %v7381
        %v7383 = vlaneseq
        %v7384 = vshrl.u32 %v7383, 7
        %v7385 = vsub.s32 %v7382, %v7384
        %v7386 = vrot.slane %v7372, %v7385
        %v7387 = vcombine.low %v7331, %v7347
        %v7388 = vcombine.high %v7331, %v7347
        %v7390 = vunpack.c.l.s4 1934713408
        %v7391 = vunpack.c.0.s8 %v7390
        %v7392 = vlaneseq
        %v7393 = vshrl.u32 %v7392, 7
        %v7394 = vsub.s32 %v7391, %v7393
        %v7395 = vrot.slane %v7387, %v7394
        %v7397 = vunpack.c.l.s4 1934713408
        %v7398 = vunpack.c.0.s8 %v7397
        %v7399 = vlaneseq
        %v7400 = vshrl.u32 %v7399, 7
        %v7401 = vsub.s32 %v7398, %v7400
        %v7402 = vrot.slane %v7388, %v7401
        %v7403 = vcombine.low %v7338, %v7354
        %v7404 = vcombine.high %v7338, %v7354
        %v7406 = vunpack.c.l.s4 1934713408
        %v7407 = vunpack.c.0.s8 %v7406
        %v7408 = vlaneseq
        %v7409 = vshrl.u32 %v7408, 7
        %v7410 = vsub.s32 %v7407, %v7409
        %v7411 = vrot.slane %v7403, %v7410
        %v7413 = vunpack.c.l.s4 1934713408
        %v7414 = vunpack.c.0.s8 %v7413
        %v7415 = vlaneseq
        %v7416 = vshrl.u32 %v7415, 7
        %v7417 = vsub.s32 %v7414, %v7416
        %v7418 = vrot.slane %v7404, %v7417
        %v7419 = vcombine.low %v7363, %v7395
        %v7420 = vcombine.high %v7363, %v7395
        %v7421 = vcombine.low %v7370, %v7402
        %v7422 = vcombine.high %v7370, %v7402
        %v7423 = vcombine.low %v7379, %v7411
        %v7424 = vcombine.high %v7379, %v7411
        %v7425 = vcombine.low %v7386, %v7418
        %v7426 = vcombine.high %v7386, %v7418
        %v7427 = vcombine.low %v3292, %v3296
        %v7428 = vcombine.high %v3292, %v3296
        %v7430 = vunpack.c.l.s4 1983009808
        %v7431 = vunpack.c.0.s8 %v7430
        %v7432 = vlaneseq
        %v7433 = vshrl.u32 %v7432, 7
        %v7434 = vsub.s32 %v7431, %v7433
        %v7435 = vrot.slane %v7427, %v7434
        %v7437 = vunpack.c.l.s4 1983009808
        %v7438 = vunpack.c.0.s8 %v7437
        %v7439 = vlaneseq
        %v7440 = vshrl.u32 %v7439, 7
        %v7441 = vsub.s32 %v7438, %v7440
        %v7442 = vrot.slane %v7428, %v7441
        %v7443 = vcombine.low %v3294, %v3298
        %v7444 = vcombine.high %v3294, %v3298
        %v7446 = vunpack.c.l.s4 1983009808
        %v7447 = vunpack.c.0.s8 %v7446
        %v7448 = vlaneseq
        %v7449 = vshrl.u32 %v7448, 7
        %v7450 = vsub.s32 %v7447, %v7449
        %v7451 = vrot.slane %v7443, %v7450
        %v7453 = vunpack.c.l.s4 1983009808
        %v7454 = vunpack.c.0.s8 %v7453
        %v7455 = vlaneseq
        %v7456 = vshrl.u32 %v7455, 7
        %v7457 = vsub.s32 %v7454, %v7456
        %v7458 = vrot.slane %v7444, %v7457
        %v7459 = vcombine.low %v3300, %v3304
        %v7460 = vcombine.high %v3300, %v3304
        %v7462 = vunpack.c.l.s4 1983009808
        %v7463 = vunpack.c.0.s8 %v7462
        %v7464 = vlaneseq
        %v7465 = vshrl.u32 %v7464, 7
        %v7466 = vsub.s32 %v7463, %v7465
        %v7467 = vrot.slane %v7459, %v7466
        %v7469 = vunpack.c.l.s4 1983009808
        %v7470 = vunpack.c.0.s8 %v7469
        %v7471 = vlaneseq
        %v7472 = vshrl.u32 %v7471, 7
        %v7473 = vsub.s32 %v7470, %v7472
        %v7474 = vrot.slane %v7460, %v7473
        %v7475 = vcombine.low %v3302, %v3306
        %v7476 = vcombine.high %v3302, %v3306
        %v7478 = vunpack.c.l.s4 1983009808
        %v7479 = vunpack.c.0.s8 %v7478
        %v7480 = vlaneseq
        %v7481 = vshrl.u32 %v7480, 7
        %v7482 = vsub.s32 %v7479, %v7481
        %v7483 = vrot.slane %v7475, %v7482
        %v7485 = vunpack.c.l.s4 1983009808
        %v7486 = vunpack.c.0.s8 %v7485
        %v7487 = vlaneseq
        %v7488 = vshrl.u32 %v7487, 7
        %v7489 = vsub.s32 %v7486, %v7488
        %v7490 = vrot.slane %v7476, %v7489
        %v7491 = vcombine.low %v7435, %v7451
        %v7492 = vcombine.high %v7435, %v7451
        %v7494 = vunpack.c.l.s4 1934713408
        %v7495 = vunpack.c.0.s8 %v7494
        %v7496 = vlaneseq
        %v7497 = vshrl.u32 %v7496, 7
        %v7498 = vsub.s32 %v7495, %v7497
        %v7499 = vrot.slane %v7491, %v7498
        %v7501 = vunpack.c.l.s4 1934713408
        %v7502 = vunpack.c.0.s8 %v7501
        %v7503 = vlaneseq
        %v7504 = vshrl.u32 %v7503, 7
        %v7505 = vsub.s32 %v7502, %v7504
        %v7506 = vrot.slane %v7492, %v7505
        %v7507 = vcombine.low %v7442, %v7458
        %v7508 = vcombine.high %v7442, %v7458
        %v7510 = vunpack.c.l.s4 1934713408
        %v7511 = vunpack.c.0.s8 %v7510
        %v7512 = vlaneseq
        %v7513 = vshrl.u32 %v7512, 7
        %v7514 = vsub.s32 %v7511, %v7513
        %v7515 = vrot.slane %v7507, %v7514
        %v7517 = vunpack.c.l.s4 1934713408
        %v7518 = vunpack.c.0.s8 %v7517
        %v7519 = vlaneseq
        %v7520 = vshrl.u32 %v7519, 7
        %v7521 = vsub.s32 %v7518, %v7520
        %v7522 = vrot.slane %v7508, %v7521
        %v7523 = vcombine.low %v7467, %v7483
        %v7524 = vcombine.high %v7467, %v7483
        %v7526 = vunpack.c.l.s4 1934713408
        %v7527 = vunpack.c.0.s8 %v7526
        %v7528 = vlaneseq
        %v7529 = vshrl.u32 %v7528, 7
        %v7530 = vsub.s32 %v7527, %v7529
        %v7531 = vrot.slane %v7523, %v7530
        %v7533 = vunpack.c.l.s4 1934713408
        %v7534 = vunpack.c.0.s8 %v7533
        %v7535 = vlaneseq
        %v7536 = vshrl.u32 %v7535, 7
        %v7537 = vsub.s32 %v7534, %v7536
        %v7538 = vrot.slane %v7524, %v7537
        %v7539 = vcombine.low %v7474, %v7490
        %v7540 = vcombine.high %v7474, %v7490
        %v7542 = vunpack.c.l.s4 1934713408
        %v7543 = vunpack.c.0.s8 %v7542
        %v7544 = vlaneseq
        %v7545 = vshrl.u32 %v7544, 7
        %v7546 = vsub.s32 %v7543, %v7545
        %v7547 = vrot.slane %v7539, %v7546
        %v7549 = vunpack.c.l.s4 1934713408
        %v7550 = vunpack.c.0.s8 %v7549
        %v7551 = vlaneseq
        %v7552 = vshrl.u32 %v7551, 7
        %v7553 = vsub.s32 %v7550, %v7552
        %v7554 = vrot.slane %v7540, %v7553
        %v7555 = vcombine.low %v7499, %v7531
        %v7556 = vcombine.high %v7499, %v7531
        %v7557 = vcombine.low %v7506, %v7538
        %v7558 = vcombine.high %v7506, %v7538
        %v7559 = vcombine.low %v7515, %v7547
        %v7560 = vcombine.high %v7515, %v7547
        %v7561 = vcombine.low %v7522, %v7554
        %v7562 = vcombine.high %v7522, %v7554
        %v7563 = vcombine.low %v3308, %v3312
        %v7564 = vcombine.high %v3308, %v3312
        %v7566 = vunpack.c.l.s4 1983009808
        %v7567 = vunpack.c.0.s8 %v7566
        %v7568 = vlaneseq
        %v7569 = vshrl.u32 %v7568, 7
        %v7570 = vsub.s32 %v7567, %v7569
        %v7571 = vrot.slane %v7563, %v7570
        %v7573 = vunpack.c.l.s4 1983009808
        %v7574 = vunpack.c.0.s8 %v7573
        %v7575 = vlaneseq
        %v7576 = vshrl.u32 %v7575, 7
        %v7577 = vsub.s32 %v7574, %v7576
        %v7578 = vrot.slane %v7564, %v7577
        %v7579 = vcombine.low %v3310, %v3314
        %v7580 = vcombine.high %v3310, %v3314
        %v7582 = vunpack.c.l.s4 1983009808
        %v7583 = vunpack.c.0.s8 %v7582
        %v7584 = vlaneseq
        %v7585 = vshrl.u32 %v7584, 7
        %v7586 = vsub.s32 %v7583, %v7585
        %v7587 = vrot.slane %v7579, %v7586
        %v7589 = vunpack.c.l.s4 1983009808
        %v7590 = vunpack.c.0.s8 %v7589
        %v7591 = vlaneseq
        %v7592 = vshrl.u32 %v7591, 7
        %v7593 = vsub.s32 %v7590, %v7592
        %v7594 = vrot.slane %v7580, %v7593
        %v7595 = vcombine.low %v3316, %v3320
        %v7596 = vcombine.high %v3316, %v3320
        %v7598 = vunpack.c.l.s4 1983009808
        %v7599 = vunpack.c.0.s8 %v7598
        %v7600 = vlaneseq
        %v7601 = vshrl.u32 %v7600, 7
        %v7602 = vsub.s32 %v7599, %v7601
        %v7603 = vrot.slane %v7595, %v7602
        %v7605 = vunpack.c.l.s4 1983009808
        %v7606 = vunpack.c.0.s8 %v7605
        %v7607 = vlaneseq
        %v7608 = vshrl.u32 %v7607, 7
        %v7609 = vsub.s32 %v7606, %v7608
        %v7610 = vrot.slane %v7596, %v7609
        %v7611 = vcombine.low %v3318, %v3322
        %v7612 = vcombine.high %v3318, %v3322
        %v7614 = vunpack.c.l.s4 1983009808
        %v7615 = vunpack.c.0.s8 %v7614
        %v7616 = vlaneseq
        %v7617 = vshrl.u32 %v7616, 7
        %v7618 = vsub.s32 %v7615, %v7617
        %v7619 = vrot.slane %v7611, %v7618
        %v7621 = vunpack.c.l.s4 1983009808
        %v7622 = vunpack.c.0.s8 %v7621
        %v7623 = vlaneseq
        %v7624 = vshrl.u32 %v7623, 7
        %v7625 = vsub.s32 %v7622, %v7624
        %v7626 = vrot.slane %v7612, %v7625
        %v7627 = vcombine.low %v7571, %v7587
        %v7628 = vcombine.high %v7571, %v7587
        %v7630 = vunpack.c.l.s4 1934713408
        %v7631 = vunpack.c.0.s8 %v7630
        %v7632 = vlaneseq
        %v7633 = vshrl.u32 %v7632, 7
        %v7634 = vsub.s32 %v7631, %v7633
        %v7635 = vrot.slane %v7627, %v7634
        %v7637 = vunpack.c.l.s4 1934713408
        %v7638 = vunpack.c.0.s8 %v7637
        %v7639 = vlaneseq
        %v7640 = vshrl.u32 %v7639, 7
        %v7641 = vsub.s32 %v7638, %v7640
        %v7642 = vrot.slane %v7628, %v7641
        %v7643 = vcombine.low %v7578, %v7594
        %v7644 = vcombine.high %v7578, %v7594
        %v7646 = vunpack.c.l.s4 1934713408
        %v7647 = vunpack.c.0.s8 %v7646
        %v7648 = vlaneseq
        %v7649 = vshrl.u32 %v7648, 7
        %v7650 = vsub.s32 %v7647, %v7649
        %v7651 = vrot.slane %v7643, %v7650
        %v7653 = vunpack.c.l.s4 1934713408
        %v7654 = vunpack.c.0.s8 %v7653
        %v7655 = vlaneseq
        %v7656 = vshrl.u32 %v7655, 7
        %v7657 = vsub.s32 %v7654, %v7656
        %v7658 = vrot.slane %v7644, %v7657
        %v7659 = vcombine.low %v7603, %v7619
        %v7660 = vcombine.high %v7603, %v7619
        %v7662 = vunpack.c.l.s4 1934713408
        %v7663 = vunpack.c.0.s8 %v7662
        %v7664 = vlaneseq
        %v7665 = vshrl.u32 %v7664, 7
        %v7666 = vsub.s32 %v7663, %v7665
        %v7667 = vrot.slane %v7659, %v7666
        %v7669 = vunpack.c.l.s4 1934713408
        %v7670 = vunpack.c.0.s8 %v7669
        %v7671 = vlaneseq
        %v7672 = vshrl.u32 %v7671, 7
        %v7673 = vsub.s32 %v7670, %v7672
        %v7674 = vrot.slane %v7660, %v7673
        %v7675 = vcombine.low %v7610, %v7626
        %v7676 = vcombine.high %v7610, %v7626
        %v7678 = vunpack.c.l.s4 1934713408
        %v7679 = vunpack.c.0.s8 %v7678
        %v7680 = vlaneseq
        %v7681 = vshrl.u32 %v7680, 7
        %v7682 = vsub.s32 %v7679, %v7681
        %v7683 = vrot.slane %v7675, %v7682
        %v7685 = vunpack.c.l.s4 1934713408
        %v7686 = vunpack.c.0.s8 %v7685
        %v7687 = vlaneseq
        %v7688 = vshrl.u32 %v7687, 7
        %v7689 = vsub.s32 %v7686, %v7688
        %v7690 = vrot.slane %v7676, %v7689
        %v7691 = vcombine.low %v7635, %v7667
        %v7692 = vcombine.high %v7635, %v7667
        %v7693 = vcombine.low %v7642, %v7674
        %v7694 = vcombine.high %v7642, %v7674
        %v7695 = vcombine.low %v7651, %v7683
        %v7696 = vcombine.high %v7651, %v7683
        %v7697 = vcombine.low %v7658, %v7690
        %v7698 = vcombine.high %v7658, %v7690
        %v7699 = vcombine.low %v3324, %v3328
        %v7700 = vcombine.high %v3324, %v3328
        %v7702 = vunpack.c.l.s4 1983009808
        %v7703 = vunpack.c.0.s8 %v7702
        %v7704 = vlaneseq
        %v7705 = vshrl.u32 %v7704, 7
        %v7706 = vsub.s32 %v7703, %v7705
        %v7707 = vrot.slane %v7699, %v7706
        %v7709 = vunpack.c.l.s4 1983009808
        %v7710 = vunpack.c.0.s8 %v7709
        %v7711 = vlaneseq
        %v7712 = vshrl.u32 %v7711, 7
        %v7713 = vsub.s32 %v7710, %v7712
        %v7714 = vrot.slane %v7700, %v7713
        %v7715 = vcombine.low %v3326, %v3330
        %v7716 = vcombine.high %v3326, %v3330
        %v7718 = vunpack.c.l.s4 1983009808
        %v7719 = vunpack.c.0.s8 %v7718
        %v7720 = vlaneseq
        %v7721 = vshrl.u32 %v7720, 7
        %v7722 = vsub.s32 %v7719, %v7721
        %v7723 = vrot.slane %v7715, %v7722
        %v7725 = vunpack.c.l.s4 1983009808
        %v7726 = vunpack.c.0.s8 %v7725
        %v7727 = vlaneseq
        %v7728 = vshrl.u32 %v7727, 7
        %v7729 = vsub.s32 %v7726, %v7728
        %v7730 = vrot.slane %v7716, %v7729
        %v7731 = vcombine.low %v3332, %v3336
        %v7732 = vcombine.high %v3332, %v3336
        %v7734 = vunpack.c.l.s4 1983009808
        %v7735 = vunpack.c.0.s8 %v7734
        %v7736 = vlaneseq
        %v7737 = vshrl.u32 %v7736, 7
        %v7738 = vsub.s32 %v7735, %v7737
        %v7739 = vrot.slane %v7731, %v7738
        %v7741 = vunpack.c.l.s4 1983009808
        %v7742 = vunpack.c.0.s8 %v7741
        %v7743 = vlaneseq
        %v7744 = vshrl.u32 %v7743, 7
        %v7745 = vsub.s32 %v7742, %v7744
        %v7746 = vrot.slane %v7732, %v7745
        %v7747 = vcombine.low %v3334, %v3338
        %v7748 = vcombine.high %v3334, %v3338
        %v7750 = vunpack.c.l.s4 1983009808
        %v7751 = vunpack.c.0.s8 %v7750
        %v7752 = vlaneseq
        %v7753 = vshrl.u32 %v7752, 7
        %v7754 = vsub.s32 %v7751, %v7753
        %v7755 = vrot.slane %v7747, %v7754
        %v7757 = vunpack.c.l.s4 1983009808
        %v7758 = vunpack.c.0.s8 %v7757
        %v7759 = vlaneseq
        %v7760 = vshrl.u32 %v7759, 7
        %v7761 = vsub.s32 %v7758, %v7760
        %v7762 = vrot.slane %v7748, %v7761
        %v7763 = vcombine.low %v7707, %v7723
        %v7764 = vcombine.high %v7707, %v7723
        %v7766 = vunpack.c.l.s4 1934713408
        %v7767 = vunpack.c.0.s8 %v7766
        %v7768 = vlaneseq
        %v7769 = vshrl.u32 %v7768, 7
        %v7770 = vsub.s32 %v7767, %v7769
        %v7771 = vrot.slane %v7763, %v7770
        %v7773 = vunpack.c.l.s4 1934713408
        %v7774 = vunpack.c.0.s8 %v7773
        %v7775 = vlaneseq
        %v7776 = vshrl.u32 %v7775, 7
        %v7777 = vsub.s32 %v7774, %v7776
        %v7778 = vrot.slane %v7764, %v7777
        %v7779 = vcombine.low %v7714, %v7730
        %v7780 = vcombine.high %v7714, %v7730
        %v7782 = vunpack.c.l.s4 1934713408
        %v7783 = vunpack.c.0.s8 %v7782
        %v7784 = vlaneseq
        %v7785 = vshrl.u32 %v7784, 7
        %v7786 = vsub.s32 %v7783, %v7785
        %v7787 = vrot.slane %v7779, %v7786
        %v7789 = vunpack.c.l.s4 1934713408
        %v7790 = vunpack.c.0.s8 %v7789
        %v7791 = vlaneseq
        %v7792 = vshrl.u32 %v7791, 7
        %v7793 = vsub.s32 %v7790, %v7792
        %v7794 = vrot.slane %v7780, %v7793
        %v7795 = vcombine.low %v7739, %v7755
        %v7796 = vcombine.high %v7739, %v7755
        %v7798 = vunpack.c.l.s4 1934713408
        %v7799 = vunpack.c.0.s8 %v7798
        %v7800 = vlaneseq
        %v7801 = vshrl.u32 %v7800, 7
        %v7802 = vsub.s32 %v7799, %v7801
        %v7803 = vrot.slane %v7795, %v7802
        %v7805 = vunpack.c.l.s4 1934713408
        %v7806 = vunpack.c.0.s8 %v7805
        %v7807 = vlaneseq
        %v7808 = vshrl.u32 %v7807, 7
        %v7809 = vsub.s32 %v7806, %v7808
        %v7810 = vrot.slane %v7796, %v7809
        %v7811 = vcombine.low %v7746, %v7762
        %v7812 = vcombine.high %v7746, %v7762
        %v7814 = vunpack.c.l.s4 1934713408
        %v7815 = vunpack.c.0.s8 %v7814
        %v7816 = vlaneseq
        %v7817 = vshrl.u32 %v7816, 7
        %v7818 = vsub.s32 %v7815, %v7817
        %v7819 = vrot.slane %v7811, %v7818
        %v7821 = vunpack.c.l.s4 1934713408
        %v7822 = vunpack.c.0.s8 %v7821
        %v7823 = vlaneseq
        %v7824 = vshrl.u32 %v7823, 7
        %v7825 = vsub.s32 %v7822, %v7824
        %v7826 = vrot.slane %v7812, %v7825
        %v7827 = vcombine.low %v7771, %v7803
        %v7828 = vcombine.high %v7771, %v7803
        %v7829 = vcombine.low %v7778, %v7810
        %v7830 = vcombine.high %v7778, %v7810
        %v7831 = vcombine.low %v7787, %v7819
        %v7832 = vcombine.high %v7787, %v7819
        %v7833 = vcombine.low %v7794, %v7826
        %v7834 = vcombine.high %v7794, %v7826
        %v7835 = vcombine.low %v3340, %v3344
        %v7836 = vcombine.high %v3340, %v3344
        %v7838 = vunpack.c.l.s4 1983009808
        %v7839 = vunpack.c.0.s8 %v7838
        %v7840 = vlaneseq
        %v7841 = vshrl.u32 %v7840, 7
        %v7842 = vsub.s32 %v7839, %v7841
        %v7843 = vrot.slane %v7835, %v7842
        %v7845 = vunpack.c.l.s4 1983009808
        %v7846 = vunpack.c.0.s8 %v7845
        %v7847 = vlaneseq
        %v7848 = vshrl.u32 %v7847, 7
        %v7849 = vsub.s32 %v7846, %v7848
        %v7850 = vrot.slane %v7836, %v7849
        %v7851 = vcombine.low %v3342, %v3346
        %v7852 = vcombine.high %v3342, %v3346
        %v7854 = vunpack.c.l.s4 1983009808
        %v7855 = vunpack.c.0.s8 %v7854
        %v7856 = vlaneseq
        %v7857 = vshrl.u32 %v7856, 7
        %v7858 = vsub.s32 %v7855, %v7857
        %v7859 = vrot.slane %v7851, %v7858
        %v7861 = vunpack.c.l.s4 1983009808
        %v7862 = vunpack.c.0.s8 %v7861
        %v7863 = vlaneseq
        %v7864 = vshrl.u32 %v7863, 7
        %v7865 = vsub.s32 %v7862, %v7864
        %v7866 = vrot.slane %v7852, %v7865
        %v7867 = vcombine.low %v3348, %v3352
        %v7868 = vcombine.high %v3348, %v3352
        %v7870 = vunpack.c.l.s4 1983009808
        %v7871 = vunpack.c.0.s8 %v7870
        %v7872 = vlaneseq
        %v7873 = vshrl.u32 %v7872, 7
        %v7874 = vsub.s32 %v7871, %v7873
        %v7875 = vrot.slane %v7867, %v7874
        %v7877 = vunpack.c.l.s4 1983009808
        %v7878 = vunpack.c.0.s8 %v7877
        %v7879 = vlaneseq
        %v7880 = vshrl.u32 %v7879, 7
        %v7881 = vsub.s32 %v7878, %v7880
        %v7882 = vrot.slane %v7868, %v7881
        %v7883 = vcombine.low %v3350, %v3354
        %v7884 = vcombine.high %v3350, %v3354
        %v7886 = vunpack.c.l.s4 1983009808
        %v7887 = vunpack.c.0.s8 %v7886
        %v7888 = vlaneseq
        %v7889 = vshrl.u32 %v7888, 7
        %v7890 = vsub.s32 %v7887, %v7889
        %v7891 = vrot.slane %v7883, %v7890
        %v7893 = vunpack.c.l.s4 1983009808
        %v7894 = vunpack.c.0.s8 %v7893
        %v7895 = vlaneseq
        %v7896 = vshrl.u32 %v7895, 7
        %v7897 = vsub.s32 %v7894, %v7896
        %v7898 = vrot.slane %v7884, %v7897
        %v7899 = vcombine.low %v7843, %v7859
        %v7900 = vcombine.high %v7843, %v7859
        %v7902 = vunpack.c.l.s4 1934713408
        %v7903 = vunpack.c.0.s8 %v7902
        %v7904 = vlaneseq
        %v7905 = vshrl.u32 %v7904, 7
        %v7906 = vsub.s32 %v7903, %v7905
        %v7907 = vrot.slane %v7899, %v7906
        %v7909 = vunpack.c.l.s4 1934713408
        %v7910 = vunpack.c.0.s8 %v7909
        %v7911 = vlaneseq
        %v7912 = vshrl.u32 %v7911, 7
        %v7913 = vsub.s32 %v7910, %v7912
        %v7914 = vrot.slane %v7900, %v7913
        %v7915 = vcombine.low %v7850, %v7866
        %v7916 = vcombine.high %v7850, %v7866
        %v7918 = vunpack.c.l.s4 1934713408
        %v7919 = vunpack.c.0.s8 %v7918
        %v7920 = vlaneseq
        %v7921 = vshrl.u32 %v7920, 7
        %v7922 = vsub.s32 %v7919, %v7921
        %v7923 = vrot.slane %v7915, %v7922
        %v7925 = vunpack.c.l.s4 1934713408
        %v7926 = vunpack.c.0.s8 %v7925
        %v7927 = vlaneseq
        %v7928 = vshrl.u32 %v7927, 7
        %v7929 = vsub.s32 %v7926, %v7928
        %v7930 = vrot.slane %v7916, %v7929
        %v7931 = vcombine.low %v7875, %v7891
        %v7932 = vcombine.high %v7875, %v7891
        %v7934 = vunpack.c.l.s4 1934713408
        %v7935 = vunpack.c.0.s8 %v7934
        %v7936 = vlaneseq
        %v7937 = vshrl.u32 %v7936, 7
        %v7938 = vsub.s32 %v7935, %v7937
        %v7939 = vrot.slane %v7931, %v7938
        %v7941 = vunpack.c.l.s4 1934713408
        %v7942 = vunpack.c.0.s8 %v7941
        %v7943 = vlaneseq
        %v7944 = vshrl.u32 %v7943, 7
        %v7945 = vsub.s32 %v7942, %v7944
        %v7946 = vrot.slane %v7932, %v7945
        %v7947 = vcombine.low %v7882, %v7898
        %v7948 = vcombine.high %v7882, %v7898
        %v7950 = vunpack.c.l.s4 1934713408
        %v7951 = vunpack.c.0.s8 %v7950
        %v7952 = vlaneseq
        %v7953 = vshrl.u32 %v7952, 7
        %v7954 = vsub.s32 %v7951, %v7953
        %v7955 = vrot.slane %v7947, %v7954
        %v7957 = vunpack.c.l.s4 1934713408
        %v7958 = vunpack.c.0.s8 %v7957
        %v7959 = vlaneseq
        %v7960 = vshrl.u32 %v7959, 7
        %v7961 = vsub.s32 %v7958, %v7960
        %v7962 = vrot.slane %v7948, %v7961
        %v7963 = vcombine.low %v7907, %v7939
        %v7964 = vcombine.high %v7907, %v7939
        %v7965 = vcombine.low %v7914, %v7946
        %v7966 = vcombine.high %v7914, %v7946
        %v7967 = vcombine.low %v7923, %v7955
        %v7968 = vcombine.high %v7923, %v7955
        %v7969 = vcombine.low %v7930, %v7962
        %v7970 = vcombine.high %v7930, %v7962
        %v7971 = vcombine.low %v3356, %v3360
        %v7972 = vcombine.high %v3356, %v3360
        %v7974 = vunpack.c.l.s4 1983009808
        %v7975 = vunpack.c.0.s8 %v7974
        %v7976 = vlaneseq
        %v7977 = vshrl.u32 %v7976, 7
        %v7978 = vsub.s32 %v7975, %v7977
        %v7979 = vrot.slane %v7971, %v7978
        %v7981 = vunpack.c.l.s4 1983009808
        %v7982 = vunpack.c.0.s8 %v7981
        %v7983 = vlaneseq
        %v7984 = vshrl.u32 %v7983, 7
        %v7985 = vsub.s32 %v7982, %v7984
        %v7986 = vrot.slane %v7972, %v7985
        %v7987 = vcombine.low %v3358, %v3362
        %v7988 = vcombine.high %v3358, %v3362
        %v7990 = vunpack.c.l.s4 1983009808
        %v7991 = vunpack.c.0.s8 %v7990
        %v7992 = vlaneseq
        %v7993 = vshrl.u32 %v7992, 7
        %v7994 = vsub.s32 %v7991, %v7993
        %v7995 = vrot.slane %v7987, %v7994
        %v7997 = vunpack.c.l.s4 1983009808
        %v7998 = vunpack.c.0.s8 %v7997
        %v7999 = vlaneseq
        %v8000 = vshrl.u32 %v7999, 7
        %v8001 = vsub.s32 %v7998, %v8000
        %v8002 = vrot.slane %v7988, %v8001
        %v8003 = vcombine.low %v3364, %v3368
        %v8004 = vcombine.high %v3364, %v3368
        %v8006 = vunpack.c.l.s4 1983009808
        %v8007 = vunpack.c.0.s8 %v8006
        %v8008 = vlaneseq
        %v8009 = vshrl.u32 %v8008, 7
        %v8010 = vsub.s32 %v8007, %v8009
        %v8011 = vrot.slane %v8003, %v8010
        %v8013 = vunpack.c.l.s4 1983009808
        %v8014 = vunpack.c.0.s8 %v8013
        %v8015 = vlaneseq
        %v8016 = vshrl.u32 %v8015, 7
        %v8017 = vsub.s32 %v8014, %v8016
        %v8018 = vrot.slane %v8004, %v8017
        %v8019 = vcombine.low %v3366, %v3370
        %v8020 = vcombine.high %v3366, %v3370
        %v8022 = vunpack.c.l.s4 1983009808
        %v8023 = vunpack.c.0.s8 %v8022
        %v8024 = vlaneseq
        %v8025 = vshrl.u32 %v8024, 7
        %v8026 = vsub.s32 %v8023, %v8025
        %v8027 = vrot.slane %v8019, %v8026
        %v8029 = vunpack.c.l.s4 1983009808
        %v8030 = vunpack.c.0.s8 %v8029
        %v8031 = vlaneseq
        %v8032 = vshrl.u32 %v8031, 7
        %v8033 = vsub.s32 %v8030, %v8032
        %v8034 = vrot.slane %v8020, %v8033
        %v8035 = vcombine.low %v7979, %v7995
        %v8036 = vcombine.high %v7979, %v7995
        %v8038 = vunpack.c.l.s4 1934713408
        %v8039 = vunpack.c.0.s8 %v8038
        %v8040 = vlaneseq
        %v8041 = vshrl.u32 %v8040, 7
        %v8042 = vsub.s32 %v8039, %v8041
        %v8043 = vrot.slane %v8035, %v8042
        %v8045 = vunpack.c.l.s4 1934713408
        %v8046 = vunpack.c.0.s8 %v8045
        %v8047 = vlaneseq
        %v8048 = vshrl.u32 %v8047, 7
        %v8049 = vsub.s32 %v8046, %v8048
        %v8050 = vrot.slane %v8036, %v8049
        %v8051 = vcombine.low %v7986, %v8002
        %v8052 = vcombine.high %v7986, %v8002
        %v8054 = vunpack.c.l.s4 1934713408
        %v8055 = vunpack.c.0.s8 %v8054
        %v8056 = vlaneseq
        %v8057 = vshrl.u32 %v8056, 7
        %v8058 = vsub.s32 %v8055, %v8057
        %v8059 = vrot.slane %v8051, %v8058
        %v8061 = vunpack.c.l.s4 1934713408
        %v8062 = vunpack.c.0.s8 %v8061
        %v8063 = vlaneseq
        %v8064 = vshrl.u32 %v8063, 7
        %v8065 = vsub.s32 %v8062, %v8064
        %v8066 = vrot.slane %v8052, %v8065
        %v8067 = vcombine.low %v8011, %v8027
        %v8068 = vcombine.high %v8011, %v8027
        %v8070 = vunpack.c.l.s4 1934713408
        %v8071 = vunpack.c.0.s8 %v8070
        %v8072 = vlaneseq
        %v8073 = vshrl.u32 %v8072, 7
        %v8074 = vsub.s32 %v8071, %v8073
        %v8075 = vrot.slane %v8067, %v8074
        %v8077 = vunpack.c.l.s4 1934713408
        %v8078 = vunpack.c.0.s8 %v8077
        %v8079 = vlaneseq
        %v8080 = vshrl.u32 %v8079, 7
        %v8081 = vsub.s32 %v8078, %v8080
        %v8082 = vrot.slane %v8068, %v8081
        %v8083 = vcombine.low %v8018, %v8034
        %v8084 = vcombine.high %v8018, %v8034
        %v8086 = vunpack.c.l.s4 1934713408
        %v8087 = vunpack.c.0.s8 %v8086
        %v8088 = vlaneseq
        %v8089 = vshrl.u32 %v8088, 7
        %v8090 = vsub.s32 %v8087, %v8089
        %v8091 = vrot.slane %v8083, %v8090
        %v8093 = vunpack.c.l.s4 1934713408
        %v8094 = vunpack.c.0.s8 %v8093
        %v8095 = vlaneseq
        %v8096 = vshrl.u32 %v8095, 7
        %v8097 = vsub.s32 %v8094, %v8096
        %v8098 = vrot.slane %v8084, %v8097
        %v8099 = vcombine.low %v8043, %v8075
        %v8100 = vcombine.high %v8043, %v8075
        %v8101 = vcombine.low %v8050, %v8082
        %v8102 = vcombine.high %v8050, %v8082
        %v8103 = vcombine.low %v8059, %v8091
        %v8104 = vcombine.high %v8059, %v8091
        %v8105 = vcombine.low %v8066, %v8098
        %v8106 = vcombine.high %v8066, %v8098
        %v8107 = vcombine.low %v3372, %v3376
        %v8108 = vcombine.high %v3372, %v3376
        %v8110 = vunpack.c.l.s4 1983009808
        %v8111 = vunpack.c.0.s8 %v8110
        %v8112 = vlaneseq
        %v8113 = vshrl.u32 %v8112, 7
        %v8114 = vsub.s32 %v8111, %v8113
        %v8115 = vrot.slane %v8107, %v8114
        %v8117 = vunpack.c.l.s4 1983009808
        %v8118 = vunpack.c.0.s8 %v8117
        %v8119 = vlaneseq
        %v8120 = vshrl.u32 %v8119, 7
        %v8121 = vsub.s32 %v8118, %v8120
        %v8122 = vrot.slane %v8108, %v8121
        %v8123 = vcombine.low %v3374, %v3378
        %v8124 = vcombine.high %v3374, %v3378
        %v8126 = vunpack.c.l.s4 1983009808
        %v8127 = vunpack.c.0.s8 %v8126
        %v8128 = vlaneseq
        %v8129 = vshrl.u32 %v8128, 7
        %v8130 = vsub.s32 %v8127, %v8129
        %v8131 = vrot.slane %v8123, %v8130
        %v8133 = vunpack.c.l.s4 1983009808
        %v8134 = vunpack.c.0.s8 %v8133
        %v8135 = vlaneseq
        %v8136 = vshrl.u32 %v8135, 7
        %v8137 = vsub.s32 %v8134, %v8136
        %v8138 = vrot.slane %v8124, %v8137
        %v8139 = vcombine.low %v3380, %v3384
        %v8140 = vcombine.high %v3380, %v3384
        %v8142 = vunpack.c.l.s4 1983009808
        %v8143 = vunpack.c.0.s8 %v8142
        %v8144 = vlaneseq
        %v8145 = vshrl.u32 %v8144, 7
        %v8146 = vsub.s32 %v8143, %v8145
        %v8147 = vrot.slane %v8139, %v8146
        %v8149 = vunpack.c.l.s4 1983009808
        %v8150 = vunpack.c.0.s8 %v8149
        %v8151 = vlaneseq
        %v8152 = vshrl.u32 %v8151, 7
        %v8153 = vsub.s32 %v8150, %v8152
        %v8154 = vrot.slane %v8140, %v8153
        %v8155 = vcombine.low %v3382, %v3386
        %v8156 = vcombine.high %v3382, %v3386
        %v8158 = vunpack.c.l.s4 1983009808
        %v8159 = vunpack.c.0.s8 %v8158
        %v8160 = vlaneseq
        %v8161 = vshrl.u32 %v8160, 7
        %v8162 = vsub.s32 %v8159, %v8161
        %v8163 = vrot.slane %v8155, %v8162
        %v8165 = vunpack.c.l.s4 1983009808
        %v8166 = vunpack.c.0.s8 %v8165
        %v8167 = vlaneseq
        %v8168 = vshrl.u32 %v8167, 7
        %v8169 = vsub.s32 %v8166, %v8168
        %v8170 = vrot.slane %v8156, %v8169
        %v8171 = vcombine.low %v8115, %v8131
        %v8172 = vcombine.high %v8115, %v8131
        %v8174 = vunpack.c.l.s4 1934713408
        %v8175 = vunpack.c.0.s8 %v8174
        %v8176 = vlaneseq
        %v8177 = vshrl.u32 %v8176, 7
        %v8178 = vsub.s32 %v8175, %v8177
        %v8179 = vrot.slane %v8171, %v8178
        %v8181 = vunpack.c.l.s4 1934713408
        %v8182 = vunpack.c.0.s8 %v8181
        %v8183 = vlaneseq
        %v8184 = vshrl.u32 %v8183, 7
        %v8185 = vsub.s32 %v8182, %v8184
        %v8186 = vrot.slane %v8172, %v8185
        %v8187 = vcombine.low %v8122, %v8138
        %v8188 = vcombine.high %v8122, %v8138
        %v8190 = vunpack.c.l.s4 1934713408
        %v8191 = vunpack.c.0.s8 %v8190
        %v8192 = vlaneseq
        %v8193 = vshrl.u32 %v8192, 7
        %v8194 = vsub.s32 %v8191, %v8193
        %v8195 = vrot.slane %v8187, %v8194
        %v8197 = vunpack.c.l.s4 1934713408
        %v8198 = vunpack.c.0.s8 %v8197
        %v8199 = vlaneseq
        %v8200 = vshrl.u32 %v8199, 7
        %v8201 = vsub.s32 %v8198, %v8200
        %v8202 = vrot.slane %v8188, %v8201
        %v8203 = vcombine.low %v8147, %v8163
        %v8204 = vcombine.high %v8147, %v8163
        %v8206 = vunpack.c.l.s4 1934713408
        %v8207 = vunpack.c.0.s8 %v8206
        %v8208 = vlaneseq
        %v8209 = vshrl.u32 %v8208, 7
        %v8210 = vsub.s32 %v8207, %v8209
        %v8211 = vrot.slane %v8203, %v8210
        %v8213 = vunpack.c.l.s4 1934713408
        %v8214 = vunpack.c.0.s8 %v8213
        %v8215 = vlaneseq
        %v8216 = vshrl.u32 %v8215, 7
        %v8217 = vsub.s32 %v8214, %v8216
        %v8218 = vrot.slane %v8204, %v8217
        %v8219 = vcombine.low %v8154, %v8170
        %v8220 = vcombine.high %v8154, %v8170
        %v8222 = vunpack.c.l.s4 1934713408
        %v8223 = vunpack.c.0.s8 %v8222
        %v8224 = vlaneseq
        %v8225 = vshrl.u32 %v8224, 7
        %v8226 = vsub.s32 %v8223, %v8225
        %v8227 = vrot.slane %v8219, %v8226
        %v8229 = vunpack.c.l.s4 1934713408
        %v8230 = vunpack.c.0.s8 %v8229
        %v8231 = vlaneseq
        %v8232 = vshrl.u32 %v8231, 7
        %v8233 = vsub.s32 %v8230, %v8232
        %v8234 = vrot.slane %v8220, %v8233
        %v8235 = vcombine.low %v8179, %v8211
        %v8236 = vcombine.high %v8179, %v8211
        %v8237 = vcombine.low %v8186, %v8218
        %v8238 = vcombine.high %v8186, %v8218
        %v8239 = vcombine.low %v8195, %v8227
        %v8240 = vcombine.high %v8195, %v8227
        %v8241 = vcombine.low %v8202, %v8234
        %v8242 = vcombine.high %v8202, %v8234
        %v8243 = vcombine.low %v3388, %v3392
        %v8244 = vcombine.high %v3388, %v3392
        %v8246 = vunpack.c.l.s4 1983009808
        %v8247 = vunpack.c.0.s8 %v8246
        %v8248 = vlaneseq
        %v8249 = vshrl.u32 %v8248, 7
        %v8250 = vsub.s32 %v8247, %v8249
        %v8251 = vrot.slane %v8243, %v8250
        %v8253 = vunpack.c.l.s4 1983009808
        %v8254 = vunpack.c.0.s8 %v8253
        %v8255 = vlaneseq
        %v8256 = vshrl.u32 %v8255, 7
        %v8257 = vsub.s32 %v8254, %v8256
        %v8258 = vrot.slane %v8244, %v8257
        %v8259 = vcombine.low %v3390, %v3394
        %v8260 = vcombine.high %v3390, %v3394
        %v8262 = vunpack.c.l.s4 1983009808
        %v8263 = vunpack.c.0.s8 %v8262
        %v8264 = vlaneseq
        %v8265 = vshrl.u32 %v8264, 7
        %v8266 = vsub.s32 %v8263, %v8265
        %v8267 = vrot.slane %v8259, %v8266
        %v8269 = vunpack.c.l.s4 1983009808
        %v8270 = vunpack.c.0.s8 %v8269
        %v8271 = vlaneseq
        %v8272 = vshrl.u32 %v8271, 7
        %v8273 = vsub.s32 %v8270, %v8272
        %v8274 = vrot.slane %v8260, %v8273
        %v8275 = vcombine.low %v3396, %v3400
        %v8276 = vcombine.high %v3396, %v3400
        %v8278 = vunpack.c.l.s4 1983009808
        %v8279 = vunpack.c.0.s8 %v8278
        %v8280 = vlaneseq
        %v8281 = vshrl.u32 %v8280, 7
        %v8282 = vsub.s32 %v8279, %v8281
        %v8283 = vrot.slane %v8275, %v8282
        %v8285 = vunpack.c.l.s4 1983009808
        %v8286 = vunpack.c.0.s8 %v8285
        %v8287 = vlaneseq
        %v8288 = vshrl.u32 %v8287, 7
        %v8289 = vsub.s32 %v8286, %v8288
        %v8290 = vrot.slane %v8276, %v8289
        %v8291 = vcombine.low %v3398, %v3402
        %v8292 = vcombine.high %v3398, %v3402
        %v8294 = vunpack.c.l.s4 1983009808
        %v8295 = vunpack.c.0.s8 %v8294
        %v8296 = vlaneseq
        %v8297 = vshrl.u32 %v8296, 7
        %v8298 = vsub.s32 %v8295, %v8297
        %v8299 = vrot.slane %v8291, %v8298
        %v8301 = vunpack.c.l.s4 1983009808
        %v8302 = vunpack.c.0.s8 %v8301
        %v8303 = vlaneseq
        %v8304 = vshrl.u32 %v8303, 7
        %v8305 = vsub.s32 %v8302, %v8304
        %v8306 = vrot.slane %v8292, %v8305
        %v8307 = vcombine.low %v8251, %v8267
        %v8308 = vcombine.high %v8251, %v8267
        %v8310 = vunpack.c.l.s4 1934713408
        %v8311 = vunpack.c.0.s8 %v8310
        %v8312 = vlaneseq
        %v8313 = vshrl.u32 %v8312, 7
        %v8314 = vsub.s32 %v8311, %v8313
        %v8315 = vrot.slane %v8307, %v8314
        %v8317 = vunpack.c.l.s4 1934713408
        %v8318 = vunpack.c.0.s8 %v8317
        %v8319 = vlaneseq
        %v8320 = vshrl.u32 %v8319, 7
        %v8321 = vsub.s32 %v8318, %v8320
        %v8322 = vrot.slane %v8308, %v8321
        %v8323 = vcombine.low %v8258, %v8274
        %v8324 = vcombine.high %v8258, %v8274
        %v8326 = vunpack.c.l.s4 1934713408
        %v8327 = vunpack.c.0.s8 %v8326
        %v8328 = vlaneseq
        %v8329 = vshrl.u32 %v8328, 7
        %v8330 = vsub.s32 %v8327, %v8329
        %v8331 = vrot.slane %v8323, %v8330
        %v8333 = vunpack.c.l.s4 1934713408
        %v8334 = vunpack.c.0.s8 %v8333
        %v8335 = vlaneseq
        %v8336 = vshrl.u32 %v8335, 7
        %v8337 = vsub.s32 %v8334, %v8336
        %v8338 = vrot.slane %v8324, %v8337
        %v8339 = vcombine.low %v8283, %v8299
        %v8340 = vcombine.high %v8283, %v8299
        %v8342 = vunpack.c.l.s4 1934713408
        %v8343 = vunpack.c.0.s8 %v8342
        %v8344 = vlaneseq
        %v8345 = vshrl.u32 %v8344, 7
        %v8346 = vsub.s32 %v8343, %v8345
        %v8347 = vrot.slane %v8339, %v8346
        %v8349 = vunpack.c.l.s4 1934713408
        %v8350 = vunpack.c.0.s8 %v8349
        %v8351 = vlaneseq
        %v8352 = vshrl.u32 %v8351, 7
        %v8353 = vsub.s32 %v8350, %v8352
        %v8354 = vrot.slane %v8340, %v8353
        %v8355 = vcombine.low %v8290, %v8306
        %v8356 = vcombine.high %v8290, %v8306
        %v8358 = vunpack.c.l.s4 1934713408
        %v8359 = vunpack.c.0.s8 %v8358
        %v8360 = vlaneseq
        %v8361 = vshrl.u32 %v8360, 7
        %v8362 = vsub.s32 %v8359, %v8361
        %v8363 = vrot.slane %v8355, %v8362
        %v8365 = vunpack.c.l.s4 1934713408
        %v8366 = vunpack.c.0.s8 %v8365
        %v8367 = vlaneseq
        %v8368 = vshrl.u32 %v8367, 7
        %v8369 = vsub.s32 %v8366, %v8368
        %v8370 = vrot.slane %v8356, %v8369
        %v8371 = vcombine.low %v8315, %v8347
        %v8372 = vcombine.high %v8315, %v8347
        %v8373 = vcombine.low %v8322, %v8354
        %v8374 = vcombine.high %v8322, %v8354
        %v8375 = vcombine.low %v8331, %v8363
        %v8376 = vcombine.high %v8331, %v8363
        %v8377 = vcombine.low %v8338, %v8370
        %v8378 = vcombine.high %v8338, %v8370
        %8387 = vrot.lane.b32.xlu0 %v6332, 2
        %v8388 = vpop.permute.xlu0 %8387
        %8389 = vrot.lane.b32.xlu0 %v6468, 2
        %v8390 = vpop.permute.xlu0 %8389
        %8391 = vrot.lane.b32.xlu0 %v6604, 2
        %v8392 = vpop.permute.xlu0 %8391
        %8393 = vrot.lane.b32.xlu0 %v6740, 2
        %v8394 = vpop.permute.xlu0 %8393
        %8395 = vrot.lane.b32.xlu0 %v6876, 2
        %v8396 = vpop.permute.xlu0 %8395
        %8397 = vrot.lane.b32.xlu0 %v7012, 2
        %v8398 = vpop.permute.xlu0 %8397
        %8399 = vrot.lane.b32.xlu0 %v7148, 2
        %v8400 = vpop.permute.xlu0 %8399
        %8401 = vrot.lane.b32.xlu0 %v7284, 2
        %v8402 = vpop.permute.xlu0 %8401
        %8419 = vrot.lane.b32.xlu0 %v6333, 4
        %v8420 = vpop.permute.xlu0 %8419
        %8421 = vrot.lane.b32.xlu0 %v6469, 4
        %v8422 = vpop.permute.xlu0 %8421
        %8423 = vrot.lane.b32.xlu0 %v6605, 4
        %v8424 = vpop.permute.xlu0 %8423
        %8425 = vrot.lane.b32.xlu0 %v6741, 4
        %v8426 = vpop.permute.xlu0 %8425
        %8427 = vrot.lane.b32.xlu0 %v6877, 4
        %v8428 = vpop.permute.xlu0 %8427
        %8429 = vrot.lane.b32.xlu0 %v7013, 4
        %v8430 = vpop.permute.xlu0 %8429
        %8431 = vrot.lane.b32.xlu0 %v7149, 4
        %v8432 = vpop.permute.xlu0 %8431
        %8433 = vrot.lane.b32.xlu0 %v7285, 4
        %v8434 = vpop.permute.xlu0 %8433
        %8451 = vrot.lane.b32.xlu0 %v6334, 6
        %v8452 = vpop.permute.xlu0 %8451
        %8453 = vrot.lane.b32.xlu0 %v6470, 6
        %v8454 = vpop.permute.xlu0 %8453
        %8455 = vrot.lane.b32.xlu0 %v6606, 6
        %v8456 = vpop.permute.xlu0 %8455
        %8457 = vrot.lane.b32.xlu0 %v6742, 6
        %v8458 = vpop.permute.xlu0 %8457
        %8459 = vrot.lane.b32.xlu0 %v6878, 6
        %v8460 = vpop.permute.xlu0 %8459
        %8461 = vrot.lane.b32.xlu0 %v7014, 6
        %v8462 = vpop.permute.xlu0 %8461
        %8463 = vrot.lane.b32.xlu0 %v7150, 6
        %v8464 = vpop.permute.xlu0 %8463
        %8465 = vrot.lane.b32.xlu0 %v7286, 6
        %v8466 = vpop.permute.xlu0 %8465
        %8483 = vrot.lane.b32.xlu0 %v6335, 8
        %v8484 = vpop.permute.xlu0 %8483
        %8485 = vrot.lane.b32.xlu0 %v6471, 8
        %v8486 = vpop.permute.xlu0 %8485
        %8487 = vrot.lane.b32.xlu0 %v6607, 8
        %v8488 = vpop.permute.xlu0 %8487
        %8489 = vrot.lane.b32.xlu0 %v6743, 8
        %v8490 = vpop.permute.xlu0 %8489
        %8491 = vrot.lane.b32.xlu0 %v6879, 8
        %v8492 = vpop.permute.xlu0 %8491
        %8493 = vrot.lane.b32.xlu0 %v7015, 8
        %v8494 = vpop.permute.xlu0 %8493
        %8495 = vrot.lane.b32.xlu0 %v7151, 8
        %v8496 = vpop.permute.xlu0 %8495
        %8497 = vrot.lane.b32.xlu0 %v7287, 8
        %v8498 = vpop.permute.xlu0 %8497
        %8515 = vrot.lane.b32.xlu0 %v6336, 10
        %v8516 = vpop.permute.xlu0 %8515
        %8517 = vrot.lane.b32.xlu0 %v6472, 10
        %v8518 = vpop.permute.xlu0 %8517
        %8519 = vrot.lane.b32.xlu0 %v6608, 10
        %v8520 = vpop.permute.xlu0 %8519
        %8521 = vrot.lane.b32.xlu0 %v6744, 10
        %v8522 = vpop.permute.xlu0 %8521
        %8523 = vrot.lane.b32.xlu0 %v6880, 10
        %v8524 = vpop.permute.xlu0 %8523
        %8525 = vrot.lane.b32.xlu0 %v7016, 10
        %v8526 = vpop.permute.xlu0 %8525
        %8527 = vrot.lane.b32.xlu0 %v7152, 10
        %v8528 = vpop.permute.xlu0 %8527
        %8529 = vrot.lane.b32.xlu0 %v7288, 10
        %v8530 = vpop.permute.xlu0 %8529
        %8547 = vrot.lane.b32.xlu0 %v6337, 12
        %v8548 = vpop.permute.xlu0 %8547
        %8549 = vrot.lane.b32.xlu0 %v6473, 12
        %v8550 = vpop.permute.xlu0 %8549
        %8551 = vrot.lane.b32.xlu0 %v6609, 12
        %v8552 = vpop.permute.xlu0 %8551
        %8553 = vrot.lane.b32.xlu0 %v6745, 12
        %v8554 = vpop.permute.xlu0 %8553
        %8555 = vrot.lane.b32.xlu0 %v6881, 12
        %v8556 = vpop.permute.xlu0 %8555
        %8557 = vrot.lane.b32.xlu0 %v7017, 12
        %v8558 = vpop.permute.xlu0 %8557
        %8559 = vrot.lane.b32.xlu0 %v7153, 12
        %v8560 = vpop.permute.xlu0 %8559
        %8561 = vrot.lane.b32.xlu0 %v7289, 12
        %v8562 = vpop.permute.xlu0 %8561
        %8579 = vrot.lane.b32.xlu0 %v6338, 14
        %v8580 = vpop.permute.xlu0 %8579
        %8581 = vrot.lane.b32.xlu0 %v6474, 14
        %v8582 = vpop.permute.xlu0 %8581
        %8583 = vrot.lane.b32.xlu0 %v6610, 14
        %v8584 = vpop.permute.xlu0 %8583
        %8585 = vrot.lane.b32.xlu0 %v6746, 14
        %v8586 = vpop.permute.xlu0 %8585
        %8587 = vrot.lane.b32.xlu0 %v6882, 14
        %v8588 = vpop.permute.xlu0 %8587
        %8589 = vrot.lane.b32.xlu0 %v7018, 14
        %v8590 = vpop.permute.xlu0 %8589
        %8591 = vrot.lane.b32.xlu0 %v7154, 14
        %v8592 = vpop.permute.xlu0 %8591
        %8593 = vrot.lane.b32.xlu0 %v7290, 14
        %v8594 = vpop.permute.xlu0 %8593
        %8611 = vrot.lane.b32.xlu0 %v7419, 16
        %v8612 = vpop.permute.xlu0 %8611
        %8613 = vrot.lane.b32.xlu0 %v7555, 16
        %v8614 = vpop.permute.xlu0 %8613
        %8615 = vrot.lane.b32.xlu0 %v7691, 16
        %v8616 = vpop.permute.xlu0 %8615
        %8617 = vrot.lane.b32.xlu0 %v7827, 16
        %v8618 = vpop.permute.xlu0 %8617
        %8619 = vrot.lane.b32.xlu0 %v7963, 16
        %v8620 = vpop.permute.xlu0 %8619
        %8621 = vrot.lane.b32.xlu0 %v8099, 16
        %v8622 = vpop.permute.xlu0 %8621
        %8623 = vrot.lane.b32.xlu0 %v8235, 16
        %v8624 = vpop.permute.xlu0 %8623
        %8625 = vrot.lane.b32.xlu0 %v8371, 16
        %v8626 = vpop.permute.xlu0 %8625
        %8643 = vrot.lane.b32.xlu0 %v7420, 18
        %v8644 = vpop.permute.xlu0 %8643
        %8645 = vrot.lane.b32.xlu0 %v7556, 18
        %v8646 = vpop.permute.xlu0 %8645
        %8647 = vrot.lane.b32.xlu0 %v7692, 18
        %v8648 = vpop.permute.xlu0 %8647
        %8649 = vrot.lane.b32.xlu0 %v7828, 18
        %v8650 = vpop.permute.xlu0 %8649
        %8651 = vrot.lane.b32.xlu0 %v7964, 18
        %v8652 = vpop.permute.xlu0 %8651
        %8653 = vrot.lane.b32.xlu0 %v8100, 18
        %v8654 = vpop.permute.xlu0 %8653
        %8655 = vrot.lane.b32.xlu0 %v8236, 18
        %v8656 = vpop.permute.xlu0 %8655
        %8657 = vrot.lane.b32.xlu0 %v8372, 18
        %v8658 = vpop.permute.xlu0 %8657
        %8675 = vrot.lane.b32.xlu0 %v7421, 20
        %v8676 = vpop.permute.xlu0 %8675
        %8677 = vrot.lane.b32.xlu0 %v7557, 20
        %v8678 = vpop.permute.xlu0 %8677
        %8679 = vrot.lane.b32.xlu0 %v7693, 20
        %v8680 = vpop.permute.xlu0 %8679
        %8681 = vrot.lane.b32.xlu0 %v7829, 20
        %v8682 = vpop.permute.xlu0 %8681
        %8683 = vrot.lane.b32.xlu0 %v7965, 20
        %v8684 = vpop.permute.xlu0 %8683
        %8685 = vrot.lane.b32.xlu0 %v8101, 20
        %v8686 = vpop.permute.xlu0 %8685
        %8687 = vrot.lane.b32.xlu0 %v8237, 20
        %v8688 = vpop.permute.xlu0 %8687
        %8689 = vrot.lane.b32.xlu0 %v8373, 20
        %v8690 = vpop.permute.xlu0 %8689
        %8707 = vrot.lane.b32.xlu0 %v7422, 22
        %v8708 = vpop.permute.xlu0 %8707
        %8709 = vrot.lane.b32.xlu0 %v7558, 22
        %v8710 = vpop.permute.xlu0 %8709
        %8711 = vrot.lane.b32.xlu0 %v7694, 22
        %v8712 = vpop.permute.xlu0 %8711
        %8713 = vrot.lane.b32.xlu0 %v7830, 22
        %v8714 = vpop.permute.xlu0 %8713
        %8715 = vrot.lane.b32.xlu0 %v7966, 22
        %v8716 = vpop.permute.xlu0 %8715
        %8717 = vrot.lane.b32.xlu0 %v8102, 22
        %v8718 = vpop.permute.xlu0 %8717
        %8719 = vrot.lane.b32.xlu0 %v8238, 22
        %v8720 = vpop.permute.xlu0 %8719
        %8721 = vrot.lane.b32.xlu0 %v8374, 22
        %v8722 = vpop.permute.xlu0 %8721
        %8739 = vrot.lane.b32.xlu0 %v7423, 24
        %v8740 = vpop.permute.xlu0 %8739
        %8741 = vrot.lane.b32.xlu0 %v7559, 24
        %v8742 = vpop.permute.xlu0 %8741
        %8743 = vrot.lane.b32.xlu0 %v7695, 24
        %v8744 = vpop.permute.xlu0 %8743
        %8745 = vrot.lane.b32.xlu0 %v7831, 24
        %v8746 = vpop.permute.xlu0 %8745
        %8747 = vrot.lane.b32.xlu0 %v7967, 24
        %v8748 = vpop.permute.xlu0 %8747
        %8749 = vrot.lane.b32.xlu0 %v8103, 24
        %v8750 = vpop.permute.xlu0 %8749
        %8751 = vrot.lane.b32.xlu0 %v8239, 24
        %v8752 = vpop.permute.xlu0 %8751
        %8753 = vrot.lane.b32.xlu0 %v8375, 24
        %v8754 = vpop.permute.xlu0 %8753
        %8771 = vrot.lane.b32.xlu0 %v7424, 26
        %v8772 = vpop.permute.xlu0 %8771
        %8773 = vrot.lane.b32.xlu0 %v7560, 26
        %v8774 = vpop.permute.xlu0 %8773
        %8775 = vrot.lane.b32.xlu0 %v7696, 26
        %v8776 = vpop.permute.xlu0 %8775
        %8777 = vrot.lane.b32.xlu0 %v7832, 26
        %v8778 = vpop.permute.xlu0 %8777
        %8779 = vrot.lane.b32.xlu0 %v7968, 26
        %v8780 = vpop.permute.xlu0 %8779
        %8781 = vrot.lane.b32.xlu0 %v8104, 26
        %v8782 = vpop.permute.xlu0 %8781
        %8783 = vrot.lane.b32.xlu0 %v8240, 26
        %v8784 = vpop.permute.xlu0 %8783
        %8785 = vrot.lane.b32.xlu0 %v8376, 26
        %v8786 = vpop.permute.xlu0 %8785
        %8803 = vrot.lane.b32.xlu0 %v7425, 28
        %v8804 = vpop.permute.xlu0 %8803
        %8805 = vrot.lane.b32.xlu0 %v7561, 28
        %v8806 = vpop.permute.xlu0 %8805
        %8807 = vrot.lane.b32.xlu0 %v7697, 28
        %v8808 = vpop.permute.xlu0 %8807
        %8809 = vrot.lane.b32.xlu0 %v7833, 28
        %v8810 = vpop.permute.xlu0 %8809
        %8811 = vrot.lane.b32.xlu0 %v7969, 28
        %v8812 = vpop.permute.xlu0 %8811
        %8813 = vrot.lane.b32.xlu0 %v8105, 28
        %v8814 = vpop.permute.xlu0 %8813
        %8815 = vrot.lane.b32.xlu0 %v8241, 28
        %v8816 = vpop.permute.xlu0 %8815
        %8817 = vrot.lane.b32.xlu0 %v8377, 28
        %v8818 = vpop.permute.xlu0 %8817
        %8835 = vrot.lane.b32.xlu0 %v7426, 30
        %v8836 = vpop.permute.xlu0 %8835
        %8837 = vrot.lane.b32.xlu0 %v7562, 30
        %v8838 = vpop.permute.xlu0 %8837
        %8839 = vrot.lane.b32.xlu0 %v7698, 30
        %v8840 = vpop.permute.xlu0 %8839
        %8841 = vrot.lane.b32.xlu0 %v7834, 30
        %v8842 = vpop.permute.xlu0 %8841
        %8843 = vrot.lane.b32.xlu0 %v7970, 30
        %v8844 = vpop.permute.xlu0 %8843
        %8845 = vrot.lane.b32.xlu0 %v8106, 30
        %v8846 = vpop.permute.xlu0 %8845
        %8847 = vrot.lane.b32.xlu0 %v8242, 30
        %v8848 = vpop.permute.xlu0 %8847
        %8849 = vrot.lane.b32.xlu0 %v8378, 30
        %v8850 = vpop.permute.xlu0 %8849
        %v8859 = vsel %vm6059, %v6331, %v8388
        %v8860 = vsel %vm6059, %v6467, %v8390
        %v8861 = vsel %vm6059, %v6603, %v8392
        %v8862 = vsel %vm6059, %v6739, %v8394
        %v8863 = vsel %vm6059, %v6875, %v8396
        %v8864 = vsel %vm6059, %v7011, %v8398
        %v8865 = vsel %vm6059, %v7147, %v8400
        %v8866 = vsel %vm6059, %v7283, %v8402
        %v8867 = vsel %vm6068, %v8859, %v8420
        %v8868 = vsel %vm6068, %v8860, %v8422
        %v8869 = vsel %vm6068, %v8861, %v8424
        %v8870 = vsel %vm6068, %v8862, %v8426
        %v8871 = vsel %vm6068, %v8863, %v8428
        %v8872 = vsel %vm6068, %v8864, %v8430
        %v8873 = vsel %vm6068, %v8865, %v8432
        %v8874 = vsel %vm6068, %v8866, %v8434
        %v8875 = vsel %vm6077, %v8867, %v8452
        %v8876 = vsel %vm6077, %v8868, %v8454
        %v8877 = vsel %vm6077, %v8869, %v8456
        %v8878 = vsel %vm6077, %v8870, %v8458
        %v8879 = vsel %vm6077, %v8871, %v8460
        %v8880 = vsel %vm6077, %v8872, %v8462
        %v8881 = vsel %vm6077, %v8873, %v8464
        %v8882 = vsel %vm6077, %v8874, %v8466
        %v8883 = vsel %vm6086, %v8875, %v8484
        %v8884 = vsel %vm6086, %v8876, %v8486
        %v8885 = vsel %vm6086, %v8877, %v8488
        %v8886 = vsel %vm6086, %v8878, %v8490
        %v8887 = vsel %vm6086, %v8879, %v8492
        %v8888 = vsel %vm6086, %v8880, %v8494
        %v8889 = vsel %vm6086, %v8881, %v8496
        %v8890 = vsel %vm6086, %v8882, %v8498
        %v8891 = vsel %vm6095, %v8883, %v8516
        %v8892 = vsel %vm6095, %v8884, %v8518
        %v8893 = vsel %vm6095, %v8885, %v8520
        %v8894 = vsel %vm6095, %v8886, %v8522
        %v8895 = vsel %vm6095, %v8887, %v8524
        %v8896 = vsel %vm6095, %v8888, %v8526
        %v8897 = vsel %vm6095, %v8889, %v8528
        %v8898 = vsel %vm6095, %v8890, %v8530
        %v8899 = vsel %vm6104, %v8891, %v8548
        %v8900 = vsel %vm6104, %v8892, %v8550
        %v8901 = vsel %vm6104, %v8893, %v8552
        %v8902 = vsel %vm6104, %v8894, %v8554
        %v8903 = vsel %vm6104, %v8895, %v8556
        %v8904 = vsel %vm6104, %v8896, %v8558
        %v8905 = vsel %vm6104, %v8897, %v8560
        %v8906 = vsel %vm6104, %v8898, %v8562
        %v8907 = vsel %vm6113, %v8899, %v8580
        %v8908 = vsel %vm6113, %v8900, %v8582
        %v8909 = vsel %vm6113, %v8901, %v8584
        %v8910 = vsel %vm6113, %v8902, %v8586
        %v8911 = vsel %vm6113, %v8903, %v8588
        %v8912 = vsel %vm6113, %v8904, %v8590
        %v8913 = vsel %vm6113, %v8905, %v8592
        %v8914 = vsel %vm6113, %v8906, %v8594
        %v8915 = vsel %vm6122, %v8907, %v8612
        %v8916 = vsel %vm6122, %v8908, %v8614
        %v8917 = vsel %vm6122, %v8909, %v8616
        %v8918 = vsel %vm6122, %v8910, %v8618
        %v8919 = vsel %vm6122, %v8911, %v8620
        %v8920 = vsel %vm6122, %v8912, %v8622
        %v8921 = vsel %vm6122, %v8913, %v8624
        %v8922 = vsel %vm6122, %v8914, %v8626
        %v8923 = vsel %vm6131, %v8915, %v8644
        %v8924 = vsel %vm6131, %v8916, %v8646
        %v8925 = vsel %vm6131, %v8917, %v8648
        %v8926 = vsel %vm6131, %v8918, %v8650
        %v8927 = vsel %vm6131, %v8919, %v8652
        %v8928 = vsel %vm6131, %v8920, %v8654
        %v8929 = vsel %vm6131, %v8921, %v8656
        %v8930 = vsel %vm6131, %v8922, %v8658
        %v8931 = vsel %vm6140, %v8923, %v8676
        %v8932 = vsel %vm6140, %v8924, %v8678
        %v8933 = vsel %vm6140, %v8925, %v8680
        %v8934 = vsel %vm6140, %v8926, %v8682
        %v8935 = vsel %vm6140, %v8927, %v8684
        %v8936 = vsel %vm6140, %v8928, %v8686
        %v8937 = vsel %vm6140, %v8929, %v8688
        %v8938 = vsel %vm6140, %v8930, %v8690
        %v8939 = vsel %vm6149, %v8931, %v8708
        %v8940 = vsel %vm6149, %v8932, %v8710
        %v8941 = vsel %vm6149, %v8933, %v8712
        %v8942 = vsel %vm6149, %v8934, %v8714
        %v8943 = vsel %vm6149, %v8935, %v8716
        %v8944 = vsel %vm6149, %v8936, %v8718
        %v8945 = vsel %vm6149, %v8937, %v8720
        %v8946 = vsel %vm6149, %v8938, %v8722
        %v8947 = vsel %vm6158, %v8939, %v8740
        %v8948 = vsel %vm6158, %v8940, %v8742
        %v8949 = vsel %vm6158, %v8941, %v8744
        %v8950 = vsel %vm6158, %v8942, %v8746
        %v8951 = vsel %vm6158, %v8943, %v8748
        %v8952 = vsel %vm6158, %v8944, %v8750
        %v8953 = vsel %vm6158, %v8945, %v8752
        %v8954 = vsel %vm6158, %v8946, %v8754
        %v8955 = vsel %vm6167, %v8947, %v8772
        %v8956 = vsel %vm6167, %v8948, %v8774
        %v8957 = vsel %vm6167, %v8949, %v8776
        %v8958 = vsel %vm6167, %v8950, %v8778
        %v8959 = vsel %vm6167, %v8951, %v8780
        %v8960 = vsel %vm6167, %v8952, %v8782
        %v8961 = vsel %vm6167, %v8953, %v8784
        %v8962 = vsel %vm6167, %v8954, %v8786
        %v8963 = vsel %vm6176, %v8955, %v8804
        %v8964 = vsel %vm6176, %v8956, %v8806
        %v8965 = vsel %vm6176, %v8957, %v8808
        %v8966 = vsel %vm6176, %v8958, %v8810
        %v8967 = vsel %vm6176, %v8959, %v8812
        %v8968 = vsel %vm6176, %v8960, %v8814
        %v8969 = vsel %vm6176, %v8961, %v8816
        %v8970 = vsel %vm6176, %v8962, %v8818
        %v8971 = vsel %vm6185, %v8963, %v8836
        %v8972 = vsel %vm6185, %v8964, %v8838
        %v8973 = vsel %vm6185, %v8965, %v8840
        %v8974 = vsel %vm6185, %v8966, %v8842
        %v8975 = vsel %vm6185, %v8967, %v8844
        %v8976 = vsel %vm6185, %v8968, %v8846
        %v8977 = vsel %vm6185, %v8969, %v8848
        %v8978 = vsel %vm6185, %v8970, %v8850
        %8987 = vrot.lane.b32.xlu0 %v8971, 32
        %v8988 = vpop.permute.xlu0 %8987
        %8989 = vrot.lane.b32.xlu0 %v8972, 32
        %v8990 = vpop.permute.xlu0 %8989
        %8991 = vrot.lane.b32.xlu0 %v8973, 32
        %v8992 = vpop.permute.xlu0 %8991
        %8993 = vrot.lane.b32.xlu0 %v8974, 32
        %v8994 = vpop.permute.xlu0 %8993
        %8995 = vrot.lane.b32.xlu0 %v8975, 32
        %v8996 = vpop.permute.xlu0 %8995
        %8997 = vrot.lane.b32.xlu0 %v8976, 32
        %v8998 = vpop.permute.xlu0 %8997
        %8999 = vrot.lane.b32.xlu0 %v8977, 32
        %v9000 = vpop.permute.xlu0 %8999
        %9001 = vrot.lane.b32.xlu0 %v8978, 32
        %v9002 = vpop.permute.xlu0 %9001
        %vm9011 = vcmask 523520
        %9012 = vst.msk [vmem:[%s292] sm:$0xff] %vm9011, %v8988
        %9013 = vst.msk [vmem:[%s292 + $0x8] sm:$0xff] %vm9011, %v8990
        %9014 = vst.msk [vmem:[%s292 + $0x10] sm:$0xff] %vm9011, %v8992
        %9015 = vst.msk [vmem:[%s292 + $0x18] sm:$0xff] %vm9011, %v8994
        %9016 = vst.msk [vmem:[%s292 + $0x20] sm:$0xff] %vm9011, %v8996
        %9017 = vst.msk [vmem:[%s292 + $0x28] sm:$0xff] %vm9011, %v8998
        %9018 = vst.msk [vmem:[%s292 + $0x30] sm:$0xff] %vm9011, %v9000
        %9019 = vst.msk [vmem:[%s292 + $0x38] sm:$0xff] %vm9011, %v9002
        %s9020 = sand.u32 %s65, 1
        %s9021 = scalar_lea.sflag [#allocation4], %s9020
        %s9022 = sand.u32 %s65, 1
        %s9023 = smul.addr %s9022, 64
        %s9024 = scalar_lea.vmem [#allocation3], %s9023
        // Predicated region
        $region63: #{tpu_custom_call.1} parent=57 // pred_check
          %p9025 = pneg %p75
        $region64: #{tpu_custom_call.1} parent=57 // pred_check_branch
          %9027 = sbr.rel (%p9025) target = $region66
        $region65: #{tpu_custom_call.1} parent=57 // pred_region
          %s9028 = smul.u32 8, %s20
          %s9030 = ssub.s32 1024, 1024
          %9031 = vsyncadd %s9021, %s9030
          %s9032 = smul.addr %s19, 8
          %s9033 = sadd.s32 %s9028, %s9032
          %s9034 = smul.addr %s9033, 128
          %s9035 = scalar_lea.hbm %s1, %s9034
          %s9036 = sshll.u32 %s9024, 4
          %s9037 = int_to_ptr.vmem [resolvable:$true] %s9036
          %9042 = dma.vmem_to_hbm [thread:$0]  %s9037, 1024, %s9035, %s9021, 128, 128, 8
        $region66: #{tpu_custom_call.1} parent=57 // pred_fallthru
          _
      $region58: #{tpu_custom_call.1} parent=5 // pred_fallthru
        _
      %p9043 = scmp.le.s32.totalorder 2, %s10
      // Predicated region
      $region67: #{tpu_custom_call.1} parent=5 // pred_check
        %p9044 = pneg %p9043
      $region68: #{tpu_custom_call.1} parent=5 // pred_check_branch
        %9046 = sbr.rel (%p9044) target = $region70
      $region69: #{tpu_custom_call.1} parent=5 // pred_region
        %s9047 = ssub.s32 %s10, 2
        // Predicated region
        $region71: #{tpu_custom_call.1} parent=69 // pred_check
          %p9048 = pneg %p81
        $region72: #{tpu_custom_call.1} parent=69 // pred_check_branch
          %9050 = sbr.rel (%p9048) target = $region74
        $region73: #{tpu_custom_call.1} parent=69 // pred_region
          %s9051 = sand.u32 %s66, 1
          %s9052 = scalar_lea.sflag [#allocation4], %s9051
          %s9053 = sand.u32 %s66, 1
          %s9054 = smul.addr %s9053, 64
          %s9055 = scalar_lea.vmem [#allocation3], %s9054
          %9056 = dma.done %s9052, 1024
        $region74: #{tpu_custom_call.1} parent=69 // pred_fallthru
          _
      $region70: #{tpu_custom_call.1} parent=5 // pred_fallthru
        _
    $region6: #{tpu_custom_call.1} parent=1 // loop_footer
      %s14 = sadd.s32 1, %s10
    $region7: #{tpu_custom_call.1} parent=1 // loop_footer_branch
      %9 = sbr.rel target = $region3
    $region8: #{tpu_custom_call.1} parent=1 // loop_exit
      _
    %9057 = vsyncpa [#allocation4], 1
    %s9058 = scalar_lea.sflag [#allocation4], 1
    %9059 = vsyncpa %s9058, 1

</llo_original>
